<compile_context>
chip_gen: v6e
topology: v6e:2x2x1
jax: 0.10.0
libtpu: 0.0.40
codegen_flags: <defaults>
</compile_context>

<pallas_src>
import functools

import jax
import jax.numpy as jnp
from jax.experimental import pallas as pl
from jax.experimental.pallas import tpu as pltpu

EPS = 1e-5
LANES = 128


def _round_up(x, m):
    return (x + m - 1) // m * m


# ------------------------------ Pallas kernels -------------------------------
def _conv3x3_stats_kernel(*refs, h, w, pre_act):
    """[optional folded-BN + ReLU pre-activation] -> 3x3 conv via 9 shifted
    MXU matmuls -> per-channel sum / sum-of-squares accumulated across the
    batch grid (for training-mode BatchNorm)."""
    if pre_act:
        (x_ref, scale_ref, shift_ref, w_ref,
         out_ref, sum_ref, ssq_ref, xpad_ref) = refs
    else:
        x_ref, w_ref, out_ref, sum_ref, ssq_ref, xpad_ref = refs
        scale_ref = shift_ref = None

    cp_in = x_ref.shape[-1]
    cp_out = w_ref.shape[-1]

    # Init the cross-grid stats accumulators (resident output blocks).
    @pl.when(pl.program_id(0) == 0)
    def _():
        sum_ref[...] = jnp.zeros_like(sum_ref)
        ssq_ref[...] = jnp.zeros_like(ssq_ref)

    x = x_ref[0]                                   # [H*W, Cin] f32
    if pre_act:
        x = x * scale_ref[...] + shift_ref[...]    # folded BN: single FMA
        x = jnp.maximum(x, 0.0)                    # ReLU

    # Spatial zero-padding (padding=1) into VMEM scratch; no HBM im2col.
    xpad_ref[...] = jnp.zeros_like(xpad_ref)
    xpad_ref[pl.ds(1, h), pl.ds(1, w), :] = x.reshape(h, w, cp_in)

    # Conv as 9 shifted matmuls: bf16 operands, f32 accumulation on the MXU.
    acc = jnp.zeros((h * w, cp_out), jnp.float32)
    for kh in range(3):
        for kw in range(3):
            slab = xpad_ref[pl.ds(kh, h), pl.ds(kw, w), :]
            slab = slab.reshape(h * w, cp_in).astype(jnp.bfloat16)
            acc = acc + jnp.dot(slab, w_ref[kh * 3 + kw],
                                preferred_element_type=jnp.float32)

    out_ref[0] = acc
    sum_ref[...] += jnp.sum(acc, axis=0, keepdims=True)
    ssq_ref[...] += jnp.sum(acc * acc, axis=0, keepdims=True)


def _bn_residual_relu_kernel(conv_ref, scale_ref, shift_ref, res_ref, out_ref):
    """out = relu(conv * scale + shift + residual)  (folded-BN epilogue)."""
    y = conv_ref[0] * scale_ref[...] + shift_ref[...] + res_ref[0]
    out_ref[0] = jnp.maximum(y, 0.0)


# ---------------------------- pallas_call wrappers ----------------------------
def _conv3x3_bn_stats(x, wk, scale=None, shift=None, *, n, h, w):
    """x: [N, H*W, Cp_in] f32, wk: [9, Cp_in, Cp_out] bf16 ->
       (conv [N, H*W, Cp_out] f32, sum [1, Cp_out], sumsq [1, Cp_out])."""
    hw = h * w
    cp_in = x.shape[-1]
    cp_out = wk.shape[-1]
    pre_act = scale is not None

    args = [x]
    in_specs = [pl.BlockSpec((1, hw, cp_in), lambda i: (i, 0, 0))]
    if pre_act:
        args += [scale, shift]
        in_specs += [pl.BlockSpec((1, cp_in), lambda i: (0, 0))] * 2
    args.append(wk)
    in_specs.append(pl.BlockSpec((9, cp_in, cp_out), lambda i: (0, 0, 0)))

    kernel = functools.partial(_conv3x3_stats_kernel, h=h, w=w, pre_act=pre_act)
    return pl.pallas_call(
        kernel,
        grid=(n,),
        in_specs=in_specs,
        out_specs=(
            pl.BlockSpec((1, hw, cp_out), lambda i: (i, 0, 0)),
            pl.BlockSpec((1, cp_out), lambda i: (0, 0)),   # resident accumulator
            pl.BlockSpec((1, cp_out), lambda i: (0, 0)),   # resident accumulator
        ),
        out_shape=(
            jax.ShapeDtypeStruct((n, hw, cp_out), jnp.float32),
            jax.ShapeDtypeStruct((1, cp_out), jnp.float32),
            jax.ShapeDtypeStruct((1, cp_out), jnp.float32),
        ),
        scratch_shapes=[pltpu.VMEM((h + 2, w + 2, cp_in), jnp.float32)],
        compiler_params=pltpu.CompilerParams(
            dimension_semantics=("arbitrary",)),   # stats reduce across batch
    )(*args)


def _bn_residual_relu(conv, scale, shift, res, *, n, hw, cp):
    return pl.pallas_call(
        _bn_residual_relu_kernel,
        grid=(n,),
        in_specs=[
            pl.BlockSpec((1, hw, cp), lambda i: (i, 0, 0)),
            pl.BlockSpec((1, cp), lambda i: (0, 0)),
            pl.BlockSpec((1, cp), lambda i: (0, 0)),
            pl.BlockSpec((1, hw, cp), lambda i: (i, 0, 0)),
        ],
        out_specs=pl.BlockSpec((1, hw, cp), lambda i: (i, 0, 0)),
        out_shape=jax.ShapeDtypeStruct((n, hw, cp), jnp.float32),
        compiler_params=pltpu.CompilerParams(
            dimension_semantics=("parallel",)),    # megacore-shardable (v7x)
    )(conv, scale, shift, res)


# -------------------------------- JAX glue ------------------------------------
def _pad_last(a, target):
    pad = target - a.shape[-1]
    if pad == 0:
        return a
    cfg = [(0, 0)] * (a.ndim - 1) + [(0, pad)]
    return jnp.pad(a, cfg)


def _bn_fold(s, ssq, gamma, beta, m):
    """Fold training-mode BatchNorm into a per-channel scale/shift FMA."""
    mean = s / m
    var = jnp.maximum(ssq / m - mean * mean, 0.0)   # biased variance
    scale = gamma * jax.lax.rsqrt(var + EPS)
    shift = beta - mean * scale
    return scale, shift


def basic_block_forward(x_nchw, params):
    """BasicBlock forward. x_nchw: [N, C, H, W] f32 -> [N, C, H, W] f32."""
    w1, g1, b1, w2, g2, b2 = params          # w*: HWIO [3,3,C,C]; g/b: [1,C]
    n, c, h, w = x_nchw.shape
    hw = h * w
    m = n * hw
    cp = _round_up(c, LANES)                  # lane-dense channel padding

    x_nhwc = jnp.transpose(x_nchw, (0, 2, 3, 1)).astype(jnp.float32)
    x_flat = _pad_last(x_nhwc.reshape(n, hw, c), cp)          # [N, HW, Cp]

    def prep_w(wk):                            # [3,3,C,C] -> [9, Cp, Cp] bf16
        wk = jnp.pad(wk, ((0, 0), (0, 0), (0, cp - c), (0, cp - c)))
        return wk.reshape(9, cp, cp).astype(jnp.bfloat16)

    w1p, w2p = prep_w(w1), prep_w(w2)
    g1p, b1p = _pad_last(g1, cp), _pad_last(b1, cp)
    g2p, b2p = _pad_last(g2, cp), _pad_last(b2, cp)

    # conv1 + batch statistics
    conv1, s1, q1 = _conv3x3_bn_stats(x_flat, w1p, n=n, h=h, w=w)
    scale1, shift1 = _bn_fold(s1, q1, g1p, b1p, m)

    # relu(bn1) fused as pre-activation of conv2 + batch statistics
    conv2, s2, q2 = _conv3x3_bn_stats(conv1, w2p, scale1, shift1, n=n, h=h, w=w)
    scale2, shift2 = _bn_fold(s2, q2, g2p, b2p, m)

    # bn2 + residual + relu epilogue (identity valid: inplanes==planes, stride=1)
    out = _bn_residual_relu(conv2, scale2, shift2, x_flat, n=n, hw=hw, cp=cp)

    out = out[:, :, :c].reshape(n, h, w, c)
    return jnp.transpose(out, (0, 3, 1, 2))


# ---------------------------- pure-JAX reference ------------------------------
def _reference_forward(x_nchw, params):
    w1, g1, b1, w2, g2, b2 = params
    x = jnp.transpose(x_nchw, (0, 2, 3, 1)).astype(jnp.float32)   # NHWC

    def conv3x3(x_nhwc, w_hwio):
        return jax.lax.conv_general_dilated(
            x_nhwc, w_hwio, window_strides=(1, 1), padding="SAME",
            dimension_numbers=("NHWC", "HWIO", "NHWC"))

    def bn_train(y, g, b):
        mean = jnp.mean(y, axis=(0, 1, 2), keepdims=True)
        var = jnp.mean(jnp.square(y - mean), axis=(0, 1, 2), keepdims=True)
        return (y - mean) * jax.lax.rsqrt(var + EPS) * g.reshape(1, 1, 1, -1) \
            + b.reshape(1, 1, 1, -1)

    out = jax.nn.relu(bn_train(conv3x3(x, w1), g1, b1))
    out = bn_train(conv3x3(out, w2), g2, b2)
    out = jax.nn.relu(out + x)
    return jnp.transpose(out, (0, 3, 1, 2))


# ----------------------------------- main --------------------------------------
if __name__ == "__main__":
    # Small shapes consistent with BasicBlock(inplanes=4, planes=4, stride=1)
    N, C, H, W = 2, 4, 16, 16
    key = jax.random.PRNGKey(0)
    kx, k1, k2 = jax.random.split(key, 3)

    x = jax.random.normal(kx, (N, C, H, W), dtype=jnp.float32)

    # Deterministic parameter init (HWIO conv weights, affine BN params).
    w1 = 0.2 * jax.random.normal(k1, (3, 3, C, C), dtype=jnp.float32)
    w2 = 0.2 * jax.random.normal(k2, (3, 3, C, C), dtype=jnp.float32)
    g1 = (1.0 + 0.1 * jnp.arange(C, dtype=jnp.float32)).reshape(1, C)
    b1 = (0.05 * jnp.arange(C, dtype=jnp.float32)).reshape(1, C)
    g2 = (1.0 - 0.05 * jnp.arange(C, dtype=jnp.float32)).reshape(1, C)
    b2 = (-0.02 * jnp.arange(C, dtype=jnp.float32)).reshape(1, C)
    params = (w1, g1, b1, w2, g2, b2)

    out = jax.block_until_ready(jax.jit(basic_block_forward)(x, params))
    ref = jax.block_until_ready(_reference_forward(x, params))

    assert out.shape == (N, C, H, W), out.shape
    # Tolerance deliberately relaxed vs. the f32 reference: the GEMM operands
    # are cast to bf16 for native MXU throughput (f32 accumulation is kept).
    max_err = float(jnp.max(jnp.abs(out - ref)))
    assert jnp.allclose(out, ref, atol=3e-2, rtol=3e-2), max_err
    print("KERNEL_OK")
</pallas_src>

<mosaic_0001>
module attributes {stable_mosaic.version = 11 : i64} {
  func.func @_conv3x3_stats_kernel(%arg0: i32, %arg1: memref<1x256x128xf32, #tpu.memory_space<vmem>>, %arg2: memref<9x128x128xbf16, #tpu.memory_space<vmem>>, %arg3: memref<1x256x128xf32, #tpu.memory_space<vmem>>, %arg4: memref<1x128xf32, #tpu.memory_space<vmem>>, %arg5: memref<1x128xf32, #tpu.memory_space<vmem>>, %arg6: memref<18x18x128xf32, #tpu.memory_space<vmem>>) attributes {dimension_semantics = [#tpu.dimension_semantics<arbitrary>], iteration_bounds = array<i64: 2>, scalar_prefetch = 0 : i64, scratch_operands = 1 : i64, tpu.core_type = #tpu.core_type<tc>, window_params = [{transform_indices = @transform_0, window_bounds = array<i64: 1, 256, 128>}, {pipeline_mode = #tpu.pipeline_mode<synchronous>, transform_indices = @transform_1, window_bounds = array<i64: 9, 128, 128>}, {transform_indices = @transform_2, window_bounds = array<i64: 1, 256, 128>}, {pipeline_mode = #tpu.pipeline_mode<synchronous>, transform_indices = @transform_3, window_bounds = array<i64: 1, 128>}, {pipeline_mode = #tpu.pipeline_mode<synchronous>, transform_indices = @transform_4, window_bounds = array<i64: 1, 128>}]} {
    %c0_i32 = arith.constant 0 : i32
    %0 = arith.cmpi eq, %arg0, %c0_i32 : i32
    %1 = arith.extui %0 : i1 to i32
    %c0_i32_0 = arith.constant 0 : i32
    %2 = arith.cmpi ne, %1, %c0_i32_0 : i32
    scf.if %2 {
      %cst_78 = arith.constant 0.000000e+00 : f32
      %87 = vector.broadcast %cst_78 : f32 to vector<1x128xf32>
      %c0_79 = arith.constant 0 : index
      %c0_80 = arith.constant 0 : index
      %88 = vector.load %arg4[%c0_79, %c0_80] : memref<1x128xf32, #tpu.memory_space<vmem>>, vector<1x128xf32>
      tpu.vector_store %arg4[%c0_79, %c0_80], %87 {strides = array<i32>} : memref<1x128xf32, #tpu.memory_space<vmem>>, vector<1x128xf32>,
      %cst_81 = arith.constant 0.000000e+00 : f32
      %89 = vector.broadcast %cst_81 : f32 to vector<1x128xf32>
      %c0_82 = arith.constant 0 : index
      %c0_83 = arith.constant 0 : index
      %90 = vector.load %arg5[%c0_82, %c0_83] : memref<1x128xf32, #tpu.memory_space<vmem>>, vector<1x128xf32>
      tpu.vector_store %arg5[%c0_82, %c0_83], %89 {strides = array<i32>} : memref<1x128xf32, #tpu.memory_space<vmem>>, vector<1x128xf32>,
    } else {
    }
    %c0 = arith.constant 0 : index
    %c0_1 = arith.constant 0 : index
    %c0_2 = arith.constant 0 : index
    %3 = vector.load %arg1[%c0, %c0_1, %c0_2] : memref<1x256x128xf32, #tpu.memory_space<vmem>>, vector<1x256x128xf32>
    %4 = vector.shape_cast %3 : vector<1x256x128xf32> to vector<256x128xf32>
    %cst = arith.constant 0.000000e+00 : f32
    %5 = vector.broadcast %cst : f32 to vector<18x18x128xf32>
    %c0_3 = arith.constant 0 : index
    %c0_4 = arith.constant 0 : index
    %c0_5 = arith.constant 0 : index
    %6 = vector.load %arg6[%c0_3, %c0_4, %c0_5] : memref<18x18x128xf32, #tpu.memory_space<vmem>>, vector<18x18x128xf32>
    tpu.vector_store %arg6[%c0_3, %c0_4, %c0_5], %5 {strides = array<i32>} : memref<18x18x128xf32, #tpu.memory_space<vmem>>, vector<18x18x128xf32>,
    %7 = vector.shape_cast %4 : vector<256x128xf32> to vector<16x16x128xf32>
    %c1 = arith.constant 1 : index
    %c1_6 = arith.constant 1 : index
    %c0_7 = arith.constant 0 : index
    %8 = vector.load %arg6[%c1, %c1_6, %c0_7] : memref<18x18x128xf32, #tpu.memory_space<vmem>>, vector<16x16x128xf32>
    tpu.vector_store %arg6[%c1, %c1_6, %c0_7], %7 {strides = array<i32>} : memref<18x18x128xf32, #tpu.memory_space<vmem>>, vector<16x16x128xf32>,
    %cst_8 = arith.constant 0.000000e+00 : f32
    %9 = vector.broadcast %cst_8 : f32 to vector<256x128xf32>
    %c0_9 = arith.constant 0 : index
    %c0_10 = arith.constant 0 : index
    %c0_11 = arith.constant 0 : index
    %10 = vector.load %arg6[%c0_9, %c0_10, %c0_11] : memref<18x18x128xf32, #tpu.memory_space<vmem>>, vector<16x16x128xf32>
    %11 = vector.shape_cast %10 : vector<16x16x128xf32> to vector<256x128xf32>
    %12 = arith.truncf %11 : vector<256x128xf32> to vector<256x128xbf16>
    %c0_12 = arith.constant 0 : index
    %c0_13 = arith.constant 0 : index
    %c0_14 = arith.constant 0 : index
    %13 = vector.load %arg2[%c0_12, %c0_13, %c0_14] : memref<9x128x128xbf16, #tpu.memory_space<vmem>>, vector<1x128x128xbf16>
    %14 = vector.shape_cast %13 : vector<1x128x128xbf16> to vector<128x128xbf16>
    %cst_15 = arith.constant dense<0.000000e+00> : vector<256x128xf32>
    %15 = tpu.matmul %12, %14, %cst_15 {dimension_numbers = #tpu.dot_dimension_numbers<[1], [0], [0], [1], [0, 0, 1, 1], [], []>} : vector<256x128xbf16>, vector<128x128xbf16>, vector<256x128xf32> -> vector<256x128xf32>
    %16 = arith.addf %9, %15 : vector<256x128xf32>
    %c0_16 = arith.constant 0 : index
    %c1_17 = arith.constant 1 : index
    %c0_18 = arith.constant 0 : index
    %17 = vector.load %arg6[%c0_16, %c1_17, %c0_18] : memref<18x18x128xf32, #tpu.memory_space<vmem>>, vector<16x16x128xf32>
    %18 = vector.shape_cast %17 : vector<16x16x128xf32> to vector<256x128xf32>
    %19 = arith.truncf %18 : vector<256x128xf32> to vector<256x128xbf16>
    %c1_19 = arith.constant 1 : index
    %c0_20 = arith.constant 0 : index
    %c0_21 = arith.constant 0 : index
    %20 = vector.load %arg2[%c1_19, %c0_20, %c0_21] : memref<9x128x128xbf16, #tpu.memory_space<vmem>>, vector<1x128x128xbf16>
    %21 = vector.shape_cast %20 : vector<1x128x128xbf16> to vector<128x128xbf16>
    %cst_22 = arith.constant dense<0.000000e+00> : vector<256x128xf32>
    %22 = tpu.matmul %19, %21, %cst_22 {dimension_numbers = #tpu.dot_dimension_numbers<[1], [0], [0], [1], [0, 0, 1, 1], [], []>} : vector<256x128xbf16>, vector<128x128xbf16>, vector<256x128xf32> -> vector<256x128xf32>
    %23 = arith.addf %16, %22 : vector<256x128xf32>
    %c0_23 = arith.constant 0 : index
    %c2 = arith.constant 2 : index
    %c0_24 = arith.constant 0 : index
    %24 = vector.load %arg6[%c0_23, %c2, %c0_24] : memref<18x18x128xf32, #tpu.memory_space<vmem>>, vector<16x16x128xf32>
    %25 = vector.shape_cast %24 : vector<16x16x128xf32> to vector<256x128xf32>
    %26 = arith.truncf %25 : vector<256x128xf32> to vector<256x128xbf16>
    %c2_25 = arith.constant 2 : index
    %c0_26 = arith.constant 0 : index
    %c0_27 = arith.constant 0 : index
    %27 = vector.load %arg2[%c2_25, %c0_26, %c0_27] : memref<9x128x128xbf16, #tpu.memory_space<vmem>>, vector<1x128x128xbf16>
    %28 = vector.shape_cast %27 : vector<1x128x128xbf16> to vector<128x128xbf16>
    %cst_28 = arith.constant dense<0.000000e+00> : vector<256x128xf32>
    %29 = tpu.matmul %26, %28, %cst_28 {dimension_numbers = #tpu.dot_dimension_numbers<[1], [0], [0], [1], [0, 0, 1, 1], [], []>} : vector<256x128xbf16>, vector<128x128xbf16>, vector<256x128xf32> -> vector<256x128xf32>
    %30 = arith.addf %23, %29 : vector<256x128xf32>
    %c1_29 = arith.constant 1 : index
    %c0_30 = arith.constant 0 : index
    %c0_31 = arith.constant 0 : index
    %31 = vector.load %arg6[%c1_29, %c0_30, %c0_31] : memref<18x18x128xf32, #tpu.memory_space<vmem>>, vector<16x16x128xf32>
    %32 = vector.shape_cast %31 : vector<16x16x128xf32> to vector<256x128xf32>
    %33 = arith.truncf %32 : vector<256x128xf32> to vector<256x128xbf16>
    %c3 = arith.constant 3 : index
    %c0_32 = arith.constant 0 : index
    %c0_33 = arith.constant 0 : index
    %34 = vector.load %arg2[%c3, %c0_32, %c0_33] : memref<9x128x128xbf16, #tpu.memory_space<vmem>>, vector<1x128x128xbf16>
    %35 = vector.shape_cast %34 : vector<1x128x128xbf16> to vector<128x128xbf16>
    %cst_34 = arith.constant dense<0.000000e+00> : vector<256x128xf32>
    %36 = tpu.matmul %33, %35, %cst_34 {dimension_numbers = #tpu.dot_dimension_numbers<[1], [0], [0], [1], [0, 0, 1, 1], [], []>} : vector<256x128xbf16>, vector<128x128xbf16>, vector<256x128xf32> -> vector<256x128xf32>
    %37 = arith.addf %30, %36 : vector<256x128xf32>
    %c1_35 = arith.constant 1 : index
    %c1_36 = arith.constant 1 : index
    %c0_37 = arith.constant 0 : index
    %38 = vector.load %arg6[%c1_35, %c1_36, %c0_37] : memref<18x18x128xf32, #tpu.memory_space<vmem>>, vector<16x16x128xf32>
    %39 = vector.shape_cast %38 : vector<16x16x128xf32> to vector<256x128xf32>
    %40 = arith.truncf %39 : vector<256x128xf32> to vector<256x128xbf16>
    %c4 = arith.constant 4 : index
    %c0_38 = arith.constant 0 : index
    %c0_39 = arith.constant 0 : index
    %41 = vector.load %arg2[%c4, %c0_38, %c0_39] : memref<9x128x128xbf16, #tpu.memory_space<vmem>>, vector<1x128x128xbf16>
    %42 = vector.shape_cast %41 : vector<1x128x128xbf16> to vector<128x128xbf16>
    %cst_40 = arith.constant dense<0.000000e+00> : vector<256x128xf32>
    %43 = tpu.matmul %40, %42, %cst_40 {dimension_numbers = #tpu.dot_dimension_numbers<[1], [0], [0], [1], [0, 0, 1, 1], [], []>} : vector<256x128xbf16>, vector<128x128xbf16>, vector<256x128xf32> -> vector<256x128xf32>
    %44 = arith.addf %37, %43 : vector<256x128xf32>
    %c1_41 = arith.constant 1 : index
    %c2_42 = arith.constant 2 : index
    %c0_43 = arith.constant 0 : index
    %45 = vector.load %arg6[%c1_41, %c2_42, %c0_43] : memref<18x18x128xf32, #tpu.memory_space<vmem>>, vector<16x16x128xf32>
    %46 = vector.shape_cast %45 : vector<16x16x128xf32> to vector<256x128xf32>
    %47 = arith.truncf %46 : vector<256x128xf32> to vector<256x128xbf16>
    %c5 = arith.constant 5 : index
    %c0_44 = arith.constant 0 : index
    %c0_45 = arith.constant 0 : index
    %48 = vector.load %arg2[%c5, %c0_44, %c0_45] : memref<9x128x128xbf16, #tpu.memory_space<vmem>>, vector<1x128x128xbf16>
    %49 = vector.shape_cast %48 : vector<1x128x128xbf16> to vector<128x128xbf16>
    %cst_46 = arith.constant dense<0.000000e+00> : vector<256x128xf32>
    %50 = tpu.matmul %47, %49, %cst_46 {dimension_numbers = #tpu.dot_dimension_numbers<[1], [0], [0], [1], [0, 0, 1, 1], [], []>} : vector<256x128xbf16>, vector<128x128xbf16>, vector<256x128xf32> -> vector<256x128xf32>
    %51 = arith.addf %44, %50 : vector<256x128xf32>
    %c2_47 = arith.constant 2 : index
    %c0_48 = arith.constant 0 : index
    %c0_49 = arith.constant 0 : index
    %52 = vector.load %arg6[%c2_47, %c0_48, %c0_49] : memref<18x18x128xf32, #tpu.memory_space<vmem>>, vector<16x16x128xf32>
    %53 = vector.shape_cast %52 : vector<16x16x128xf32> to vector<256x128xf32>
    %54 = arith.truncf %53 : vector<256x128xf32> to vector<256x128xbf16>
    %c6 = arith.constant 6 : index
    %c0_50 = arith.constant 0 : index
    %c0_51 = arith.constant 0 : index
    %55 = vector.load %arg2[%c6, %c0_50, %c0_51] : memref<9x128x128xbf16, #tpu.memory_space<vmem>>, vector<1x128x128xbf16>
    %56 = vector.shape_cast %55 : vector<1x128x128xbf16> to vector<128x128xbf16>
    %cst_52 = arith.constant dense<0.000000e+00> : vector<256x128xf32>
    %57 = tpu.matmul %54, %56, %cst_52 {dimension_numbers = #tpu.dot_dimension_numbers<[1], [0], [0], [1], [0, 0, 1, 1], [], []>} : vector<256x128xbf16>, vector<128x128xbf16>, vector<256x128xf32> -> vector<256x128xf32>
    %58 = arith.addf %51, %57 : vector<256x128xf32>
    %c2_53 = arith.constant 2 : index
    %c1_54 = arith.constant 1 : index
    %c0_55 = arith.constant 0 : index
    %59 = vector.load %arg6[%c2_53, %c1_54, %c0_55] : memref<18x18x128xf32, #tpu.memory_space<vmem>>, vector<16x16x128xf32>
    %60 = vector.shape_cast %59 : vector<16x16x128xf32> to vector<256x128xf32>
    %61 = arith.truncf %60 : vector<256x128xf32> to vector<256x128xbf16>
    %c7 = arith.constant 7 : index
    %c0_56 = arith.constant 0 : index
    %c0_57 = arith.constant 0 : index
    %62 = vector.load %arg2[%c7, %c0_56, %c0_57] : memref<9x128x128xbf16, #tpu.memory_space<vmem>>, vector<1x128x128xbf16>
    %63 = vector.shape_cast %62 : vector<1x128x128xbf16> to vector<128x128xbf16>
    %cst_58 = arith.constant dense<0.000000e+00> : vector<256x128xf32>
    %64 = tpu.matmul %61, %63, %cst_58 {dimension_numbers = #tpu.dot_dimension_numbers<[1], [0], [0], [1], [0, 0, 1, 1], [], []>} : vector<256x128xbf16>, vector<128x128xbf16>, vector<256x128xf32> -> vector<256x128xf32>
    %65 = arith.addf %58, %64 : vector<256x128xf32>
    %c2_59 = arith.constant 2 : index
    %c2_60 = arith.constant 2 : index
    %c0_61 = arith.constant 0 : index
    %66 = vector.load %arg6[%c2_59, %c2_60, %c0_61] : memref<18x18x128xf32, #tpu.memory_space<vmem>>, vector<16x16x128xf32>
    %67 = vector.shape_cast %66 : vector<16x16x128xf32> to vector<256x128xf32>
    %68 = arith.truncf %67 : vector<256x128xf32> to vector<256x128xbf16>
    %c8 = arith.constant 8 : index
    %c0_62 = arith.constant 0 : index
    %c0_63 = arith.constant 0 : index
    %69 = vector.load %arg2[%c8, %c0_62, %c0_63] : memref<9x128x128xbf16, #tpu.memory_space<vmem>>, vector<1x128x128xbf16>
    %70 = vector.shape_cast %69 : vector<1x128x128xbf16> to vector<128x128xbf16>
    %cst_64 = arith.constant dense<0.000000e+00> : vector<256x128xf32>
    %71 = tpu.matmul %68, %70, %cst_64 {dimension_numbers = #tpu.dot_dimension_numbers<[1], [0], [0], [1], [0, 0, 1, 1], [], []>} : vector<256x128xbf16>, vector<128x128xbf16>, vector<256x128xf32> -> vector<256x128xf32>
    %72 = arith.addf %65, %71 : vector<256x128xf32>
    %c0_65 = arith.constant 0 : index
    %c0_66 = arith.constant 0 : index
    %c0_67 = arith.constant 0 : index
    %73 = vector.load %arg3[%c0_65, %c0_66, %c0_67] : memref<1x256x128xf32, #tpu.memory_space<vmem>>, vector<1x256x128xf32>
    %74 = vector.shape_cast %73 : vector<1x256x128xf32> to vector<256x128xf32>
    %75 = vector.shape_cast %72 : vector<256x128xf32> to vector<1x256x128xf32>
    tpu.vector_store %arg3[%c0_65, %c0_66, %c0_67], %75 {strides = array<i32>} : memref<1x256x128xf32, #tpu.memory_space<vmem>>, vector<1x256x128xf32>,
    %c0_68 = arith.constant 0 : index
    %c0_69 = arith.constant 0 : index
    %76 = vector.load %arg4[%c0_68, %c0_69] : memref<1x128xf32, #tpu.memory_space<vmem>>, vector<1x128xf32>
    %cst_70 = arith.constant dense<0.000000e+00> : vector<128xf32>
    %77 = vector.multi_reduction <add>, %72, %cst_70 [0] : vector<256x128xf32> to vector<128xf32>
    %78 = vector.shape_cast %77 : vector<128xf32> to vector<1x128xf32>
    %79 = arith.addf %76, %78 : vector<1x128xf32>
    %c0_71 = arith.constant 0 : index
    %c0_72 = arith.constant 0 : index
    %80 = vector.load %arg4[%c0_71, %c0_72] : memref<1x128xf32, #tpu.memory_space<vmem>>, vector<1x128xf32>
    tpu.vector_store %arg4[%c0_71, %c0_72], %79 {strides = array<i32>} : memref<1x128xf32, #tpu.memory_space<vmem>>, vector<1x128xf32>,
    %c0_73 = arith.constant 0 : index
    %c0_74 = arith.constant 0 : index
    %81 = vector.load %arg5[%c0_73, %c0_74] : memref<1x128xf32, #tpu.memory_space<vmem>>, vector<1x128xf32>
    %82 = arith.mulf %72, %72 : vector<256x128xf32>
    %cst_75 = arith.constant dense<0.000000e+00> : vector<128xf32>
    %83 = vector.multi_reduction <add>, %82, %cst_75 [0] : vector<256x128xf32> to vector<128xf32>
    %84 = vector.shape_cast %83 : vector<128xf32> to vector<1x128xf32>
    %85 = arith.addf %81, %84 : vector<1x128xf32>
    %c0_76 = arith.constant 0 : index
    %c0_77 = arith.constant 0 : index
    %86 = vector.load %arg5[%c0_76, %c0_77] : memref<1x128xf32, #tpu.memory_space<vmem>>, vector<1x128xf32>
    tpu.vector_store %arg5[%c0_76, %c0_77], %85 {strides = array<i32>} : memref<1x128xf32, #tpu.memory_space<vmem>>, vector<1x128xf32>,
    return
  }
  func.func @transform_0(%arg0: i32) -> (i32, i32, i32) {
    %c0_i32 = arith.constant 0 : i32
    %c0_i32_0 = arith.constant 0 : i32
    %c0_i32_1 = arith.constant 0 : i32
    return %arg0, %c0_i32, %c0_i32_0 : i32, i32, i32
  }
  func.func @transform_1(%arg0: i32) -> (i32, i32, i32) {
    %c0_i32 = arith.constant 0 : i32
    %c0_i32_0 = arith.constant 0 : i32
    %c0_i32_1 = arith.constant 0 : i32
    %c0_i32_2 = arith.constant 0 : i32
    return %c0_i32, %c0_i32_0, %c0_i32_1 : i32, i32, i32
  }
  func.func @transform_2(%arg0: i32) -> (i32, i32, i32) {
    %c0_i32 = arith.constant 0 : i32
    %c0_i32_0 = arith.constant 0 : i32
    %c0_i32_1 = arith.constant 0 : i32
    return %arg0, %c0_i32, %c0_i32_0 : i32, i32, i32
  }
  func.func @transform_3(%arg0: i32) -> (i32, i32) {
    %c0_i32 = arith.constant 0 : i32
    %c0_i32_0 = arith.constant 0 : i32
    %c0_i32_1 = arith.constant 0 : i32
    return %c0_i32, %c0_i32_0 : i32, i32
  }
  func.func @transform_4(%arg0: i32) -> (i32, i32) {
    %c0_i32 = arith.constant 0 : i32
    %c0_i32_0 = arith.constant 0 : i32
    %c0_i32_1 = arith.constant 0 : i32
    return %c0_i32, %c0_i32_0 : i32, i32
  }
}

module attributes {stable_mosaic.version = 11 : i64} {
  func.func @_bn_residual_relu_kernel(%arg0: i32, %arg1: memref<1x256x128xf32, #tpu.memory_space<vmem>>, %arg2: memref<1x128xf32, #tpu.memory_space<vmem>>, %arg3: memref<1x128xf32, #tpu.memory_space<vmem>>, %arg4: memref<1x256x128xf32, #tpu.memory_space<vmem>>, %arg5: memref<1x256x128xf32, #tpu.memory_space<vmem>>) attributes {dimension_semantics = [#tpu.dimension_semantics<parallel>], iteration_bounds = array<i64: 2>, scalar_prefetch = 0 : i64, scratch_operands = 0 : i64, tpu.core_type = #tpu.core_type<tc>, window_params = [{transform_indices = @transform_0, window_bounds = array<i64: 1, 256, 128>}, {pipeline_mode = #tpu.pipeline_mode<synchronous>, transform_indices = @transform_1, window_bounds = array<i64: 1, 128>}, {pipeline_mode = #tpu.pipeline_mode<synchronous>, transform_indices = @transform_2, window_bounds = array<i64: 1, 128>}, {transform_indices = @transform_3, window_bounds = array<i64: 1, 256, 128>}, {transform_indices = @transform_4, window_bounds = array<i64: 1, 256, 128>}]} {
    %c0 = arith.constant 0 : index
    %c0_0 = arith.constant 0 : index
    %c0_1 = arith.constant 0 : index
    %0 = vector.load %arg1[%c0, %c0_0, %c0_1] : memref<1x256x128xf32, #tpu.memory_space<vmem>>, vector<1x256x128xf32>
    %1 = vector.shape_cast %0 : vector<1x256x128xf32> to vector<256x128xf32>
    %c0_2 = arith.constant 0 : index
    %c0_3 = arith.constant 0 : index
    %2 = vector.load %arg2[%c0_2, %c0_3] : memref<1x128xf32, #tpu.memory_space<vmem>>, vector<1x128xf32>
    %3 = vector.broadcast %2 : vector<1x128xf32> to vector<256x128xf32>
    %4 = arith.mulf %1, %3 : vector<256x128xf32>
    %c0_4 = arith.constant 0 : index
    %c0_5 = arith.constant 0 : index
    %5 = vector.load %arg3[%c0_4, %c0_5] : memref<1x128xf32, #tpu.memory_space<vmem>>, vector<1x128xf32>
    %6 = vector.broadcast %5 : vector<1x128xf32> to vector<256x128xf32>
    %7 = arith.addf %4, %6 : vector<256x128xf32>
    %c0_6 = arith.constant 0 : index
    %c0_7 = arith.constant 0 : index
    %c0_8 = arith.constant 0 : index
    %8 = vector.load %arg4[%c0_6, %c0_7, %c0_8] : memref<1x256x128xf32, #tpu.memory_space<vmem>>, vector<1x256x128xf32>
    %9 = vector.shape_cast %8 : vector<1x256x128xf32> to vector<256x128xf32>
    %10 = arith.addf %7, %9 : vector<256x128xf32>
    %cst = arith.constant 0.000000e+00 : f32
    %11 = vector.broadcast %cst : f32 to vector<256x128xf32>
    %12 = arith.maximumf %10, %11 : vector<256x128xf32>
    %c0_9 = arith.constant 0 : index
    %c0_10 = arith.constant 0 : index
    %c0_11 = arith.constant 0 : index
    %13 = vector.load %arg5[%c0_9, %c0_10, %c0_11] : memref<1x256x128xf32, #tpu.memory_space<vmem>>, vector<1x256x128xf32>
    %14 = vector.shape_cast %13 : vector<1x256x128xf32> to vector<256x128xf32>
    %15 = vector.shape_cast %12 : vector<256x128xf32> to vector<1x256x128xf32>
    tpu.vector_store %arg5[%c0_9, %c0_10, %c0_11], %15 {strides = array<i32>} : memref<1x256x128xf32, #tpu.memory_space<vmem>>, vector<1x256x128xf32>,
    return
  }
  func.func @transform_0(%arg0: i32) -> (i32, i32, i32) {
    %c0_i32 = arith.constant 0 : i32
    %c0_i32_0 = arith.constant 0 : i32
    %c0_i32_1 = arith.constant 0 : i32
    return %arg0, %c0_i32, %c0_i32_0 : i32, i32, i32
  }
  func.func @transform_1(%arg0: i32) -> (i32, i32) {
    %c0_i32 = arith.constant 0 : i32
    %c0_i32_0 = arith.constant 0 : i32
    %c0_i32_1 = arith.constant 0 : i32
    return %c0_i32, %c0_i32_0 : i32, i32
  }
  func.func @transform_2(%arg0: i32) -> (i32, i32) {
    %c0_i32 = arith.constant 0 : i32
    %c0_i32_0 = arith.constant 0 : i32
    %c0_i32_1 = arith.constant 0 : i32
    return %c0_i32, %c0_i32_0 : i32, i32
  }
  func.func @transform_3(%arg0: i32) -> (i32, i32, i32) {
    %c0_i32 = arith.constant 0 : i32
    %c0_i32_0 = arith.constant 0 : i32
    %c0_i32_1 = arith.constant 0 : i32
    return %arg0, %c0_i32, %c0_i32_0 : i32, i32, i32
  }
  func.func @transform_4(%arg0: i32) -> (i32, i32, i32) {
    %c0_i32 = arith.constant 0 : i32
    %c0_i32_0 = arith.constant 0 : i32
    %c0_i32_1 = arith.constant 0 : i32
    return %arg0, %c0_i32, %c0_i32_0 : i32, i32, i32
  }
}

module attributes {stable_mosaic.version = 11 : i64} {
  func.func @_conv3x3_stats_kernel(%arg0: i32, %arg1: memref<1x256x128xf32, #tpu.memory_space<vmem>>, %arg2: memref<1x128xf32, #tpu.memory_space<vmem>>, %arg3: memref<1x128xf32, #tpu.memory_space<vmem>>, %arg4: memref<9x128x128xbf16, #tpu.memory_space<vmem>>, %arg5: memref<1x256x128xf32, #tpu.memory_space<vmem>>, %arg6: memref<1x128xf32, #tpu.memory_space<vmem>>, %arg7: memref<1x128xf32, #tpu.memory_space<vmem>>, %arg8: memref<18x18x128xf32, #tpu.memory_space<vmem>>) attributes {dimension_semantics = [#tpu.dimension_semantics<arbitrary>], iteration_bounds = array<i64: 2>, scalar_prefetch = 0 : i64, scratch_operands = 1 : i64, tpu.core_type = #tpu.core_type<tc>, window_params = [{transform_indices = @transform_0, window_bounds = array<i64: 1, 256, 128>}, {pipeline_mode = #tpu.pipeline_mode<synchronous>, transform_indices = @transform_1, window_bounds = array<i64: 1, 128>}, {pipeline_mode = #tpu.pipeline_mode<synchronous>, transform_indices = @transform_2, window_bounds = array<i64: 1, 128>}, {pipeline_mode = #tpu.pipeline_mode<synchronous>, transform_indices = @transform_3, window_bounds = array<i64: 9, 128, 128>}, {transform_indices = @transform_4, window_bounds = array<i64: 1, 256, 128>}, {pipeline_mode = #tpu.pipeline_mode<synchronous>, transform_indices = @transform_5, window_bounds = array<i64: 1, 128>}, {pipeline_mode = #tpu.pipeline_mode<synchronous>, transform_indices = @transform_6, window_bounds = array<i64: 1, 128>}]} {
    %c0_i32 = arith.constant 0 : i32
    %0 = arith.cmpi eq, %arg0, %c0_i32 : i32
    %1 = arith.extui %0 : i1 to i32
    %c0_i32_0 = arith.constant 0 : i32
    %2 = arith.cmpi ne, %1, %c0_i32_0 : i32
    scf.if %2 {
      %cst_83 = arith.constant 0.000000e+00 : f32
      %95 = vector.broadcast %cst_83 : f32 to vector<1x128xf32>
      %c0_84 = arith.constant 0 : index
      %c0_85 = arith.constant 0 : index
      %96 = vector.load %arg6[%c0_84, %c0_85] : memref<1x128xf32, #tpu.memory_space<vmem>>, vector<1x128xf32>
      tpu.vector_store %arg6[%c0_84, %c0_85], %95 {strides = array<i32>} : memref<1x128xf32, #tpu.memory_space<vmem>>, vector<1x128xf32>,
      %cst_86 = arith.constant 0.000000e+00 : f32
      %97 = vector.broadcast %cst_86 : f32 to vector<1x128xf32>
      %c0_87 = arith.constant 0 : index
      %c0_88 = arith.constant 0 : index
      %98 = vector.load %arg7[%c0_87, %c0_88] : memref<1x128xf32, #tpu.memory_space<vmem>>, vector<1x128xf32>
      tpu.vector_store %arg7[%c0_87, %c0_88], %97 {strides = array<i32>} : memref<1x128xf32, #tpu.memory_space<vmem>>, vector<1x128xf32>,
    } else {
    }
    %c0 = arith.constant 0 : index
    %c0_1 = arith.constant 0 : index
    %c0_2 = arith.constant 0 : index
    %3 = vector.load %arg1[%c0, %c0_1, %c0_2] : memref<1x256x128xf32, #tpu.memory_space<vmem>>, vector<1x256x128xf32>
    %4 = vector.shape_cast %3 : vector<1x256x128xf32> to vector<256x128xf32>
    %c0_3 = arith.constant 0 : index
    %c0_4 = arith.constant 0 : index
    %5 = vector.load %arg2[%c0_3, %c0_4] : memref<1x128xf32, #tpu.memory_space<vmem>>, vector<1x128xf32>
    %6 = vector.broadcast %5 : vector<1x128xf32> to vector<256x128xf32>
    %7 = arith.mulf %4, %6 : vector<256x128xf32>
    %c0_5 = arith.constant 0 : index
    %c0_6 = arith.constant 0 : index
    %8 = vector.load %arg3[%c0_5, %c0_6] : memref<1x128xf32, #tpu.memory_space<vmem>>, vector<1x128xf32>
    %9 = vector.broadcast %8 : vector<1x128xf32> to vector<256x128xf32>
    %10 = arith.addf %7, %9 : vector<256x128xf32>
    %cst = arith.constant 0.000000e+00 : f32
    %11 = vector.broadcast %cst : f32 to vector<256x128xf32>
    %12 = arith.maximumf %10, %11 : vector<256x128xf32>
    %cst_7 = arith.constant 0.000000e+00 : f32
    %13 = vector.broadcast %cst_7 : f32 to vector<18x18x128xf32>
    %c0_8 = arith.constant 0 : index
    %c0_9 = arith.constant 0 : index
    %c0_10 = arith.constant 0 : index
    %14 = vector.load %arg8[%c0_8, %c0_9, %c0_10] : memref<18x18x128xf32, #tpu.memory_space<vmem>>, vector<18x18x128xf32>
    tpu.vector_store %arg8[%c0_8, %c0_9, %c0_10], %13 {strides = array<i32>} : memref<18x18x128xf32, #tpu.memory_space<vmem>>, vector<18x18x128xf32>,
    %15 = vector.shape_cast %12 : vector<256x128xf32> to vector<16x16x128xf32>
    %c1 = arith.constant 1 : index
    %c1_11 = arith.constant 1 : index
    %c0_12 = arith.constant 0 : index
    %16 = vector.load %arg8[%c1, %c1_11, %c0_12] : memref<18x18x128xf32, #tpu.memory_space<vmem>>, vector<16x16x128xf32>
    tpu.vector_store %arg8[%c1, %c1_11, %c0_12], %15 {strides = array<i32>} : memref<18x18x128xf32, #tpu.memory_space<vmem>>, vector<16x16x128xf32>,
    %cst_13 = arith.constant 0.000000e+00 : f32
    %17 = vector.broadcast %cst_13 : f32 to vector<256x128xf32>
    %c0_14 = arith.constant 0 : index
    %c0_15 = arith.constant 0 : index
    %c0_16 = arith.constant 0 : index
    %18 = vector.load %arg8[%c0_14, %c0_15, %c0_16] : memref<18x18x128xf32, #tpu.memory_space<vmem>>, vector<16x16x128xf32>
    %19 = vector.shape_cast %18 : vector<16x16x128xf32> to vector<256x128xf32>
    %20 = arith.truncf %19 : vector<256x128xf32> to vector<256x128xbf16>
    %c0_17 = arith.constant 0 : index
    %c0_18 = arith.constant 0 : index
    %c0_19 = arith.constant 0 : index
    %21 = vector.load %arg4[%c0_17, %c0_18, %c0_19] : memref<9x128x128xbf16, #tpu.memory_space<vmem>>, vector<1x128x128xbf16>
    %22 = vector.shape_cast %21 : vector<1x128x128xbf16> to vector<128x128xbf16>
    %cst_20 = arith.constant dense<0.000000e+00> : vector<256x128xf32>
    %23 = tpu.matmul %20, %22, %cst_20 {dimension_numbers = #tpu.dot_dimension_numbers<[1], [0], [0], [1], [0, 0, 1, 1], [], []>} : vector<256x128xbf16>, vector<128x128xbf16>, vector<256x128xf32> -> vector<256x128xf32>
    %24 = arith.addf %17, %23 : vector<256x128xf32>
    %c0_21 = arith.constant 0 : index
    %c1_22 = arith.constant 1 : index
    %c0_23 = arith.constant 0 : index
    %25 = vector.load %arg8[%c0_21, %c1_22, %c0_23] : memref<18x18x128xf32, #tpu.memory_space<vmem>>, vector<16x16x128xf32>
    %26 = vector.shape_cast %25 : vector<16x16x128xf32> to vector<256x128xf32>
    %27 = arith.truncf %26 : vector<256x128xf32> to vector<256x128xbf16>
    %c1_24 = arith.constant 1 : index
    %c0_25 = arith.constant 0 : index
    %c0_26 = arith.constant 0 : index
    %28 = vector.load %arg4[%c1_24, %c0_25, %c0_26] : memref<9x128x128xbf16, #tpu.memory_space<vmem>>, vector<1x128x128xbf16>
    %29 = vector.shape_cast %28 : vector<1x128x128xbf16> to vector<128x128xbf16>
    %cst_27 = arith.constant dense<0.000000e+00> : vector<256x128xf32>
    %30 = tpu.matmul %27, %29, %cst_27 {dimension_numbers = #tpu.dot_dimension_numbers<[1], [0], [0], [1], [0, 0, 1, 1], [], []>} : vector<256x128xbf16>, vector<128x128xbf16>, vector<256x128xf32> -> vector<256x128xf32>
    %31 = arith.addf %24, %30 : vector<256x128xf32>
    %c0_28 = arith.constant 0 : index
    %c2 = arith.constant 2 : index
    %c0_29 = arith.constant 0 : index
    %32 = vector.load %arg8[%c0_28, %c2, %c0_29] : memref<18x18x128xf32, #tpu.memory_space<vmem>>, vector<16x16x128xf32>
    %33 = vector.shape_cast %32 : vector<16x16x128xf32> to vector<256x128xf32>
    %34 = arith.truncf %33 : vector<256x128xf32> to vector<256x128xbf16>
    %c2_30 = arith.constant 2 : index
    %c0_31 = arith.constant 0 : index
    %c0_32 = arith.constant 0 : index
    %35 = vector.load %arg4[%c2_30, %c0_31, %c0_32] : memref<9x128x128xbf16, #tpu.memory_space<vmem>>, vector<1x128x128xbf16>
    %36 = vector.shape_cast %35 : vector<1x128x128xbf16> to vector<128x128xbf16>
    %cst_33 = arith.constant dense<0.000000e+00> : vector<256x128xf32>
    %37 = tpu.matmul %34, %36, %cst_33 {dimension_numbers = #tpu.dot_dimension_numbers<[1], [0], [0], [1], [0, 0, 1, 1], [], []>} : vector<256x128xbf16>, vector<128x128xbf16>, vector<256x128xf32> -> vector<256x128xf32>
    %38 = arith.addf %31, %37 : vector<256x128xf32>
    %c1_34 = arith.constant 1 : index
    %c0_35 = arith.constant 0 : index
    %c0_36 = arith.constant 0 : index
    %39 = vector.load %arg8[%c1_34, %c0_35, %c0_36] : memref<18x18x128xf32, #tpu.memory_space<vmem>>, vector<16x16x128xf32>
    %40 = vector.shape_cast %39 : vector<16x16x128xf32> to vector<256x128xf32>
    %41 = arith.truncf %40 : vector<256x128xf32> to vector<256x128xbf16>
    %c3 = arith.constant 3 : index
    %c0_37 = arith.constant 0 : index
    %c0_38 = arith.constant 0 : index
    %42 = vector.load %arg4[%c3, %c0_37, %c0_38] : memref<9x128x128xbf16, #tpu.memory_space<vmem>>, vector<1x128x128xbf16>
    %43 = vector.shape_cast %42 : vector<1x128x128xbf16> to vector<128x128xbf16>
    %cst_39 = arith.constant dense<0.000000e+00> : vector<256x128xf32>
    %44 = tpu.matmul %41, %43, %cst_39 {dimension_numbers = #tpu.dot_dimension_numbers<[1], [0], [0], [1], [0, 0, 1, 1], [], []>} : vector<256x128xbf16>, vector<128x128xbf16>, vector<256x128xf32> -> vector<256x128xf32>
    %45 = arith.addf %38, %44 : vector<256x128xf32>
    %c1_40 = arith.constant 1 : index
    %c1_41 = arith.constant 1 : index
    %c0_42 = arith.constant 0 : index
    %46 = vector.load %arg8[%c1_40, %c1_41, %c0_42] : memref<18x18x128xf32, #tpu.memory_space<vmem>>, vector<16x16x128xf32>
    %47 = vector.shape_cast %46 : vector<16x16x128xf32> to vector<256x128xf32>
    %48 = arith.truncf %47 : vector<256x128xf32> to vector<256x128xbf16>
    %c4 = arith.constant 4 : index
    %c0_43 = arith.constant 0 : index
    %c0_44 = arith.constant 0 : index
    %49 = vector.load %arg4[%c4, %c0_43, %c0_44] : memref<9x128x128xbf16, #tpu.memory_space<vmem>>, vector<1x128x128xbf16>
    %50 = vector.shape_cast %49 : vector<1x128x128xbf16> to vector<128x128xbf16>
    %cst_45 = arith.constant dense<0.000000e+00> : vector<256x128xf32>
    %51 = tpu.matmul %48, %50, %cst_45 {dimension_numbers = #tpu.dot_dimension_numbers<[1], [0], [0], [1], [0, 0, 1, 1], [], []>} : vector<256x128xbf16>, vector<128x128xbf16>, vector<256x128xf32> -> vector<256x128xf32>
    %52 = arith.addf %45, %51 : vector<256x128xf32>
    %c1_46 = arith.constant 1 : index
    %c2_47 = arith.constant 2 : index
    %c0_48 = arith.constant 0 : index
    %53 = vector.load %arg8[%c1_46, %c2_47, %c0_48] : memref<18x18x128xf32, #tpu.memory_space<vmem>>, vector<16x16x128xf32>
    %54 = vector.shape_cast %53 : vector<16x16x128xf32> to vector<256x128xf32>
    %55 = arith.truncf %54 : vector<256x128xf32> to vector<256x128xbf16>
    %c5 = arith.constant 5 : index
    %c0_49 = arith.constant 0 : index
    %c0_50 = arith.constant 0 : index
    %56 = vector.load %arg4[%c5, %c0_49, %c0_50] : memref<9x128x128xbf16, #tpu.memory_space<vmem>>, vector<1x128x128xbf16>
    %57 = vector.shape_cast %56 : vector<1x128x128xbf16> to vector<128x128xbf16>
    %cst_51 = arith.constant dense<0.000000e+00> : vector<256x128xf32>
    %58 = tpu.matmul %55, %57, %cst_51 {dimension_numbers = #tpu.dot_dimension_numbers<[1], [0], [0], [1], [0, 0, 1, 1], [], []>} : vector<256x128xbf16>, vector<128x128xbf16>, vector<256x128xf32> -> vector<256x128xf32>
    %59 = arith.addf %52, %58 : vector<256x128xf32>
    %c2_52 = arith.constant 2 : index
    %c0_53 = arith.constant 0 : index
    %c0_54 = arith.constant 0 : index
    %60 = vector.load %arg8[%c2_52, %c0_53, %c0_54] : memref<18x18x128xf32, #tpu.memory_space<vmem>>, vector<16x16x128xf32>
    %61 = vector.shape_cast %60 : vector<16x16x128xf32> to vector<256x128xf32>
    %62 = arith.truncf %61 : vector<256x128xf32> to vector<256x128xbf16>
    %c6 = arith.constant 6 : index
    %c0_55 = arith.constant 0 : index
    %c0_56 = arith.constant 0 : index
    %63 = vector.load %arg4[%c6, %c0_55, %c0_56] : memref<9x128x128xbf16, #tpu.memory_space<vmem>>, vector<1x128x128xbf16>
    %64 = vector.shape_cast %63 : vector<1x128x128xbf16> to vector<128x128xbf16>
    %cst_57 = arith.constant dense<0.000000e+00> : vector<256x128xf32>
    %65 = tpu.matmul %62, %64, %cst_57 {dimension_numbers = #tpu.dot_dimension_numbers<[1], [0], [0], [1], [0, 0, 1, 1], [], []>} : vector<256x128xbf16>, vector<128x128xbf16>, vector<256x128xf32> -> vector<256x128xf32>
    %66 = arith.addf %59, %65 : vector<256x128xf32>
    %c2_58 = arith.constant 2 : index
    %c1_59 = arith.constant 1 : index
    %c0_60 = arith.constant 0 : index
    %67 = vector.load %arg8[%c2_58, %c1_59, %c0_60] : memref<18x18x128xf32, #tpu.memory_space<vmem>>, vector<16x16x128xf32>
    %68 = vector.shape_cast %67 : vector<16x16x128xf32> to vector<256x128xf32>
    %69 = arith.truncf %68 : vector<256x128xf32> to vector<256x128xbf16>
    %c7 = arith.constant 7 : index
    %c0_61 = arith.constant 0 : index
    %c0_62 = arith.constant 0 : index
    %70 = vector.load %arg4[%c7, %c0_61, %c0_62] : memref<9x128x128xbf16, #tpu.memory_space<vmem>>, vector<1x128x128xbf16>
    %71 = vector.shape_cast %70 : vector<1x128x128xbf16> to vector<128x128xbf16>
    %cst_63 = arith.constant dense<0.000000e+00> : vector<256x128xf32>
    %72 = tpu.matmul %69, %71, %cst_63 {dimension_numbers = #tpu.dot_dimension_numbers<[1], [0], [0], [1], [0, 0, 1, 1], [], []>} : vector<256x128xbf16>, vector<128x128xbf16>, vector<256x128xf32> -> vector<256x128xf32>
    %73 = arith.addf %66, %72 : vector<256x128xf32>
    %c2_64 = arith.constant 2 : index
    %c2_65 = arith.constant 2 : index
    %c0_66 = arith.constant 0 : index
    %74 = vector.load %arg8[%c2_64, %c2_65, %c0_66] : memref<18x18x128xf32, #tpu.memory_space<vmem>>, vector<16x16x128xf32>
    %75 = vector.shape_cast %74 : vector<16x16x128xf32> to vector<256x128xf32>
    %76 = arith.truncf %75 : vector<256x128xf32> to vector<256x128xbf16>
    %c8 = arith.constant 8 : index
    %c0_67 = arith.constant 0 : index
    %c0_68 = arith.constant 0 : index
    %77 = vector.load %arg4[%c8, %c0_67, %c0_68] : memref<9x128x128xbf16, #tpu.memory_space<vmem>>, vector<1x128x128xbf16>
    %78 = vector.shape_cast %77 : vector<1x128x128xbf16> to vector<128x128xbf16>
    %cst_69 = arith.constant dense<0.000000e+00> : vector<256x128xf32>
    %79 = tpu.matmul %76, %78, %cst_69 {dimension_numbers = #tpu.dot_dimension_numbers<[1], [0], [0], [1], [0, 0, 1, 1], [], []>} : vector<256x128xbf16>, vector<128x128xbf16>, vector<256x128xf32> -> vector<256x128xf32>
    %80 = arith.addf %73, %79 : vector<256x128xf32>
    %c0_70 = arith.constant 0 : index
    %c0_71 = arith.constant 0 : index
    %c0_72 = arith.constant 0 : index
    %81 = vector.load %arg5[%c0_70, %c0_71, %c0_72] : memref<1x256x128xf32, #tpu.memory_space<vmem>>, vector<1x256x128xf32>
    %82 = vector.shape_cast %81 : vector<1x256x128xf32> to vector<256x128xf32>
    %83 = vector.shape_cast %80 : vector<256x128xf32> to vector<1x256x128xf32>
    tpu.vector_store %arg5[%c0_70, %c0_71, %c0_72], %83 {strides = array<i32>} : memref<1x256x128xf32, #tpu.memory_space<vmem>>, vector<1x256x128xf32>,
    %c0_73 = arith.constant 0 : index
    %c0_74 = arith.constant 0 : index
    %84 = vector.load %arg6[%c0_73, %c0_74] : memref<1x128xf32, #tpu.memory_space<vmem>>, vector<1x128xf32>
    %cst_75 = arith.constant dense<0.000000e+00> : vector<128xf32>
    %85 = vector.multi_reduction <add>, %80, %cst_75 [0] : vector<256x128xf32> to vector<128xf32>
    %86 = vector.shape_cast %85 : vector<128xf32> to vector<1x128xf32>
    %87 = arith.addf %84, %86 : vector<1x128xf32>
    %c0_76 = arith.constant 0 : index
    %c0_77 = arith.constant 0 : index
    %88 = vector.load %arg6[%c0_76, %c0_77] : memref<1x128xf32, #tpu.memory_space<vmem>>, vector<1x128xf32>
    tpu.vector_store %arg6[%c0_76, %c0_77], %87 {strides = array<i32>} : memref<1x128xf32, #tpu.memory_space<vmem>>, vector<1x128xf32>,
    %c0_78 = arith.constant 0 : index
    %c0_79 = arith.constant 0 : index
    %89 = vector.load %arg7[%c0_78, %c0_79] : memref<1x128xf32, #tpu.memory_space<vmem>>, vector<1x128xf32>
    %90 = arith.mulf %80, %80 : vector<256x128xf32>
    %cst_80 = arith.constant dense<0.000000e+00> : vector<128xf32>
    %91 = vector.multi_reduction <add>, %90, %cst_80 [0] : vector<256x128xf32> to vector<128xf32>
    %92 = vector.shape_cast %91 : vector<128xf32> to vector<1x128xf32>
    %93 = arith.addf %89, %92 : vector<1x128xf32>
    %c0_81 = arith.constant 0 : index
    %c0_82 = arith.constant 0 : index
    %94 = vector.load %arg7[%c0_81, %c0_82] : memref<1x128xf32, #tpu.memory_space<vmem>>, vector<1x128xf32>
    tpu.vector_store %arg7[%c0_81, %c0_82], %93 {strides = array<i32>} : memref<1x128xf32, #tpu.memory_space<vmem>>, vector<1x128xf32>,
    return
  }
  func.func @transform_0(%arg0: i32) -> (i32, i32, i32) {
    %c0_i32 = arith.constant 0 : i32
    %c0_i32_0 = arith.constant 0 : i32
    %c0_i32_1 = arith.constant 0 : i32
    return %arg0, %c0_i32, %c0_i32_0 : i32, i32, i32
  }
  func.func @transform_1(%arg0: i32) -> (i32, i32) {
    %c0_i32 = arith.constant 0 : i32
    %c0_i32_0 = arith.constant 0 : i32
    %c0_i32_1 = arith.constant 0 : i32
    return %c0_i32, %c0_i32_0 : i32, i32
  }
  func.func @transform_2(%arg0: i32) -> (i32, i32) {
    %c0_i32 = arith.constant 0 : i32
    %c0_i32_0 = arith.constant 0 : i32
    %c0_i32_1 = arith.constant 0 : i32
    return %c0_i32, %c0_i32_0 : i32, i32
  }
  func.func @transform_3(%arg0: i32) -> (i32, i32, i32) {
    %c0_i32 = arith.constant 0 : i32
    %c0_i32_0 = arith.constant 0 : i32
    %c0_i32_1 = arith.constant 0 : i32
    %c0_i32_2 = arith.constant 0 : i32
    return %c0_i32, %c0_i32_0, %c0_i32_1 : i32, i32, i32
  }
  func.func @transform_4(%arg0: i32) -> (i32, i32, i32) {
    %c0_i32 = arith.constant 0 : i32
    %c0_i32_0 = arith.constant 0 : i32
    %c0_i32_1 = arith.constant 0 : i32
    return %arg0, %c0_i32, %c0_i32_0 : i32, i32, i32
  }
  func.func @transform_5(%arg0: i32) -> (i32, i32) {
    %c0_i32 = arith.constant 0 : i32
    %c0_i32_0 = arith.constant 0 : i32
    %c0_i32_1 = arith.constant 0 : i32
    return %c0_i32, %c0_i32_0 : i32, i32
  }
  func.func @transform_6(%arg0: i32) -> (i32, i32) {
    %c0_i32 = arith.constant 0 : i32
    %c0_i32_0 = arith.constant 0 : i32
    %c0_i32_1 = arith.constant 0 : i32
    return %c0_i32, %c0_i32_0 : i32, i32
  }
}

</mosaic_0001>

<llo_original>
// kernel: basic_block_forward.5
$region0: #{basic_block_forward.5}
  #allocation0 [shape = 'u32[]', space=smem, size = 0x4, offset = 0x4, fixed_abs, tag = 'smem constant byte address 0x4 - core index']
  #allocation1 [shape = 'u32[144,128]{1,0:T(1,128)}', space=vmem, size = 0x12000, scoped, tag = 'internal scratch']
  %s0 = inlined_call_operand.vmem [shape: f32[2,256,128], index: 0, kind: input, shape index: {}]
  %s1 = inlined_call_operand.vmem [shape: f32[1,128], index: 1, kind: input, shape index: {}]
  %s2 = inlined_call_operand.vmem [shape: f32[1,128], index: 2, kind: input, shape index: {}]
  %s3 = inlined_call_operand.vmem [shape: f32[2,256,128], index: 3, kind: input, shape index: {}]
  %s4 = inlined_call_operand.vmem [shape: f32[2,256,128], index: 4, kind: output, shape index: {}]
  %s5 = sld [smem:[#allocation0]]
  $region49: #{basic_block_forward.5} parent=0
    _
  %s7 = ssub.s32 1, %s5
  %s8 = scalar_select 0, %s7, %s5
  loop: start=0, step=1, limit=4
  $region2: #{basic_block_forward.5} parent=0 // loop_pre_header
    _
  $region3: #{basic_block_forward.5} parent=0 // loop_header
    %s10 = sphi 0, %s14
    %p11 = scmp.ge.s32.totalorder %s10, 4
    %s20 = sphi 0, %s22
    %s23 = sphi 0, %s20
    %s24 = sphi 0, %s23
    %s40 = sphi 0, %s24
    %s44 = sphi 0, %s44
    %s46 = sphi 0, %s44
    %s47 = sphi 0, %s46
    %s61 = sphi 0, %s47
    %s65 = sphi 0, %s65
    %s67 = sphi 0, %s65
    %s68 = sphi 0, %s67
    %s82 = sphi 0, %s68
    %s88 = sphi 0, %s90
    %s91 = sphi 0, %s88
    %s92 = sphi 0, %s91
    %s108 = sphi 0, %s92
    %s114 = sphi 0, %s116
    %s117 = sphi 0, %s114
    %s118 = sphi 0, %s117
    %s134 = sphi 0, %s118
  $region4: #{basic_block_forward.5} parent=0 // loop_header_branch
    %13 = sbr.rel (%p11) target = $region8
  $region5: #{basic_block_forward.5} parent=0 // loop_body
    %s15 = ssub.s32 %s10, 1
    %s16 = ssub.s32 %s10, 2
    %s17 = sadd.s32 %s10, 1
    %s18 = ssub.s32 %s10, %s17
    %p19 = scmp.eq.s32.totalorder %s18, 0
    %s21 = sadd.s32 %s20, 1
    %s22 = scalar_select %p19, %s20, %s21
    %p25 = pneg %p19
    %p26 = scmp.eq.s32.totalorder %s10, 1
    %p27 = por %p25, %p26
    %p28 = scmp.ne.s32.totalorder %s20, %s23
    %p29 = scmp.eq.s32.totalorder %s10, 0
    %p30 = por %p28, %p29
    %p31 = scmp.ne.s32.totalorder %s20, %s23
    %p32 = scmp.eq.s32.totalorder %s15, 1
    %p33 = por %p31, %p32
    %p34 = scmp.ne.s32.totalorder %s23, %s24
    %p35 = scmp.eq.s32.totalorder %s15, 0
    %p36 = por %p34, %p35
    %p37 = scmp.ne.s32.totalorder %s23, %s24
    %p38 = scmp.eq.s32.totalorder %s16, 1
    %p39 = por %p37, %p38
    %p41 = scmp.ne.s32.totalorder %s24, %s40
    %p42 = scmp.eq.s32.totalorder %s16, 0
    %p43 = por %p41, %p42
    %s45 = sadd.s32 %s44, 1
    %p48 = scmp.eq.s32.totalorder %s10, 1
    %p49 = scmp.ne.s32.totalorder %s44, %s46
    %p50 = scmp.eq.s32.totalorder %s10, 0
    %p51 = por %p49, %p50
    %p52 = scmp.ne.s32.totalorder %s44, %s46
    %p53 = scmp.eq.s32.totalorder %s15, 1
    %p54 = por %p52, %p53
    %p55 = scmp.ne.s32.totalorder %s46, %s47
    %p56 = scmp.eq.s32.totalorder %s15, 0
    %p57 = por %p55, %p56
    %p58 = scmp.ne.s32.totalorder %s46, %s47
    %p59 = scmp.eq.s32.totalorder %s16, 1
    %p60 = por %p58, %p59
    %p62 = scmp.ne.s32.totalorder %s47, %s61
    %p63 = scmp.eq.s32.totalorder %s16, 0
    %p64 = por %p62, %p63
    %s66 = sadd.s32 %s65, 1
    %p69 = scmp.eq.s32.totalorder %s10, 1
    %p70 = scmp.ne.s32.totalorder %s65, %s67
    %p71 = scmp.eq.s32.totalorder %s10, 0
    %p72 = por %p70, %p71
    %p73 = scmp.ne.s32.totalorder %s65, %s67
    %p74 = scmp.eq.s32.totalorder %s15, 1
    %p75 = por %p73, %p74
    %p76 = scmp.ne.s32.totalorder %s67, %s68
    %p77 = scmp.eq.s32.totalorder %s15, 0
    %p78 = por %p76, %p77
    %p79 = scmp.ne.s32.totalorder %s67, %s68
    %p80 = scmp.eq.s32.totalorder %s16, 1
    %p81 = por %p79, %p80
    %p83 = scmp.ne.s32.totalorder %s68, %s82
    %p84 = scmp.eq.s32.totalorder %s16, 0
    %p85 = por %p83, %p84
    %s86 = ssub.s32 %s10, %s17
    %p87 = scmp.eq.s32.totalorder %s86, 0
    %s89 = sadd.s32 %s88, 1
    %s90 = scalar_select %p87, %s88, %s89
    %p93 = pneg %p87
    %p94 = scmp.eq.s32.totalorder %s10, 1
    %p95 = por %p93, %p94
    %p96 = scmp.ne.s32.totalorder %s88, %s91
    %p97 = scmp.eq.s32.totalorder %s10, 0
    %p98 = por %p96, %p97
    %p99 = scmp.ne.s32.totalorder %s88, %s91
    %p100 = scmp.eq.s32.totalorder %s15, 1
    %p101 = por %p99, %p100
    %p102 = scmp.ne.s32.totalorder %s91, %s92
    %p103 = scmp.eq.s32.totalorder %s15, 0
    %p104 = por %p102, %p103
    %p105 = scmp.ne.s32.totalorder %s91, %s92
    %p106 = scmp.eq.s32.totalorder %s16, 1
    %p107 = por %p105, %p106
    %p109 = scmp.ne.s32.totalorder %s92, %s108
    %p110 = scmp.eq.s32.totalorder %s16, 0
    %p111 = por %p109, %p110
    %s112 = ssub.s32 %s10, %s17
    %p113 = scmp.eq.s32.totalorder %s112, 0
    %s115 = sadd.s32 %s114, 1
    %s116 = scalar_select %p113, %s114, %s115
    %p119 = pneg %p113
    %p120 = scmp.eq.s32.totalorder %s10, 1
    %p121 = por %p119, %p120
    %p122 = scmp.ne.s32.totalorder %s114, %s117
    %p123 = scmp.eq.s32.totalorder %s10, 0
    %p124 = por %p122, %p123
    %p125 = scmp.ne.s32.totalorder %s114, %s117
    %p126 = scmp.eq.s32.totalorder %s15, 1
    %p127 = por %p125, %p126
    %p128 = scmp.ne.s32.totalorder %s117, %s118
    %p129 = scmp.eq.s32.totalorder %s15, 0
    %p130 = por %p128, %p129
    %p131 = scmp.ne.s32.totalorder %s117, %s118
    %p132 = scmp.eq.s32.totalorder %s16, 1
    %p133 = por %p131, %p132
    %p135 = scmp.ne.s32.totalorder %s118, %s134
    %p136 = scmp.eq.s32.totalorder %s16, 0
    %p137 = por %p135, %p136
    %p138 = scmp.le.s32.totalorder 1, %s10
    %p139 = scmp.lt.s32.totalorder %s10, 3
    %p140 = pnand %p138, %p139
    %p141 = pneg %p140
    // Predicated region
    $region9: #{basic_block_forward.5} parent=5 // pred_check
      _
    $region10: #{basic_block_forward.5} parent=5 // pred_check_branch
      %143 = sbr.rel (%p140) target = $region12
    $region11: #{basic_block_forward.5} parent=5 // pred_region
      %s144 = ssub.s32 %s10, 1
      // Predicated region
      $region13: #{basic_block_forward.5} parent=11 // pred_check
        %p145 = pneg %p57
      $region14: #{basic_block_forward.5} parent=11 // pred_check_branch
        %147 = sbr.rel (%p145) target = $region16
      $region15: #{basic_block_forward.5} parent=11 // pred_region
        _
      $region16: #{basic_block_forward.5} parent=11 // pred_fallthru
        _
      // Predicated region
      $region17: #{basic_block_forward.5} parent=11 // pred_check
        %p148 = pneg %p78
      $region18: #{basic_block_forward.5} parent=11 // pred_check_branch
        %150 = sbr.rel (%p148) target = $region20
      $region19: #{basic_block_forward.5} parent=11 // pred_region
        _
      $region20: #{basic_block_forward.5} parent=11 // pred_fallthru
        _
    $region12: #{basic_block_forward.5} parent=5 // pred_fallthru
      _
    %p151 = scmp.lt.s32.totalorder %s10, 2
    // Predicated region
    $region21: #{basic_block_forward.5} parent=5 // pred_check
      %p152 = pneg %p151
    $region22: #{basic_block_forward.5} parent=5 // pred_check_branch
      %154 = sbr.rel (%p152) target = $region24
    $region23: #{basic_block_forward.5} parent=5 // pred_region
      // Predicated region
      $region25: #{basic_block_forward.5} parent=23 // pred_check
        %p155 = pneg %p30
      $region26: #{basic_block_forward.5} parent=23 // pred_check_branch
        %157 = sbr.rel (%p155) target = $region28
      $region27: #{basic_block_forward.5} parent=23 // pred_region
        %p158 = scmp.lt.s32.totalorder %s10, 1
        %s159 = scalar_select %p158, %s10, 1
        %s160 = smul.addr %s159, 32
        %s161 = smul.addr %s160, 8
        %s162 = scalar_lea.vmem %s0, %s161
      $region28: #{basic_block_forward.5} parent=23 // pred_fallthru
        _
      // Predicated region
      $region29: #{basic_block_forward.5} parent=23 // pred_check
        %p163 = pneg %p98
      $region30: #{basic_block_forward.5} parent=23 // pred_check_branch
        %165 = sbr.rel (%p163) target = $region32
      $region31: #{basic_block_forward.5} parent=23 // pred_region
        %p166 = scmp.lt.s32.totalorder %s10, 1
        %s167 = scalar_select %p166, %s10, 1
        %s168 = smul.addr %s167, 32
        %s169 = smul.addr %s168, 8
        %s170 = scalar_lea.vmem %s3, %s169
      $region32: #{basic_block_forward.5} parent=23 // pred_fallthru
        _
    $region24: #{basic_block_forward.5} parent=5 // pred_fallthru
      _
    %p171 = scmp.le.s32.totalorder 1, %s10
    %p172 = scmp.lt.s32.totalorder %s10, 3
    %p173 = pnand %p171, %p172
    %p174 = pneg %p173
    // Predicated region
    $region33: #{basic_block_forward.5} parent=5 // pred_check
      _
    $region34: #{basic_block_forward.5} parent=5 // pred_check_branch
      %176 = sbr.rel (%p173) target = $region36
    $region35: #{basic_block_forward.5} parent=5 // pred_region
      %s177 = ssub.s32 %s10, 1
      %p178 = scmp.lt.s32.totalorder %s15, 1
      %s179 = scalar_select %p178, %s15, 1
      %s180 = smul.addr %s179, 32
      %s181 = smul.addr %s180, 8
      %s182 = scalar_lea.vmem %s0, %s181
      %p183 = pneg %p36
      %p184 = pneg %p33
      %p185 = pneg %p57
      %p186 = pneg %p54
      %p187 = pneg %p78
      %p188 = pneg %p75
      %p189 = scmp.lt.s32.totalorder %s15, 1
      %s190 = scalar_select %p189, %s15, 1
      %s191 = smul.addr %s190, 32
      %s192 = smul.addr %s191, 8
      %s193 = scalar_lea.vmem %s3, %s192
      %p194 = pneg %p104
      %p195 = pneg %p101
      %p196 = pneg %p130
      %p197 = pneg %p127
      %p198 = scmp.lt.s32.totalorder %s15, 1
      %s199 = scalar_select %p198, %s15, 1
      %s200 = smul.addr %s199, 32
      %s201 = smul.addr %s200, 8
      %s202 = scalar_lea.vmem %s4, %s201
      %p203 = scmp.lt.s32.totalorder %s15, 1
      %s204 = scalar_select %p203, %s15, 1
      %s205 = smul.addr %s204, 32
      %s206 = smul.addr %s205, 8
      %s207 = scalar_lea.vmem %s0, %s206
      %p208 = scmp.lt.s32.totalorder %s15, 1
      %s209 = scalar_select %p208, %s15, 1
      %s210 = smul.addr %s209, 32
      %s211 = smul.addr %s210, 8
      %s212 = scalar_lea.vmem %s3, %s211
      %p213 = scmp.lt.s32.totalorder %s15, 1
      %s214 = scalar_select %p213, %s15, 1
      %s215 = smul.addr %s214, 32
      %s216 = smul.addr %s215, 8
      %s217 = scalar_lea.vmem %s4, %s216
      %v218 = vld [vmem:[%s207] sm:$0xff]
      %v219 = vld [vmem:[%s207 + $0x8] sm:$0xff]
      %v220 = vld [vmem:[%s207 + $0x10] sm:$0xff]
      %v221 = vld [vmem:[%s207 + $0x18] sm:$0xff]
      %v222 = vld [vmem:[%s207 + $0x20] sm:$0xff]
      %v223 = vld [vmem:[%s207 + $0x28] sm:$0xff]
      %v224 = vld [vmem:[%s207 + $0x30] sm:$0xff]
      %v225 = vld [vmem:[%s207 + $0x38] sm:$0xff]
      %v226 = vld [vmem:[%s207 + $0x40] sm:$0xff]
      %v227 = vld [vmem:[%s207 + $0x48] sm:$0xff]
      %v228 = vld [vmem:[%s207 + $0x50] sm:$0xff]
      %v229 = vld [vmem:[%s207 + $0x58] sm:$0xff]
      %v230 = vld [vmem:[%s207 + $0x60] sm:$0xff]
      %v231 = vld [vmem:[%s207 + $0x68] sm:$0xff]
      %v232 = vld [vmem:[%s207 + $0x70] sm:$0xff]
      %v233 = vld [vmem:[%s207 + $0x78] sm:$0xff]
      %v234 = vld [vmem:[%s207 + $0x80] sm:$0xff]
      %v235 = vld [vmem:[%s207 + $0x88] sm:$0xff]
      %v236 = vld [vmem:[%s207 + $0x90] sm:$0xff]
      %v237 = vld [vmem:[%s207 + $0x98] sm:$0xff]
      %v238 = vld [vmem:[%s207 + $0xa0] sm:$0xff]
      %v239 = vld [vmem:[%s207 + $0xa8] sm:$0xff]
      %v240 = vld [vmem:[%s207 + $0xb0] sm:$0xff]
      %v241 = vld [vmem:[%s207 + $0xb8] sm:$0xff]
      %v242 = vld [vmem:[%s207 + $0xc0] sm:$0xff]
      %v243 = vld [vmem:[%s207 + $0xc8] sm:$0xff]
      %v244 = vld [vmem:[%s207 + $0xd0] sm:$0xff]
      %v245 = vld [vmem:[%s207 + $0xd8] sm:$0xff]
      %v246 = vld [vmem:[%s207 + $0xe0] sm:$0xff]
      %v247 = vld [vmem:[%s207 + $0xe8] sm:$0xff]
      %v248 = vld [vmem:[%s207 + $0xf0] sm:$0xff]
      %v249 = vld [vmem:[%s207 + $0xf8] sm:$0xff]
      %v250 = vld [vmem:[%s1] sm:$0x1]
      %v252 = vlaneseq
      %v253 = vshrl.u32 %v252, 7
      %v254 = vsub.s32 0, %v253
      %v255 = vrot.slane %v250, %v254
      %v257 = vmul.f32 %v218, %v255
      %v258 = vmul.f32 %v219, %v255
      %v259 = vmul.f32 %v220, %v255
      %v260 = vmul.f32 %v221, %v255
      %v261 = vmul.f32 %v222, %v255
      %v262 = vmul.f32 %v223, %v255
      %v263 = vmul.f32 %v224, %v255
      %v264 = vmul.f32 %v225, %v255
      %v265 = vmul.f32 %v226, %v255
      %v266 = vmul.f32 %v227, %v255
      %v267 = vmul.f32 %v228, %v255
      %v268 = vmul.f32 %v229, %v255
      %v269 = vmul.f32 %v230, %v255
      %v270 = vmul.f32 %v231, %v255
      %v271 = vmul.f32 %v232, %v255
      %v272 = vmul.f32 %v233, %v255
      %v273 = vmul.f32 %v234, %v255
      %v274 = vmul.f32 %v235, %v255
      %v275 = vmul.f32 %v236, %v255
      %v276 = vmul.f32 %v237, %v255
      %v277 = vmul.f32 %v238, %v255
      %v278 = vmul.f32 %v239, %v255
      %v279 = vmul.f32 %v240, %v255
      %v280 = vmul.f32 %v241, %v255
      %v281 = vmul.f32 %v242, %v255
      %v282 = vmul.f32 %v243, %v255
      %v283 = vmul.f32 %v244, %v255
      %v284 = vmul.f32 %v245, %v255
      %v285 = vmul.f32 %v246, %v255
      %v286 = vmul.f32 %v247, %v255
      %v287 = vmul.f32 %v248, %v255
      %v288 = vmul.f32 %v249, %v255
      %v289 = vld [vmem:[%s2] sm:$0x1]
      %v291 = vlaneseq
      %v292 = vshrl.u32 %v291, 7
      %v293 = vsub.s32 0, %v292
      %v294 = vrot.slane %v289, %v293
      %v296 = vadd.f32 %v257, %v294
      %v297 = vadd.f32 %v258, %v294
      %v298 = vadd.f32 %v259, %v294
      %v299 = vadd.f32 %v260, %v294
      %v300 = vadd.f32 %v261, %v294
      %v301 = vadd.f32 %v262, %v294
      %v302 = vadd.f32 %v263, %v294
      %v303 = vadd.f32 %v264, %v294
      %v304 = vadd.f32 %v265, %v294
      %v305 = vadd.f32 %v266, %v294
      %v306 = vadd.f32 %v267, %v294
      %v307 = vadd.f32 %v268, %v294
      %v308 = vadd.f32 %v269, %v294
      %v309 = vadd.f32 %v270, %v294
      %v310 = vadd.f32 %v271, %v294
      %v311 = vadd.f32 %v272, %v294
      %v312 = vadd.f32 %v273, %v294
      %v313 = vadd.f32 %v274, %v294
      %v314 = vadd.f32 %v275, %v294
      %v315 = vadd.f32 %v276, %v294
      %v316 = vadd.f32 %v277, %v294
      %v317 = vadd.f32 %v278, %v294
      %v318 = vadd.f32 %v279, %v294
      %v319 = vadd.f32 %v280, %v294
      %v320 = vadd.f32 %v281, %v294
      %v321 = vadd.f32 %v282, %v294
      %v322 = vadd.f32 %v283, %v294
      %v323 = vadd.f32 %v284, %v294
      %v324 = vadd.f32 %v285, %v294
      %v325 = vadd.f32 %v286, %v294
      %v326 = vadd.f32 %v287, %v294
      %v327 = vadd.f32 %v288, %v294
      %v328 = vld [vmem:[%s212] sm:$0xff]
      %v329 = vld [vmem:[%s212 + $0x8] sm:$0xff]
      %v330 = vld [vmem:[%s212 + $0x10] sm:$0xff]
      %v331 = vld [vmem:[%s212 + $0x18] sm:$0xff]
      %v332 = vld [vmem:[%s212 + $0x20] sm:$0xff]
      %v333 = vld [vmem:[%s212 + $0x28] sm:$0xff]
      %v334 = vld [vmem:[%s212 + $0x30] sm:$0xff]
      %v335 = vld [vmem:[%s212 + $0x38] sm:$0xff]
      %v336 = vld [vmem:[%s212 + $0x40] sm:$0xff]
      %v337 = vld [vmem:[%s212 + $0x48] sm:$0xff]
      %v338 = vld [vmem:[%s212 + $0x50] sm:$0xff]
      %v339 = vld [vmem:[%s212 + $0x58] sm:$0xff]
      %v340 = vld [vmem:[%s212 + $0x60] sm:$0xff]
      %v341 = vld [vmem:[%s212 + $0x68] sm:$0xff]
      %v342 = vld [vmem:[%s212 + $0x70] sm:$0xff]
      %v343 = vld [vmem:[%s212 + $0x78] sm:$0xff]
      %v344 = vld [vmem:[%s212 + $0x80] sm:$0xff]
      %v345 = vld [vmem:[%s212 + $0x88] sm:$0xff]
      %v346 = vld [vmem:[%s212 + $0x90] sm:$0xff]
      %v347 = vld [vmem:[%s212 + $0x98] sm:$0xff]
      %v348 = vld [vmem:[%s212 + $0xa0] sm:$0xff]
      %v349 = vld [vmem:[%s212 + $0xa8] sm:$0xff]
      %v350 = vld [vmem:[%s212 + $0xb0] sm:$0xff]
      %v351 = vld [vmem:[%s212 + $0xb8] sm:$0xff]
      %v352 = vld [vmem:[%s212 + $0xc0] sm:$0xff]
      %v353 = vld [vmem:[%s212 + $0xc8] sm:$0xff]
      %v354 = vld [vmem:[%s212 + $0xd0] sm:$0xff]
      %v355 = vld [vmem:[%s212 + $0xd8] sm:$0xff]
      %v356 = vld [vmem:[%s212 + $0xe0] sm:$0xff]
      %v357 = vld [vmem:[%s212 + $0xe8] sm:$0xff]
      %v358 = vld [vmem:[%s212 + $0xf0] sm:$0xff]
      %v359 = vld [vmem:[%s212 + $0xf8] sm:$0xff]
      %v360 = vadd.f32 %v296, %v328
      %v361 = vadd.f32 %v297, %v329
      %v362 = vadd.f32 %v298, %v330
      %v363 = vadd.f32 %v299, %v331
      %v364 = vadd.f32 %v300, %v332
      %v365 = vadd.f32 %v301, %v333
      %v366 = vadd.f32 %v302, %v334
      %v367 = vadd.f32 %v303, %v335
      %v368 = vadd.f32 %v304, %v336
      %v369 = vadd.f32 %v305, %v337
      %v370 = vadd.f32 %v306, %v338
      %v371 = vadd.f32 %v307, %v339
      %v372 = vadd.f32 %v308, %v340
      %v373 = vadd.f32 %v309, %v341
      %v374 = vadd.f32 %v310, %v342
      %v375 = vadd.f32 %v311, %v343
      %v376 = vadd.f32 %v312, %v344
      %v377 = vadd.f32 %v313, %v345
      %v378 = vadd.f32 %v314, %v346
      %v379 = vadd.f32 %v315, %v347
      %v380 = vadd.f32 %v316, %v348
      %v381 = vadd.f32 %v317, %v349
      %v382 = vadd.f32 %v318, %v350
      %v383 = vadd.f32 %v319, %v351
      %v384 = vadd.f32 %v320, %v352
      %v385 = vadd.f32 %v321, %v353
      %v386 = vadd.f32 %v322, %v354
      %v387 = vadd.f32 %v323, %v355
      %v388 = vadd.f32 %v324, %v356
      %v389 = vadd.f32 %v325, %v357
      %v390 = vadd.f32 %v326, %v358
      %v391 = vadd.f32 %v327, %v359
      %v392 = vmax.f32 %v360, 0.0
      %v393 = vmax.f32 %v361, 0.0
      %v394 = vmax.f32 %v362, 0.0
      %v395 = vmax.f32 %v363, 0.0
      %v396 = vmax.f32 %v364, 0.0
      %v397 = vmax.f32 %v365, 0.0
      %v398 = vmax.f32 %v366, 0.0
      %v399 = vmax.f32 %v367, 0.0
      %v400 = vmax.f32 %v368, 0.0
      %v401 = vmax.f32 %v369, 0.0
      %v402 = vmax.f32 %v370, 0.0
      %v403 = vmax.f32 %v371, 0.0
      %v404 = vmax.f32 %v372, 0.0
      %v405 = vmax.f32 %v373, 0.0
      %v406 = vmax.f32 %v374, 0.0
      %v407 = vmax.f32 %v375, 0.0
      %v408 = vmax.f32 %v376, 0.0
      %v409 = vmax.f32 %v377, 0.0
      %v410 = vmax.f32 %v378, 0.0
      %v411 = vmax.f32 %v379, 0.0
      %v412 = vmax.f32 %v380, 0.0
      %v413 = vmax.f32 %v381, 0.0
      %v414 = vmax.f32 %v382, 0.0
      %v415 = vmax.f32 %v383, 0.0
      %v416 = vmax.f32 %v384, 0.0
      %v417 = vmax.f32 %v385, 0.0
      %v418 = vmax.f32 %v386, 0.0
      %v419 = vmax.f32 %v387, 0.0
      %v420 = vmax.f32 %v388, 0.0
      %v421 = vmax.f32 %v389, 0.0
      %v422 = vmax.f32 %v390, 0.0
      %v423 = vmax.f32 %v391, 0.0
      %424 = vst [vmem:[%s217] sm:$0xff] %v392
      %425 = vst [vmem:[%s217 + $0x8] sm:$0xff] %v393
      %426 = vst [vmem:[%s217 + $0x10] sm:$0xff] %v394
      %427 = vst [vmem:[%s217 + $0x18] sm:$0xff] %v395
      %428 = vst [vmem:[%s217 + $0x20] sm:$0xff] %v396
      %429 = vst [vmem:[%s217 + $0x28] sm:$0xff] %v397
      %430 = vst [vmem:[%s217 + $0x30] sm:$0xff] %v398
      %431 = vst [vmem:[%s217 + $0x38] sm:$0xff] %v399
      %432 = vst [vmem:[%s217 + $0x40] sm:$0xff] %v400
      %433 = vst [vmem:[%s217 + $0x48] sm:$0xff] %v401
      %434 = vst [vmem:[%s217 + $0x50] sm:$0xff] %v402
      %435 = vst [vmem:[%s217 + $0x58] sm:$0xff] %v403
      %436 = vst [vmem:[%s217 + $0x60] sm:$0xff] %v404
      %437 = vst [vmem:[%s217 + $0x68] sm:$0xff] %v405
      %438 = vst [vmem:[%s217 + $0x70] sm:$0xff] %v406
      %439 = vst [vmem:[%s217 + $0x78] sm:$0xff] %v407
      %440 = vst [vmem:[%s217 + $0x80] sm:$0xff] %v408
      %441 = vst [vmem:[%s217 + $0x88] sm:$0xff] %v409
      %442 = vst [vmem:[%s217 + $0x90] sm:$0xff] %v410
      %443 = vst [vmem:[%s217 + $0x98] sm:$0xff] %v411
      %444 = vst [vmem:[%s217 + $0xa0] sm:$0xff] %v412
      %445 = vst [vmem:[%s217 + $0xa8] sm:$0xff] %v413
      %446 = vst [vmem:[%s217 + $0xb0] sm:$0xff] %v414
      %447 = vst [vmem:[%s217 + $0xb8] sm:$0xff] %v415
      %448 = vst [vmem:[%s217 + $0xc0] sm:$0xff] %v416
      %449 = vst [vmem:[%s217 + $0xc8] sm:$0xff] %v417
      %450 = vst [vmem:[%s217 + $0xd0] sm:$0xff] %v418
      %451 = vst [vmem:[%s217 + $0xd8] sm:$0xff] %v419
      %452 = vst [vmem:[%s217 + $0xe0] sm:$0xff] %v420
      %453 = vst [vmem:[%s217 + $0xe8] sm:$0xff] %v421
      %454 = vst [vmem:[%s217 + $0xf0] sm:$0xff] %v422
      %455 = vst [vmem:[%s217 + $0xf8] sm:$0xff] %v423
      %p456 = scmp.lt.s32.totalorder %s15, 1
      %s457 = scalar_select %p456, %s15, 1
      %s458 = smul.addr %s457, 32
      %s459 = smul.addr %s458, 8
      %s460 = scalar_lea.vmem %s4, %s459
      // Predicated region
      $region37: #{basic_block_forward.5} parent=35 // pred_check
        %p461 = pneg %p127
      $region38: #{basic_block_forward.5} parent=35 // pred_check_branch
        %463 = sbr.rel (%p461) target = $region40
      $region39: #{basic_block_forward.5} parent=35 // pred_region
        _
      $region40: #{basic_block_forward.5} parent=35 // pred_fallthru
        _
    $region36: #{basic_block_forward.5} parent=5 // pred_fallthru
      _
    %p464 = scmp.le.s32.totalorder 2, %s10
    // Predicated region
    $region41: #{basic_block_forward.5} parent=5 // pred_check
      %p465 = pneg %p464
    $region42: #{basic_block_forward.5} parent=5 // pred_check_branch
      %467 = sbr.rel (%p465) target = $region44
    $region43: #{basic_block_forward.5} parent=5 // pred_region
      %s468 = ssub.s32 %s10, 2
      // Predicated region
      $region45: #{basic_block_forward.5} parent=43 // pred_check
        %p469 = pneg %p133
      $region46: #{basic_block_forward.5} parent=43 // pred_check_branch
        %471 = sbr.rel (%p469) target = $region48
      $region47: #{basic_block_forward.5} parent=43 // pred_region
        %p472 = scmp.lt.s32.totalorder %s16, 1
        %s473 = scalar_select %p472, %s16, 1
        %s474 = smul.addr %s473, 32
        %s475 = smul.addr %s474, 8
        %s476 = scalar_lea.vmem %s4, %s475
      $region48: #{basic_block_forward.5} parent=43 // pred_fallthru
        _
    $region44: #{basic_block_forward.5} parent=5 // pred_fallthru
      _
  $region6: #{basic_block_forward.5} parent=0 // loop_footer
    %s14 = sadd.s32 1, %s10
  $region7: #{basic_block_forward.5} parent=0 // loop_footer_branch
    %9 = sbr.rel target = $region3
  $region8: #{basic_block_forward.5} parent=0 // loop_exit
    _

// kernel: basic_block_forward.3
$region0: #{basic_block_forward.3}
  #allocation0 [shape = 'u32[]', space=smem, size = 0x4, offset = 0x4, fixed_abs, tag = 'smem constant byte address 0x4 - core index']
  #allocation1 [shape = 'u32[144,128]{1,0:T(1,128)}', space=vmem, size = 0x12000, scoped, tag = 'internal scratch']
  #allocation2 [shape = 'f32[18,18,128]{2,1,0:T(8,128)}', space=vmem, size = 0x36000, scoped, tag = 'scratch operand']
  %s0 = inlined_call_operand.vmem [shape: f32[2,256,128], index: 0, kind: input, shape index: {}]
  %s1 = inlined_call_operand.vmem [shape: bf16[9,128,128], index: 1, kind: input, shape index: {}]
  %s2 = inlined_call_operand.vmem [shape: f32[2,256,128], index: 2, kind: output, shape index: {0}]
  %s3 = inlined_call_operand.vmem [shape: f32[1,128], index: 3, kind: output, shape index: {1}]
  %s4 = inlined_call_operand.vmem [shape: f32[1,128], index: 4, kind: output, shape index: {2}]
  %5 = xla_tuple %s2, %s3, %s4
  %s6 = sld [smem:[#allocation0]]
  $region61: #{basic_block_forward.3} parent=0
    _
  %s8 = ssub.s32 1, %s6
  %s9 = scalar_select 0, %s8, %s6
  loop: start=0, step=1, limit=4
  $region2: #{basic_block_forward.3} parent=0 // loop_pre_header
    _
  $region3: #{basic_block_forward.3} parent=0 // loop_header
    %s11 = sphi 0, %s15
    %p12 = scmp.ge.s32.totalorder %s11, 4
    %s21 = sphi 0, %s23
    %s24 = sphi 0, %s21
    %s25 = sphi 0, %s24
    %s41 = sphi 0, %s25
    %s45 = sphi 0, %s45
    %s47 = sphi 0, %s45
    %s48 = sphi 0, %s47
    %s62 = sphi 0, %s48
    %s68 = sphi 0, %s70
    %s71 = sphi 0, %s68
    %s72 = sphi 0, %s71
    %s88 = sphi 0, %s72
    %s92 = sphi 0, %s92
    %s94 = sphi 0, %s92
    %s95 = sphi 0, %s94
    %s109 = sphi 0, %s95
    %s113 = sphi 0, %s113
    %s115 = sphi 0, %s113
    %s116 = sphi 0, %s115
    %s130 = sphi 0, %s116
  $region4: #{basic_block_forward.3} parent=0 // loop_header_branch
    %14 = sbr.rel (%p12) target = $region8
  $region5: #{basic_block_forward.3} parent=0 // loop_body
    %s16 = ssub.s32 %s11, 1
    %s17 = ssub.s32 %s11, 2
    %s18 = sadd.s32 %s11, 1
    %s19 = ssub.s32 %s11, %s18
    %p20 = scmp.eq.s32.totalorder %s19, 0
    %s22 = sadd.s32 %s21, 1
    %s23 = scalar_select %p20, %s21, %s22
    %p26 = pneg %p20
    %p27 = scmp.eq.s32.totalorder %s11, 1
    %p28 = por %p26, %p27
    %p29 = scmp.ne.s32.totalorder %s21, %s24
    %p30 = scmp.eq.s32.totalorder %s11, 0
    %p31 = por %p29, %p30
    %p32 = scmp.ne.s32.totalorder %s21, %s24
    %p33 = scmp.eq.s32.totalorder %s16, 1
    %p34 = por %p32, %p33
    %p35 = scmp.ne.s32.totalorder %s24, %s25
    %p36 = scmp.eq.s32.totalorder %s16, 0
    %p37 = por %p35, %p36
    %p38 = scmp.ne.s32.totalorder %s24, %s25
    %p39 = scmp.eq.s32.totalorder %s17, 1
    %p40 = por %p38, %p39
    %p42 = scmp.ne.s32.totalorder %s25, %s41
    %p43 = scmp.eq.s32.totalorder %s17, 0
    %p44 = por %p42, %p43
    %s46 = sadd.s32 %s45, 1
    %p49 = scmp.eq.s32.totalorder %s11, 1
    %p50 = scmp.ne.s32.totalorder %s45, %s47
    %p51 = scmp.eq.s32.totalorder %s11, 0
    %p52 = por %p50, %p51
    %p53 = scmp.ne.s32.totalorder %s45, %s47
    %p54 = scmp.eq.s32.totalorder %s16, 1
    %p55 = por %p53, %p54
    %p56 = scmp.ne.s32.totalorder %s47, %s48
    %p57 = scmp.eq.s32.totalorder %s16, 0
    %p58 = por %p56, %p57
    %p59 = scmp.ne.s32.totalorder %s47, %s48
    %p60 = scmp.eq.s32.totalorder %s17, 1
    %p61 = por %p59, %p60
    %p63 = scmp.ne.s32.totalorder %s48, %s62
    %p64 = scmp.eq.s32.totalorder %s17, 0
    %p65 = por %p63, %p64
    %s66 = ssub.s32 %s11, %s18
    %p67 = scmp.eq.s32.totalorder %s66, 0
    %s69 = sadd.s32 %s68, 1
    %s70 = scalar_select %p67, %s68, %s69
    %p73 = pneg %p67
    %p74 = scmp.eq.s32.totalorder %s11, 1
    %p75 = por %p73, %p74
    %p76 = scmp.ne.s32.totalorder %s68, %s71
    %p77 = scmp.eq.s32.totalorder %s11, 0
    %p78 = por %p76, %p77
    %p79 = scmp.ne.s32.totalorder %s68, %s71
    %p80 = scmp.eq.s32.totalorder %s16, 1
    %p81 = por %p79, %p80
    %p82 = scmp.ne.s32.totalorder %s71, %s72
    %p83 = scmp.eq.s32.totalorder %s16, 0
    %p84 = por %p82, %p83
    %p85 = scmp.ne.s32.totalorder %s71, %s72
    %p86 = scmp.eq.s32.totalorder %s17, 1
    %p87 = por %p85, %p86
    %p89 = scmp.ne.s32.totalorder %s72, %s88
    %p90 = scmp.eq.s32.totalorder %s17, 0
    %p91 = por %p89, %p90
    %s93 = sadd.s32 %s92, 1
    %p96 = scmp.eq.s32.totalorder %s11, 1
    %p97 = scmp.ne.s32.totalorder %s92, %s94
    %p98 = scmp.eq.s32.totalorder %s11, 0
    %p99 = por %p97, %p98
    %p100 = scmp.ne.s32.totalorder %s92, %s94
    %p101 = scmp.eq.s32.totalorder %s16, 1
    %p102 = por %p100, %p101
    %p103 = scmp.ne.s32.totalorder %s94, %s95
    %p104 = scmp.eq.s32.totalorder %s16, 0
    %p105 = por %p103, %p104
    %p106 = scmp.ne.s32.totalorder %s94, %s95
    %p107 = scmp.eq.s32.totalorder %s17, 1
    %p108 = por %p106, %p107
    %p110 = scmp.ne.s32.totalorder %s95, %s109
    %p111 = scmp.eq.s32.totalorder %s17, 0
    %p112 = por %p110, %p111
    %s114 = sadd.s32 %s113, 1
    %p117 = scmp.eq.s32.totalorder %s11, 1
    %p118 = scmp.ne.s32.totalorder %s113, %s115
    %p119 = scmp.eq.s32.totalorder %s11, 0
    %p120 = por %p118, %p119
    %p121 = scmp.ne.s32.totalorder %s113, %s115
    %p122 = scmp.eq.s32.totalorder %s16, 1
    %p123 = por %p121, %p122
    %p124 = scmp.ne.s32.totalorder %s115, %s116
    %p125 = scmp.eq.s32.totalorder %s16, 0
    %p126 = por %p124, %p125
    %p127 = scmp.ne.s32.totalorder %s115, %s116
    %p128 = scmp.eq.s32.totalorder %s17, 1
    %p129 = por %p127, %p128
    %p131 = scmp.ne.s32.totalorder %s116, %s130
    %p132 = scmp.eq.s32.totalorder %s17, 0
    %p133 = por %p131, %p132
    %p134 = scmp.le.s32.totalorder 1, %s11
    %p135 = scmp.lt.s32.totalorder %s11, 3
    %p136 = pnand %p134, %p135
    %p137 = pneg %p136
    // Predicated region
    $region9: #{basic_block_forward.3} parent=5 // pred_check
      _
    $region10: #{basic_block_forward.3} parent=5 // pred_check_branch
      %139 = sbr.rel (%p136) target = $region12
    $region11: #{basic_block_forward.3} parent=5 // pred_region
      %s140 = ssub.s32 %s11, 1
      // Predicated region
      $region13: #{basic_block_forward.3} parent=11 // pred_check
        %p141 = pneg %p58
      $region14: #{basic_block_forward.3} parent=11 // pred_check_branch
        %143 = sbr.rel (%p141) target = $region16
      $region15: #{basic_block_forward.3} parent=11 // pred_region
        _
      $region16: #{basic_block_forward.3} parent=11 // pred_fallthru
        _
    $region12: #{basic_block_forward.3} parent=5 // pred_fallthru
      _
    %p144 = scmp.lt.s32.totalorder %s11, 2
    // Predicated region
    $region17: #{basic_block_forward.3} parent=5 // pred_check
      %p145 = pneg %p144
    $region18: #{basic_block_forward.3} parent=5 // pred_check_branch
      %147 = sbr.rel (%p145) target = $region20
    $region19: #{basic_block_forward.3} parent=5 // pred_region
      // Predicated region
      $region21: #{basic_block_forward.3} parent=19 // pred_check
        %p148 = pneg %p31
      $region22: #{basic_block_forward.3} parent=19 // pred_check_branch
        %150 = sbr.rel (%p148) target = $region24
      $region23: #{basic_block_forward.3} parent=19 // pred_region
        %p151 = scmp.lt.s32.totalorder %s11, 1
        %s152 = scalar_select %p151, %s11, 1
        %s153 = smul.addr %s152, 32
        %s154 = smul.addr %s153, 8
        %s155 = scalar_lea.vmem %s0, %s154
      $region24: #{basic_block_forward.3} parent=19 // pred_fallthru
        _
    $region20: #{basic_block_forward.3} parent=5 // pred_fallthru
      _
    %p156 = scmp.le.s32.totalorder 1, %s11
    %p157 = scmp.lt.s32.totalorder %s11, 3
    %p158 = pnand %p156, %p157
    %p159 = pneg %p158
    // Predicated region
    $region25: #{basic_block_forward.3} parent=5 // pred_check
      _
    $region26: #{basic_block_forward.3} parent=5 // pred_check_branch
      %161 = sbr.rel (%p158) target = $region28
    $region27: #{basic_block_forward.3} parent=5 // pred_region
      %s162 = ssub.s32 %s11, 1
      %p163 = scmp.lt.s32.totalorder %s16, 1
      %s164 = scalar_select %p163, %s16, 1
      %s165 = smul.addr %s164, 32
      %s166 = smul.addr %s165, 8
      %s167 = scalar_lea.vmem %s0, %s166
      %p168 = pneg %p37
      %p169 = pneg %p34
      %p170 = pneg %p58
      %p171 = pneg %p55
      %p172 = pneg %p84
      %p173 = pneg %p81
      %p174 = scmp.lt.s32.totalorder %s16, 1
      %s175 = scalar_select %p174, %s16, 1
      %s176 = smul.addr %s175, 32
      %s177 = smul.addr %s176, 8
      %s178 = scalar_lea.vmem %s2, %s177
      %p179 = pneg %p105
      %p180 = pneg %p102
      %p181 = pneg %p126
      %p182 = pneg %p123
      %p183 = scmp.lt.s32.totalorder %s16, 1
      %s184 = scalar_select %p183, %s16, 1
      %s185 = smul.addr %s184, 32
      %s186 = smul.addr %s185, 8
      %s187 = scalar_lea.vmem %s0, %s186
      %p188 = scmp.lt.s32.totalorder %s16, 1
      %s189 = scalar_select %p188, %s16, 1
      %s190 = smul.addr %s189, 32
      %s191 = smul.addr %s190, 8
      %s192 = scalar_lea.vmem %s2, %s191
      %p194 = scmp.eq.s32.totalorder %s16, 0
      // Predicated region
      $region29: #{basic_block_forward.3} parent=27 // pred_check
        %p195 = pneg %p194
      $region30: #{basic_block_forward.3} parent=27 // pred_check_branch
        %197 = sbr.rel (%p195) target = $region32
      $region31: #{basic_block_forward.3} parent=27 // pred_region
        %198 = vst [vmem:[%s3] sm:$0x1] 0.0
        %199 = vst [vmem:[%s4] sm:$0x1] 0.0
      $region32: #{basic_block_forward.3} parent=27 // pred_fallthru
        _
      %v200 = vld [vmem:[%s187] sm:$0xff]
      %v201 = vld [vmem:[%s187 + $0x8] sm:$0xff]
      %v202 = vld [vmem:[%s187 + $0x10] sm:$0xff]
      %v203 = vld [vmem:[%s187 + $0x18] sm:$0xff]
      %v204 = vld [vmem:[%s187 + $0x20] sm:$0xff]
      %v205 = vld [vmem:[%s187 + $0x28] sm:$0xff]
      %v206 = vld [vmem:[%s187 + $0x30] sm:$0xff]
      %v207 = vld [vmem:[%s187 + $0x38] sm:$0xff]
      %v208 = vld [vmem:[%s187 + $0x40] sm:$0xff]
      %v209 = vld [vmem:[%s187 + $0x48] sm:$0xff]
      %v210 = vld [vmem:[%s187 + $0x50] sm:$0xff]
      %v211 = vld [vmem:[%s187 + $0x58] sm:$0xff]
      %v212 = vld [vmem:[%s187 + $0x60] sm:$0xff]
      %v213 = vld [vmem:[%s187 + $0x68] sm:$0xff]
      %v214 = vld [vmem:[%s187 + $0x70] sm:$0xff]
      %v215 = vld [vmem:[%s187 + $0x78] sm:$0xff]
      %v216 = vld [vmem:[%s187 + $0x80] sm:$0xff]
      %v217 = vld [vmem:[%s187 + $0x88] sm:$0xff]
      %v218 = vld [vmem:[%s187 + $0x90] sm:$0xff]
      %v219 = vld [vmem:[%s187 + $0x98] sm:$0xff]
      %v220 = vld [vmem:[%s187 + $0xa0] sm:$0xff]
      %v221 = vld [vmem:[%s187 + $0xa8] sm:$0xff]
      %v222 = vld [vmem:[%s187 + $0xb0] sm:$0xff]
      %v223 = vld [vmem:[%s187 + $0xb8] sm:$0xff]
      %v224 = vld [vmem:[%s187 + $0xc0] sm:$0xff]
      %v225 = vld [vmem:[%s187 + $0xc8] sm:$0xff]
      %v226 = vld [vmem:[%s187 + $0xd0] sm:$0xff]
      %v227 = vld [vmem:[%s187 + $0xd8] sm:$0xff]
      %v228 = vld [vmem:[%s187 + $0xe0] sm:$0xff]
      %v229 = vld [vmem:[%s187 + $0xe8] sm:$0xff]
      %v230 = vld [vmem:[%s187 + $0xf0] sm:$0xff]
      %v231 = vld [vmem:[%s187 + $0xf8] sm:$0xff]
      %232 = vst [vmem:[#allocation2] sm:$0xff] 0.0
      %233 = vst [vmem:[#allocation2 + $0x8] sm:$0xff] 0.0
      %234 = vst [vmem:[#allocation2 + $0x10] sm:$0x3] 0.0
      %235 = vst [vmem:[#allocation2 + $0x18] sm:$0xff] 0.0
      %236 = vst [vmem:[#allocation2 + $0x20] sm:$0xff] 0.0
      %237 = vst [vmem:[#allocation2 + $0x28] sm:$0x3] 0.0
      %238 = vst [vmem:[#allocation2 + $0x30] sm:$0xff] 0.0
      %239 = vst [vmem:[#allocation2 + $0x38] sm:$0xff] 0.0
      %240 = vst [vmem:[#allocation2 + $0x40] sm:$0x3] 0.0
      %241 = vst [vmem:[#allocation2 + $0x48] sm:$0xff] 0.0
      %242 = vst [vmem:[#allocation2 + $0x50] sm:$0xff] 0.0
      %243 = vst [vmem:[#allocation2 + $0x58] sm:$0x3] 0.0
      %244 = vst [vmem:[#allocation2 + $0x60] sm:$0xff] 0.0
      %245 = vst [vmem:[#allocation2 + $0x68] sm:$0xff] 0.0
      %246 = vst [vmem:[#allocation2 + $0x70] sm:$0x3] 0.0
      %247 = vst [vmem:[#allocation2 + $0x78] sm:$0xff] 0.0
      %248 = vst [vmem:[#allocation2 + $0x80] sm:$0xff] 0.0
      %249 = vst [vmem:[#allocation2 + $0x88] sm:$0x3] 0.0
      %250 = vst [vmem:[#allocation2 + $0x90] sm:$0xff] 0.0
      %251 = vst [vmem:[#allocation2 + $0x98] sm:$0xff] 0.0
      %252 = vst [vmem:[#allocation2 + $0xa0] sm:$0x3] 0.0
      %253 = vst [vmem:[#allocation2 + $0xa8] sm:$0xff] 0.0
      %254 = vst [vmem:[#allocation2 + $0xb0] sm:$0xff] 0.0
      %255 = vst [vmem:[#allocation2 + $0xb8] sm:$0x3] 0.0
      %256 = vst [vmem:[#allocation2 + $0xc0] sm:$0xff] 0.0
      %257 = vst [vmem:[#allocation2 + $0xc8] sm:$0xff] 0.0
      %258 = vst [vmem:[#allocation2 + $0xd0] sm:$0x3] 0.0
      %259 = vst [vmem:[#allocation2 + $0xd8] sm:$0xff] 0.0
      %260 = vst [vmem:[#allocation2 + $0xe0] sm:$0xff] 0.0
      %261 = vst [vmem:[#allocation2 + $0xe8] sm:$0x3] 0.0
      %262 = vst [vmem:[#allocation2 + $0xf0] sm:$0xff] 0.0
      %263 = vst [vmem:[#allocation2 + $0xf8] sm:$0xff] 0.0
      %264 = vst [vmem:[#allocation2 + $0x100] sm:$0x3] 0.0
      %265 = vst [vmem:[#allocation2 + $0x108] sm:$0xff] 0.0
      %266 = vst [vmem:[#allocation2 + $0x110] sm:$0xff] 0.0
      %267 = vst [vmem:[#allocation2 + $0x118] sm:$0x3] 0.0
      %268 = vst [vmem:[#allocation2 + $0x120] sm:$0xff] 0.0
      %269 = vst [vmem:[#allocation2 + $0x128] sm:$0xff] 0.0
      %270 = vst [vmem:[#allocation2 + $0x130] sm:$0x3] 0.0
      %271 = vst [vmem:[#allocation2 + $0x138] sm:$0xff] 0.0
      %272 = vst [vmem:[#allocation2 + $0x140] sm:$0xff] 0.0
      %273 = vst [vmem:[#allocation2 + $0x148] sm:$0x3] 0.0
      %274 = vst [vmem:[#allocation2 + $0x150] sm:$0xff] 0.0
      %275 = vst [vmem:[#allocation2 + $0x158] sm:$0xff] 0.0
      %276 = vst [vmem:[#allocation2 + $0x160] sm:$0x3] 0.0
      %277 = vst [vmem:[#allocation2 + $0x168] sm:$0xff] 0.0
      %278 = vst [vmem:[#allocation2 + $0x170] sm:$0xff] 0.0
      %279 = vst [vmem:[#allocation2 + $0x178] sm:$0x3] 0.0
      %280 = vst [vmem:[#allocation2 + $0x180] sm:$0xff] 0.0
      %281 = vst [vmem:[#allocation2 + $0x188] sm:$0xff] 0.0
      %282 = vst [vmem:[#allocation2 + $0x190] sm:$0x3] 0.0
      %283 = vst [vmem:[#allocation2 + $0x198] sm:$0xff] 0.0
      %284 = vst [vmem:[#allocation2 + $0x1a0] sm:$0xff] 0.0
      %285 = vst [vmem:[#allocation2 + $0x1a8] sm:$0x3] 0.0
      %s286 = scalar_lea.vmem [#allocation2], 24
      %287 = vst [vmem:[%s286 + $0x1] sm:$0xff] %v200
      %288 = vst [vmem:[%s286 + $0x9] sm:$0xff] %v201
      %289 = vst [vmem:[%s286 + $0x19] sm:$0xff] %v202
      %290 = vst [vmem:[%s286 + $0x21] sm:$0xff] %v203
      %291 = vst [vmem:[%s286 + $0x31] sm:$0xff] %v204
      %292 = vst [vmem:[%s286 + $0x39] sm:$0xff] %v205
      %293 = vst [vmem:[%s286 + $0x49] sm:$0xff] %v206
      %294 = vst [vmem:[%s286 + $0x51] sm:$0xff] %v207
      %295 = vst [vmem:[%s286 + $0x61] sm:$0xff] %v208
      %296 = vst [vmem:[%s286 + $0x69] sm:$0xff] %v209
      %297 = vst [vmem:[%s286 + $0x79] sm:$0xff] %v210
      %298 = vst [vmem:[%s286 + $0x81] sm:$0xff] %v211
      %299 = vst [vmem:[%s286 + $0x91] sm:$0xff] %v212
      %300 = vst [vmem:[%s286 + $0x99] sm:$0xff] %v213
      %301 = vst [vmem:[%s286 + $0xa9] sm:$0xff] %v214
      %302 = vst [vmem:[%s286 + $0xb1] sm:$0xff] %v215
      %303 = vst [vmem:[%s286 + $0xc1] sm:$0xff] %v216
      %304 = vst [vmem:[%s286 + $0xc9] sm:$0xff] %v217
      %305 = vst [vmem:[%s286 + $0xd9] sm:$0xff] %v218
      %306 = vst [vmem:[%s286 + $0xe1] sm:$0xff] %v219
      %307 = vst [vmem:[%s286 + $0xf1] sm:$0xff] %v220
      %308 = vst [vmem:[%s286 + $0xf9] sm:$0xff] %v221
      %309 = vst [vmem:[%s286 + $0x109] sm:$0xff] %v222
      %310 = vst [vmem:[%s286 + $0x111] sm:$0xff] %v223
      %311 = vst [vmem:[%s286 + $0x121] sm:$0xff] %v224
      %312 = vst [vmem:[%s286 + $0x129] sm:$0xff] %v225
      %313 = vst [vmem:[%s286 + $0x139] sm:$0xff] %v226
      %314 = vst [vmem:[%s286 + $0x141] sm:$0xff] %v227
      %315 = vst [vmem:[%s286 + $0x151] sm:$0xff] %v228
      %316 = vst [vmem:[%s286 + $0x159] sm:$0xff] %v229
      %317 = vst [vmem:[%s286 + $0x169] sm:$0xff] %v230
      %318 = vst [vmem:[%s286 + $0x171] sm:$0xff] %v231
      %v319 = vld [vmem:[#allocation2] sm:$0xff]
      %v320 = vld [vmem:[#allocation2 + $0x8] sm:$0xff]
      %v321 = vld [vmem:[#allocation2 + $0x18] sm:$0xff]
      %v322 = vld [vmem:[#allocation2 + $0x20] sm:$0xff]
      %v323 = vld [vmem:[#allocation2 + $0x30] sm:$0xff]
      %v324 = vld [vmem:[#allocation2 + $0x38] sm:$0xff]
      %v325 = vld [vmem:[#allocation2 + $0x48] sm:$0xff]
      %v326 = vld [vmem:[#allocation2 + $0x50] sm:$0xff]
      %v327 = vld [vmem:[#allocation2 + $0x60] sm:$0xff]
      %v328 = vld [vmem:[#allocation2 + $0x68] sm:$0xff]
      %v329 = vld [vmem:[#allocation2 + $0x78] sm:$0xff]
      %v330 = vld [vmem:[#allocation2 + $0x80] sm:$0xff]
      %v331 = vld [vmem:[#allocation2 + $0x90] sm:$0xff]
      %v332 = vld [vmem:[#allocation2 + $0x98] sm:$0xff]
      %v333 = vld [vmem:[#allocation2 + $0xa8] sm:$0xff]
      %v334 = vld [vmem:[#allocation2 + $0xb0] sm:$0xff]
      %v335 = vld [vmem:[#allocation2 + $0xc0] sm:$0xff]
      %v336 = vld [vmem:[#allocation2 + $0xc8] sm:$0xff]
      %v337 = vld [vmem:[#allocation2 + $0xd8] sm:$0xff]
      %v338 = vld [vmem:[#allocation2 + $0xe0] sm:$0xff]
      %v339 = vld [vmem:[#allocation2 + $0xf0] sm:$0xff]
      %v340 = vld [vmem:[#allocation2 + $0xf8] sm:$0xff]
      %v341 = vld [vmem:[#allocation2 + $0x108] sm:$0xff]
      %v342 = vld [vmem:[#allocation2 + $0x110] sm:$0xff]
      %v343 = vld [vmem:[#allocation2 + $0x120] sm:$0xff]
      %v344 = vld [vmem:[#allocation2 + $0x128] sm:$0xff]
      %v345 = vld [vmem:[#allocation2 + $0x138] sm:$0xff]
      %v346 = vld [vmem:[#allocation2 + $0x140] sm:$0xff]
      %v347 = vld [vmem:[#allocation2 + $0x150] sm:$0xff]
      %v348 = vld [vmem:[#allocation2 + $0x158] sm:$0xff]
      %v349 = vld [vmem:[#allocation2 + $0x168] sm:$0xff]
      %v350 = vld [vmem:[#allocation2 + $0x170] sm:$0xff]
      %v351 = vpack.c.bf16 %v320, %v319
      %v352 = vpack.c.bf16 %v322, %v321
      %v353 = vpack.c.bf16 %v324, %v323
      %v354 = vpack.c.bf16 %v326, %v325
      %v355 = vpack.c.bf16 %v328, %v327
      %v356 = vpack.c.bf16 %v330, %v329
      %v357 = vpack.c.bf16 %v332, %v331
      %v358 = vpack.c.bf16 %v334, %v333
      %v359 = vpack.c.bf16 %v336, %v335
      %v360 = vpack.c.bf16 %v338, %v337
      %v361 = vpack.c.bf16 %v340, %v339
      %v362 = vpack.c.bf16 %v342, %v341
      %v363 = vpack.c.bf16 %v344, %v343
      %v364 = vpack.c.bf16 %v346, %v345
      %v365 = vpack.c.bf16 %v348, %v347
      %v366 = vpack.c.bf16 %v350, %v349
      %v367 = vld [vmem:[%s1] sm:$0xf]
      %v368 = vld [vmem:[%s1 + $0x4] sm:$0xf]
      %v369 = vld [vmem:[%s1 + $0x8] sm:$0xf]
      %v370 = vld [vmem:[%s1 + $0xc] sm:$0xf]
      %v371 = vld [vmem:[%s1 + $0x10] sm:$0xf]
      %v372 = vld [vmem:[%s1 + $0x14] sm:$0xf]
      %v373 = vld [vmem:[%s1 + $0x18] sm:$0xf]
      %v374 = vld [vmem:[%s1 + $0x1c] sm:$0xf]
      %v375 = vld [vmem:[%s1 + $0x20] sm:$0xf]
      %v376 = vld [vmem:[%s1 + $0x24] sm:$0xf]
      %v377 = vld [vmem:[%s1 + $0x28] sm:$0xf]
      %v378 = vld [vmem:[%s1 + $0x2c] sm:$0xf]
      %v379 = vld [vmem:[%s1 + $0x30] sm:$0xf]
      %v380 = vld [vmem:[%s1 + $0x34] sm:$0xf]
      %v381 = vld [vmem:[%s1 + $0x38] sm:$0xf]
      %v382 = vld [vmem:[%s1 + $0x3c] sm:$0xf]
      %v383 = vld [vmem:[#allocation2 + $0x1] sm:$0xff]
      %v384 = vld [vmem:[#allocation2 + $0x9] sm:$0xff]
      %v385 = vld [vmem:[#allocation2 + $0x19] sm:$0xff]
      %v386 = vld [vmem:[#allocation2 + $0x21] sm:$0xff]
      %v387 = vld [vmem:[#allocation2 + $0x31] sm:$0xff]
      %v388 = vld [vmem:[#allocation2 + $0x39] sm:$0xff]
      %v389 = vld [vmem:[#allocation2 + $0x49] sm:$0xff]
      %v390 = vld [vmem:[#allocation2 + $0x51] sm:$0xff]
      %v391 = vld [vmem:[#allocation2 + $0x61] sm:$0xff]
      %v392 = vld [vmem:[#allocation2 + $0x69] sm:$0xff]
      %v393 = vld [vmem:[#allocation2 + $0x79] sm:$0xff]
      %v394 = vld [vmem:[#allocation2 + $0x81] sm:$0xff]
      %v395 = vld [vmem:[#allocation2 + $0x91] sm:$0xff]
      %v396 = vld [vmem:[#allocation2 + $0x99] sm:$0xff]
      %v397 = vld [vmem:[#allocation2 + $0xa9] sm:$0xff]
      %v398 = vld [vmem:[#allocation2 + $0xb1] sm:$0xff]
      %v399 = vld [vmem:[#allocation2 + $0xc1] sm:$0xff]
      %v400 = vld [vmem:[#allocation2 + $0xc9] sm:$0xff]
      %v401 = vld [vmem:[#allocation2 + $0xd9] sm:$0xff]
      %v402 = vld [vmem:[#allocation2 + $0xe1] sm:$0xff]
      %v403 = vld [vmem:[#allocation2 + $0xf1] sm:$0xff]
      %v404 = vld [vmem:[#allocation2 + $0xf9] sm:$0xff]
      %v405 = vld [vmem:[#allocation2 + $0x109] sm:$0xff]
      %v406 = vld [vmem:[#allocation2 + $0x111] sm:$0xff]
      %v407 = vld [vmem:[#allocation2 + $0x121] sm:$0xff]
      %v408 = vld [vmem:[#allocation2 + $0x129] sm:$0xff]
      %v409 = vld [vmem:[#allocation2 + $0x139] sm:$0xff]
      %v410 = vld [vmem:[#allocation2 + $0x141] sm:$0xff]
      %v411 = vld [vmem:[#allocation2 + $0x151] sm:$0xff]
      %v412 = vld [vmem:[#allocation2 + $0x159] sm:$0xff]
      %v413 = vld [vmem:[#allocation2 + $0x169] sm:$0xff]
      %v414 = vld [vmem:[#allocation2 + $0x171] sm:$0xff]
      %v415 = vpack.c.bf16 %v384, %v383
      %v416 = vpack.c.bf16 %v386, %v385
      %v417 = vpack.c.bf16 %v388, %v387
      %v418 = vpack.c.bf16 %v390, %v389
      %v419 = vpack.c.bf16 %v392, %v391
      %v420 = vpack.c.bf16 %v394, %v393
      %v421 = vpack.c.bf16 %v396, %v395
      %v422 = vpack.c.bf16 %v398, %v397
      %v423 = vpack.c.bf16 %v400, %v399
      %v424 = vpack.c.bf16 %v402, %v401
      %v425 = vpack.c.bf16 %v404, %v403
      %v426 = vpack.c.bf16 %v406, %v405
      %v427 = vpack.c.bf16 %v408, %v407
      %v428 = vpack.c.bf16 %v410, %v409
      %v429 = vpack.c.bf16 %v412, %v411
      %v430 = vpack.c.bf16 %v414, %v413
      %s431 = scalar_lea.vmem %s1, 64
      %v432 = vld [vmem:[%s431] sm:$0xf]
      %v433 = vld [vmem:[%s431 + $0x4] sm:$0xf]
      %v434 = vld [vmem:[%s431 + $0x8] sm:$0xf]
      %v435 = vld [vmem:[%s431 + $0xc] sm:$0xf]
      %v436 = vld [vmem:[%s431 + $0x10] sm:$0xf]
      %v437 = vld [vmem:[%s431 + $0x14] sm:$0xf]
      %v438 = vld [vmem:[%s431 + $0x18] sm:$0xf]
      %v439 = vld [vmem:[%s431 + $0x1c] sm:$0xf]
      %v440 = vld [vmem:[%s431 + $0x20] sm:$0xf]
      %v441 = vld [vmem:[%s431 + $0x24] sm:$0xf]
      %v442 = vld [vmem:[%s431 + $0x28] sm:$0xf]
      %v443 = vld [vmem:[%s431 + $0x2c] sm:$0xf]
      %v444 = vld [vmem:[%s431 + $0x30] sm:$0xf]
      %v445 = vld [vmem:[%s431 + $0x34] sm:$0xf]
      %v446 = vld [vmem:[%s431 + $0x38] sm:$0xf]
      %v447 = vld [vmem:[%s431 + $0x3c] sm:$0xf]
      %v464 = vunpack.c.l.b16 %v432
      %v465 = vunpack.c.l.b16 %v433
      %v466 = vunpack.c.l.b16 %v434
      %v467 = vunpack.c.l.b16 %v435
      %v468 = vunpack.c.l.b16 %v436
      %v469 = vunpack.c.l.b16 %v437
      %v470 = vunpack.c.l.b16 %v438
      %v471 = vunpack.c.l.b16 %v439
      %v472 = vunpack.c.l.b16 %v440
      %v473 = vunpack.c.l.b16 %v441
      %v474 = vunpack.c.l.b16 %v442
      %v475 = vunpack.c.l.b16 %v443
      %v476 = vunpack.c.l.b16 %v444
      %v477 = vunpack.c.l.b16 %v445
      %v478 = vunpack.c.l.b16 %v446
      %v479 = vunpack.c.l.b16 %v447
      %v480 = vpack.c.b16 %v465, %v464
      %v481 = vpack.c.b16 %v467, %v466
      %v482 = vpack.c.b16 %v469, %v468
      %v483 = vpack.c.b16 %v471, %v470
      %v484 = vpack.c.b16 %v473, %v472
      %v485 = vpack.c.b16 %v475, %v474
      %v486 = vpack.c.b16 %v477, %v476
      %v487 = vpack.c.b16 %v479, %v478
      %496 = vmatprep.subr.bf16.mxu0 0
      %497 = vmatpush1.bf16.msra.mxu0 %v487
      %498 = vmatprep.subr.bf16.mxu0 0
      %499 = vmatpush1.bf16.msra.mxu0 %v486
      %500 = vmatprep.subr.bf16.mxu0 0
      %501 = vmatpush1.bf16.msra.mxu0 %v485
      %502 = vmatprep.subr.bf16.mxu0 0
      %503 = vmatpush1.bf16.msra.mxu0 %v484
      %504 = vmatprep.subr.bf16.mxu0 0
      %505 = vmatpush1.bf16.msra.mxu0 %v483
      %506 = vmatprep.subr.bf16.mxu0 0
      %507 = vmatpush1.bf16.msra.mxu0 %v482
      %508 = vmatprep.subr.bf16.mxu0 0
      %509 = vmatpush1.bf16.msra.mxu0 %v481
      %510 = vmatprep.subr.bf16.mxu0 0
      %511 = vmatpush1.bf16.msra.mxu0 %v480
      %512 = vmatprep.subr.bf16.mxu0 0
      %513 = vmatpush2.bf16.msra.mxu0 0
      %514 = vmatprep.subr.bf16.mxu0 0
      %515 = vmatpush2.bf16.msra.mxu0 0
      %516 = vmatprep.subr.bf16.mxu0 0
      %517 = vmatpush2.bf16.msra.mxu0 0
      %518 = vmatprep.subr.bf16.mxu0 0
      %519 = vmatpush2.bf16.msra.mxu0 0
      %520 = vmatprep.subr.bf16.mxu0 0
      %521 = vmatpush2.bf16.msra.mxu0 0
      %522 = vmatprep.subr.bf16.mxu0 0
      %523 = vmatpush2.bf16.msra.mxu0 0
      %524 = vmatprep.subr.bf16.mxu0 0
      %525 = vmatpush2.bf16.msra.mxu0 0
      %526 = vmatprep.subr.bf16.mxu0 0
      %527 = vmatpush2.bf16.msra.mxu0 0
      %528 = vmatprep.mubr.bf16.mxu0 0
      %529 = vmatmul.mubr.bf16.gmra.mxu0 %v415
      %v530 = vpop.f32.mrf.mxu0
      %v531 = vadd.f32 0.0, %v530
      %v532 = vpop.f32.mrf.mxu0
      %v533 = vpop.f32.mrf.mxu0
      %v534 = vadd.f32 0.0, %v533
      %v535 = vpop.f32.mrf.mxu0
      %536 = vmatprep.mubr.bf16.mxu0 0
      %537 = vmatmul.mubr.bf16.gmra.mxu0 %v416
      %v538 = vpop.f32.mrf.mxu0
      %v539 = vadd.f32 0.0, %v538
      %v540 = vpop.f32.mrf.mxu0
      %v541 = vpop.f32.mrf.mxu0
      %v542 = vadd.f32 0.0, %v541
      %v543 = vpop.f32.mrf.mxu0
      %544 = vmatprep.mubr.bf16.mxu0 0
      %545 = vmatmul.mubr.bf16.gmra.mxu0 %v417
      %v546 = vpop.f32.mrf.mxu0
      %v547 = vadd.f32 0.0, %v546
      %v548 = vpop.f32.mrf.mxu0
      %v549 = vpop.f32.mrf.mxu0
      %v550 = vadd.f32 0.0, %v549
      %v551 = vpop.f32.mrf.mxu0
      %552 = vmatprep.mubr.bf16.mxu0 0
      %553 = vmatmul.mubr.bf16.gmra.mxu0 %v418
      %v554 = vpop.f32.mrf.mxu0
      %v555 = vadd.f32 0.0, %v554
      %v556 = vpop.f32.mrf.mxu0
      %v557 = vpop.f32.mrf.mxu0
      %v558 = vadd.f32 0.0, %v557
      %v559 = vpop.f32.mrf.mxu0
      %560 = vmatprep.mubr.bf16.mxu0 0
      %561 = vmatmul.mubr.bf16.gmra.mxu0 %v419
      %v562 = vpop.f32.mrf.mxu0
      %v563 = vadd.f32 0.0, %v562
      %v564 = vpop.f32.mrf.mxu0
      %v565 = vpop.f32.mrf.mxu0
      %v566 = vadd.f32 0.0, %v565
      %v567 = vpop.f32.mrf.mxu0
      %568 = vmatprep.mubr.bf16.mxu0 0
      %569 = vmatmul.mubr.bf16.gmra.mxu0 %v420
      %v570 = vpop.f32.mrf.mxu0
      %v571 = vadd.f32 0.0, %v570
      %v572 = vpop.f32.mrf.mxu0
      %v573 = vpop.f32.mrf.mxu0
      %v574 = vadd.f32 0.0, %v573
      %v575 = vpop.f32.mrf.mxu0
      %576 = vmatprep.mubr.bf16.mxu0 0
      %577 = vmatmul.mubr.bf16.gmra.mxu0 %v421
      %v578 = vpop.f32.mrf.mxu0
      %v579 = vadd.f32 0.0, %v578
      %v580 = vpop.f32.mrf.mxu0
      %v581 = vpop.f32.mrf.mxu0
      %v582 = vadd.f32 0.0, %v581
      %v583 = vpop.f32.mrf.mxu0
      %584 = vmatprep.mubr.bf16.mxu0 0
      %585 = vmatmul.mubr.bf16.gmra.mxu0 %v422
      %v586 = vpop.f32.mrf.mxu0
      %v587 = vadd.f32 0.0, %v586
      %v588 = vpop.f32.mrf.mxu0
      %v589 = vpop.f32.mrf.mxu0
      %v590 = vadd.f32 0.0, %v589
      %v591 = vpop.f32.mrf.mxu0
      %592 = vmatprep.mubr.bf16.mxu0 0
      %593 = vmatmul.mubr.bf16.gmra.mxu0 %v423
      %v594 = vpop.f32.mrf.mxu0
      %v595 = vadd.f32 0.0, %v594
      %v596 = vpop.f32.mrf.mxu0
      %v597 = vpop.f32.mrf.mxu0
      %v598 = vadd.f32 0.0, %v597
      %v599 = vpop.f32.mrf.mxu0
      %600 = vmatprep.mubr.bf16.mxu0 0
      %601 = vmatmul.mubr.bf16.gmra.mxu0 %v424
      %v602 = vpop.f32.mrf.mxu0
      %v603 = vadd.f32 0.0, %v602
      %v604 = vpop.f32.mrf.mxu0
      %v605 = vpop.f32.mrf.mxu0
      %v606 = vadd.f32 0.0, %v605
      %v607 = vpop.f32.mrf.mxu0
      %608 = vmatprep.mubr.bf16.mxu0 0
      %609 = vmatmul.mubr.bf16.gmra.mxu0 %v425
      %v610 = vpop.f32.mrf.mxu0
      %v611 = vadd.f32 0.0, %v610
      %v612 = vpop.f32.mrf.mxu0
      %v613 = vpop.f32.mrf.mxu0
      %v614 = vadd.f32 0.0, %v613
      %v615 = vpop.f32.mrf.mxu0
      %616 = vmatprep.mubr.bf16.mxu0 0
      %617 = vmatmul.mubr.bf16.gmra.mxu0 %v426
      %v618 = vpop.f32.mrf.mxu0
      %v619 = vadd.f32 0.0, %v618
      %v620 = vpop.f32.mrf.mxu0
      %v621 = vpop.f32.mrf.mxu0
      %v622 = vadd.f32 0.0, %v621
      %v623 = vpop.f32.mrf.mxu0
      %624 = vmatprep.mubr.bf16.mxu0 0
      %625 = vmatmul.mubr.bf16.gmra.mxu0 %v427
      %v626 = vpop.f32.mrf.mxu0
      %v627 = vadd.f32 0.0, %v626
      %v628 = vpop.f32.mrf.mxu0
      %v629 = vpop.f32.mrf.mxu0
      %v630 = vadd.f32 0.0, %v629
      %v631 = vpop.f32.mrf.mxu0
      %632 = vmatprep.mubr.bf16.mxu0 0
      %633 = vmatmul.mubr.bf16.gmra.mxu0 %v428
      %v634 = vpop.f32.mrf.mxu0
      %v635 = vadd.f32 0.0, %v634
      %v636 = vpop.f32.mrf.mxu0
      %v637 = vpop.f32.mrf.mxu0
      %v638 = vadd.f32 0.0, %v637
      %v639 = vpop.f32.mrf.mxu0
      %640 = vmatprep.mubr.bf16.mxu0 0
      %641 = vmatmul.mubr.bf16.gmra.mxu0 %v429
      %v642 = vpop.f32.mrf.mxu0
      %v643 = vadd.f32 0.0, %v642
      %v644 = vpop.f32.mrf.mxu0
      %v645 = vpop.f32.mrf.mxu0
      %v646 = vadd.f32 0.0, %v645
      %v647 = vpop.f32.mrf.mxu0
      %648 = vmatprep.mubr.bf16.mxu0 0
      %649 = vmatmul.mubr.bf16.gmra.mxu0 %v430
      %v650 = vpop.f32.mrf.mxu0
      %v651 = vadd.f32 0.0, %v650
      %v652 = vpop.f32.mrf.mxu0
      %v653 = vpop.f32.mrf.mxu0
      %v654 = vadd.f32 0.0, %v653
      %v655 = vpop.f32.mrf.mxu0
      %656 = vdwg.mxu0
      %v673 = vunpack.c.l.b16 %v367
      %v674 = vunpack.c.l.b16 %v368
      %v675 = vunpack.c.l.b16 %v369
      %v676 = vunpack.c.l.b16 %v370
      %v677 = vunpack.c.l.b16 %v371
      %v678 = vunpack.c.l.b16 %v372
      %v679 = vunpack.c.l.b16 %v373
      %v680 = vunpack.c.l.b16 %v374
      %v681 = vunpack.c.l.b16 %v375
      %v682 = vunpack.c.l.b16 %v376
      %v683 = vunpack.c.l.b16 %v377
      %v684 = vunpack.c.l.b16 %v378
      %v685 = vunpack.c.l.b16 %v379
      %v686 = vunpack.c.l.b16 %v380
      %v687 = vunpack.c.l.b16 %v381
      %v688 = vunpack.c.l.b16 %v382
      %v689 = vpack.c.b16 %v674, %v673
      %v690 = vpack.c.b16 %v676, %v675
      %v691 = vpack.c.b16 %v678, %v677
      %v692 = vpack.c.b16 %v680, %v679
      %v693 = vpack.c.b16 %v682, %v681
      %v694 = vpack.c.b16 %v684, %v683
      %v695 = vpack.c.b16 %v686, %v685
      %v696 = vpack.c.b16 %v688, %v687
      %705 = vmatprep.subr.bf16.mxu0 0
      %706 = vmatpush1.bf16.msra.mxu0 %v696
      %707 = vmatprep.subr.bf16.mxu0 0
      %708 = vmatpush1.bf16.msra.mxu0 %v695
      %709 = vmatprep.subr.bf16.mxu0 0
      %710 = vmatpush1.bf16.msra.mxu0 %v694
      %711 = vmatprep.subr.bf16.mxu0 0
      %712 = vmatpush1.bf16.msra.mxu0 %v693
      %713 = vmatprep.subr.bf16.mxu0 0
      %714 = vmatpush1.bf16.msra.mxu0 %v692
      %715 = vmatprep.subr.bf16.mxu0 0
      %716 = vmatpush1.bf16.msra.mxu0 %v691
      %717 = vmatprep.subr.bf16.mxu0 0
      %718 = vmatpush1.bf16.msra.mxu0 %v690
      %719 = vmatprep.subr.bf16.mxu0 0
      %720 = vmatpush1.bf16.msra.mxu0 %v689
      %721 = vmatprep.subr.bf16.mxu0 0
      %722 = vmatpush2.bf16.msra.mxu0 0
      %723 = vmatprep.subr.bf16.mxu0 0
      %724 = vmatpush2.bf16.msra.mxu0 0
      %725 = vmatprep.subr.bf16.mxu0 0
      %726 = vmatpush2.bf16.msra.mxu0 0
      %727 = vmatprep.subr.bf16.mxu0 0
      %728 = vmatpush2.bf16.msra.mxu0 0
      %729 = vmatprep.subr.bf16.mxu0 0
      %730 = vmatpush2.bf16.msra.mxu0 0
      %731 = vmatprep.subr.bf16.mxu0 0
      %732 = vmatpush2.bf16.msra.mxu0 0
      %733 = vmatprep.subr.bf16.mxu0 0
      %734 = vmatpush2.bf16.msra.mxu0 0
      %735 = vmatprep.subr.bf16.mxu0 0
      %736 = vmatpush2.bf16.msra.mxu0 0
      %737 = vmatprep.mubr.bf16.mxu0 0
      %738 = vmatmul.mubr.bf16.gmra.mxu0 %v351
      %v739 = vpop.f32.mrf.mxu0
      %v740 = vadd.f32 %v531, %v739
      %v741 = vpop.f32.mrf.mxu0
      %v742 = vpop.f32.mrf.mxu0
      %v743 = vadd.f32 %v534, %v742
      %v744 = vpop.f32.mrf.mxu0
      %745 = vmatprep.mubr.bf16.mxu0 0
      %746 = vmatmul.mubr.bf16.gmra.mxu0 %v352
      %v747 = vpop.f32.mrf.mxu0
      %v748 = vadd.f32 %v539, %v747
      %v749 = vpop.f32.mrf.mxu0
      %v750 = vpop.f32.mrf.mxu0
      %v751 = vadd.f32 %v542, %v750
      %v752 = vpop.f32.mrf.mxu0
      %753 = vmatprep.mubr.bf16.mxu0 0
      %754 = vmatmul.mubr.bf16.gmra.mxu0 %v353
      %v755 = vpop.f32.mrf.mxu0
      %v756 = vadd.f32 %v547, %v755
      %v757 = vpop.f32.mrf.mxu0
      %v758 = vpop.f32.mrf.mxu0
      %v759 = vadd.f32 %v550, %v758
      %v760 = vpop.f32.mrf.mxu0
      %761 = vmatprep.mubr.bf16.mxu0 0
      %762 = vmatmul.mubr.bf16.gmra.mxu0 %v354
      %v763 = vpop.f32.mrf.mxu0
      %v764 = vadd.f32 %v555, %v763
      %v765 = vpop.f32.mrf.mxu0
      %v766 = vpop.f32.mrf.mxu0
      %v767 = vadd.f32 %v558, %v766
      %v768 = vpop.f32.mrf.mxu0
      %769 = vmatprep.mubr.bf16.mxu0 0
      %770 = vmatmul.mubr.bf16.gmra.mxu0 %v355
      %v771 = vpop.f32.mrf.mxu0
      %v772 = vadd.f32 %v563, %v771
      %v773 = vpop.f32.mrf.mxu0
      %v774 = vpop.f32.mrf.mxu0
      %v775 = vadd.f32 %v566, %v774
      %v776 = vpop.f32.mrf.mxu0
      %777 = vmatprep.mubr.bf16.mxu0 0
      %778 = vmatmul.mubr.bf16.gmra.mxu0 %v356
      %v779 = vpop.f32.mrf.mxu0
      %v780 = vadd.f32 %v571, %v779
      %v781 = vpop.f32.mrf.mxu0
      %v782 = vpop.f32.mrf.mxu0
      %v783 = vadd.f32 %v574, %v782
      %v784 = vpop.f32.mrf.mxu0
      %785 = vmatprep.mubr.bf16.mxu0 0
      %786 = vmatmul.mubr.bf16.gmra.mxu0 %v357
      %v787 = vpop.f32.mrf.mxu0
      %v788 = vadd.f32 %v579, %v787
      %v789 = vpop.f32.mrf.mxu0
      %v790 = vpop.f32.mrf.mxu0
      %v791 = vadd.f32 %v582, %v790
      %v792 = vpop.f32.mrf.mxu0
      %793 = vmatprep.mubr.bf16.mxu0 0
      %794 = vmatmul.mubr.bf16.gmra.mxu0 %v358
      %v795 = vpop.f32.mrf.mxu0
      %v796 = vadd.f32 %v587, %v795
      %v797 = vpop.f32.mrf.mxu0
      %v798 = vpop.f32.mrf.mxu0
      %v799 = vadd.f32 %v590, %v798
      %v800 = vpop.f32.mrf.mxu0
      %801 = vmatprep.mubr.bf16.mxu0 0
      %802 = vmatmul.mubr.bf16.gmra.mxu0 %v359
      %v803 = vpop.f32.mrf.mxu0
      %v804 = vadd.f32 %v595, %v803
      %v805 = vpop.f32.mrf.mxu0
      %v806 = vpop.f32.mrf.mxu0
      %v807 = vadd.f32 %v598, %v806
      %v808 = vpop.f32.mrf.mxu0
      %809 = vmatprep.mubr.bf16.mxu0 0
      %810 = vmatmul.mubr.bf16.gmra.mxu0 %v360
      %v811 = vpop.f32.mrf.mxu0
      %v812 = vadd.f32 %v603, %v811
      %v813 = vpop.f32.mrf.mxu0
      %v814 = vpop.f32.mrf.mxu0
      %v815 = vadd.f32 %v606, %v814
      %v816 = vpop.f32.mrf.mxu0
      %817 = vmatprep.mubr.bf16.mxu0 0
      %818 = vmatmul.mubr.bf16.gmra.mxu0 %v361
      %v819 = vpop.f32.mrf.mxu0
      %v820 = vadd.f32 %v611, %v819
      %v821 = vpop.f32.mrf.mxu0
      %v822 = vpop.f32.mrf.mxu0
      %v823 = vadd.f32 %v614, %v822
      %v824 = vpop.f32.mrf.mxu0
      %825 = vmatprep.mubr.bf16.mxu0 0
      %826 = vmatmul.mubr.bf16.gmra.mxu0 %v362
      %v827 = vpop.f32.mrf.mxu0
      %v828 = vadd.f32 %v619, %v827
      %v829 = vpop.f32.mrf.mxu0
      %v830 = vpop.f32.mrf.mxu0
      %v831 = vadd.f32 %v622, %v830
      %v832 = vpop.f32.mrf.mxu0
      %833 = vmatprep.mubr.bf16.mxu0 0
      %834 = vmatmul.mubr.bf16.gmra.mxu0 %v363
      %v835 = vpop.f32.mrf.mxu0
      %v836 = vadd.f32 %v627, %v835
      %v837 = vpop.f32.mrf.mxu0
      %v838 = vpop.f32.mrf.mxu0
      %v839 = vadd.f32 %v630, %v838
      %v840 = vpop.f32.mrf.mxu0
      %841 = vmatprep.mubr.bf16.mxu0 0
      %842 = vmatmul.mubr.bf16.gmra.mxu0 %v364
      %v843 = vpop.f32.mrf.mxu0
      %v844 = vadd.f32 %v635, %v843
      %v845 = vpop.f32.mrf.mxu0
      %v846 = vpop.f32.mrf.mxu0
      %v847 = vadd.f32 %v638, %v846
      %v848 = vpop.f32.mrf.mxu0
      %849 = vmatprep.mubr.bf16.mxu0 0
      %850 = vmatmul.mubr.bf16.gmra.mxu0 %v365
      %v851 = vpop.f32.mrf.mxu0
      %v852 = vadd.f32 %v643, %v851
      %v853 = vpop.f32.mrf.mxu0
      %v854 = vpop.f32.mrf.mxu0
      %v855 = vadd.f32 %v646, %v854
      %v856 = vpop.f32.mrf.mxu0
      %857 = vmatprep.mubr.bf16.mxu0 0
      %858 = vmatmul.mubr.bf16.gmra.mxu0 %v366
      %v859 = vpop.f32.mrf.mxu0
      %v860 = vadd.f32 %v651, %v859
      %v861 = vpop.f32.mrf.mxu0
      %v862 = vpop.f32.mrf.mxu0
      %v863 = vadd.f32 %v654, %v862
      %v864 = vpop.f32.mrf.mxu0
      %865 = vdwg.mxu0
      %v866 = vld [vmem:[#allocation2 + $0x2] sm:$0xff]
      %v867 = vld [vmem:[#allocation2 + $0xa] sm:$0xff]
      %v868 = vld [vmem:[#allocation2 + $0x1a] sm:$0xff]
      %v869 = vld [vmem:[#allocation2 + $0x22] sm:$0xff]
      %v870 = vld [vmem:[#allocation2 + $0x32] sm:$0xff]
      %v871 = vld [vmem:[#allocation2 + $0x3a] sm:$0xff]
      %v872 = vld [vmem:[#allocation2 + $0x4a] sm:$0xff]
      %v873 = vld [vmem:[#allocation2 + $0x52] sm:$0xff]
      %v874 = vld [vmem:[#allocation2 + $0x62] sm:$0xff]
      %v875 = vld [vmem:[#allocation2 + $0x6a] sm:$0xff]
      %v876 = vld [vmem:[#allocation2 + $0x7a] sm:$0xff]
      %v877 = vld [vmem:[#allocation2 + $0x82] sm:$0xff]
      %v878 = vld [vmem:[#allocation2 + $0x92] sm:$0xff]
      %v879 = vld [vmem:[#allocation2 + $0x9a] sm:$0xff]
      %v880 = vld [vmem:[#allocation2 + $0xaa] sm:$0xff]
      %v881 = vld [vmem:[#allocation2 + $0xb2] sm:$0xff]
      %v882 = vld [vmem:[#allocation2 + $0xc2] sm:$0xff]
      %v883 = vld [vmem:[#allocation2 + $0xca] sm:$0xff]
      %v884 = vld [vmem:[#allocation2 + $0xda] sm:$0xff]
      %v885 = vld [vmem:[#allocation2 + $0xe2] sm:$0xff]
      %v886 = vld [vmem:[#allocation2 + $0xf2] sm:$0xff]
      %v887 = vld [vmem:[#allocation2 + $0xfa] sm:$0xff]
      %v888 = vld [vmem:[#allocation2 + $0x10a] sm:$0xff]
      %v889 = vld [vmem:[#allocation2 + $0x112] sm:$0xff]
      %v890 = vld [vmem:[#allocation2 + $0x122] sm:$0xff]
      %v891 = vld [vmem:[#allocation2 + $0x12a] sm:$0xff]
      %v892 = vld [vmem:[#allocation2 + $0x13a] sm:$0xff]
      %v893 = vld [vmem:[#allocation2 + $0x142] sm:$0xff]
      %v894 = vld [vmem:[#allocation2 + $0x152] sm:$0xff]
      %v895 = vld [vmem:[#allocation2 + $0x15a] sm:$0xff]
      %v896 = vld [vmem:[#allocation2 + $0x16a] sm:$0xff]
      %v897 = vld [vmem:[#allocation2 + $0x172] sm:$0xff]
      %v898 = vpack.c.bf16 %v867, %v866
      %v899 = vpack.c.bf16 %v869, %v868
      %v900 = vpack.c.bf16 %v871, %v870
      %v901 = vpack.c.bf16 %v873, %v872
      %v902 = vpack.c.bf16 %v875, %v874
      %v903 = vpack.c.bf16 %v877, %v876
      %v904 = vpack.c.bf16 %v879, %v878
      %v905 = vpack.c.bf16 %v881, %v880
      %v906 = vpack.c.bf16 %v883, %v882
      %v907 = vpack.c.bf16 %v885, %v884
      %v908 = vpack.c.bf16 %v887, %v886
      %v909 = vpack.c.bf16 %v889, %v888
      %v910 = vpack.c.bf16 %v891, %v890
      %v911 = vpack.c.bf16 %v893, %v892
      %v912 = vpack.c.bf16 %v895, %v894
      %v913 = vpack.c.bf16 %v897, %v896
      %s914 = scalar_lea.vmem %s1, 128
      %v915 = vld [vmem:[%s914] sm:$0xf]
      %v916 = vld [vmem:[%s914 + $0x4] sm:$0xf]
      %v917 = vld [vmem:[%s914 + $0x8] sm:$0xf]
      %v918 = vld [vmem:[%s914 + $0xc] sm:$0xf]
      %v919 = vld [vmem:[%s914 + $0x10] sm:$0xf]
      %v920 = vld [vmem:[%s914 + $0x14] sm:$0xf]
      %v921 = vld [vmem:[%s914 + $0x18] sm:$0xf]
      %v922 = vld [vmem:[%s914 + $0x1c] sm:$0xf]
      %v923 = vld [vmem:[%s914 + $0x20] sm:$0xf]
      %v924 = vld [vmem:[%s914 + $0x24] sm:$0xf]
      %v925 = vld [vmem:[%s914 + $0x28] sm:$0xf]
      %v926 = vld [vmem:[%s914 + $0x2c] sm:$0xf]
      %v927 = vld [vmem:[%s914 + $0x30] sm:$0xf]
      %v928 = vld [vmem:[%s914 + $0x34] sm:$0xf]
      %v929 = vld [vmem:[%s914 + $0x38] sm:$0xf]
      %v930 = vld [vmem:[%s914 + $0x3c] sm:$0xf]
      %v947 = vunpack.c.l.b16 %v915
      %v948 = vunpack.c.l.b16 %v916
      %v949 = vunpack.c.l.b16 %v917
      %v950 = vunpack.c.l.b16 %v918
      %v951 = vunpack.c.l.b16 %v919
      %v952 = vunpack.c.l.b16 %v920
      %v953 = vunpack.c.l.b16 %v921
      %v954 = vunpack.c.l.b16 %v922
      %v955 = vunpack.c.l.b16 %v923
      %v956 = vunpack.c.l.b16 %v924
      %v957 = vunpack.c.l.b16 %v925
      %v958 = vunpack.c.l.b16 %v926
      %v959 = vunpack.c.l.b16 %v927
      %v960 = vunpack.c.l.b16 %v928
      %v961 = vunpack.c.l.b16 %v929
      %v962 = vunpack.c.l.b16 %v930
      %v963 = vpack.c.b16 %v948, %v947
      %v964 = vpack.c.b16 %v950, %v949
      %v965 = vpack.c.b16 %v952, %v951
      %v966 = vpack.c.b16 %v954, %v953
      %v967 = vpack.c.b16 %v956, %v955
      %v968 = vpack.c.b16 %v958, %v957
      %v969 = vpack.c.b16 %v960, %v959
      %v970 = vpack.c.b16 %v962, %v961
      %979 = vmatprep.subr.bf16.mxu0 0
      %980 = vmatpush1.bf16.msra.mxu0 %v970
      %981 = vmatprep.subr.bf16.mxu0 0
      %982 = vmatpush1.bf16.msra.mxu0 %v969
      %983 = vmatprep.subr.bf16.mxu0 0
      %984 = vmatpush1.bf16.msra.mxu0 %v968
      %985 = vmatprep.subr.bf16.mxu0 0
      %986 = vmatpush1.bf16.msra.mxu0 %v967
      %987 = vmatprep.subr.bf16.mxu0 0
      %988 = vmatpush1.bf16.msra.mxu0 %v966
      %989 = vmatprep.subr.bf16.mxu0 0
      %990 = vmatpush1.bf16.msra.mxu0 %v965
      %991 = vmatprep.subr.bf16.mxu0 0
      %992 = vmatpush1.bf16.msra.mxu0 %v964
      %993 = vmatprep.subr.bf16.mxu0 0
      %994 = vmatpush1.bf16.msra.mxu0 %v963
      %995 = vmatprep.subr.bf16.mxu0 0
      %996 = vmatpush2.bf16.msra.mxu0 0
      %997 = vmatprep.subr.bf16.mxu0 0
      %998 = vmatpush2.bf16.msra.mxu0 0
      %999 = vmatprep.subr.bf16.mxu0 0
      %1000 = vmatpush2.bf16.msra.mxu0 0
      %1001 = vmatprep.subr.bf16.mxu0 0
      %1002 = vmatpush2.bf16.msra.mxu0 0
      %1003 = vmatprep.subr.bf16.mxu0 0
      %1004 = vmatpush2.bf16.msra.mxu0 0
      %1005 = vmatprep.subr.bf16.mxu0 0
      %1006 = vmatpush2.bf16.msra.mxu0 0
      %1007 = vmatprep.subr.bf16.mxu0 0
      %1008 = vmatpush2.bf16.msra.mxu0 0
      %1009 = vmatprep.subr.bf16.mxu0 0
      %1010 = vmatpush2.bf16.msra.mxu0 0
      %1011 = vmatprep.mubr.bf16.mxu0 0
      %1012 = vmatmul.mubr.bf16.gmra.mxu0 %v898
      %v1013 = vpop.f32.mrf.mxu0
      %v1014 = vadd.f32 0.0, %v1013
      %v1015 = vpop.f32.mrf.mxu0
      %v1016 = vpop.f32.mrf.mxu0
      %v1017 = vadd.f32 0.0, %v1016
      %v1018 = vpop.f32.mrf.mxu0
      %1019 = vmatprep.mubr.bf16.mxu0 0
      %1020 = vmatmul.mubr.bf16.gmra.mxu0 %v899
      %v1021 = vpop.f32.mrf.mxu0
      %v1022 = vadd.f32 0.0, %v1021
      %v1023 = vpop.f32.mrf.mxu0
      %v1024 = vpop.f32.mrf.mxu0
      %v1025 = vadd.f32 0.0, %v1024
      %v1026 = vpop.f32.mrf.mxu0
      %1027 = vmatprep.mubr.bf16.mxu0 0
      %1028 = vmatmul.mubr.bf16.gmra.mxu0 %v900
      %v1029 = vpop.f32.mrf.mxu0
      %v1030 = vadd.f32 0.0, %v1029
      %v1031 = vpop.f32.mrf.mxu0
      %v1032 = vpop.f32.mrf.mxu0
      %v1033 = vadd.f32 0.0, %v1032
      %v1034 = vpop.f32.mrf.mxu0
      %1035 = vmatprep.mubr.bf16.mxu0 0
      %1036 = vmatmul.mubr.bf16.gmra.mxu0 %v901
      %v1037 = vpop.f32.mrf.mxu0
      %v1038 = vadd.f32 0.0, %v1037
      %v1039 = vpop.f32.mrf.mxu0
      %v1040 = vpop.f32.mrf.mxu0
      %v1041 = vadd.f32 0.0, %v1040
      %v1042 = vpop.f32.mrf.mxu0
      %1043 = vmatprep.mubr.bf16.mxu0 0
      %1044 = vmatmul.mubr.bf16.gmra.mxu0 %v902
      %v1045 = vpop.f32.mrf.mxu0
      %v1046 = vadd.f32 0.0, %v1045
      %v1047 = vpop.f32.mrf.mxu0
      %v1048 = vpop.f32.mrf.mxu0
      %v1049 = vadd.f32 0.0, %v1048
      %v1050 = vpop.f32.mrf.mxu0
      %1051 = vmatprep.mubr.bf16.mxu0 0
      %1052 = vmatmul.mubr.bf16.gmra.mxu0 %v903
      %v1053 = vpop.f32.mrf.mxu0
      %v1054 = vadd.f32 0.0, %v1053
      %v1055 = vpop.f32.mrf.mxu0
      %v1056 = vpop.f32.mrf.mxu0
      %v1057 = vadd.f32 0.0, %v1056
      %v1058 = vpop.f32.mrf.mxu0
      %1059 = vmatprep.mubr.bf16.mxu0 0
      %1060 = vmatmul.mubr.bf16.gmra.mxu0 %v904
      %v1061 = vpop.f32.mrf.mxu0
      %v1062 = vadd.f32 0.0, %v1061
      %v1063 = vpop.f32.mrf.mxu0
      %v1064 = vpop.f32.mrf.mxu0
      %v1065 = vadd.f32 0.0, %v1064
      %v1066 = vpop.f32.mrf.mxu0
      %1067 = vmatprep.mubr.bf16.mxu0 0
      %1068 = vmatmul.mubr.bf16.gmra.mxu0 %v905
      %v1069 = vpop.f32.mrf.mxu0
      %v1070 = vadd.f32 0.0, %v1069
      %v1071 = vpop.f32.mrf.mxu0
      %v1072 = vpop.f32.mrf.mxu0
      %v1073 = vadd.f32 0.0, %v1072
      %v1074 = vpop.f32.mrf.mxu0
      %1075 = vmatprep.mubr.bf16.mxu0 0
      %1076 = vmatmul.mubr.bf16.gmra.mxu0 %v906
      %v1077 = vpop.f32.mrf.mxu0
      %v1078 = vadd.f32 0.0, %v1077
      %v1079 = vpop.f32.mrf.mxu0
      %v1080 = vpop.f32.mrf.mxu0
      %v1081 = vadd.f32 0.0, %v1080
      %v1082 = vpop.f32.mrf.mxu0
      %1083 = vmatprep.mubr.bf16.mxu0 0
      %1084 = vmatmul.mubr.bf16.gmra.mxu0 %v907
      %v1085 = vpop.f32.mrf.mxu0
      %v1086 = vadd.f32 0.0, %v1085
      %v1087 = vpop.f32.mrf.mxu0
      %v1088 = vpop.f32.mrf.mxu0
      %v1089 = vadd.f32 0.0, %v1088
      %v1090 = vpop.f32.mrf.mxu0
      %1091 = vmatprep.mubr.bf16.mxu0 0
      %1092 = vmatmul.mubr.bf16.gmra.mxu0 %v908
      %v1093 = vpop.f32.mrf.mxu0
      %v1094 = vadd.f32 0.0, %v1093
      %v1095 = vpop.f32.mrf.mxu0
      %v1096 = vpop.f32.mrf.mxu0
      %v1097 = vadd.f32 0.0, %v1096
      %v1098 = vpop.f32.mrf.mxu0
      %1099 = vmatprep.mubr.bf16.mxu0 0
      %1100 = vmatmul.mubr.bf16.gmra.mxu0 %v909
      %v1101 = vpop.f32.mrf.mxu0
      %v1102 = vadd.f32 0.0, %v1101
      %v1103 = vpop.f32.mrf.mxu0
      %v1104 = vpop.f32.mrf.mxu0
      %v1105 = vadd.f32 0.0, %v1104
      %v1106 = vpop.f32.mrf.mxu0
      %1107 = vmatprep.mubr.bf16.mxu0 0
      %1108 = vmatmul.mubr.bf16.gmra.mxu0 %v910
      %v1109 = vpop.f32.mrf.mxu0
      %v1110 = vadd.f32 0.0, %v1109
      %v1111 = vpop.f32.mrf.mxu0
      %v1112 = vpop.f32.mrf.mxu0
      %v1113 = vadd.f32 0.0, %v1112
      %v1114 = vpop.f32.mrf.mxu0
      %1115 = vmatprep.mubr.bf16.mxu0 0
      %1116 = vmatmul.mubr.bf16.gmra.mxu0 %v911
      %v1117 = vpop.f32.mrf.mxu0
      %v1118 = vadd.f32 0.0, %v1117
      %v1119 = vpop.f32.mrf.mxu0
      %v1120 = vpop.f32.mrf.mxu0
      %v1121 = vadd.f32 0.0, %v1120
      %v1122 = vpop.f32.mrf.mxu0
      %1123 = vmatprep.mubr.bf16.mxu0 0
      %1124 = vmatmul.mubr.bf16.gmra.mxu0 %v912
      %v1125 = vpop.f32.mrf.mxu0
      %v1126 = vadd.f32 0.0, %v1125
      %v1127 = vpop.f32.mrf.mxu0
      %v1128 = vpop.f32.mrf.mxu0
      %v1129 = vadd.f32 0.0, %v1128
      %v1130 = vpop.f32.mrf.mxu0
      %1131 = vmatprep.mubr.bf16.mxu0 0
      %1132 = vmatmul.mubr.bf16.gmra.mxu0 %v913
      %v1133 = vpop.f32.mrf.mxu0
      %v1134 = vadd.f32 0.0, %v1133
      %v1135 = vpop.f32.mrf.mxu0
      %v1136 = vpop.f32.mrf.mxu0
      %v1137 = vadd.f32 0.0, %v1136
      %v1138 = vpop.f32.mrf.mxu0
      %1139 = vdwg.mxu0
      %v1140 = vadd.f32 %v740, %v1014
      %v1141 = vadd.f32 %v743, %v1017
      %v1142 = vadd.f32 %v748, %v1022
      %v1143 = vadd.f32 %v751, %v1025
      %v1144 = vadd.f32 %v756, %v1030
      %v1145 = vadd.f32 %v759, %v1033
      %v1146 = vadd.f32 %v764, %v1038
      %v1147 = vadd.f32 %v767, %v1041
      %v1148 = vadd.f32 %v772, %v1046
      %v1149 = vadd.f32 %v775, %v1049
      %v1150 = vadd.f32 %v780, %v1054
      %v1151 = vadd.f32 %v783, %v1057
      %v1152 = vadd.f32 %v788, %v1062
      %v1153 = vadd.f32 %v791, %v1065
      %v1154 = vadd.f32 %v796, %v1070
      %v1155 = vadd.f32 %v799, %v1073
      %v1156 = vadd.f32 %v804, %v1078
      %v1157 = vadd.f32 %v807, %v1081
      %v1158 = vadd.f32 %v812, %v1086
      %v1159 = vadd.f32 %v815, %v1089
      %v1160 = vadd.f32 %v820, %v1094
      %v1161 = vadd.f32 %v823, %v1097
      %v1162 = vadd.f32 %v828, %v1102
      %v1163 = vadd.f32 %v831, %v1105
      %v1164 = vadd.f32 %v836, %v1110
      %v1165 = vadd.f32 %v839, %v1113
      %v1166 = vadd.f32 %v844, %v1118
      %v1167 = vadd.f32 %v847, %v1121
      %v1168 = vadd.f32 %v852, %v1126
      %v1169 = vadd.f32 %v855, %v1129
      %v1170 = vadd.f32 %v860, %v1134
      %v1171 = vadd.f32 %v863, %v1137
      %v1172 = vld [vmem:[%s286] sm:$0xff]
      %v1173 = vld [vmem:[%s286 + $0x8] sm:$0xff]
      %v1174 = vld [vmem:[%s286 + $0x18] sm:$0xff]
      %v1175 = vld [vmem:[%s286 + $0x20] sm:$0xff]
      %v1176 = vld [vmem:[%s286 + $0x30] sm:$0xff]
      %v1177 = vld [vmem:[%s286 + $0x38] sm:$0xff]
      %v1178 = vld [vmem:[%s286 + $0x48] sm:$0xff]
      %v1179 = vld [vmem:[%s286 + $0x50] sm:$0xff]
      %v1180 = vld [vmem:[%s286 + $0x60] sm:$0xff]
      %v1181 = vld [vmem:[%s286 + $0x68] sm:$0xff]
      %v1182 = vld [vmem:[%s286 + $0x78] sm:$0xff]
      %v1183 = vld [vmem:[%s286 + $0x80] sm:$0xff]
      %v1184 = vld [vmem:[%s286 + $0x90] sm:$0xff]
      %v1185 = vld [vmem:[%s286 + $0x98] sm:$0xff]
      %v1186 = vld [vmem:[%s286 + $0xa8] sm:$0xff]
      %v1187 = vld [vmem:[%s286 + $0xb0] sm:$0xff]
      %v1188 = vld [vmem:[%s286 + $0xc0] sm:$0xff]
      %v1189 = vld [vmem:[%s286 + $0xc8] sm:$0xff]
      %v1190 = vld [vmem:[%s286 + $0xd8] sm:$0xff]
      %v1191 = vld [vmem:[%s286 + $0xe0] sm:$0xff]
      %v1192 = vld [vmem:[%s286 + $0xf0] sm:$0xff]
      %v1193 = vld [vmem:[%s286 + $0xf8] sm:$0xff]
      %v1194 = vld [vmem:[%s286 + $0x108] sm:$0xff]
      %v1195 = vld [vmem:[%s286 + $0x110] sm:$0xff]
      %v1196 = vld [vmem:[%s286 + $0x120] sm:$0xff]
      %v1197 = vld [vmem:[%s286 + $0x128] sm:$0xff]
      %v1198 = vld [vmem:[%s286 + $0x138] sm:$0xff]
      %v1199 = vld [vmem:[%s286 + $0x140] sm:$0xff]
      %v1200 = vld [vmem:[%s286 + $0x150] sm:$0xff]
      %v1201 = vld [vmem:[%s286 + $0x158] sm:$0xff]
      %v1202 = vld [vmem:[%s286 + $0x168] sm:$0xff]
      %v1203 = vld [vmem:[%s286 + $0x170] sm:$0xff]
      %v1204 = vpack.c.bf16 %v1173, %v1172
      %v1205 = vpack.c.bf16 %v1175, %v1174
      %v1206 = vpack.c.bf16 %v1177, %v1176
      %v1207 = vpack.c.bf16 %v1179, %v1178
      %v1208 = vpack.c.bf16 %v1181, %v1180
      %v1209 = vpack.c.bf16 %v1183, %v1182
      %v1210 = vpack.c.bf16 %v1185, %v1184
      %v1211 = vpack.c.bf16 %v1187, %v1186
      %v1212 = vpack.c.bf16 %v1189, %v1188
      %v1213 = vpack.c.bf16 %v1191, %v1190
      %v1214 = vpack.c.bf16 %v1193, %v1192
      %v1215 = vpack.c.bf16 %v1195, %v1194
      %v1216 = vpack.c.bf16 %v1197, %v1196
      %v1217 = vpack.c.bf16 %v1199, %v1198
      %v1218 = vpack.c.bf16 %v1201, %v1200
      %v1219 = vpack.c.bf16 %v1203, %v1202
      %s1220 = scalar_lea.vmem %s1, 192
      %v1221 = vld [vmem:[%s1220] sm:$0xf]
      %v1222 = vld [vmem:[%s1220 + $0x4] sm:$0xf]
      %v1223 = vld [vmem:[%s1220 + $0x8] sm:$0xf]
      %v1224 = vld [vmem:[%s1220 + $0xc] sm:$0xf]
      %v1225 = vld [vmem:[%s1220 + $0x10] sm:$0xf]
      %v1226 = vld [vmem:[%s1220 + $0x14] sm:$0xf]
      %v1227 = vld [vmem:[%s1220 + $0x18] sm:$0xf]
      %v1228 = vld [vmem:[%s1220 + $0x1c] sm:$0xf]
      %v1229 = vld [vmem:[%s1220 + $0x20] sm:$0xf]
      %v1230 = vld [vmem:[%s1220 + $0x24] sm:$0xf]
      %v1231 = vld [vmem:[%s1220 + $0x28] sm:$0xf]
      %v1232 = vld [vmem:[%s1220 + $0x2c] sm:$0xf]
      %v1233 = vld [vmem:[%s1220 + $0x30] sm:$0xf]
      %v1234 = vld [vmem:[%s1220 + $0x34] sm:$0xf]
      %v1235 = vld [vmem:[%s1220 + $0x38] sm:$0xf]
      %v1236 = vld [vmem:[%s1220 + $0x3c] sm:$0xf]
      %v1253 = vunpack.c.l.b16 %v1221
      %v1254 = vunpack.c.l.b16 %v1222
      %v1255 = vunpack.c.l.b16 %v1223
      %v1256 = vunpack.c.l.b16 %v1224
      %v1257 = vunpack.c.l.b16 %v1225
      %v1258 = vunpack.c.l.b16 %v1226
      %v1259 = vunpack.c.l.b16 %v1227
      %v1260 = vunpack.c.l.b16 %v1228
      %v1261 = vunpack.c.l.b16 %v1229
      %v1262 = vunpack.c.l.b16 %v1230
      %v1263 = vunpack.c.l.b16 %v1231
      %v1264 = vunpack.c.l.b16 %v1232
      %v1265 = vunpack.c.l.b16 %v1233
      %v1266 = vunpack.c.l.b16 %v1234
      %v1267 = vunpack.c.l.b16 %v1235
      %v1268 = vunpack.c.l.b16 %v1236
      %v1269 = vpack.c.b16 %v1254, %v1253
      %v1270 = vpack.c.b16 %v1256, %v1255
      %v1271 = vpack.c.b16 %v1258, %v1257
      %v1272 = vpack.c.b16 %v1260, %v1259
      %v1273 = vpack.c.b16 %v1262, %v1261
      %v1274 = vpack.c.b16 %v1264, %v1263
      %v1275 = vpack.c.b16 %v1266, %v1265
      %v1276 = vpack.c.b16 %v1268, %v1267
      %1285 = vmatprep.subr.bf16.mxu0 0
      %1286 = vmatpush1.bf16.msra.mxu0 %v1276
      %1287 = vmatprep.subr.bf16.mxu0 0
      %1288 = vmatpush1.bf16.msra.mxu0 %v1275
      %1289 = vmatprep.subr.bf16.mxu0 0
      %1290 = vmatpush1.bf16.msra.mxu0 %v1274
      %1291 = vmatprep.subr.bf16.mxu0 0
      %1292 = vmatpush1.bf16.msra.mxu0 %v1273
      %1293 = vmatprep.subr.bf16.mxu0 0
      %1294 = vmatpush1.bf16.msra.mxu0 %v1272
      %1295 = vmatprep.subr.bf16.mxu0 0
      %1296 = vmatpush1.bf16.msra.mxu0 %v1271
      %1297 = vmatprep.subr.bf16.mxu0 0
      %1298 = vmatpush1.bf16.msra.mxu0 %v1270
      %1299 = vmatprep.subr.bf16.mxu0 0
      %1300 = vmatpush1.bf16.msra.mxu0 %v1269
      %1301 = vmatprep.subr.bf16.mxu0 0
      %1302 = vmatpush2.bf16.msra.mxu0 0
      %1303 = vmatprep.subr.bf16.mxu0 0
      %1304 = vmatpush2.bf16.msra.mxu0 0
      %1305 = vmatprep.subr.bf16.mxu0 0
      %1306 = vmatpush2.bf16.msra.mxu0 0
      %1307 = vmatprep.subr.bf16.mxu0 0
      %1308 = vmatpush2.bf16.msra.mxu0 0
      %1309 = vmatprep.subr.bf16.mxu0 0
      %1310 = vmatpush2.bf16.msra.mxu0 0
      %1311 = vmatprep.subr.bf16.mxu0 0
      %1312 = vmatpush2.bf16.msra.mxu0 0
      %1313 = vmatprep.subr.bf16.mxu0 0
      %1314 = vmatpush2.bf16.msra.mxu0 0
      %1315 = vmatprep.subr.bf16.mxu0 0
      %1316 = vmatpush2.bf16.msra.mxu0 0
      %1317 = vmatprep.mubr.bf16.mxu0 0
      %1318 = vmatmul.mubr.bf16.gmra.mxu0 %v1204
      %v1319 = vpop.f32.mrf.mxu0
      %v1320 = vadd.f32 0.0, %v1319
      %v1321 = vpop.f32.mrf.mxu0
      %v1322 = vpop.f32.mrf.mxu0
      %v1323 = vadd.f32 0.0, %v1322
      %v1324 = vpop.f32.mrf.mxu0
      %1325 = vmatprep.mubr.bf16.mxu0 0
      %1326 = vmatmul.mubr.bf16.gmra.mxu0 %v1205
      %v1327 = vpop.f32.mrf.mxu0
      %v1328 = vadd.f32 0.0, %v1327
      %v1329 = vpop.f32.mrf.mxu0
      %v1330 = vpop.f32.mrf.mxu0
      %v1331 = vadd.f32 0.0, %v1330
      %v1332 = vpop.f32.mrf.mxu0
      %1333 = vmatprep.mubr.bf16.mxu0 0
      %1334 = vmatmul.mubr.bf16.gmra.mxu0 %v1206
      %v1335 = vpop.f32.mrf.mxu0
      %v1336 = vadd.f32 0.0, %v1335
      %v1337 = vpop.f32.mrf.mxu0
      %v1338 = vpop.f32.mrf.mxu0
      %v1339 = vadd.f32 0.0, %v1338
      %v1340 = vpop.f32.mrf.mxu0
      %1341 = vmatprep.mubr.bf16.mxu0 0
      %1342 = vmatmul.mubr.bf16.gmra.mxu0 %v1207
      %v1343 = vpop.f32.mrf.mxu0
      %v1344 = vadd.f32 0.0, %v1343
      %v1345 = vpop.f32.mrf.mxu0
      %v1346 = vpop.f32.mrf.mxu0
      %v1347 = vadd.f32 0.0, %v1346
      %v1348 = vpop.f32.mrf.mxu0
      %1349 = vmatprep.mubr.bf16.mxu0 0
      %1350 = vmatmul.mubr.bf16.gmra.mxu0 %v1208
      %v1351 = vpop.f32.mrf.mxu0
      %v1352 = vadd.f32 0.0, %v1351
      %v1353 = vpop.f32.mrf.mxu0
      %v1354 = vpop.f32.mrf.mxu0
      %v1355 = vadd.f32 0.0, %v1354
      %v1356 = vpop.f32.mrf.mxu0
      %1357 = vmatprep.mubr.bf16.mxu0 0
      %1358 = vmatmul.mubr.bf16.gmra.mxu0 %v1209
      %v1359 = vpop.f32.mrf.mxu0
      %v1360 = vadd.f32 0.0, %v1359
      %v1361 = vpop.f32.mrf.mxu0
      %v1362 = vpop.f32.mrf.mxu0
      %v1363 = vadd.f32 0.0, %v1362
      %v1364 = vpop.f32.mrf.mxu0
      %1365 = vmatprep.mubr.bf16.mxu0 0
      %1366 = vmatmul.mubr.bf16.gmra.mxu0 %v1210
      %v1367 = vpop.f32.mrf.mxu0
      %v1368 = vadd.f32 0.0, %v1367
      %v1369 = vpop.f32.mrf.mxu0
      %v1370 = vpop.f32.mrf.mxu0
      %v1371 = vadd.f32 0.0, %v1370
      %v1372 = vpop.f32.mrf.mxu0
      %1373 = vmatprep.mubr.bf16.mxu0 0
      %1374 = vmatmul.mubr.bf16.gmra.mxu0 %v1211
      %v1375 = vpop.f32.mrf.mxu0
      %v1376 = vadd.f32 0.0, %v1375
      %v1377 = vpop.f32.mrf.mxu0
      %v1378 = vpop.f32.mrf.mxu0
      %v1379 = vadd.f32 0.0, %v1378
      %v1380 = vpop.f32.mrf.mxu0
      %1381 = vmatprep.mubr.bf16.mxu0 0
      %1382 = vmatmul.mubr.bf16.gmra.mxu0 %v1212
      %v1383 = vpop.f32.mrf.mxu0
      %v1384 = vadd.f32 0.0, %v1383
      %v1385 = vpop.f32.mrf.mxu0
      %v1386 = vpop.f32.mrf.mxu0
      %v1387 = vadd.f32 0.0, %v1386
      %v1388 = vpop.f32.mrf.mxu0
      %1389 = vmatprep.mubr.bf16.mxu0 0
      %1390 = vmatmul.mubr.bf16.gmra.mxu0 %v1213
      %v1391 = vpop.f32.mrf.mxu0
      %v1392 = vadd.f32 0.0, %v1391
      %v1393 = vpop.f32.mrf.mxu0
      %v1394 = vpop.f32.mrf.mxu0
      %v1395 = vadd.f32 0.0, %v1394
      %v1396 = vpop.f32.mrf.mxu0
      %1397 = vmatprep.mubr.bf16.mxu0 0
      %1398 = vmatmul.mubr.bf16.gmra.mxu0 %v1214
      %v1399 = vpop.f32.mrf.mxu0
      %v1400 = vadd.f32 0.0, %v1399
      %v1401 = vpop.f32.mrf.mxu0
      %v1402 = vpop.f32.mrf.mxu0
      %v1403 = vadd.f32 0.0, %v1402
      %v1404 = vpop.f32.mrf.mxu0
      %1405 = vmatprep.mubr.bf16.mxu0 0
      %1406 = vmatmul.mubr.bf16.gmra.mxu0 %v1215
      %v1407 = vpop.f32.mrf.mxu0
      %v1408 = vadd.f32 0.0, %v1407
      %v1409 = vpop.f32.mrf.mxu0
      %v1410 = vpop.f32.mrf.mxu0
      %v1411 = vadd.f32 0.0, %v1410
      %v1412 = vpop.f32.mrf.mxu0
      %1413 = vmatprep.mubr.bf16.mxu0 0
      %1414 = vmatmul.mubr.bf16.gmra.mxu0 %v1216
      %v1415 = vpop.f32.mrf.mxu0
      %v1416 = vadd.f32 0.0, %v1415
      %v1417 = vpop.f32.mrf.mxu0
      %v1418 = vpop.f32.mrf.mxu0
      %v1419 = vadd.f32 0.0, %v1418
      %v1420 = vpop.f32.mrf.mxu0
      %1421 = vmatprep.mubr.bf16.mxu0 0
      %1422 = vmatmul.mubr.bf16.gmra.mxu0 %v1217
      %v1423 = vpop.f32.mrf.mxu0
      %v1424 = vadd.f32 0.0, %v1423
      %v1425 = vpop.f32.mrf.mxu0
      %v1426 = vpop.f32.mrf.mxu0
      %v1427 = vadd.f32 0.0, %v1426
      %v1428 = vpop.f32.mrf.mxu0
      %1429 = vmatprep.mubr.bf16.mxu0 0
      %1430 = vmatmul.mubr.bf16.gmra.mxu0 %v1218
      %v1431 = vpop.f32.mrf.mxu0
      %v1432 = vadd.f32 0.0, %v1431
      %v1433 = vpop.f32.mrf.mxu0
      %v1434 = vpop.f32.mrf.mxu0
      %v1435 = vadd.f32 0.0, %v1434
      %v1436 = vpop.f32.mrf.mxu0
      %1437 = vmatprep.mubr.bf16.mxu0 0
      %1438 = vmatmul.mubr.bf16.gmra.mxu0 %v1219
      %v1439 = vpop.f32.mrf.mxu0
      %v1440 = vadd.f32 0.0, %v1439
      %v1441 = vpop.f32.mrf.mxu0
      %v1442 = vpop.f32.mrf.mxu0
      %v1443 = vadd.f32 0.0, %v1442
      %v1444 = vpop.f32.mrf.mxu0
      %1445 = vdwg.mxu0
      %v1446 = vadd.f32 %v1140, %v1320
      %v1447 = vadd.f32 %v1141, %v1323
      %v1448 = vadd.f32 %v1142, %v1328
      %v1449 = vadd.f32 %v1143, %v1331
      %v1450 = vadd.f32 %v1144, %v1336
      %v1451 = vadd.f32 %v1145, %v1339
      %v1452 = vadd.f32 %v1146, %v1344
      %v1453 = vadd.f32 %v1147, %v1347
      %v1454 = vadd.f32 %v1148, %v1352
      %v1455 = vadd.f32 %v1149, %v1355
      %v1456 = vadd.f32 %v1150, %v1360
      %v1457 = vadd.f32 %v1151, %v1363
      %v1458 = vadd.f32 %v1152, %v1368
      %v1459 = vadd.f32 %v1153, %v1371
      %v1460 = vadd.f32 %v1154, %v1376
      %v1461 = vadd.f32 %v1155, %v1379
      %v1462 = vadd.f32 %v1156, %v1384
      %v1463 = vadd.f32 %v1157, %v1387
      %v1464 = vadd.f32 %v1158, %v1392
      %v1465 = vadd.f32 %v1159, %v1395
      %v1466 = vadd.f32 %v1160, %v1400
      %v1467 = vadd.f32 %v1161, %v1403
      %v1468 = vadd.f32 %v1162, %v1408
      %v1469 = vadd.f32 %v1163, %v1411
      %v1470 = vadd.f32 %v1164, %v1416
      %v1471 = vadd.f32 %v1165, %v1419
      %v1472 = vadd.f32 %v1166, %v1424
      %v1473 = vadd.f32 %v1167, %v1427
      %v1474 = vadd.f32 %v1168, %v1432
      %v1475 = vadd.f32 %v1169, %v1435
      %v1476 = vadd.f32 %v1170, %v1440
      %v1477 = vadd.f32 %v1171, %v1443
      %v1478 = vld [vmem:[%s286 + $0x1] sm:$0xff]
      %v1479 = vld [vmem:[%s286 + $0x9] sm:$0xff]
      %v1480 = vld [vmem:[%s286 + $0x19] sm:$0xff]
      %v1481 = vld [vmem:[%s286 + $0x21] sm:$0xff]
      %v1482 = vld [vmem:[%s286 + $0x31] sm:$0xff]
      %v1483 = vld [vmem:[%s286 + $0x39] sm:$0xff]
      %v1484 = vld [vmem:[%s286 + $0x49] sm:$0xff]
      %v1485 = vld [vmem:[%s286 + $0x51] sm:$0xff]
      %v1486 = vld [vmem:[%s286 + $0x61] sm:$0xff]
      %v1487 = vld [vmem:[%s286 + $0x69] sm:$0xff]
      %v1488 = vld [vmem:[%s286 + $0x79] sm:$0xff]
      %v1489 = vld [vmem:[%s286 + $0x81] sm:$0xff]
      %v1490 = vld [vmem:[%s286 + $0x91] sm:$0xff]
      %v1491 = vld [vmem:[%s286 + $0x99] sm:$0xff]
      %v1492 = vld [vmem:[%s286 + $0xa9] sm:$0xff]
      %v1493 = vld [vmem:[%s286 + $0xb1] sm:$0xff]
      %v1494 = vld [vmem:[%s286 + $0xc1] sm:$0xff]
      %v1495 = vld [vmem:[%s286 + $0xc9] sm:$0xff]
      %v1496 = vld [vmem:[%s286 + $0xd9] sm:$0xff]
      %v1497 = vld [vmem:[%s286 + $0xe1] sm:$0xff]
      %v1498 = vld [vmem:[%s286 + $0xf1] sm:$0xff]
      %v1499 = vld [vmem:[%s286 + $0xf9] sm:$0xff]
      %v1500 = vld [vmem:[%s286 + $0x109] sm:$0xff]
      %v1501 = vld [vmem:[%s286 + $0x111] sm:$0xff]
      %v1502 = vld [vmem:[%s286 + $0x121] sm:$0xff]
      %v1503 = vld [vmem:[%s286 + $0x129] sm:$0xff]
      %v1504 = vld [vmem:[%s286 + $0x139] sm:$0xff]
      %v1505 = vld [vmem:[%s286 + $0x141] sm:$0xff]
      %v1506 = vld [vmem:[%s286 + $0x151] sm:$0xff]
      %v1507 = vld [vmem:[%s286 + $0x159] sm:$0xff]
      %v1508 = vld [vmem:[%s286 + $0x169] sm:$0xff]
      %v1509 = vld [vmem:[%s286 + $0x171] sm:$0xff]
      %v1510 = vpack.c.bf16 %v1479, %v1478
      %v1511 = vpack.c.bf16 %v1481, %v1480
      %v1512 = vpack.c.bf16 %v1483, %v1482
      %v1513 = vpack.c.bf16 %v1485, %v1484
      %v1514 = vpack.c.bf16 %v1487, %v1486
      %v1515 = vpack.c.bf16 %v1489, %v1488
      %v1516 = vpack.c.bf16 %v1491, %v1490
      %v1517 = vpack.c.bf16 %v1493, %v1492
      %v1518 = vpack.c.bf16 %v1495, %v1494
      %v1519 = vpack.c.bf16 %v1497, %v1496
      %v1520 = vpack.c.bf16 %v1499, %v1498
      %v1521 = vpack.c.bf16 %v1501, %v1500
      %v1522 = vpack.c.bf16 %v1503, %v1502
      %v1523 = vpack.c.bf16 %v1505, %v1504
      %v1524 = vpack.c.bf16 %v1507, %v1506
      %v1525 = vpack.c.bf16 %v1509, %v1508
      %s1526 = scalar_lea.vmem %s1, 256
      %v1527 = vld [vmem:[%s1526] sm:$0xf]
      %v1528 = vld [vmem:[%s1526 + $0x4] sm:$0xf]
      %v1529 = vld [vmem:[%s1526 + $0x8] sm:$0xf]
      %v1530 = vld [vmem:[%s1526 + $0xc] sm:$0xf]
      %v1531 = vld [vmem:[%s1526 + $0x10] sm:$0xf]
      %v1532 = vld [vmem:[%s1526 + $0x14] sm:$0xf]
      %v1533 = vld [vmem:[%s1526 + $0x18] sm:$0xf]
      %v1534 = vld [vmem:[%s1526 + $0x1c] sm:$0xf]
      %v1535 = vld [vmem:[%s1526 + $0x20] sm:$0xf]
      %v1536 = vld [vmem:[%s1526 + $0x24] sm:$0xf]
      %v1537 = vld [vmem:[%s1526 + $0x28] sm:$0xf]
      %v1538 = vld [vmem:[%s1526 + $0x2c] sm:$0xf]
      %v1539 = vld [vmem:[%s1526 + $0x30] sm:$0xf]
      %v1540 = vld [vmem:[%s1526 + $0x34] sm:$0xf]
      %v1541 = vld [vmem:[%s1526 + $0x38] sm:$0xf]
      %v1542 = vld [vmem:[%s1526 + $0x3c] sm:$0xf]
      %v1559 = vunpack.c.l.b16 %v1527
      %v1560 = vunpack.c.l.b16 %v1528
      %v1561 = vunpack.c.l.b16 %v1529
      %v1562 = vunpack.c.l.b16 %v1530
      %v1563 = vunpack.c.l.b16 %v1531
      %v1564 = vunpack.c.l.b16 %v1532
      %v1565 = vunpack.c.l.b16 %v1533
      %v1566 = vunpack.c.l.b16 %v1534
      %v1567 = vunpack.c.l.b16 %v1535
      %v1568 = vunpack.c.l.b16 %v1536
      %v1569 = vunpack.c.l.b16 %v1537
      %v1570 = vunpack.c.l.b16 %v1538
      %v1571 = vunpack.c.l.b16 %v1539
      %v1572 = vunpack.c.l.b16 %v1540
      %v1573 = vunpack.c.l.b16 %v1541
      %v1574 = vunpack.c.l.b16 %v1542
      %v1575 = vpack.c.b16 %v1560, %v1559
      %v1576 = vpack.c.b16 %v1562, %v1561
      %v1577 = vpack.c.b16 %v1564, %v1563
      %v1578 = vpack.c.b16 %v1566, %v1565
      %v1579 = vpack.c.b16 %v1568, %v1567
      %v1580 = vpack.c.b16 %v1570, %v1569
      %v1581 = vpack.c.b16 %v1572, %v1571
      %v1582 = vpack.c.b16 %v1574, %v1573
      %1591 = vmatprep.subr.bf16.mxu0 0
      %1592 = vmatpush1.bf16.msra.mxu0 %v1582
      %1593 = vmatprep.subr.bf16.mxu0 0
      %1594 = vmatpush1.bf16.msra.mxu0 %v1581
      %1595 = vmatprep.subr.bf16.mxu0 0
      %1596 = vmatpush1.bf16.msra.mxu0 %v1580
      %1597 = vmatprep.subr.bf16.mxu0 0
      %1598 = vmatpush1.bf16.msra.mxu0 %v1579
      %1599 = vmatprep.subr.bf16.mxu0 0
      %1600 = vmatpush1.bf16.msra.mxu0 %v1578
      %1601 = vmatprep.subr.bf16.mxu0 0
      %1602 = vmatpush1.bf16.msra.mxu0 %v1577
      %1603 = vmatprep.subr.bf16.mxu0 0
      %1604 = vmatpush1.bf16.msra.mxu0 %v1576
      %1605 = vmatprep.subr.bf16.mxu0 0
      %1606 = vmatpush1.bf16.msra.mxu0 %v1575
      %1607 = vmatprep.subr.bf16.mxu0 0
      %1608 = vmatpush2.bf16.msra.mxu0 0
      %1609 = vmatprep.subr.bf16.mxu0 0
      %1610 = vmatpush2.bf16.msra.mxu0 0
      %1611 = vmatprep.subr.bf16.mxu0 0
      %1612 = vmatpush2.bf16.msra.mxu0 0
      %1613 = vmatprep.subr.bf16.mxu0 0
      %1614 = vmatpush2.bf16.msra.mxu0 0
      %1615 = vmatprep.subr.bf16.mxu0 0
      %1616 = vmatpush2.bf16.msra.mxu0 0
      %1617 = vmatprep.subr.bf16.mxu0 0
      %1618 = vmatpush2.bf16.msra.mxu0 0
      %1619 = vmatprep.subr.bf16.mxu0 0
      %1620 = vmatpush2.bf16.msra.mxu0 0
      %1621 = vmatprep.subr.bf16.mxu0 0
      %1622 = vmatpush2.bf16.msra.mxu0 0
      %1623 = vmatprep.mubr.bf16.mxu0 0
      %1624 = vmatmul.mubr.bf16.gmra.mxu0 %v1510
      %v1625 = vpop.f32.mrf.mxu0
      %v1626 = vadd.f32 0.0, %v1625
      %v1627 = vpop.f32.mrf.mxu0
      %v1628 = vpop.f32.mrf.mxu0
      %v1629 = vadd.f32 0.0, %v1628
      %v1630 = vpop.f32.mrf.mxu0
      %1631 = vmatprep.mubr.bf16.mxu0 0
      %1632 = vmatmul.mubr.bf16.gmra.mxu0 %v1511
      %v1633 = vpop.f32.mrf.mxu0
      %v1634 = vadd.f32 0.0, %v1633
      %v1635 = vpop.f32.mrf.mxu0
      %v1636 = vpop.f32.mrf.mxu0
      %v1637 = vadd.f32 0.0, %v1636
      %v1638 = vpop.f32.mrf.mxu0
      %1639 = vmatprep.mubr.bf16.mxu0 0
      %1640 = vmatmul.mubr.bf16.gmra.mxu0 %v1512
      %v1641 = vpop.f32.mrf.mxu0
      %v1642 = vadd.f32 0.0, %v1641
      %v1643 = vpop.f32.mrf.mxu0
      %v1644 = vpop.f32.mrf.mxu0
      %v1645 = vadd.f32 0.0, %v1644
      %v1646 = vpop.f32.mrf.mxu0
      %1647 = vmatprep.mubr.bf16.mxu0 0
      %1648 = vmatmul.mubr.bf16.gmra.mxu0 %v1513
      %v1649 = vpop.f32.mrf.mxu0
      %v1650 = vadd.f32 0.0, %v1649
      %v1651 = vpop.f32.mrf.mxu0
      %v1652 = vpop.f32.mrf.mxu0
      %v1653 = vadd.f32 0.0, %v1652
      %v1654 = vpop.f32.mrf.mxu0
      %1655 = vmatprep.mubr.bf16.mxu0 0
      %1656 = vmatmul.mubr.bf16.gmra.mxu0 %v1514
      %v1657 = vpop.f32.mrf.mxu0
      %v1658 = vadd.f32 0.0, %v1657
      %v1659 = vpop.f32.mrf.mxu0
      %v1660 = vpop.f32.mrf.mxu0
      %v1661 = vadd.f32 0.0, %v1660
      %v1662 = vpop.f32.mrf.mxu0
      %1663 = vmatprep.mubr.bf16.mxu0 0
      %1664 = vmatmul.mubr.bf16.gmra.mxu0 %v1515
      %v1665 = vpop.f32.mrf.mxu0
      %v1666 = vadd.f32 0.0, %v1665
      %v1667 = vpop.f32.mrf.mxu0
      %v1668 = vpop.f32.mrf.mxu0
      %v1669 = vadd.f32 0.0, %v1668
      %v1670 = vpop.f32.mrf.mxu0
      %1671 = vmatprep.mubr.bf16.mxu0 0
      %1672 = vmatmul.mubr.bf16.gmra.mxu0 %v1516
      %v1673 = vpop.f32.mrf.mxu0
      %v1674 = vadd.f32 0.0, %v1673
      %v1675 = vpop.f32.mrf.mxu0
      %v1676 = vpop.f32.mrf.mxu0
      %v1677 = vadd.f32 0.0, %v1676
      %v1678 = vpop.f32.mrf.mxu0
      %1679 = vmatprep.mubr.bf16.mxu0 0
      %1680 = vmatmul.mubr.bf16.gmra.mxu0 %v1517
      %v1681 = vpop.f32.mrf.mxu0
      %v1682 = vadd.f32 0.0, %v1681
      %v1683 = vpop.f32.mrf.mxu0
      %v1684 = vpop.f32.mrf.mxu0
      %v1685 = vadd.f32 0.0, %v1684
      %v1686 = vpop.f32.mrf.mxu0
      %1687 = vmatprep.mubr.bf16.mxu0 0
      %1688 = vmatmul.mubr.bf16.gmra.mxu0 %v1518
      %v1689 = vpop.f32.mrf.mxu0
      %v1690 = vadd.f32 0.0, %v1689
      %v1691 = vpop.f32.mrf.mxu0
      %v1692 = vpop.f32.mrf.mxu0
      %v1693 = vadd.f32 0.0, %v1692
      %v1694 = vpop.f32.mrf.mxu0
      %1695 = vmatprep.mubr.bf16.mxu0 0
      %1696 = vmatmul.mubr.bf16.gmra.mxu0 %v1519
      %v1697 = vpop.f32.mrf.mxu0
      %v1698 = vadd.f32 0.0, %v1697
      %v1699 = vpop.f32.mrf.mxu0
      %v1700 = vpop.f32.mrf.mxu0
      %v1701 = vadd.f32 0.0, %v1700
      %v1702 = vpop.f32.mrf.mxu0
      %1703 = vmatprep.mubr.bf16.mxu0 0
      %1704 = vmatmul.mubr.bf16.gmra.mxu0 %v1520
      %v1705 = vpop.f32.mrf.mxu0
      %v1706 = vadd.f32 0.0, %v1705
      %v1707 = vpop.f32.mrf.mxu0
      %v1708 = vpop.f32.mrf.mxu0
      %v1709 = vadd.f32 0.0, %v1708
      %v1710 = vpop.f32.mrf.mxu0
      %1711 = vmatprep.mubr.bf16.mxu0 0
      %1712 = vmatmul.mubr.bf16.gmra.mxu0 %v1521
      %v1713 = vpop.f32.mrf.mxu0
      %v1714 = vadd.f32 0.0, %v1713
      %v1715 = vpop.f32.mrf.mxu0
      %v1716 = vpop.f32.mrf.mxu0
      %v1717 = vadd.f32 0.0, %v1716
      %v1718 = vpop.f32.mrf.mxu0
      %1719 = vmatprep.mubr.bf16.mxu0 0
      %1720 = vmatmul.mubr.bf16.gmra.mxu0 %v1522
      %v1721 = vpop.f32.mrf.mxu0
      %v1722 = vadd.f32 0.0, %v1721
      %v1723 = vpop.f32.mrf.mxu0
      %v1724 = vpop.f32.mrf.mxu0
      %v1725 = vadd.f32 0.0, %v1724
      %v1726 = vpop.f32.mrf.mxu0
      %1727 = vmatprep.mubr.bf16.mxu0 0
      %1728 = vmatmul.mubr.bf16.gmra.mxu0 %v1523
      %v1729 = vpop.f32.mrf.mxu0
      %v1730 = vadd.f32 0.0, %v1729
      %v1731 = vpop.f32.mrf.mxu0
      %v1732 = vpop.f32.mrf.mxu0
      %v1733 = vadd.f32 0.0, %v1732
      %v1734 = vpop.f32.mrf.mxu0
      %1735 = vmatprep.mubr.bf16.mxu0 0
      %1736 = vmatmul.mubr.bf16.gmra.mxu0 %v1524
      %v1737 = vpop.f32.mrf.mxu0
      %v1738 = vadd.f32 0.0, %v1737
      %v1739 = vpop.f32.mrf.mxu0
      %v1740 = vpop.f32.mrf.mxu0
      %v1741 = vadd.f32 0.0, %v1740
      %v1742 = vpop.f32.mrf.mxu0
      %1743 = vmatprep.mubr.bf16.mxu0 0
      %1744 = vmatmul.mubr.bf16.gmra.mxu0 %v1525
      %v1745 = vpop.f32.mrf.mxu0
      %v1746 = vadd.f32 0.0, %v1745
      %v1747 = vpop.f32.mrf.mxu0
      %v1748 = vpop.f32.mrf.mxu0
      %v1749 = vadd.f32 0.0, %v1748
      %v1750 = vpop.f32.mrf.mxu0
      %1751 = vdwg.mxu0
      %v1752 = vadd.f32 %v1446, %v1626
      %v1753 = vadd.f32 %v1447, %v1629
      %v1754 = vadd.f32 %v1448, %v1634
      %v1755 = vadd.f32 %v1449, %v1637
      %v1756 = vadd.f32 %v1450, %v1642
      %v1757 = vadd.f32 %v1451, %v1645
      %v1758 = vadd.f32 %v1452, %v1650
      %v1759 = vadd.f32 %v1453, %v1653
      %v1760 = vadd.f32 %v1454, %v1658
      %v1761 = vadd.f32 %v1455, %v1661
      %v1762 = vadd.f32 %v1456, %v1666
      %v1763 = vadd.f32 %v1457, %v1669
      %v1764 = vadd.f32 %v1458, %v1674
      %v1765 = vadd.f32 %v1459, %v1677
      %v1766 = vadd.f32 %v1460, %v1682
      %v1767 = vadd.f32 %v1461, %v1685
      %v1768 = vadd.f32 %v1462, %v1690
      %v1769 = vadd.f32 %v1463, %v1693
      %v1770 = vadd.f32 %v1464, %v1698
      %v1771 = vadd.f32 %v1465, %v1701
      %v1772 = vadd.f32 %v1466, %v1706
      %v1773 = vadd.f32 %v1467, %v1709
      %v1774 = vadd.f32 %v1468, %v1714
      %v1775 = vadd.f32 %v1469, %v1717
      %v1776 = vadd.f32 %v1470, %v1722
      %v1777 = vadd.f32 %v1471, %v1725
      %v1778 = vadd.f32 %v1472, %v1730
      %v1779 = vadd.f32 %v1473, %v1733
      %v1780 = vadd.f32 %v1474, %v1738
      %v1781 = vadd.f32 %v1475, %v1741
      %v1782 = vadd.f32 %v1476, %v1746
      %v1783 = vadd.f32 %v1477, %v1749
      %v1784 = vld [vmem:[%s286 + $0x2] sm:$0xff]
      %v1785 = vld [vmem:[%s286 + $0xa] sm:$0xff]
      %v1786 = vld [vmem:[%s286 + $0x1a] sm:$0xff]
      %v1787 = vld [vmem:[%s286 + $0x22] sm:$0xff]
      %v1788 = vld [vmem:[%s286 + $0x32] sm:$0xff]
      %v1789 = vld [vmem:[%s286 + $0x3a] sm:$0xff]
      %v1790 = vld [vmem:[%s286 + $0x4a] sm:$0xff]
      %v1791 = vld [vmem:[%s286 + $0x52] sm:$0xff]
      %v1792 = vld [vmem:[%s286 + $0x62] sm:$0xff]
      %v1793 = vld [vmem:[%s286 + $0x6a] sm:$0xff]
      %v1794 = vld [vmem:[%s286 + $0x7a] sm:$0xff]
      %v1795 = vld [vmem:[%s286 + $0x82] sm:$0xff]
      %v1796 = vld [vmem:[%s286 + $0x92] sm:$0xff]
      %v1797 = vld [vmem:[%s286 + $0x9a] sm:$0xff]
      %v1798 = vld [vmem:[%s286 + $0xaa] sm:$0xff]
      %v1799 = vld [vmem:[%s286 + $0xb2] sm:$0xff]
      %v1800 = vld [vmem:[%s286 + $0xc2] sm:$0xff]
      %v1801 = vld [vmem:[%s286 + $0xca] sm:$0xff]
      %v1802 = vld [vmem:[%s286 + $0xda] sm:$0xff]
      %v1803 = vld [vmem:[%s286 + $0xe2] sm:$0xff]
      %v1804 = vld [vmem:[%s286 + $0xf2] sm:$0xff]
      %v1805 = vld [vmem:[%s286 + $0xfa] sm:$0xff]
      %v1806 = vld [vmem:[%s286 + $0x10a] sm:$0xff]
      %v1807 = vld [vmem:[%s286 + $0x112] sm:$0xff]
      %v1808 = vld [vmem:[%s286 + $0x122] sm:$0xff]
      %v1809 = vld [vmem:[%s286 + $0x12a] sm:$0xff]
      %v1810 = vld [vmem:[%s286 + $0x13a] sm:$0xff]
      %v1811 = vld [vmem:[%s286 + $0x142] sm:$0xff]
      %v1812 = vld [vmem:[%s286 + $0x152] sm:$0xff]
      %v1813 = vld [vmem:[%s286 + $0x15a] sm:$0xff]
      %v1814 = vld [vmem:[%s286 + $0x16a] sm:$0xff]
      %v1815 = vld [vmem:[%s286 + $0x172] sm:$0xff]
      %v1816 = vpack.c.bf16 %v1785, %v1784
      %v1817 = vpack.c.bf16 %v1787, %v1786
      %v1818 = vpack.c.bf16 %v1789, %v1788
      %v1819 = vpack.c.bf16 %v1791, %v1790
      %v1820 = vpack.c.bf16 %v1793, %v1792
      %v1821 = vpack.c.bf16 %v1795, %v1794
      %v1822 = vpack.c.bf16 %v1797, %v1796
      %v1823 = vpack.c.bf16 %v1799, %v1798
      %v1824 = vpack.c.bf16 %v1801, %v1800
      %v1825 = vpack.c.bf16 %v1803, %v1802
      %v1826 = vpack.c.bf16 %v1805, %v1804
      %v1827 = vpack.c.bf16 %v1807, %v1806
      %v1828 = vpack.c.bf16 %v1809, %v1808
      %v1829 = vpack.c.bf16 %v1811, %v1810
      %v1830 = vpack.c.bf16 %v1813, %v1812
      %v1831 = vpack.c.bf16 %v1815, %v1814
      %s1832 = scalar_lea.vmem %s1, 320
      %v1833 = vld [vmem:[%s1832] sm:$0xf]
      %v1834 = vld [vmem:[%s1832 + $0x4] sm:$0xf]
      %v1835 = vld [vmem:[%s1832 + $0x8] sm:$0xf]
      %v1836 = vld [vmem:[%s1832 + $0xc] sm:$0xf]
      %v1837 = vld [vmem:[%s1832 + $0x10] sm:$0xf]
      %v1838 = vld [vmem:[%s1832 + $0x14] sm:$0xf]
      %v1839 = vld [vmem:[%s1832 + $0x18] sm:$0xf]
      %v1840 = vld [vmem:[%s1832 + $0x1c] sm:$0xf]
      %v1841 = vld [vmem:[%s1832 + $0x20] sm:$0xf]
      %v1842 = vld [vmem:[%s1832 + $0x24] sm:$0xf]
      %v1843 = vld [vmem:[%s1832 + $0x28] sm:$0xf]
      %v1844 = vld [vmem:[%s1832 + $0x2c] sm:$0xf]
      %v1845 = vld [vmem:[%s1832 + $0x30] sm:$0xf]
      %v1846 = vld [vmem:[%s1832 + $0x34] sm:$0xf]
      %v1847 = vld [vmem:[%s1832 + $0x38] sm:$0xf]
      %v1848 = vld [vmem:[%s1832 + $0x3c] sm:$0xf]
      %v1865 = vunpack.c.l.b16 %v1833
      %v1866 = vunpack.c.l.b16 %v1834
      %v1867 = vunpack.c.l.b16 %v1835
      %v1868 = vunpack.c.l.b16 %v1836
      %v1869 = vunpack.c.l.b16 %v1837
      %v1870 = vunpack.c.l.b16 %v1838
      %v1871 = vunpack.c.l.b16 %v1839
      %v1872 = vunpack.c.l.b16 %v1840
      %v1873 = vunpack.c.l.b16 %v1841
      %v1874 = vunpack.c.l.b16 %v1842
      %v1875 = vunpack.c.l.b16 %v1843
      %v1876 = vunpack.c.l.b16 %v1844
      %v1877 = vunpack.c.l.b16 %v1845
      %v1878 = vunpack.c.l.b16 %v1846
      %v1879 = vunpack.c.l.b16 %v1847
      %v1880 = vunpack.c.l.b16 %v1848
      %v1881 = vpack.c.b16 %v1866, %v1865
      %v1882 = vpack.c.b16 %v1868, %v1867
      %v1883 = vpack.c.b16 %v1870, %v1869
      %v1884 = vpack.c.b16 %v1872, %v1871
      %v1885 = vpack.c.b16 %v1874, %v1873
      %v1886 = vpack.c.b16 %v1876, %v1875
      %v1887 = vpack.c.b16 %v1878, %v1877
      %v1888 = vpack.c.b16 %v1880, %v1879
      %1897 = vmatprep.subr.bf16.mxu0 0
      %1898 = vmatpush1.bf16.msra.mxu0 %v1888
      %1899 = vmatprep.subr.bf16.mxu0 0
      %1900 = vmatpush1.bf16.msra.mxu0 %v1887
      %1901 = vmatprep.subr.bf16.mxu0 0
      %1902 = vmatpush1.bf16.msra.mxu0 %v1886
      %1903 = vmatprep.subr.bf16.mxu0 0
      %1904 = vmatpush1.bf16.msra.mxu0 %v1885
      %1905 = vmatprep.subr.bf16.mxu0 0
      %1906 = vmatpush1.bf16.msra.mxu0 %v1884
      %1907 = vmatprep.subr.bf16.mxu0 0
      %1908 = vmatpush1.bf16.msra.mxu0 %v1883
      %1909 = vmatprep.subr.bf16.mxu0 0
      %1910 = vmatpush1.bf16.msra.mxu0 %v1882
      %1911 = vmatprep.subr.bf16.mxu0 0
      %1912 = vmatpush1.bf16.msra.mxu0 %v1881
      %1913 = vmatprep.subr.bf16.mxu0 0
      %1914 = vmatpush2.bf16.msra.mxu0 0
      %1915 = vmatprep.subr.bf16.mxu0 0
      %1916 = vmatpush2.bf16.msra.mxu0 0
      %1917 = vmatprep.subr.bf16.mxu0 0
      %1918 = vmatpush2.bf16.msra.mxu0 0
      %1919 = vmatprep.subr.bf16.mxu0 0
      %1920 = vmatpush2.bf16.msra.mxu0 0
      %1921 = vmatprep.subr.bf16.mxu0 0
      %1922 = vmatpush2.bf16.msra.mxu0 0
      %1923 = vmatprep.subr.bf16.mxu0 0
      %1924 = vmatpush2.bf16.msra.mxu0 0
      %1925 = vmatprep.subr.bf16.mxu0 0
      %1926 = vmatpush2.bf16.msra.mxu0 0
      %1927 = vmatprep.subr.bf16.mxu0 0
      %1928 = vmatpush2.bf16.msra.mxu0 0
      %1929 = vmatprep.mubr.bf16.mxu0 0
      %1930 = vmatmul.mubr.bf16.gmra.mxu0 %v1816
      %v1931 = vpop.f32.mrf.mxu0
      %v1932 = vadd.f32 0.0, %v1931
      %v1933 = vpop.f32.mrf.mxu0
      %v1934 = vpop.f32.mrf.mxu0
      %v1935 = vadd.f32 0.0, %v1934
      %v1936 = vpop.f32.mrf.mxu0
      %1937 = vmatprep.mubr.bf16.mxu0 0
      %1938 = vmatmul.mubr.bf16.gmra.mxu0 %v1817
      %v1939 = vpop.f32.mrf.mxu0
      %v1940 = vadd.f32 0.0, %v1939
      %v1941 = vpop.f32.mrf.mxu0
      %v1942 = vpop.f32.mrf.mxu0
      %v1943 = vadd.f32 0.0, %v1942
      %v1944 = vpop.f32.mrf.mxu0
      %1945 = vmatprep.mubr.bf16.mxu0 0
      %1946 = vmatmul.mubr.bf16.gmra.mxu0 %v1818
      %v1947 = vpop.f32.mrf.mxu0
      %v1948 = vadd.f32 0.0, %v1947
      %v1949 = vpop.f32.mrf.mxu0
      %v1950 = vpop.f32.mrf.mxu0
      %v1951 = vadd.f32 0.0, %v1950
      %v1952 = vpop.f32.mrf.mxu0
      %1953 = vmatprep.mubr.bf16.mxu0 0
      %1954 = vmatmul.mubr.bf16.gmra.mxu0 %v1819
      %v1955 = vpop.f32.mrf.mxu0
      %v1956 = vadd.f32 0.0, %v1955
      %v1957 = vpop.f32.mrf.mxu0
      %v1958 = vpop.f32.mrf.mxu0
      %v1959 = vadd.f32 0.0, %v1958
      %v1960 = vpop.f32.mrf.mxu0
      %1961 = vmatprep.mubr.bf16.mxu0 0
      %1962 = vmatmul.mubr.bf16.gmra.mxu0 %v1820
      %v1963 = vpop.f32.mrf.mxu0
      %v1964 = vadd.f32 0.0, %v1963
      %v1965 = vpop.f32.mrf.mxu0
      %v1966 = vpop.f32.mrf.mxu0
      %v1967 = vadd.f32 0.0, %v1966
      %v1968 = vpop.f32.mrf.mxu0
      %1969 = vmatprep.mubr.bf16.mxu0 0
      %1970 = vmatmul.mubr.bf16.gmra.mxu0 %v1821
      %v1971 = vpop.f32.mrf.mxu0
      %v1972 = vadd.f32 0.0, %v1971
      %v1973 = vpop.f32.mrf.mxu0
      %v1974 = vpop.f32.mrf.mxu0
      %v1975 = vadd.f32 0.0, %v1974
      %v1976 = vpop.f32.mrf.mxu0
      %1977 = vmatprep.mubr.bf16.mxu0 0
      %1978 = vmatmul.mubr.bf16.gmra.mxu0 %v1822
      %v1979 = vpop.f32.mrf.mxu0
      %v1980 = vadd.f32 0.0, %v1979
      %v1981 = vpop.f32.mrf.mxu0
      %v1982 = vpop.f32.mrf.mxu0
      %v1983 = vadd.f32 0.0, %v1982
      %v1984 = vpop.f32.mrf.mxu0
      %1985 = vmatprep.mubr.bf16.mxu0 0
      %1986 = vmatmul.mubr.bf16.gmra.mxu0 %v1823
      %v1987 = vpop.f32.mrf.mxu0
      %v1988 = vadd.f32 0.0, %v1987
      %v1989 = vpop.f32.mrf.mxu0
      %v1990 = vpop.f32.mrf.mxu0
      %v1991 = vadd.f32 0.0, %v1990
      %v1992 = vpop.f32.mrf.mxu0
      %1993 = vmatprep.mubr.bf16.mxu0 0
      %1994 = vmatmul.mubr.bf16.gmra.mxu0 %v1824
      %v1995 = vpop.f32.mrf.mxu0
      %v1996 = vadd.f32 0.0, %v1995
      %v1997 = vpop.f32.mrf.mxu0
      %v1998 = vpop.f32.mrf.mxu0
      %v1999 = vadd.f32 0.0, %v1998
      %v2000 = vpop.f32.mrf.mxu0
      %2001 = vmatprep.mubr.bf16.mxu0 0
      %2002 = vmatmul.mubr.bf16.gmra.mxu0 %v1825
      %v2003 = vpop.f32.mrf.mxu0
      %v2004 = vadd.f32 0.0, %v2003
      %v2005 = vpop.f32.mrf.mxu0
      %v2006 = vpop.f32.mrf.mxu0
      %v2007 = vadd.f32 0.0, %v2006
      %v2008 = vpop.f32.mrf.mxu0
      %2009 = vmatprep.mubr.bf16.mxu0 0
      %2010 = vmatmul.mubr.bf16.gmra.mxu0 %v1826
      %v2011 = vpop.f32.mrf.mxu0
      %v2012 = vadd.f32 0.0, %v2011
      %v2013 = vpop.f32.mrf.mxu0
      %v2014 = vpop.f32.mrf.mxu0
      %v2015 = vadd.f32 0.0, %v2014
      %v2016 = vpop.f32.mrf.mxu0
      %2017 = vmatprep.mubr.bf16.mxu0 0
      %2018 = vmatmul.mubr.bf16.gmra.mxu0 %v1827
      %v2019 = vpop.f32.mrf.mxu0
      %v2020 = vadd.f32 0.0, %v2019
      %v2021 = vpop.f32.mrf.mxu0
      %v2022 = vpop.f32.mrf.mxu0
      %v2023 = vadd.f32 0.0, %v2022
      %v2024 = vpop.f32.mrf.mxu0
      %2025 = vmatprep.mubr.bf16.mxu0 0
      %2026 = vmatmul.mubr.bf16.gmra.mxu0 %v1828
      %v2027 = vpop.f32.mrf.mxu0
      %v2028 = vadd.f32 0.0, %v2027
      %v2029 = vpop.f32.mrf.mxu0
      %v2030 = vpop.f32.mrf.mxu0
      %v2031 = vadd.f32 0.0, %v2030
      %v2032 = vpop.f32.mrf.mxu0
      %2033 = vmatprep.mubr.bf16.mxu0 0
      %2034 = vmatmul.mubr.bf16.gmra.mxu0 %v1829
      %v2035 = vpop.f32.mrf.mxu0
      %v2036 = vadd.f32 0.0, %v2035
      %v2037 = vpop.f32.mrf.mxu0
      %v2038 = vpop.f32.mrf.mxu0
      %v2039 = vadd.f32 0.0, %v2038
      %v2040 = vpop.f32.mrf.mxu0
      %2041 = vmatprep.mubr.bf16.mxu0 0
      %2042 = vmatmul.mubr.bf16.gmra.mxu0 %v1830
      %v2043 = vpop.f32.mrf.mxu0
      %v2044 = vadd.f32 0.0, %v2043
      %v2045 = vpop.f32.mrf.mxu0
      %v2046 = vpop.f32.mrf.mxu0
      %v2047 = vadd.f32 0.0, %v2046
      %v2048 = vpop.f32.mrf.mxu0
      %2049 = vmatprep.mubr.bf16.mxu0 0
      %2050 = vmatmul.mubr.bf16.gmra.mxu0 %v1831
      %v2051 = vpop.f32.mrf.mxu0
      %v2052 = vadd.f32 0.0, %v2051
      %v2053 = vpop.f32.mrf.mxu0
      %v2054 = vpop.f32.mrf.mxu0
      %v2055 = vadd.f32 0.0, %v2054
      %v2056 = vpop.f32.mrf.mxu0
      %2057 = vdwg.mxu0
      %v2058 = vadd.f32 %v1752, %v1932
      %v2059 = vadd.f32 %v1753, %v1935
      %v2060 = vadd.f32 %v1754, %v1940
      %v2061 = vadd.f32 %v1755, %v1943
      %v2062 = vadd.f32 %v1756, %v1948
      %v2063 = vadd.f32 %v1757, %v1951
      %v2064 = vadd.f32 %v1758, %v1956
      %v2065 = vadd.f32 %v1759, %v1959
      %v2066 = vadd.f32 %v1760, %v1964
      %v2067 = vadd.f32 %v1761, %v1967
      %v2068 = vadd.f32 %v1762, %v1972
      %v2069 = vadd.f32 %v1763, %v1975
      %v2070 = vadd.f32 %v1764, %v1980
      %v2071 = vadd.f32 %v1765, %v1983
      %v2072 = vadd.f32 %v1766, %v1988
      %v2073 = vadd.f32 %v1767, %v1991
      %v2074 = vadd.f32 %v1768, %v1996
      %v2075 = vadd.f32 %v1769, %v1999
      %v2076 = vadd.f32 %v1770, %v2004
      %v2077 = vadd.f32 %v1771, %v2007
      %v2078 = vadd.f32 %v1772, %v2012
      %v2079 = vadd.f32 %v1773, %v2015
      %v2080 = vadd.f32 %v1774, %v2020
      %v2081 = vadd.f32 %v1775, %v2023
      %v2082 = vadd.f32 %v1776, %v2028
      %v2083 = vadd.f32 %v1777, %v2031
      %v2084 = vadd.f32 %v1778, %v2036
      %v2085 = vadd.f32 %v1779, %v2039
      %v2086 = vadd.f32 %v1780, %v2044
      %v2087 = vadd.f32 %v1781, %v2047
      %v2088 = vadd.f32 %v1782, %v2052
      %v2089 = vadd.f32 %v1783, %v2055
      %s2090 = scalar_lea.vmem [#allocation2], 48
      %v2091 = vld [vmem:[%s2090] sm:$0xff]
      %v2092 = vld [vmem:[%s2090 + $0x8] sm:$0xff]
      %v2093 = vld [vmem:[%s2090 + $0x18] sm:$0xff]
      %v2094 = vld [vmem:[%s2090 + $0x20] sm:$0xff]
      %v2095 = vld [vmem:[%s2090 + $0x30] sm:$0xff]
      %v2096 = vld [vmem:[%s2090 + $0x38] sm:$0xff]
      %v2097 = vld [vmem:[%s2090 + $0x48] sm:$0xff]
      %v2098 = vld [vmem:[%s2090 + $0x50] sm:$0xff]
      %v2099 = vld [vmem:[%s2090 + $0x60] sm:$0xff]
      %v2100 = vld [vmem:[%s2090 + $0x68] sm:$0xff]
      %v2101 = vld [vmem:[%s2090 + $0x78] sm:$0xff]
      %v2102 = vld [vmem:[%s2090 + $0x80] sm:$0xff]
      %v2103 = vld [vmem:[%s2090 + $0x90] sm:$0xff]
      %v2104 = vld [vmem:[%s2090 + $0x98] sm:$0xff]
      %v2105 = vld [vmem:[%s2090 + $0xa8] sm:$0xff]
      %v2106 = vld [vmem:[%s2090 + $0xb0] sm:$0xff]
      %v2107 = vld [vmem:[%s2090 + $0xc0] sm:$0xff]
      %v2108 = vld [vmem:[%s2090 + $0xc8] sm:$0xff]
      %v2109 = vld [vmem:[%s2090 + $0xd8] sm:$0xff]
      %v2110 = vld [vmem:[%s2090 + $0xe0] sm:$0xff]
      %v2111 = vld [vmem:[%s2090 + $0xf0] sm:$0xff]
      %v2112 = vld [vmem:[%s2090 + $0xf8] sm:$0xff]
      %v2113 = vld [vmem:[%s2090 + $0x108] sm:$0xff]
      %v2114 = vld [vmem:[%s2090 + $0x110] sm:$0xff]
      %v2115 = vld [vmem:[%s2090 + $0x120] sm:$0xff]
      %v2116 = vld [vmem:[%s2090 + $0x128] sm:$0xff]
      %v2117 = vld [vmem:[%s2090 + $0x138] sm:$0xff]
      %v2118 = vld [vmem:[%s2090 + $0x140] sm:$0xff]
      %v2119 = vld [vmem:[%s2090 + $0x150] sm:$0xff]
      %v2120 = vld [vmem:[%s2090 + $0x158] sm:$0xff]
      %v2121 = vld [vmem:[%s2090 + $0x168] sm:$0xff]
      %v2122 = vld [vmem:[%s2090 + $0x170] sm:$0xff]
      %v2123 = vpack.c.bf16 %v2092, %v2091
      %v2124 = vpack.c.bf16 %v2094, %v2093
      %v2125 = vpack.c.bf16 %v2096, %v2095
      %v2126 = vpack.c.bf16 %v2098, %v2097
      %v2127 = vpack.c.bf16 %v2100, %v2099
      %v2128 = vpack.c.bf16 %v2102, %v2101
      %v2129 = vpack.c.bf16 %v2104, %v2103
      %v2130 = vpack.c.bf16 %v2106, %v2105
      %v2131 = vpack.c.bf16 %v2108, %v2107
      %v2132 = vpack.c.bf16 %v2110, %v2109
      %v2133 = vpack.c.bf16 %v2112, %v2111
      %v2134 = vpack.c.bf16 %v2114, %v2113
      %v2135 = vpack.c.bf16 %v2116, %v2115
      %v2136 = vpack.c.bf16 %v2118, %v2117
      %v2137 = vpack.c.bf16 %v2120, %v2119
      %v2138 = vpack.c.bf16 %v2122, %v2121
      %s2139 = scalar_lea.vmem %s1, 384
      %v2140 = vld [vmem:[%s2139] sm:$0xf]
      %v2141 = vld [vmem:[%s2139 + $0x4] sm:$0xf]
      %v2142 = vld [vmem:[%s2139 + $0x8] sm:$0xf]
      %v2143 = vld [vmem:[%s2139 + $0xc] sm:$0xf]
      %v2144 = vld [vmem:[%s2139 + $0x10] sm:$0xf]
      %v2145 = vld [vmem:[%s2139 + $0x14] sm:$0xf]
      %v2146 = vld [vmem:[%s2139 + $0x18] sm:$0xf]
      %v2147 = vld [vmem:[%s2139 + $0x1c] sm:$0xf]
      %v2148 = vld [vmem:[%s2139 + $0x20] sm:$0xf]
      %v2149 = vld [vmem:[%s2139 + $0x24] sm:$0xf]
      %v2150 = vld [vmem:[%s2139 + $0x28] sm:$0xf]
      %v2151 = vld [vmem:[%s2139 + $0x2c] sm:$0xf]
      %v2152 = vld [vmem:[%s2139 + $0x30] sm:$0xf]
      %v2153 = vld [vmem:[%s2139 + $0x34] sm:$0xf]
      %v2154 = vld [vmem:[%s2139 + $0x38] sm:$0xf]
      %v2155 = vld [vmem:[%s2139 + $0x3c] sm:$0xf]
      %v2172 = vunpack.c.l.b16 %v2140
      %v2173 = vunpack.c.l.b16 %v2141
      %v2174 = vunpack.c.l.b16 %v2142
      %v2175 = vunpack.c.l.b16 %v2143
      %v2176 = vunpack.c.l.b16 %v2144
      %v2177 = vunpack.c.l.b16 %v2145
      %v2178 = vunpack.c.l.b16 %v2146
      %v2179 = vunpack.c.l.b16 %v2147
      %v2180 = vunpack.c.l.b16 %v2148
      %v2181 = vunpack.c.l.b16 %v2149
      %v2182 = vunpack.c.l.b16 %v2150
      %v2183 = vunpack.c.l.b16 %v2151
      %v2184 = vunpack.c.l.b16 %v2152
      %v2185 = vunpack.c.l.b16 %v2153
      %v2186 = vunpack.c.l.b16 %v2154
      %v2187 = vunpack.c.l.b16 %v2155
      %v2188 = vpack.c.b16 %v2173, %v2172
      %v2189 = vpack.c.b16 %v2175, %v2174
      %v2190 = vpack.c.b16 %v2177, %v2176
      %v2191 = vpack.c.b16 %v2179, %v2178
      %v2192 = vpack.c.b16 %v2181, %v2180
      %v2193 = vpack.c.b16 %v2183, %v2182
      %v2194 = vpack.c.b16 %v2185, %v2184
      %v2195 = vpack.c.b16 %v2187, %v2186
      %2204 = vmatprep.subr.bf16.mxu0 0
      %2205 = vmatpush1.bf16.msra.mxu0 %v2195
      %2206 = vmatprep.subr.bf16.mxu0 0
      %2207 = vmatpush1.bf16.msra.mxu0 %v2194
      %2208 = vmatprep.subr.bf16.mxu0 0
      %2209 = vmatpush1.bf16.msra.mxu0 %v2193
      %2210 = vmatprep.subr.bf16.mxu0 0
      %2211 = vmatpush1.bf16.msra.mxu0 %v2192
      %2212 = vmatprep.subr.bf16.mxu0 0
      %2213 = vmatpush1.bf16.msra.mxu0 %v2191
      %2214 = vmatprep.subr.bf16.mxu0 0
      %2215 = vmatpush1.bf16.msra.mxu0 %v2190
      %2216 = vmatprep.subr.bf16.mxu0 0
      %2217 = vmatpush1.bf16.msra.mxu0 %v2189
      %2218 = vmatprep.subr.bf16.mxu0 0
      %2219 = vmatpush1.bf16.msra.mxu0 %v2188
      %2220 = vmatprep.subr.bf16.mxu0 0
      %2221 = vmatpush2.bf16.msra.mxu0 0
      %2222 = vmatprep.subr.bf16.mxu0 0
      %2223 = vmatpush2.bf16.msra.mxu0 0
      %2224 = vmatprep.subr.bf16.mxu0 0
      %2225 = vmatpush2.bf16.msra.mxu0 0
      %2226 = vmatprep.subr.bf16.mxu0 0
      %2227 = vmatpush2.bf16.msra.mxu0 0
      %2228 = vmatprep.subr.bf16.mxu0 0
      %2229 = vmatpush2.bf16.msra.mxu0 0
      %2230 = vmatprep.subr.bf16.mxu0 0
      %2231 = vmatpush2.bf16.msra.mxu0 0
      %2232 = vmatprep.subr.bf16.mxu0 0
      %2233 = vmatpush2.bf16.msra.mxu0 0
      %2234 = vmatprep.subr.bf16.mxu0 0
      %2235 = vmatpush2.bf16.msra.mxu0 0
      %2236 = vmatprep.mubr.bf16.mxu0 0
      %2237 = vmatmul.mubr.bf16.gmra.mxu0 %v2123
      %v2238 = vpop.f32.mrf.mxu0
      %v2239 = vadd.f32 0.0, %v2238
      %v2240 = vpop.f32.mrf.mxu0
      %v2241 = vpop.f32.mrf.mxu0
      %v2242 = vadd.f32 0.0, %v2241
      %v2243 = vpop.f32.mrf.mxu0
      %2244 = vmatprep.mubr.bf16.mxu0 0
      %2245 = vmatmul.mubr.bf16.gmra.mxu0 %v2124
      %v2246 = vpop.f32.mrf.mxu0
      %v2247 = vadd.f32 0.0, %v2246
      %v2248 = vpop.f32.mrf.mxu0
      %v2249 = vpop.f32.mrf.mxu0
      %v2250 = vadd.f32 0.0, %v2249
      %v2251 = vpop.f32.mrf.mxu0
      %2252 = vmatprep.mubr.bf16.mxu0 0
      %2253 = vmatmul.mubr.bf16.gmra.mxu0 %v2125
      %v2254 = vpop.f32.mrf.mxu0
      %v2255 = vadd.f32 0.0, %v2254
      %v2256 = vpop.f32.mrf.mxu0
      %v2257 = vpop.f32.mrf.mxu0
      %v2258 = vadd.f32 0.0, %v2257
      %v2259 = vpop.f32.mrf.mxu0
      %2260 = vmatprep.mubr.bf16.mxu0 0
      %2261 = vmatmul.mubr.bf16.gmra.mxu0 %v2126
      %v2262 = vpop.f32.mrf.mxu0
      %v2263 = vadd.f32 0.0, %v2262
      %v2264 = vpop.f32.mrf.mxu0
      %v2265 = vpop.f32.mrf.mxu0
      %v2266 = vadd.f32 0.0, %v2265
      %v2267 = vpop.f32.mrf.mxu0
      %2268 = vmatprep.mubr.bf16.mxu0 0
      %2269 = vmatmul.mubr.bf16.gmra.mxu0 %v2127
      %v2270 = vpop.f32.mrf.mxu0
      %v2271 = vadd.f32 0.0, %v2270
      %v2272 = vpop.f32.mrf.mxu0
      %v2273 = vpop.f32.mrf.mxu0
      %v2274 = vadd.f32 0.0, %v2273
      %v2275 = vpop.f32.mrf.mxu0
      %2276 = vmatprep.mubr.bf16.mxu0 0
      %2277 = vmatmul.mubr.bf16.gmra.mxu0 %v2128
      %v2278 = vpop.f32.mrf.mxu0
      %v2279 = vadd.f32 0.0, %v2278
      %v2280 = vpop.f32.mrf.mxu0
      %v2281 = vpop.f32.mrf.mxu0
      %v2282 = vadd.f32 0.0, %v2281
      %v2283 = vpop.f32.mrf.mxu0
      %2284 = vmatprep.mubr.bf16.mxu0 0
      %2285 = vmatmul.mubr.bf16.gmra.mxu0 %v2129
      %v2286 = vpop.f32.mrf.mxu0
      %v2287 = vadd.f32 0.0, %v2286
      %v2288 = vpop.f32.mrf.mxu0
      %v2289 = vpop.f32.mrf.mxu0
      %v2290 = vadd.f32 0.0, %v2289
      %v2291 = vpop.f32.mrf.mxu0
      %2292 = vmatprep.mubr.bf16.mxu0 0
      %2293 = vmatmul.mubr.bf16.gmra.mxu0 %v2130
      %v2294 = vpop.f32.mrf.mxu0
      %v2295 = vadd.f32 0.0, %v2294
      %v2296 = vpop.f32.mrf.mxu0
      %v2297 = vpop.f32.mrf.mxu0
      %v2298 = vadd.f32 0.0, %v2297
      %v2299 = vpop.f32.mrf.mxu0
      %2300 = vmatprep.mubr.bf16.mxu0 0
      %2301 = vmatmul.mubr.bf16.gmra.mxu0 %v2131
      %v2302 = vpop.f32.mrf.mxu0
      %v2303 = vadd.f32 0.0, %v2302
      %v2304 = vpop.f32.mrf.mxu0
      %v2305 = vpop.f32.mrf.mxu0
      %v2306 = vadd.f32 0.0, %v2305
      %v2307 = vpop.f32.mrf.mxu0
      %2308 = vmatprep.mubr.bf16.mxu0 0
      %2309 = vmatmul.mubr.bf16.gmra.mxu0 %v2132
      %v2310 = vpop.f32.mrf.mxu0
      %v2311 = vadd.f32 0.0, %v2310
      %v2312 = vpop.f32.mrf.mxu0
      %v2313 = vpop.f32.mrf.mxu0
      %v2314 = vadd.f32 0.0, %v2313
      %v2315 = vpop.f32.mrf.mxu0
      %2316 = vmatprep.mubr.bf16.mxu0 0
      %2317 = vmatmul.mubr.bf16.gmra.mxu0 %v2133
      %v2318 = vpop.f32.mrf.mxu0
      %v2319 = vadd.f32 0.0, %v2318
      %v2320 = vpop.f32.mrf.mxu0
      %v2321 = vpop.f32.mrf.mxu0
      %v2322 = vadd.f32 0.0, %v2321
      %v2323 = vpop.f32.mrf.mxu0
      %2324 = vmatprep.mubr.bf16.mxu0 0
      %2325 = vmatmul.mubr.bf16.gmra.mxu0 %v2134
      %v2326 = vpop.f32.mrf.mxu0
      %v2327 = vadd.f32 0.0, %v2326
      %v2328 = vpop.f32.mrf.mxu0
      %v2329 = vpop.f32.mrf.mxu0
      %v2330 = vadd.f32 0.0, %v2329
      %v2331 = vpop.f32.mrf.mxu0
      %2332 = vmatprep.mubr.bf16.mxu0 0
      %2333 = vmatmul.mubr.bf16.gmra.mxu0 %v2135
      %v2334 = vpop.f32.mrf.mxu0
      %v2335 = vadd.f32 0.0, %v2334
      %v2336 = vpop.f32.mrf.mxu0
      %v2337 = vpop.f32.mrf.mxu0
      %v2338 = vadd.f32 0.0, %v2337
      %v2339 = vpop.f32.mrf.mxu0
      %2340 = vmatprep.mubr.bf16.mxu0 0
      %2341 = vmatmul.mubr.bf16.gmra.mxu0 %v2136
      %v2342 = vpop.f32.mrf.mxu0
      %v2343 = vadd.f32 0.0, %v2342
      %v2344 = vpop.f32.mrf.mxu0
      %v2345 = vpop.f32.mrf.mxu0
      %v2346 = vadd.f32 0.0, %v2345
      %v2347 = vpop.f32.mrf.mxu0
      %2348 = vmatprep.mubr.bf16.mxu0 0
      %2349 = vmatmul.mubr.bf16.gmra.mxu0 %v2137
      %v2350 = vpop.f32.mrf.mxu0
      %v2351 = vadd.f32 0.0, %v2350
      %v2352 = vpop.f32.mrf.mxu0
      %v2353 = vpop.f32.mrf.mxu0
      %v2354 = vadd.f32 0.0, %v2353
      %v2355 = vpop.f32.mrf.mxu0
      %2356 = vmatprep.mubr.bf16.mxu0 0
      %2357 = vmatmul.mubr.bf16.gmra.mxu0 %v2138
      %v2358 = vpop.f32.mrf.mxu0
      %v2359 = vadd.f32 0.0, %v2358
      %v2360 = vpop.f32.mrf.mxu0
      %v2361 = vpop.f32.mrf.mxu0
      %v2362 = vadd.f32 0.0, %v2361
      %v2363 = vpop.f32.mrf.mxu0
      %2364 = vdwg.mxu0
      %v2365 = vadd.f32 %v2058, %v2239
      %v2366 = vadd.f32 %v2059, %v2242
      %v2367 = vadd.f32 %v2060, %v2247
      %v2368 = vadd.f32 %v2061, %v2250
      %v2369 = vadd.f32 %v2062, %v2255
      %v2370 = vadd.f32 %v2063, %v2258
      %v2371 = vadd.f32 %v2064, %v2263
      %v2372 = vadd.f32 %v2065, %v2266
      %v2373 = vadd.f32 %v2066, %v2271
      %v2374 = vadd.f32 %v2067, %v2274
      %v2375 = vadd.f32 %v2068, %v2279
      %v2376 = vadd.f32 %v2069, %v2282
      %v2377 = vadd.f32 %v2070, %v2287
      %v2378 = vadd.f32 %v2071, %v2290
      %v2379 = vadd.f32 %v2072, %v2295
      %v2380 = vadd.f32 %v2073, %v2298
      %v2381 = vadd.f32 %v2074, %v2303
      %v2382 = vadd.f32 %v2075, %v2306
      %v2383 = vadd.f32 %v2076, %v2311
      %v2384 = vadd.f32 %v2077, %v2314
      %v2385 = vadd.f32 %v2078, %v2319
      %v2386 = vadd.f32 %v2079, %v2322
      %v2387 = vadd.f32 %v2080, %v2327
      %v2388 = vadd.f32 %v2081, %v2330
      %v2389 = vadd.f32 %v2082, %v2335
      %v2390 = vadd.f32 %v2083, %v2338
      %v2391 = vadd.f32 %v2084, %v2343
      %v2392 = vadd.f32 %v2085, %v2346
      %v2393 = vadd.f32 %v2086, %v2351
      %v2394 = vadd.f32 %v2087, %v2354
      %v2395 = vadd.f32 %v2088, %v2359
      %v2396 = vadd.f32 %v2089, %v2362
      %v2397 = vld [vmem:[%s2090 + $0x1] sm:$0xff]
      %v2398 = vld [vmem:[%s2090 + $0x9] sm:$0xff]
      %v2399 = vld [vmem:[%s2090 + $0x19] sm:$0xff]
      %v2400 = vld [vmem:[%s2090 + $0x21] sm:$0xff]
      %v2401 = vld [vmem:[%s2090 + $0x31] sm:$0xff]
      %v2402 = vld [vmem:[%s2090 + $0x39] sm:$0xff]
      %v2403 = vld [vmem:[%s2090 + $0x49] sm:$0xff]
      %v2404 = vld [vmem:[%s2090 + $0x51] sm:$0xff]
      %v2405 = vld [vmem:[%s2090 + $0x61] sm:$0xff]
      %v2406 = vld [vmem:[%s2090 + $0x69] sm:$0xff]
      %v2407 = vld [vmem:[%s2090 + $0x79] sm:$0xff]
      %v2408 = vld [vmem:[%s2090 + $0x81] sm:$0xff]
      %v2409 = vld [vmem:[%s2090 + $0x91] sm:$0xff]
      %v2410 = vld [vmem:[%s2090 + $0x99] sm:$0xff]
      %v2411 = vld [vmem:[%s2090 + $0xa9] sm:$0xff]
      %v2412 = vld [vmem:[%s2090 + $0xb1] sm:$0xff]
      %v2413 = vld [vmem:[%s2090 + $0xc1] sm:$0xff]
      %v2414 = vld [vmem:[%s2090 + $0xc9] sm:$0xff]
      %v2415 = vld [vmem:[%s2090 + $0xd9] sm:$0xff]
      %v2416 = vld [vmem:[%s2090 + $0xe1] sm:$0xff]
      %v2417 = vld [vmem:[%s2090 + $0xf1] sm:$0xff]
      %v2418 = vld [vmem:[%s2090 + $0xf9] sm:$0xff]
      %v2419 = vld [vmem:[%s2090 + $0x109] sm:$0xff]
      %v2420 = vld [vmem:[%s2090 + $0x111] sm:$0xff]
      %v2421 = vld [vmem:[%s2090 + $0x121] sm:$0xff]
      %v2422 = vld [vmem:[%s2090 + $0x129] sm:$0xff]
      %v2423 = vld [vmem:[%s2090 + $0x139] sm:$0xff]
      %v2424 = vld [vmem:[%s2090 + $0x141] sm:$0xff]
      %v2425 = vld [vmem:[%s2090 + $0x151] sm:$0xff]
      %v2426 = vld [vmem:[%s2090 + $0x159] sm:$0xff]
      %v2427 = vld [vmem:[%s2090 + $0x169] sm:$0xff]
      %v2428 = vld [vmem:[%s2090 + $0x171] sm:$0xff]
      %v2429 = vpack.c.bf16 %v2398, %v2397
      %v2430 = vpack.c.bf16 %v2400, %v2399
      %v2431 = vpack.c.bf16 %v2402, %v2401
      %v2432 = vpack.c.bf16 %v2404, %v2403
      %v2433 = vpack.c.bf16 %v2406, %v2405
      %v2434 = vpack.c.bf16 %v2408, %v2407
      %v2435 = vpack.c.bf16 %v2410, %v2409
      %v2436 = vpack.c.bf16 %v2412, %v2411
      %v2437 = vpack.c.bf16 %v2414, %v2413
      %v2438 = vpack.c.bf16 %v2416, %v2415
      %v2439 = vpack.c.bf16 %v2418, %v2417
      %v2440 = vpack.c.bf16 %v2420, %v2419
      %v2441 = vpack.c.bf16 %v2422, %v2421
      %v2442 = vpack.c.bf16 %v2424, %v2423
      %v2443 = vpack.c.bf16 %v2426, %v2425
      %v2444 = vpack.c.bf16 %v2428, %v2427
      %s2445 = scalar_lea.vmem %s1, 448
      %v2446 = vld [vmem:[%s2445] sm:$0xf]
      %v2447 = vld [vmem:[%s2445 + $0x4] sm:$0xf]
      %v2448 = vld [vmem:[%s2445 + $0x8] sm:$0xf]
      %v2449 = vld [vmem:[%s2445 + $0xc] sm:$0xf]
      %v2450 = vld [vmem:[%s2445 + $0x10] sm:$0xf]
      %v2451 = vld [vmem:[%s2445 + $0x14] sm:$0xf]
      %v2452 = vld [vmem:[%s2445 + $0x18] sm:$0xf]
      %v2453 = vld [vmem:[%s2445 + $0x1c] sm:$0xf]
      %v2454 = vld [vmem:[%s2445 + $0x20] sm:$0xf]
      %v2455 = vld [vmem:[%s2445 + $0x24] sm:$0xf]
      %v2456 = vld [vmem:[%s2445 + $0x28] sm:$0xf]
      %v2457 = vld [vmem:[%s2445 + $0x2c] sm:$0xf]
      %v2458 = vld [vmem:[%s2445 + $0x30] sm:$0xf]
      %v2459 = vld [vmem:[%s2445 + $0x34] sm:$0xf]
      %v2460 = vld [vmem:[%s2445 + $0x38] sm:$0xf]
      %v2461 = vld [vmem:[%s2445 + $0x3c] sm:$0xf]
      %v2478 = vunpack.c.l.b16 %v2446
      %v2479 = vunpack.c.l.b16 %v2447
      %v2480 = vunpack.c.l.b16 %v2448
      %v2481 = vunpack.c.l.b16 %v2449
      %v2482 = vunpack.c.l.b16 %v2450
      %v2483 = vunpack.c.l.b16 %v2451
      %v2484 = vunpack.c.l.b16 %v2452
      %v2485 = vunpack.c.l.b16 %v2453
      %v2486 = vunpack.c.l.b16 %v2454
      %v2487 = vunpack.c.l.b16 %v2455
      %v2488 = vunpack.c.l.b16 %v2456
      %v2489 = vunpack.c.l.b16 %v2457
      %v2490 = vunpack.c.l.b16 %v2458
      %v2491 = vunpack.c.l.b16 %v2459
      %v2492 = vunpack.c.l.b16 %v2460
      %v2493 = vunpack.c.l.b16 %v2461
      %v2494 = vpack.c.b16 %v2479, %v2478
      %v2495 = vpack.c.b16 %v2481, %v2480
      %v2496 = vpack.c.b16 %v2483, %v2482
      %v2497 = vpack.c.b16 %v2485, %v2484
      %v2498 = vpack.c.b16 %v2487, %v2486
      %v2499 = vpack.c.b16 %v2489, %v2488
      %v2500 = vpack.c.b16 %v2491, %v2490
      %v2501 = vpack.c.b16 %v2493, %v2492
      %2510 = vmatprep.subr.bf16.mxu0 0
      %2511 = vmatpush1.bf16.msra.mxu0 %v2501
      %2512 = vmatprep.subr.bf16.mxu0 0
      %2513 = vmatpush1.bf16.msra.mxu0 %v2500
      %2514 = vmatprep.subr.bf16.mxu0 0
      %2515 = vmatpush1.bf16.msra.mxu0 %v2499
      %2516 = vmatprep.subr.bf16.mxu0 0
      %2517 = vmatpush1.bf16.msra.mxu0 %v2498
      %2518 = vmatprep.subr.bf16.mxu0 0
      %2519 = vmatpush1.bf16.msra.mxu0 %v2497
      %2520 = vmatprep.subr.bf16.mxu0 0
      %2521 = vmatpush1.bf16.msra.mxu0 %v2496
      %2522 = vmatprep.subr.bf16.mxu0 0
      %2523 = vmatpush1.bf16.msra.mxu0 %v2495
      %2524 = vmatprep.subr.bf16.mxu0 0
      %2525 = vmatpush1.bf16.msra.mxu0 %v2494
      %2526 = vmatprep.subr.bf16.mxu0 0
      %2527 = vmatpush2.bf16.msra.mxu0 0
      %2528 = vmatprep.subr.bf16.mxu0 0
      %2529 = vmatpush2.bf16.msra.mxu0 0
      %2530 = vmatprep.subr.bf16.mxu0 0
      %2531 = vmatpush2.bf16.msra.mxu0 0
      %2532 = vmatprep.subr.bf16.mxu0 0
      %2533 = vmatpush2.bf16.msra.mxu0 0
      %2534 = vmatprep.subr.bf16.mxu0 0
      %2535 = vmatpush2.bf16.msra.mxu0 0
      %2536 = vmatprep.subr.bf16.mxu0 0
      %2537 = vmatpush2.bf16.msra.mxu0 0
      %2538 = vmatprep.subr.bf16.mxu0 0
      %2539 = vmatpush2.bf16.msra.mxu0 0
      %2540 = vmatprep.subr.bf16.mxu0 0
      %2541 = vmatpush2.bf16.msra.mxu0 0
      %2542 = vmatprep.mubr.bf16.mxu0 0
      %2543 = vmatmul.mubr.bf16.gmra.mxu0 %v2429
      %v2544 = vpop.f32.mrf.mxu0
      %v2545 = vadd.f32 0.0, %v2544
      %v2546 = vpop.f32.mrf.mxu0
      %v2547 = vpop.f32.mrf.mxu0
      %v2548 = vadd.f32 0.0, %v2547
      %v2549 = vpop.f32.mrf.mxu0
      %2550 = vmatprep.mubr.bf16.mxu0 0
      %2551 = vmatmul.mubr.bf16.gmra.mxu0 %v2430
      %v2552 = vpop.f32.mrf.mxu0
      %v2553 = vadd.f32 0.0, %v2552
      %v2554 = vpop.f32.mrf.mxu0
      %v2555 = vpop.f32.mrf.mxu0
      %v2556 = vadd.f32 0.0, %v2555
      %v2557 = vpop.f32.mrf.mxu0
      %2558 = vmatprep.mubr.bf16.mxu0 0
      %2559 = vmatmul.mubr.bf16.gmra.mxu0 %v2431
      %v2560 = vpop.f32.mrf.mxu0
      %v2561 = vadd.f32 0.0, %v2560
      %v2562 = vpop.f32.mrf.mxu0
      %v2563 = vpop.f32.mrf.mxu0
      %v2564 = vadd.f32 0.0, %v2563
      %v2565 = vpop.f32.mrf.mxu0
      %2566 = vmatprep.mubr.bf16.mxu0 0
      %2567 = vmatmul.mubr.bf16.gmra.mxu0 %v2432
      %v2568 = vpop.f32.mrf.mxu0
      %v2569 = vadd.f32 0.0, %v2568
      %v2570 = vpop.f32.mrf.mxu0
      %v2571 = vpop.f32.mrf.mxu0
      %v2572 = vadd.f32 0.0, %v2571
      %v2573 = vpop.f32.mrf.mxu0
      %2574 = vmatprep.mubr.bf16.mxu0 0
      %2575 = vmatmul.mubr.bf16.gmra.mxu0 %v2433
      %v2576 = vpop.f32.mrf.mxu0
      %v2577 = vadd.f32 0.0, %v2576
      %v2578 = vpop.f32.mrf.mxu0
      %v2579 = vpop.f32.mrf.mxu0
      %v2580 = vadd.f32 0.0, %v2579
      %v2581 = vpop.f32.mrf.mxu0
      %2582 = vmatprep.mubr.bf16.mxu0 0
      %2583 = vmatmul.mubr.bf16.gmra.mxu0 %v2434
      %v2584 = vpop.f32.mrf.mxu0
      %v2585 = vadd.f32 0.0, %v2584
      %v2586 = vpop.f32.mrf.mxu0
      %v2587 = vpop.f32.mrf.mxu0
      %v2588 = vadd.f32 0.0, %v2587
      %v2589 = vpop.f32.mrf.mxu0
      %2590 = vmatprep.mubr.bf16.mxu0 0
      %2591 = vmatmul.mubr.bf16.gmra.mxu0 %v2435
      %v2592 = vpop.f32.mrf.mxu0
      %v2593 = vadd.f32 0.0, %v2592
      %v2594 = vpop.f32.mrf.mxu0
      %v2595 = vpop.f32.mrf.mxu0
      %v2596 = vadd.f32 0.0, %v2595
      %v2597 = vpop.f32.mrf.mxu0
      %2598 = vmatprep.mubr.bf16.mxu0 0
      %2599 = vmatmul.mubr.bf16.gmra.mxu0 %v2436
      %v2600 = vpop.f32.mrf.mxu0
      %v2601 = vadd.f32 0.0, %v2600
      %v2602 = vpop.f32.mrf.mxu0
      %v2603 = vpop.f32.mrf.mxu0
      %v2604 = vadd.f32 0.0, %v2603
      %v2605 = vpop.f32.mrf.mxu0
      %2606 = vmatprep.mubr.bf16.mxu0 0
      %2607 = vmatmul.mubr.bf16.gmra.mxu0 %v2437
      %v2608 = vpop.f32.mrf.mxu0
      %v2609 = vadd.f32 0.0, %v2608
      %v2610 = vpop.f32.mrf.mxu0
      %v2611 = vpop.f32.mrf.mxu0
      %v2612 = vadd.f32 0.0, %v2611
      %v2613 = vpop.f32.mrf.mxu0
      %2614 = vmatprep.mubr.bf16.mxu0 0
      %2615 = vmatmul.mubr.bf16.gmra.mxu0 %v2438
      %v2616 = vpop.f32.mrf.mxu0
      %v2617 = vadd.f32 0.0, %v2616
      %v2618 = vpop.f32.mrf.mxu0
      %v2619 = vpop.f32.mrf.mxu0
      %v2620 = vadd.f32 0.0, %v2619
      %v2621 = vpop.f32.mrf.mxu0
      %2622 = vmatprep.mubr.bf16.mxu0 0
      %2623 = vmatmul.mubr.bf16.gmra.mxu0 %v2439
      %v2624 = vpop.f32.mrf.mxu0
      %v2625 = vadd.f32 0.0, %v2624
      %v2626 = vpop.f32.mrf.mxu0
      %v2627 = vpop.f32.mrf.mxu0
      %v2628 = vadd.f32 0.0, %v2627
      %v2629 = vpop.f32.mrf.mxu0
      %2630 = vmatprep.mubr.bf16.mxu0 0
      %2631 = vmatmul.mubr.bf16.gmra.mxu0 %v2440
      %v2632 = vpop.f32.mrf.mxu0
      %v2633 = vadd.f32 0.0, %v2632
      %v2634 = vpop.f32.mrf.mxu0
      %v2635 = vpop.f32.mrf.mxu0
      %v2636 = vadd.f32 0.0, %v2635
      %v2637 = vpop.f32.mrf.mxu0
      %2638 = vmatprep.mubr.bf16.mxu0 0
      %2639 = vmatmul.mubr.bf16.gmra.mxu0 %v2441
      %v2640 = vpop.f32.mrf.mxu0
      %v2641 = vadd.f32 0.0, %v2640
      %v2642 = vpop.f32.mrf.mxu0
      %v2643 = vpop.f32.mrf.mxu0
      %v2644 = vadd.f32 0.0, %v2643
      %v2645 = vpop.f32.mrf.mxu0
      %2646 = vmatprep.mubr.bf16.mxu0 0
      %2647 = vmatmul.mubr.bf16.gmra.mxu0 %v2442
      %v2648 = vpop.f32.mrf.mxu0
      %v2649 = vadd.f32 0.0, %v2648
      %v2650 = vpop.f32.mrf.mxu0
      %v2651 = vpop.f32.mrf.mxu0
      %v2652 = vadd.f32 0.0, %v2651
      %v2653 = vpop.f32.mrf.mxu0
      %2654 = vmatprep.mubr.bf16.mxu0 0
      %2655 = vmatmul.mubr.bf16.gmra.mxu0 %v2443
      %v2656 = vpop.f32.mrf.mxu0
      %v2657 = vadd.f32 0.0, %v2656
      %v2658 = vpop.f32.mrf.mxu0
      %v2659 = vpop.f32.mrf.mxu0
      %v2660 = vadd.f32 0.0, %v2659
      %v2661 = vpop.f32.mrf.mxu0
      %2662 = vmatprep.mubr.bf16.mxu0 0
      %2663 = vmatmul.mubr.bf16.gmra.mxu0 %v2444
      %v2664 = vpop.f32.mrf.mxu0
      %v2665 = vadd.f32 0.0, %v2664
      %v2666 = vpop.f32.mrf.mxu0
      %v2667 = vpop.f32.mrf.mxu0
      %v2668 = vadd.f32 0.0, %v2667
      %v2669 = vpop.f32.mrf.mxu0
      %2670 = vdwg.mxu0
      %v2671 = vadd.f32 %v2365, %v2545
      %v2672 = vadd.f32 %v2366, %v2548
      %v2673 = vadd.f32 %v2367, %v2553
      %v2674 = vadd.f32 %v2368, %v2556
      %v2675 = vadd.f32 %v2369, %v2561
      %v2676 = vadd.f32 %v2370, %v2564
      %v2677 = vadd.f32 %v2371, %v2569
      %v2678 = vadd.f32 %v2372, %v2572
      %v2679 = vadd.f32 %v2373, %v2577
      %v2680 = vadd.f32 %v2374, %v2580
      %v2681 = vadd.f32 %v2375, %v2585
      %v2682 = vadd.f32 %v2376, %v2588
      %v2683 = vadd.f32 %v2377, %v2593
      %v2684 = vadd.f32 %v2378, %v2596
      %v2685 = vadd.f32 %v2379, %v2601
      %v2686 = vadd.f32 %v2380, %v2604
      %v2687 = vadd.f32 %v2381, %v2609
      %v2688 = vadd.f32 %v2382, %v2612
      %v2689 = vadd.f32 %v2383, %v2617
      %v2690 = vadd.f32 %v2384, %v2620
      %v2691 = vadd.f32 %v2385, %v2625
      %v2692 = vadd.f32 %v2386, %v2628
      %v2693 = vadd.f32 %v2387, %v2633
      %v2694 = vadd.f32 %v2388, %v2636
      %v2695 = vadd.f32 %v2389, %v2641
      %v2696 = vadd.f32 %v2390, %v2644
      %v2697 = vadd.f32 %v2391, %v2649
      %v2698 = vadd.f32 %v2392, %v2652
      %v2699 = vadd.f32 %v2393, %v2657
      %v2700 = vadd.f32 %v2394, %v2660
      %v2701 = vadd.f32 %v2395, %v2665
      %v2702 = vadd.f32 %v2396, %v2668
      %v2703 = vld [vmem:[%s2090 + $0x2] sm:$0xff]
      %v2704 = vld [vmem:[%s2090 + $0xa] sm:$0xff]
      %v2705 = vld [vmem:[%s2090 + $0x1a] sm:$0xff]
      %v2706 = vld [vmem:[%s2090 + $0x22] sm:$0xff]
      %v2707 = vld [vmem:[%s2090 + $0x32] sm:$0xff]
      %v2708 = vld [vmem:[%s2090 + $0x3a] sm:$0xff]
      %v2709 = vld [vmem:[%s2090 + $0x4a] sm:$0xff]
      %v2710 = vld [vmem:[%s2090 + $0x52] sm:$0xff]
      %v2711 = vld [vmem:[%s2090 + $0x62] sm:$0xff]
      %v2712 = vld [vmem:[%s2090 + $0x6a] sm:$0xff]
      %v2713 = vld [vmem:[%s2090 + $0x7a] sm:$0xff]
      %v2714 = vld [vmem:[%s2090 + $0x82] sm:$0xff]
      %v2715 = vld [vmem:[%s2090 + $0x92] sm:$0xff]
      %v2716 = vld [vmem:[%s2090 + $0x9a] sm:$0xff]
      %v2717 = vld [vmem:[%s2090 + $0xaa] sm:$0xff]
      %v2718 = vld [vmem:[%s2090 + $0xb2] sm:$0xff]
      %v2719 = vld [vmem:[%s2090 + $0xc2] sm:$0xff]
      %v2720 = vld [vmem:[%s2090 + $0xca] sm:$0xff]
      %v2721 = vld [vmem:[%s2090 + $0xda] sm:$0xff]
      %v2722 = vld [vmem:[%s2090 + $0xe2] sm:$0xff]
      %v2723 = vld [vmem:[%s2090 + $0xf2] sm:$0xff]
      %v2724 = vld [vmem:[%s2090 + $0xfa] sm:$0xff]
      %v2725 = vld [vmem:[%s2090 + $0x10a] sm:$0xff]
      %v2726 = vld [vmem:[%s2090 + $0x112] sm:$0xff]
      %v2727 = vld [vmem:[%s2090 + $0x122] sm:$0xff]
      %v2728 = vld [vmem:[%s2090 + $0x12a] sm:$0xff]
      %v2729 = vld [vmem:[%s2090 + $0x13a] sm:$0xff]
      %v2730 = vld [vmem:[%s2090 + $0x142] sm:$0xff]
      %v2731 = vld [vmem:[%s2090 + $0x152] sm:$0xff]
      %v2732 = vld [vmem:[%s2090 + $0x15a] sm:$0xff]
      %v2733 = vld [vmem:[%s2090 + $0x16a] sm:$0xff]
      %v2734 = vld [vmem:[%s2090 + $0x172] sm:$0xff]
      %v2735 = vpack.c.bf16 %v2704, %v2703
      %v2736 = vpack.c.bf16 %v2706, %v2705
      %v2737 = vpack.c.bf16 %v2708, %v2707
      %v2738 = vpack.c.bf16 %v2710, %v2709
      %v2739 = vpack.c.bf16 %v2712, %v2711
      %v2740 = vpack.c.bf16 %v2714, %v2713
      %v2741 = vpack.c.bf16 %v2716, %v2715
      %v2742 = vpack.c.bf16 %v2718, %v2717
      %v2743 = vpack.c.bf16 %v2720, %v2719
      %v2744 = vpack.c.bf16 %v2722, %v2721
      %v2745 = vpack.c.bf16 %v2724, %v2723
      %v2746 = vpack.c.bf16 %v2726, %v2725
      %v2747 = vpack.c.bf16 %v2728, %v2727
      %v2748 = vpack.c.bf16 %v2730, %v2729
      %v2749 = vpack.c.bf16 %v2732, %v2731
      %v2750 = vpack.c.bf16 %v2734, %v2733
      %s2751 = scalar_lea.vmem %s1, 512
      %v2752 = vld [vmem:[%s2751] sm:$0xf]
      %v2753 = vld [vmem:[%s2751 + $0x4] sm:$0xf]
      %v2754 = vld [vmem:[%s2751 + $0x8] sm:$0xf]
      %v2755 = vld [vmem:[%s2751 + $0xc] sm:$0xf]
      %v2756 = vld [vmem:[%s2751 + $0x10] sm:$0xf]
      %v2757 = vld [vmem:[%s2751 + $0x14] sm:$0xf]
      %v2758 = vld [vmem:[%s2751 + $0x18] sm:$0xf]
      %v2759 = vld [vmem:[%s2751 + $0x1c] sm:$0xf]
      %v2760 = vld [vmem:[%s2751 + $0x20] sm:$0xf]
      %v2761 = vld [vmem:[%s2751 + $0x24] sm:$0xf]
      %v2762 = vld [vmem:[%s2751 + $0x28] sm:$0xf]
      %v2763 = vld [vmem:[%s2751 + $0x2c] sm:$0xf]
      %v2764 = vld [vmem:[%s2751 + $0x30] sm:$0xf]
      %v2765 = vld [vmem:[%s2751 + $0x34] sm:$0xf]
      %v2766 = vld [vmem:[%s2751 + $0x38] sm:$0xf]
      %v2767 = vld [vmem:[%s2751 + $0x3c] sm:$0xf]
      %v2784 = vunpack.c.l.b16 %v2752
      %v2785 = vunpack.c.l.b16 %v2753
      %v2786 = vunpack.c.l.b16 %v2754
      %v2787 = vunpack.c.l.b16 %v2755
      %v2788 = vunpack.c.l.b16 %v2756
      %v2789 = vunpack.c.l.b16 %v2757
      %v2790 = vunpack.c.l.b16 %v2758
      %v2791 = vunpack.c.l.b16 %v2759
      %v2792 = vunpack.c.l.b16 %v2760
      %v2793 = vunpack.c.l.b16 %v2761
      %v2794 = vunpack.c.l.b16 %v2762
      %v2795 = vunpack.c.l.b16 %v2763
      %v2796 = vunpack.c.l.b16 %v2764
      %v2797 = vunpack.c.l.b16 %v2765
      %v2798 = vunpack.c.l.b16 %v2766
      %v2799 = vunpack.c.l.b16 %v2767
      %v2800 = vpack.c.b16 %v2785, %v2784
      %v2801 = vpack.c.b16 %v2787, %v2786
      %v2802 = vpack.c.b16 %v2789, %v2788
      %v2803 = vpack.c.b16 %v2791, %v2790
      %v2804 = vpack.c.b16 %v2793, %v2792
      %v2805 = vpack.c.b16 %v2795, %v2794
      %v2806 = vpack.c.b16 %v2797, %v2796
      %v2807 = vpack.c.b16 %v2799, %v2798
      %2816 = vmatprep.subr.bf16.mxu0 0
      %2817 = vmatpush1.bf16.msra.mxu0 %v2807
      %2818 = vmatprep.subr.bf16.mxu0 0
      %2819 = vmatpush1.bf16.msra.mxu0 %v2806
      %2820 = vmatprep.subr.bf16.mxu0 0
      %2821 = vmatpush1.bf16.msra.mxu0 %v2805
      %2822 = vmatprep.subr.bf16.mxu0 0
      %2823 = vmatpush1.bf16.msra.mxu0 %v2804
      %2824 = vmatprep.subr.bf16.mxu0 0
      %2825 = vmatpush1.bf16.msra.mxu0 %v2803
      %2826 = vmatprep.subr.bf16.mxu0 0
      %2827 = vmatpush1.bf16.msra.mxu0 %v2802
      %2828 = vmatprep.subr.bf16.mxu0 0
      %2829 = vmatpush1.bf16.msra.mxu0 %v2801
      %2830 = vmatprep.subr.bf16.mxu0 0
      %2831 = vmatpush1.bf16.msra.mxu0 %v2800
      %2832 = vmatprep.subr.bf16.mxu0 0
      %2833 = vmatpush2.bf16.msra.mxu0 0
      %2834 = vmatprep.subr.bf16.mxu0 0
      %2835 = vmatpush2.bf16.msra.mxu0 0
      %2836 = vmatprep.subr.bf16.mxu0 0
      %2837 = vmatpush2.bf16.msra.mxu0 0
      %2838 = vmatprep.subr.bf16.mxu0 0
      %2839 = vmatpush2.bf16.msra.mxu0 0
      %2840 = vmatprep.subr.bf16.mxu0 0
      %2841 = vmatpush2.bf16.msra.mxu0 0
      %2842 = vmatprep.subr.bf16.mxu0 0
      %2843 = vmatpush2.bf16.msra.mxu0 0
      %2844 = vmatprep.subr.bf16.mxu0 0
      %2845 = vmatpush2.bf16.msra.mxu0 0
      %2846 = vmatprep.subr.bf16.mxu0 0
      %2847 = vmatpush2.bf16.msra.mxu0 0
      %2848 = vmatprep.mubr.bf16.mxu0 0
      %2849 = vmatmul.mubr.bf16.gmra.mxu0 %v2735
      %v2850 = vpop.f32.mrf.mxu0
      %v2851 = vadd.f32 0.0, %v2850
      %v2852 = vpop.f32.mrf.mxu0
      %v2853 = vpop.f32.mrf.mxu0
      %v2854 = vadd.f32 0.0, %v2853
      %v2855 = vpop.f32.mrf.mxu0
      %2856 = vmatprep.mubr.bf16.mxu0 0
      %2857 = vmatmul.mubr.bf16.gmra.mxu0 %v2736
      %v2858 = vpop.f32.mrf.mxu0
      %v2859 = vadd.f32 0.0, %v2858
      %v2860 = vpop.f32.mrf.mxu0
      %v2861 = vpop.f32.mrf.mxu0
      %v2862 = vadd.f32 0.0, %v2861
      %v2863 = vpop.f32.mrf.mxu0
      %2864 = vmatprep.mubr.bf16.mxu0 0
      %2865 = vmatmul.mubr.bf16.gmra.mxu0 %v2737
      %v2866 = vpop.f32.mrf.mxu0
      %v2867 = vadd.f32 0.0, %v2866
      %v2868 = vpop.f32.mrf.mxu0
      %v2869 = vpop.f32.mrf.mxu0
      %v2870 = vadd.f32 0.0, %v2869
      %v2871 = vpop.f32.mrf.mxu0
      %2872 = vmatprep.mubr.bf16.mxu0 0
      %2873 = vmatmul.mubr.bf16.gmra.mxu0 %v2738
      %v2874 = vpop.f32.mrf.mxu0
      %v2875 = vadd.f32 0.0, %v2874
      %v2876 = vpop.f32.mrf.mxu0
      %v2877 = vpop.f32.mrf.mxu0
      %v2878 = vadd.f32 0.0, %v2877
      %v2879 = vpop.f32.mrf.mxu0
      %2880 = vmatprep.mubr.bf16.mxu0 0
      %2881 = vmatmul.mubr.bf16.gmra.mxu0 %v2739
      %v2882 = vpop.f32.mrf.mxu0
      %v2883 = vadd.f32 0.0, %v2882
      %v2884 = vpop.f32.mrf.mxu0
      %v2885 = vpop.f32.mrf.mxu0
      %v2886 = vadd.f32 0.0, %v2885
      %v2887 = vpop.f32.mrf.mxu0
      %2888 = vmatprep.mubr.bf16.mxu0 0
      %2889 = vmatmul.mubr.bf16.gmra.mxu0 %v2740
      %v2890 = vpop.f32.mrf.mxu0
      %v2891 = vadd.f32 0.0, %v2890
      %v2892 = vpop.f32.mrf.mxu0
      %v2893 = vpop.f32.mrf.mxu0
      %v2894 = vadd.f32 0.0, %v2893
      %v2895 = vpop.f32.mrf.mxu0
      %2896 = vmatprep.mubr.bf16.mxu0 0
      %2897 = vmatmul.mubr.bf16.gmra.mxu0 %v2741
      %v2898 = vpop.f32.mrf.mxu0
      %v2899 = vadd.f32 0.0, %v2898
      %v2900 = vpop.f32.mrf.mxu0
      %v2901 = vpop.f32.mrf.mxu0
      %v2902 = vadd.f32 0.0, %v2901
      %v2903 = vpop.f32.mrf.mxu0
      %2904 = vmatprep.mubr.bf16.mxu0 0
      %2905 = vmatmul.mubr.bf16.gmra.mxu0 %v2742
      %v2906 = vpop.f32.mrf.mxu0
      %v2907 = vadd.f32 0.0, %v2906
      %v2908 = vpop.f32.mrf.mxu0
      %v2909 = vpop.f32.mrf.mxu0
      %v2910 = vadd.f32 0.0, %v2909
      %v2911 = vpop.f32.mrf.mxu0
      %2912 = vmatprep.mubr.bf16.mxu0 0
      %2913 = vmatmul.mubr.bf16.gmra.mxu0 %v2743
      %v2914 = vpop.f32.mrf.mxu0
      %v2915 = vadd.f32 0.0, %v2914
      %v2916 = vpop.f32.mrf.mxu0
      %v2917 = vpop.f32.mrf.mxu0
      %v2918 = vadd.f32 0.0, %v2917
      %v2919 = vpop.f32.mrf.mxu0
      %2920 = vmatprep.mubr.bf16.mxu0 0
      %2921 = vmatmul.mubr.bf16.gmra.mxu0 %v2744
      %v2922 = vpop.f32.mrf.mxu0
      %v2923 = vadd.f32 0.0, %v2922
      %v2924 = vpop.f32.mrf.mxu0
      %v2925 = vpop.f32.mrf.mxu0
      %v2926 = vadd.f32 0.0, %v2925
      %v2927 = vpop.f32.mrf.mxu0
      %2928 = vmatprep.mubr.bf16.mxu0 0
      %2929 = vmatmul.mubr.bf16.gmra.mxu0 %v2745
      %v2930 = vpop.f32.mrf.mxu0
      %v2931 = vadd.f32 0.0, %v2930
      %v2932 = vpop.f32.mrf.mxu0
      %v2933 = vpop.f32.mrf.mxu0
      %v2934 = vadd.f32 0.0, %v2933
      %v2935 = vpop.f32.mrf.mxu0
      %2936 = vmatprep.mubr.bf16.mxu0 0
      %2937 = vmatmul.mubr.bf16.gmra.mxu0 %v2746
      %v2938 = vpop.f32.mrf.mxu0
      %v2939 = vadd.f32 0.0, %v2938
      %v2940 = vpop.f32.mrf.mxu0
      %v2941 = vpop.f32.mrf.mxu0
      %v2942 = vadd.f32 0.0, %v2941
      %v2943 = vpop.f32.mrf.mxu0
      %2944 = vmatprep.mubr.bf16.mxu0 0
      %2945 = vmatmul.mubr.bf16.gmra.mxu0 %v2747
      %v2946 = vpop.f32.mrf.mxu0
      %v2947 = vadd.f32 0.0, %v2946
      %v2948 = vpop.f32.mrf.mxu0
      %v2949 = vpop.f32.mrf.mxu0
      %v2950 = vadd.f32 0.0, %v2949
      %v2951 = vpop.f32.mrf.mxu0
      %2952 = vmatprep.mubr.bf16.mxu0 0
      %2953 = vmatmul.mubr.bf16.gmra.mxu0 %v2748
      %v2954 = vpop.f32.mrf.mxu0
      %v2955 = vadd.f32 0.0, %v2954
      %v2956 = vpop.f32.mrf.mxu0
      %v2957 = vpop.f32.mrf.mxu0
      %v2958 = vadd.f32 0.0, %v2957
      %v2959 = vpop.f32.mrf.mxu0
      %2960 = vmatprep.mubr.bf16.mxu0 0
      %2961 = vmatmul.mubr.bf16.gmra.mxu0 %v2749
      %v2962 = vpop.f32.mrf.mxu0
      %v2963 = vadd.f32 0.0, %v2962
      %v2964 = vpop.f32.mrf.mxu0
      %v2965 = vpop.f32.mrf.mxu0
      %v2966 = vadd.f32 0.0, %v2965
      %v2967 = vpop.f32.mrf.mxu0
      %2968 = vmatprep.mubr.bf16.mxu0 0
      %2969 = vmatmul.mubr.bf16.gmra.mxu0 %v2750
      %v2970 = vpop.f32.mrf.mxu0
      %v2971 = vadd.f32 0.0, %v2970
      %v2972 = vpop.f32.mrf.mxu0
      %v2973 = vpop.f32.mrf.mxu0
      %v2974 = vadd.f32 0.0, %v2973
      %v2975 = vpop.f32.mrf.mxu0
      %2976 = vdwg.mxu0
      %v2977 = vadd.f32 %v2671, %v2851
      %v2978 = vadd.f32 %v2672, %v2854
      %v2979 = vadd.f32 %v2673, %v2859
      %v2980 = vadd.f32 %v2674, %v2862
      %v2981 = vadd.f32 %v2675, %v2867
      %v2982 = vadd.f32 %v2676, %v2870
      %v2983 = vadd.f32 %v2677, %v2875
      %v2984 = vadd.f32 %v2678, %v2878
      %v2985 = vadd.f32 %v2679, %v2883
      %v2986 = vadd.f32 %v2680, %v2886
      %v2987 = vadd.f32 %v2681, %v2891
      %v2988 = vadd.f32 %v2682, %v2894
      %v2989 = vadd.f32 %v2683, %v2899
      %v2990 = vadd.f32 %v2684, %v2902
      %v2991 = vadd.f32 %v2685, %v2907
      %v2992 = vadd.f32 %v2686, %v2910
      %v2993 = vadd.f32 %v2687, %v2915
      %v2994 = vadd.f32 %v2688, %v2918
      %v2995 = vadd.f32 %v2689, %v2923
      %v2996 = vadd.f32 %v2690, %v2926
      %v2997 = vadd.f32 %v2691, %v2931
      %v2998 = vadd.f32 %v2692, %v2934
      %v2999 = vadd.f32 %v2693, %v2939
      %v3000 = vadd.f32 %v2694, %v2942
      %v3001 = vadd.f32 %v2695, %v2947
      %v3002 = vadd.f32 %v2696, %v2950
      %v3003 = vadd.f32 %v2697, %v2955
      %v3004 = vadd.f32 %v2698, %v2958
      %v3005 = vadd.f32 %v2699, %v2963
      %v3006 = vadd.f32 %v2700, %v2966
      %v3007 = vadd.f32 %v2701, %v2971
      %v3008 = vadd.f32 %v2702, %v2974
      %3009 = vst [vmem:[%s192] sm:$0xff] %v2977
      %3010 = vst [vmem:[%s192 + $0x8] sm:$0xff] %v2978
      %3011 = vst [vmem:[%s192 + $0x10] sm:$0xff] %v2979
      %3012 = vst [vmem:[%s192 + $0x18] sm:$0xff] %v2980
      %3013 = vst [vmem:[%s192 + $0x20] sm:$0xff] %v2981
      %3014 = vst [vmem:[%s192 + $0x28] sm:$0xff] %v2982
      %3015 = vst [vmem:[%s192 + $0x30] sm:$0xff] %v2983
      %3016 = vst [vmem:[%s192 + $0x38] sm:$0xff] %v2984
      %3017 = vst [vmem:[%s192 + $0x40] sm:$0xff] %v2985
      %3018 = vst [vmem:[%s192 + $0x48] sm:$0xff] %v2986
      %3019 = vst [vmem:[%s192 + $0x50] sm:$0xff] %v2987
      %3020 = vst [vmem:[%s192 + $0x58] sm:$0xff] %v2988
      %3021 = vst [vmem:[%s192 + $0x60] sm:$0xff] %v2989
      %3022 = vst [vmem:[%s192 + $0x68] sm:$0xff] %v2990
      %3023 = vst [vmem:[%s192 + $0x70] sm:$0xff] %v2991
      %3024 = vst [vmem:[%s192 + $0x78] sm:$0xff] %v2992
      %3025 = vst [vmem:[%s192 + $0x80] sm:$0xff] %v2993
      %3026 = vst [vmem:[%s192 + $0x88] sm:$0xff] %v2994
      %3027 = vst [vmem:[%s192 + $0x90] sm:$0xff] %v2995
      %3028 = vst [vmem:[%s192 + $0x98] sm:$0xff] %v2996
      %3029 = vst [vmem:[%s192 + $0xa0] sm:$0xff] %v2997
      %3030 = vst [vmem:[%s192 + $0xa8] sm:$0xff] %v2998
      %3031 = vst [vmem:[%s192 + $0xb0] sm:$0xff] %v2999
      %3032 = vst [vmem:[%s192 + $0xb8] sm:$0xff] %v3000
      %3033 = vst [vmem:[%s192 + $0xc0] sm:$0xff] %v3001
      %3034 = vst [vmem:[%s192 + $0xc8] sm:$0xff] %v3002
      %3035 = vst [vmem:[%s192 + $0xd0] sm:$0xff] %v3003
      %3036 = vst [vmem:[%s192 + $0xd8] sm:$0xff] %v3004
      %3037 = vst [vmem:[%s192 + $0xe0] sm:$0xff] %v3005
      %3038 = vst [vmem:[%s192 + $0xe8] sm:$0xff] %v3006
      %3039 = vst [vmem:[%s192 + $0xf0] sm:$0xff] %v3007
      %3040 = vst [vmem:[%s192 + $0xf8] sm:$0xff] %v3008
      %v3041 = vld [vmem:[%s3] sm:$0x1]
      %v3042 = vadd.f32 %v2977, %v2978
      %v3043 = vadd.f32 %v3042, %v2979
      %v3044 = vadd.f32 %v3043, %v2980
      %v3045 = vadd.f32 %v3044, %v2981
      %v3046 = vadd.f32 %v3045, %v2982
      %v3047 = vadd.f32 %v3046, %v2983
      %v3048 = vadd.f32 %v3047, %v2984
      %v3049 = vadd.f32 %v3048, %v2985
      %v3050 = vadd.f32 %v3049, %v2986
      %v3051 = vadd.f32 %v3050, %v2987
      %v3052 = vadd.f32 %v3051, %v2988
      %v3053 = vadd.f32 %v3052, %v2989
      %v3054 = vadd.f32 %v3053, %v2990
      %v3055 = vadd.f32 %v3054, %v2991
      %v3056 = vadd.f32 %v3055, %v2992
      %v3057 = vadd.f32 %v3056, %v2993
      %v3058 = vadd.f32 %v3057, %v2994
      %v3059 = vadd.f32 %v3058, %v2995
      %v3060 = vadd.f32 %v3059, %v2996
      %v3061 = vadd.f32 %v3060, %v2997
      %v3062 = vadd.f32 %v3061, %v2998
      %v3063 = vadd.f32 %v3062, %v2999
      %v3064 = vadd.f32 %v3063, %v3000
      %v3065 = vadd.f32 %v3064, %v3001
      %v3066 = vadd.f32 %v3065, %v3002
      %v3067 = vadd.f32 %v3066, %v3003
      %v3068 = vadd.f32 %v3067, %v3004
      %v3069 = vadd.f32 %v3068, %v3005
      %v3070 = vadd.f32 %v3069, %v3006
      %v3071 = vadd.f32 %v3070, %v3007
      %v3072 = vadd.f32 %v3071, %v3008
      %v3073 = vrot.slane %v3072, 4
      %v3074 = vadd.f32 %v3072, %v3073
      %v3075 = vrot.slane %v3074, 2
      %v3076 = vadd.f32 %v3074, %v3075
      %v3077 = vrot.slane %v3076, 1
      %v3078 = vadd.f32 %v3076, %v3077
      %v3079 = vadd.f32 %v3041, %v3078
      %3080 = vst [vmem:[%s3] sm:$0x1] %v3079
      %v3081 = vld [vmem:[%s4] sm:$0x1]
      %v3082 = vmul.f32 %v2977, %v2977
      %v3083 = vmul.f32 %v2978, %v2978
      %v3084 = vmul.f32 %v2979, %v2979
      %v3085 = vmul.f32 %v2980, %v2980
      %v3086 = vmul.f32 %v2981, %v2981
      %v3087 = vmul.f32 %v2982, %v2982
      %v3088 = vmul.f32 %v2983, %v2983
      %v3089 = vmul.f32 %v2984, %v2984
      %v3090 = vmul.f32 %v2985, %v2985
      %v3091 = vmul.f32 %v2986, %v2986
      %v3092 = vmul.f32 %v2987, %v2987
      %v3093 = vmul.f32 %v2988, %v2988
      %v3094 = vmul.f32 %v2989, %v2989
      %v3095 = vmul.f32 %v2990, %v2990
      %v3096 = vmul.f32 %v2991, %v2991
      %v3097 = vmul.f32 %v2992, %v2992
      %v3098 = vmul.f32 %v2993, %v2993
      %v3099 = vmul.f32 %v2994, %v2994
      %v3100 = vmul.f32 %v2995, %v2995
      %v3101 = vmul.f32 %v2996, %v2996
      %v3102 = vmul.f32 %v2997, %v2997
      %v3103 = vmul.f32 %v2998, %v2998
      %v3104 = vmul.f32 %v2999, %v2999
      %v3105 = vmul.f32 %v3000, %v3000
      %v3106 = vmul.f32 %v3001, %v3001
      %v3107 = vmul.f32 %v3002, %v3002
      %v3108 = vmul.f32 %v3003, %v3003
      %v3109 = vmul.f32 %v3004, %v3004
      %v3110 = vmul.f32 %v3005, %v3005
      %v3111 = vmul.f32 %v3006, %v3006
      %v3112 = vmul.f32 %v3007, %v3007
      %v3113 = vmul.f32 %v3008, %v3008
      %v3114 = vadd.f32 %v3082, %v3083
      %v3115 = vadd.f32 %v3114, %v3084
      %v3116 = vadd.f32 %v3115, %v3085
      %v3117 = vadd.f32 %v3116, %v3086
      %v3118 = vadd.f32 %v3117, %v3087
      %v3119 = vadd.f32 %v3118, %v3088
      %v3120 = vadd.f32 %v3119, %v3089
      %v3121 = vadd.f32 %v3120, %v3090
      %v3122 = vadd.f32 %v3121, %v3091
      %v3123 = vadd.f32 %v3122, %v3092
      %v3124 = vadd.f32 %v3123, %v3093
      %v3125 = vadd.f32 %v3124, %v3094
      %v3126 = vadd.f32 %v3125, %v3095
      %v3127 = vadd.f32 %v3126, %v3096
      %v3128 = vadd.f32 %v3127, %v3097
      %v3129 = vadd.f32 %v3128, %v3098
      %v3130 = vadd.f32 %v3129, %v3099
      %v3131 = vadd.f32 %v3130, %v3100
      %v3132 = vadd.f32 %v3131, %v3101
      %v3133 = vadd.f32 %v3132, %v3102
      %v3134 = vadd.f32 %v3133, %v3103
      %v3135 = vadd.f32 %v3134, %v3104
      %v3136 = vadd.f32 %v3135, %v3105
      %v3137 = vadd.f32 %v3136, %v3106
      %v3138 = vadd.f32 %v3137, %v3107
      %v3139 = vadd.f32 %v3138, %v3108
      %v3140 = vadd.f32 %v3139, %v3109
      %v3141 = vadd.f32 %v3140, %v3110
      %v3142 = vadd.f32 %v3141, %v3111
      %v3143 = vadd.f32 %v3142, %v3112
      %v3144 = vadd.f32 %v3143, %v3113
      %v3145 = vrot.slane %v3144, 4
      %v3146 = vadd.f32 %v3144, %v3145
      %v3147 = vrot.slane %v3146, 2
      %v3148 = vadd.f32 %v3146, %v3147
      %v3149 = vrot.slane %v3148, 1
      %v3150 = vadd.f32 %v3148, %v3149
      %v3151 = vadd.f32 %v3081, %v3150
      %3152 = vst [vmem:[%s4] sm:$0x1] %v3151
      %p3153 = scmp.lt.s32.totalorder %s16, 1
      %s3154 = scalar_select %p3153, %s16, 1
      %s3155 = smul.addr %s3154, 32
      %s3156 = smul.addr %s3155, 8
      %s3157 = scalar_lea.vmem %s2, %s3156
      // Predicated region
      $region33: #{basic_block_forward.3} parent=27 // pred_check
        %p3158 = pneg %p81
      $region34: #{basic_block_forward.3} parent=27 // pred_check_branch
        %3160 = sbr.rel (%p3158) target = $region36
      $region35: #{basic_block_forward.3} parent=27 // pred_region
        _
      $region36: #{basic_block_forward.3} parent=27 // pred_fallthru
        _
      // Predicated region
      $region37: #{basic_block_forward.3} parent=27 // pred_check
        %p3161 = pneg %p102
      $region38: #{basic_block_forward.3} parent=27 // pred_check_branch
        %3163 = sbr.rel (%p3161) target = $region40
      $region39: #{basic_block_forward.3} parent=27 // pred_region
        _
      $region40: #{basic_block_forward.3} parent=27 // pred_fallthru
        _
      // Predicated region
      $region41: #{basic_block_forward.3} parent=27 // pred_check
        %p3164 = pneg %p123
      $region42: #{basic_block_forward.3} parent=27 // pred_check_branch
        %3166 = sbr.rel (%p3164) target = $region44
      $region43: #{basic_block_forward.3} parent=27 // pred_region
        _
      $region44: #{basic_block_forward.3} parent=27 // pred_fallthru
        _
      // Predicated region
      $region45: #{basic_block_forward.3} parent=27 // pred_check
        %p3167 = pneg %p102
      $region46: #{basic_block_forward.3} parent=27 // pred_check_branch
        %3169 = sbr.rel (%p3167) target = $region48
      $region47: #{basic_block_forward.3} parent=27 // pred_region
        _
      $region48: #{basic_block_forward.3} parent=27 // pred_fallthru
        _
      // Predicated region
      $region49: #{basic_block_forward.3} parent=27 // pred_check
        %p3170 = pneg %p123
      $region50: #{basic_block_forward.3} parent=27 // pred_check_branch
        %3172 = sbr.rel (%p3170) target = $region52
      $region51: #{basic_block_forward.3} parent=27 // pred_region
        _
      $region52: #{basic_block_forward.3} parent=27 // pred_fallthru
        _
    $region28: #{basic_block_forward.3} parent=5 // pred_fallthru
      _
    %p3173 = scmp.le.s32.totalorder 2, %s11
    // Predicated region
    $region53: #{basic_block_forward.3} parent=5 // pred_check
      %p3174 = pneg %p3173
    $region54: #{basic_block_forward.3} parent=5 // pred_check_branch
      %3176 = sbr.rel (%p3174) target = $region56
    $region55: #{basic_block_forward.3} parent=5 // pred_region
      %s3177 = ssub.s32 %s11, 2
      // Predicated region
      $region57: #{basic_block_forward.3} parent=55 // pred_check
        %p3178 = pneg %p87
      $region58: #{basic_block_forward.3} parent=55 // pred_check_branch
        %3180 = sbr.rel (%p3178) target = $region60
      $region59: #{basic_block_forward.3} parent=55 // pred_region
        %p3181 = scmp.lt.s32.totalorder %s17, 1
        %s3182 = scalar_select %p3181, %s17, 1
        %s3183 = smul.addr %s3182, 32
        %s3184 = smul.addr %s3183, 8
        %s3185 = scalar_lea.vmem %s2, %s3184
      $region60: #{basic_block_forward.3} parent=55 // pred_fallthru
        _
    $region56: #{basic_block_forward.3} parent=5 // pred_fallthru
      _
  $region6: #{basic_block_forward.3} parent=0 // loop_footer
    %s15 = sadd.s32 1, %s11
  $region7: #{basic_block_forward.3} parent=0 // loop_footer_branch
    %10 = sbr.rel target = $region3
  $region8: #{basic_block_forward.3} parent=0 // loop_exit
    _

// kernel: basic_block_forward.4
$region0: #{basic_block_forward.4}
  #allocation0 [shape = 'u32[]', space=smem, size = 0x4, offset = 0x4, fixed_abs, tag = 'smem constant byte address 0x4 - core index']
  #allocation1 [shape = 'u32[144,128]{1,0:T(1,128)}', space=vmem, size = 0x12000, scoped, tag = 'internal scratch']
  #allocation2 [shape = 'f32[18,18,128]{2,1,0:T(8,128)}', space=vmem, size = 0x36000, scoped, tag = 'scratch operand']
  %s0 = inlined_call_operand.vmem [shape: f32[2,256,128], index: 0, kind: input, shape index: {}]
  %s1 = inlined_call_operand.vmem [shape: f32[1,128], index: 1, kind: input, shape index: {}]
  %s2 = inlined_call_operand.vmem [shape: f32[1,128], index: 2, kind: input, shape index: {}]
  %s3 = inlined_call_operand.vmem [shape: bf16[9,128,128], index: 3, kind: input, shape index: {}]
  %s4 = inlined_call_operand.vmem [shape: f32[2,256,128], index: 4, kind: output, shape index: {0}]
  %s5 = inlined_call_operand.vmem [shape: f32[1,128], index: 5, kind: output, shape index: {1}]
  %s6 = inlined_call_operand.vmem [shape: f32[1,128], index: 6, kind: output, shape index: {2}]
  %7 = xla_tuple %s4, %s5, %s6
  %s8 = sld [smem:[#allocation0]]
  $region69: #{basic_block_forward.4} parent=0
    _
  %s10 = ssub.s32 1, %s8
  %s11 = scalar_select 0, %s10, %s8
  loop: start=0, step=1, limit=4
  $region2: #{basic_block_forward.4} parent=0 // loop_pre_header
    _
  $region3: #{basic_block_forward.4} parent=0 // loop_header
    %s13 = sphi 0, %s17
    %p14 = scmp.ge.s32.totalorder %s13, 4
    %s23 = sphi 0, %s25
    %s26 = sphi 0, %s23
    %s27 = sphi 0, %s26
    %s43 = sphi 0, %s27
    %s47 = sphi 0, %s47
    %s49 = sphi 0, %s47
    %s50 = sphi 0, %s49
    %s64 = sphi 0, %s50
    %s68 = sphi 0, %s68
    %s70 = sphi 0, %s68
    %s71 = sphi 0, %s70
    %s85 = sphi 0, %s71
    %s89 = sphi 0, %s89
    %s91 = sphi 0, %s89
    %s92 = sphi 0, %s91
    %s106 = sphi 0, %s92
    %s112 = sphi 0, %s114
    %s115 = sphi 0, %s112
    %s116 = sphi 0, %s115
    %s132 = sphi 0, %s116
    %s136 = sphi 0, %s136
    %s138 = sphi 0, %s136
    %s139 = sphi 0, %s138
    %s153 = sphi 0, %s139
    %s157 = sphi 0, %s157
    %s159 = sphi 0, %s157
    %s160 = sphi 0, %s159
    %s174 = sphi 0, %s160
  $region4: #{basic_block_forward.4} parent=0 // loop_header_branch
    %16 = sbr.rel (%p14) target = $region8
  $region5: #{basic_block_forward.4} parent=0 // loop_body
    %s18 = ssub.s32 %s13, 1
    %s19 = ssub.s32 %s13, 2
    %s20 = sadd.s32 %s13, 1
    %s21 = ssub.s32 %s13, %s20
    %p22 = scmp.eq.s32.totalorder %s21, 0
    %s24 = sadd.s32 %s23, 1
    %s25 = scalar_select %p22, %s23, %s24
    %p28 = pneg %p22
    %p29 = scmp.eq.s32.totalorder %s13, 1
    %p30 = por %p28, %p29
    %p31 = scmp.ne.s32.totalorder %s23, %s26
    %p32 = scmp.eq.s32.totalorder %s13, 0
    %p33 = por %p31, %p32
    %p34 = scmp.ne.s32.totalorder %s23, %s26
    %p35 = scmp.eq.s32.totalorder %s18, 1
    %p36 = por %p34, %p35
    %p37 = scmp.ne.s32.totalorder %s26, %s27
    %p38 = scmp.eq.s32.totalorder %s18, 0
    %p39 = por %p37, %p38
    %p40 = scmp.ne.s32.totalorder %s26, %s27
    %p41 = scmp.eq.s32.totalorder %s19, 1
    %p42 = por %p40, %p41
    %p44 = scmp.ne.s32.totalorder %s27, %s43
    %p45 = scmp.eq.s32.totalorder %s19, 0
    %p46 = por %p44, %p45
    %s48 = sadd.s32 %s47, 1
    %p51 = scmp.eq.s32.totalorder %s13, 1
    %p52 = scmp.ne.s32.totalorder %s47, %s49
    %p53 = scmp.eq.s32.totalorder %s13, 0
    %p54 = por %p52, %p53
    %p55 = scmp.ne.s32.totalorder %s47, %s49
    %p56 = scmp.eq.s32.totalorder %s18, 1
    %p57 = por %p55, %p56
    %p58 = scmp.ne.s32.totalorder %s49, %s50
    %p59 = scmp.eq.s32.totalorder %s18, 0
    %p60 = por %p58, %p59
    %p61 = scmp.ne.s32.totalorder %s49, %s50
    %p62 = scmp.eq.s32.totalorder %s19, 1
    %p63 = por %p61, %p62
    %p65 = scmp.ne.s32.totalorder %s50, %s64
    %p66 = scmp.eq.s32.totalorder %s19, 0
    %p67 = por %p65, %p66
    %s69 = sadd.s32 %s68, 1
    %p72 = scmp.eq.s32.totalorder %s13, 1
    %p73 = scmp.ne.s32.totalorder %s68, %s70
    %p74 = scmp.eq.s32.totalorder %s13, 0
    %p75 = por %p73, %p74
    %p76 = scmp.ne.s32.totalorder %s68, %s70
    %p77 = scmp.eq.s32.totalorder %s18, 1
    %p78 = por %p76, %p77
    %p79 = scmp.ne.s32.totalorder %s70, %s71
    %p80 = scmp.eq.s32.totalorder %s18, 0
    %p81 = por %p79, %p80
    %p82 = scmp.ne.s32.totalorder %s70, %s71
    %p83 = scmp.eq.s32.totalorder %s19, 1
    %p84 = por %p82, %p83
    %p86 = scmp.ne.s32.totalorder %s71, %s85
    %p87 = scmp.eq.s32.totalorder %s19, 0
    %p88 = por %p86, %p87
    %s90 = sadd.s32 %s89, 1
    %p93 = scmp.eq.s32.totalorder %s13, 1
    %p94 = scmp.ne.s32.totalorder %s89, %s91
    %p95 = scmp.eq.s32.totalorder %s13, 0
    %p96 = por %p94, %p95
    %p97 = scmp.ne.s32.totalorder %s89, %s91
    %p98 = scmp.eq.s32.totalorder %s18, 1
    %p99 = por %p97, %p98
    %p100 = scmp.ne.s32.totalorder %s91, %s92
    %p101 = scmp.eq.s32.totalorder %s18, 0
    %p102 = por %p100, %p101
    %p103 = scmp.ne.s32.totalorder %s91, %s92
    %p104 = scmp.eq.s32.totalorder %s19, 1
    %p105 = por %p103, %p104
    %p107 = scmp.ne.s32.totalorder %s92, %s106
    %p108 = scmp.eq.s32.totalorder %s19, 0
    %p109 = por %p107, %p108
    %s110 = ssub.s32 %s13, %s20
    %p111 = scmp.eq.s32.totalorder %s110, 0
    %s113 = sadd.s32 %s112, 1
    %s114 = scalar_select %p111, %s112, %s113
    %p117 = pneg %p111
    %p118 = scmp.eq.s32.totalorder %s13, 1
    %p119 = por %p117, %p118
    %p120 = scmp.ne.s32.totalorder %s112, %s115
    %p121 = scmp.eq.s32.totalorder %s13, 0
    %p122 = por %p120, %p121
    %p123 = scmp.ne.s32.totalorder %s112, %s115
    %p124 = scmp.eq.s32.totalorder %s18, 1
    %p125 = por %p123, %p124
    %p126 = scmp.ne.s32.totalorder %s115, %s116
    %p127 = scmp.eq.s32.totalorder %s18, 0
    %p128 = por %p126, %p127
    %p129 = scmp.ne.s32.totalorder %s115, %s116
    %p130 = scmp.eq.s32.totalorder %s19, 1
    %p131 = por %p129, %p130
    %p133 = scmp.ne.s32.totalorder %s116, %s132
    %p134 = scmp.eq.s32.totalorder %s19, 0
    %p135 = por %p133, %p134
    %s137 = sadd.s32 %s136, 1
    %p140 = scmp.eq.s32.totalorder %s13, 1
    %p141 = scmp.ne.s32.totalorder %s136, %s138
    %p142 = scmp.eq.s32.totalorder %s13, 0
    %p143 = por %p141, %p142
    %p144 = scmp.ne.s32.totalorder %s136, %s138
    %p145 = scmp.eq.s32.totalorder %s18, 1
    %p146 = por %p144, %p145
    %p147 = scmp.ne.s32.totalorder %s138, %s139
    %p148 = scmp.eq.s32.totalorder %s18, 0
    %p149 = por %p147, %p148
    %p150 = scmp.ne.s32.totalorder %s138, %s139
    %p151 = scmp.eq.s32.totalorder %s19, 1
    %p152 = por %p150, %p151
    %p154 = scmp.ne.s32.totalorder %s139, %s153
    %p155 = scmp.eq.s32.totalorder %s19, 0
    %p156 = por %p154, %p155
    %s158 = sadd.s32 %s157, 1
    %p161 = scmp.eq.s32.totalorder %s13, 1
    %p162 = scmp.ne.s32.totalorder %s157, %s159
    %p163 = scmp.eq.s32.totalorder %s13, 0
    %p164 = por %p162, %p163
    %p165 = scmp.ne.s32.totalorder %s157, %s159
    %p166 = scmp.eq.s32.totalorder %s18, 1
    %p167 = por %p165, %p166
    %p168 = scmp.ne.s32.totalorder %s159, %s160
    %p169 = scmp.eq.s32.totalorder %s18, 0
    %p170 = por %p168, %p169
    %p171 = scmp.ne.s32.totalorder %s159, %s160
    %p172 = scmp.eq.s32.totalorder %s19, 1
    %p173 = por %p171, %p172
    %p175 = scmp.ne.s32.totalorder %s160, %s174
    %p176 = scmp.eq.s32.totalorder %s19, 0
    %p177 = por %p175, %p176
    %p178 = scmp.le.s32.totalorder 1, %s13
    %p179 = scmp.lt.s32.totalorder %s13, 3
    %p180 = pnand %p178, %p179
    %p181 = pneg %p180
    // Predicated region
    $region9: #{basic_block_forward.4} parent=5 // pred_check
      _
    $region10: #{basic_block_forward.4} parent=5 // pred_check_branch
      %183 = sbr.rel (%p180) target = $region12
    $region11: #{basic_block_forward.4} parent=5 // pred_region
      %s184 = ssub.s32 %s13, 1
      // Predicated region
      $region13: #{basic_block_forward.4} parent=11 // pred_check
        %p185 = pneg %p60
      $region14: #{basic_block_forward.4} parent=11 // pred_check_branch
        %187 = sbr.rel (%p185) target = $region16
      $region15: #{basic_block_forward.4} parent=11 // pred_region
        _
      $region16: #{basic_block_forward.4} parent=11 // pred_fallthru
        _
      // Predicated region
      $region17: #{basic_block_forward.4} parent=11 // pred_check
        %p188 = pneg %p81
      $region18: #{basic_block_forward.4} parent=11 // pred_check_branch
        %190 = sbr.rel (%p188) target = $region20
      $region19: #{basic_block_forward.4} parent=11 // pred_region
        _
      $region20: #{basic_block_forward.4} parent=11 // pred_fallthru
        _
      // Predicated region
      $region21: #{basic_block_forward.4} parent=11 // pred_check
        %p191 = pneg %p102
      $region22: #{basic_block_forward.4} parent=11 // pred_check_branch
        %193 = sbr.rel (%p191) target = $region24
      $region23: #{basic_block_forward.4} parent=11 // pred_region
        _
      $region24: #{basic_block_forward.4} parent=11 // pred_fallthru
        _
    $region12: #{basic_block_forward.4} parent=5 // pred_fallthru
      _
    %p194 = scmp.lt.s32.totalorder %s13, 2
    // Predicated region
    $region25: #{basic_block_forward.4} parent=5 // pred_check
      %p195 = pneg %p194
    $region26: #{basic_block_forward.4} parent=5 // pred_check_branch
      %197 = sbr.rel (%p195) target = $region28
    $region27: #{basic_block_forward.4} parent=5 // pred_region
      // Predicated region
      $region29: #{basic_block_forward.4} parent=27 // pred_check
        %p198 = pneg %p33
      $region30: #{basic_block_forward.4} parent=27 // pred_check_branch
        %200 = sbr.rel (%p198) target = $region32
      $region31: #{basic_block_forward.4} parent=27 // pred_region
        %p201 = scmp.lt.s32.totalorder %s13, 1
        %s202 = scalar_select %p201, %s13, 1
        %s203 = smul.addr %s202, 32
        %s204 = smul.addr %s203, 8
        %s205 = scalar_lea.vmem %s0, %s204
      $region32: #{basic_block_forward.4} parent=27 // pred_fallthru
        _
    $region28: #{basic_block_forward.4} parent=5 // pred_fallthru
      _
    %p206 = scmp.le.s32.totalorder 1, %s13
    %p207 = scmp.lt.s32.totalorder %s13, 3
    %p208 = pnand %p206, %p207
    %p209 = pneg %p208
    // Predicated region
    $region33: #{basic_block_forward.4} parent=5 // pred_check
      _
    $region34: #{basic_block_forward.4} parent=5 // pred_check_branch
      %211 = sbr.rel (%p208) target = $region36
    $region35: #{basic_block_forward.4} parent=5 // pred_region
      %s212 = ssub.s32 %s13, 1
      %p213 = scmp.lt.s32.totalorder %s18, 1
      %s214 = scalar_select %p213, %s18, 1
      %s215 = smul.addr %s214, 32
      %s216 = smul.addr %s215, 8
      %s217 = scalar_lea.vmem %s0, %s216
      %p218 = pneg %p39
      %p219 = pneg %p36
      %p220 = pneg %p60
      %p221 = pneg %p57
      %p222 = pneg %p81
      %p223 = pneg %p78
      %p224 = pneg %p102
      %p225 = pneg %p99
      %p226 = pneg %p128
      %p227 = pneg %p125
      %p228 = scmp.lt.s32.totalorder %s18, 1
      %s229 = scalar_select %p228, %s18, 1
      %s230 = smul.addr %s229, 32
      %s231 = smul.addr %s230, 8
      %s232 = scalar_lea.vmem %s4, %s231
      %p233 = pneg %p149
      %p234 = pneg %p146
      %p235 = pneg %p170
      %p236 = pneg %p167
      %p237 = scmp.lt.s32.totalorder %s18, 1
      %s238 = scalar_select %p237, %s18, 1
      %s239 = smul.addr %s238, 32
      %s240 = smul.addr %s239, 8
      %s241 = scalar_lea.vmem %s0, %s240
      %p242 = scmp.lt.s32.totalorder %s18, 1
      %s243 = scalar_select %p242, %s18, 1
      %s244 = smul.addr %s243, 32
      %s245 = smul.addr %s244, 8
      %s246 = scalar_lea.vmem %s4, %s245
      %p248 = scmp.eq.s32.totalorder %s18, 0
      // Predicated region
      $region37: #{basic_block_forward.4} parent=35 // pred_check
        %p249 = pneg %p248
      $region38: #{basic_block_forward.4} parent=35 // pred_check_branch
        %251 = sbr.rel (%p249) target = $region40
      $region39: #{basic_block_forward.4} parent=35 // pred_region
        %252 = vst [vmem:[%s5] sm:$0x1] 0.0
        %253 = vst [vmem:[%s6] sm:$0x1] 0.0
      $region40: #{basic_block_forward.4} parent=35 // pred_fallthru
        _
      %v254 = vld [vmem:[%s241] sm:$0xff]
      %v255 = vld [vmem:[%s241 + $0x8] sm:$0xff]
      %v256 = vld [vmem:[%s241 + $0x10] sm:$0xff]
      %v257 = vld [vmem:[%s241 + $0x18] sm:$0xff]
      %v258 = vld [vmem:[%s241 + $0x20] sm:$0xff]
      %v259 = vld [vmem:[%s241 + $0x28] sm:$0xff]
      %v260 = vld [vmem:[%s241 + $0x30] sm:$0xff]
      %v261 = vld [vmem:[%s241 + $0x38] sm:$0xff]
      %v262 = vld [vmem:[%s241 + $0x40] sm:$0xff]
      %v263 = vld [vmem:[%s241 + $0x48] sm:$0xff]
      %v264 = vld [vmem:[%s241 + $0x50] sm:$0xff]
      %v265 = vld [vmem:[%s241 + $0x58] sm:$0xff]
      %v266 = vld [vmem:[%s241 + $0x60] sm:$0xff]
      %v267 = vld [vmem:[%s241 + $0x68] sm:$0xff]
      %v268 = vld [vmem:[%s241 + $0x70] sm:$0xff]
      %v269 = vld [vmem:[%s241 + $0x78] sm:$0xff]
      %v270 = vld [vmem:[%s241 + $0x80] sm:$0xff]
      %v271 = vld [vmem:[%s241 + $0x88] sm:$0xff]
      %v272 = vld [vmem:[%s241 + $0x90] sm:$0xff]
      %v273 = vld [vmem:[%s241 + $0x98] sm:$0xff]
      %v274 = vld [vmem:[%s241 + $0xa0] sm:$0xff]
      %v275 = vld [vmem:[%s241 + $0xa8] sm:$0xff]
      %v276 = vld [vmem:[%s241 + $0xb0] sm:$0xff]
      %v277 = vld [vmem:[%s241 + $0xb8] sm:$0xff]
      %v278 = vld [vmem:[%s241 + $0xc0] sm:$0xff]
      %v279 = vld [vmem:[%s241 + $0xc8] sm:$0xff]
      %v280 = vld [vmem:[%s241 + $0xd0] sm:$0xff]
      %v281 = vld [vmem:[%s241 + $0xd8] sm:$0xff]
      %v282 = vld [vmem:[%s241 + $0xe0] sm:$0xff]
      %v283 = vld [vmem:[%s241 + $0xe8] sm:$0xff]
      %v284 = vld [vmem:[%s241 + $0xf0] sm:$0xff]
      %v285 = vld [vmem:[%s241 + $0xf8] sm:$0xff]
      %v286 = vld [vmem:[%s1] sm:$0x1]
      %v288 = vlaneseq
      %v289 = vshrl.u32 %v288, 7
      %v290 = vsub.s32 0, %v289
      %v291 = vrot.slane %v286, %v290
      %v293 = vmul.f32 %v254, %v291
      %v294 = vmul.f32 %v255, %v291
      %v295 = vmul.f32 %v256, %v291
      %v296 = vmul.f32 %v257, %v291
      %v297 = vmul.f32 %v258, %v291
      %v298 = vmul.f32 %v259, %v291
      %v299 = vmul.f32 %v260, %v291
      %v300 = vmul.f32 %v261, %v291
      %v301 = vmul.f32 %v262, %v291
      %v302 = vmul.f32 %v263, %v291
      %v303 = vmul.f32 %v264, %v291
      %v304 = vmul.f32 %v265, %v291
      %v305 = vmul.f32 %v266, %v291
      %v306 = vmul.f32 %v267, %v291
      %v307 = vmul.f32 %v268, %v291
      %v308 = vmul.f32 %v269, %v291
      %v309 = vmul.f32 %v270, %v291
      %v310 = vmul.f32 %v271, %v291
      %v311 = vmul.f32 %v272, %v291
      %v312 = vmul.f32 %v273, %v291
      %v313 = vmul.f32 %v274, %v291
      %v314 = vmul.f32 %v275, %v291
      %v315 = vmul.f32 %v276, %v291
      %v316 = vmul.f32 %v277, %v291
      %v317 = vmul.f32 %v278, %v291
      %v318 = vmul.f32 %v279, %v291
      %v319 = vmul.f32 %v280, %v291
      %v320 = vmul.f32 %v281, %v291
      %v321 = vmul.f32 %v282, %v291
      %v322 = vmul.f32 %v283, %v291
      %v323 = vmul.f32 %v284, %v291
      %v324 = vmul.f32 %v285, %v291
      %v325 = vld [vmem:[%s2] sm:$0x1]
      %v327 = vlaneseq
      %v328 = vshrl.u32 %v327, 7
      %v329 = vsub.s32 0, %v328
      %v330 = vrot.slane %v325, %v329
      %v332 = vadd.f32 %v293, %v330
      %v333 = vadd.f32 %v294, %v330
      %v334 = vadd.f32 %v295, %v330
      %v335 = vadd.f32 %v296, %v330
      %v336 = vadd.f32 %v297, %v330
      %v337 = vadd.f32 %v298, %v330
      %v338 = vadd.f32 %v299, %v330
      %v339 = vadd.f32 %v300, %v330
      %v340 = vadd.f32 %v301, %v330
      %v341 = vadd.f32 %v302, %v330
      %v342 = vadd.f32 %v303, %v330
      %v343 = vadd.f32 %v304, %v330
      %v344 = vadd.f32 %v305, %v330
      %v345 = vadd.f32 %v306, %v330
      %v346 = vadd.f32 %v307, %v330
      %v347 = vadd.f32 %v308, %v330
      %v348 = vadd.f32 %v309, %v330
      %v349 = vadd.f32 %v310, %v330
      %v350 = vadd.f32 %v311, %v330
      %v351 = vadd.f32 %v312, %v330
      %v352 = vadd.f32 %v313, %v330
      %v353 = vadd.f32 %v314, %v330
      %v354 = vadd.f32 %v315, %v330
      %v355 = vadd.f32 %v316, %v330
      %v356 = vadd.f32 %v317, %v330
      %v357 = vadd.f32 %v318, %v330
      %v358 = vadd.f32 %v319, %v330
      %v359 = vadd.f32 %v320, %v330
      %v360 = vadd.f32 %v321, %v330
      %v361 = vadd.f32 %v322, %v330
      %v362 = vadd.f32 %v323, %v330
      %v363 = vadd.f32 %v324, %v330
      %v364 = vmax.f32 %v332, 0.0
      %v365 = vmax.f32 %v333, 0.0
      %v366 = vmax.f32 %v334, 0.0
      %v367 = vmax.f32 %v335, 0.0
      %v368 = vmax.f32 %v336, 0.0
      %v369 = vmax.f32 %v337, 0.0
      %v370 = vmax.f32 %v338, 0.0
      %v371 = vmax.f32 %v339, 0.0
      %v372 = vmax.f32 %v340, 0.0
      %v373 = vmax.f32 %v341, 0.0
      %v374 = vmax.f32 %v342, 0.0
      %v375 = vmax.f32 %v343, 0.0
      %v376 = vmax.f32 %v344, 0.0
      %v377 = vmax.f32 %v345, 0.0
      %v378 = vmax.f32 %v346, 0.0
      %v379 = vmax.f32 %v347, 0.0
      %v380 = vmax.f32 %v348, 0.0
      %v381 = vmax.f32 %v349, 0.0
      %v382 = vmax.f32 %v350, 0.0
      %v383 = vmax.f32 %v351, 0.0
      %v384 = vmax.f32 %v352, 0.0
      %v385 = vmax.f32 %v353, 0.0
      %v386 = vmax.f32 %v354, 0.0
      %v387 = vmax.f32 %v355, 0.0
      %v388 = vmax.f32 %v356, 0.0
      %v389 = vmax.f32 %v357, 0.0
      %v390 = vmax.f32 %v358, 0.0
      %v391 = vmax.f32 %v359, 0.0
      %v392 = vmax.f32 %v360, 0.0
      %v393 = vmax.f32 %v361, 0.0
      %v394 = vmax.f32 %v362, 0.0
      %v395 = vmax.f32 %v363, 0.0
      %396 = vst [vmem:[#allocation2] sm:$0xff] 0.0
      %397 = vst [vmem:[#allocation2 + $0x8] sm:$0xff] 0.0
      %398 = vst [vmem:[#allocation2 + $0x10] sm:$0x3] 0.0
      %399 = vst [vmem:[#allocation2 + $0x18] sm:$0xff] 0.0
      %400 = vst [vmem:[#allocation2 + $0x20] sm:$0xff] 0.0
      %401 = vst [vmem:[#allocation2 + $0x28] sm:$0x3] 0.0
      %402 = vst [vmem:[#allocation2 + $0x30] sm:$0xff] 0.0
      %403 = vst [vmem:[#allocation2 + $0x38] sm:$0xff] 0.0
      %404 = vst [vmem:[#allocation2 + $0x40] sm:$0x3] 0.0
      %405 = vst [vmem:[#allocation2 + $0x48] sm:$0xff] 0.0
      %406 = vst [vmem:[#allocation2 + $0x50] sm:$0xff] 0.0
      %407 = vst [vmem:[#allocation2 + $0x58] sm:$0x3] 0.0
      %408 = vst [vmem:[#allocation2 + $0x60] sm:$0xff] 0.0
      %409 = vst [vmem:[#allocation2 + $0x68] sm:$0xff] 0.0
      %410 = vst [vmem:[#allocation2 + $0x70] sm:$0x3] 0.0
      %411 = vst [vmem:[#allocation2 + $0x78] sm:$0xff] 0.0
      %412 = vst [vmem:[#allocation2 + $0x80] sm:$0xff] 0.0
      %413 = vst [vmem:[#allocation2 + $0x88] sm:$0x3] 0.0
      %414 = vst [vmem:[#allocation2 + $0x90] sm:$0xff] 0.0
      %415 = vst [vmem:[#allocation2 + $0x98] sm:$0xff] 0.0
      %416 = vst [vmem:[#allocation2 + $0xa0] sm:$0x3] 0.0
      %417 = vst [vmem:[#allocation2 + $0xa8] sm:$0xff] 0.0
      %418 = vst [vmem:[#allocation2 + $0xb0] sm:$0xff] 0.0
      %419 = vst [vmem:[#allocation2 + $0xb8] sm:$0x3] 0.0
      %420 = vst [vmem:[#allocation2 + $0xc0] sm:$0xff] 0.0
      %421 = vst [vmem:[#allocation2 + $0xc8] sm:$0xff] 0.0
      %422 = vst [vmem:[#allocation2 + $0xd0] sm:$0x3] 0.0
      %423 = vst [vmem:[#allocation2 + $0xd8] sm:$0xff] 0.0
      %424 = vst [vmem:[#allocation2 + $0xe0] sm:$0xff] 0.0
      %425 = vst [vmem:[#allocation2 + $0xe8] sm:$0x3] 0.0
      %426 = vst [vmem:[#allocation2 + $0xf0] sm:$0xff] 0.0
      %427 = vst [vmem:[#allocation2 + $0xf8] sm:$0xff] 0.0
      %428 = vst [vmem:[#allocation2 + $0x100] sm:$0x3] 0.0
      %429 = vst [vmem:[#allocation2 + $0x108] sm:$0xff] 0.0
      %430 = vst [vmem:[#allocation2 + $0x110] sm:$0xff] 0.0
      %431 = vst [vmem:[#allocation2 + $0x118] sm:$0x3] 0.0
      %432 = vst [vmem:[#allocation2 + $0x120] sm:$0xff] 0.0
      %433 = vst [vmem:[#allocation2 + $0x128] sm:$0xff] 0.0
      %434 = vst [vmem:[#allocation2 + $0x130] sm:$0x3] 0.0
      %435 = vst [vmem:[#allocation2 + $0x138] sm:$0xff] 0.0
      %436 = vst [vmem:[#allocation2 + $0x140] sm:$0xff] 0.0
      %437 = vst [vmem:[#allocation2 + $0x148] sm:$0x3] 0.0
      %438 = vst [vmem:[#allocation2 + $0x150] sm:$0xff] 0.0
      %439 = vst [vmem:[#allocation2 + $0x158] sm:$0xff] 0.0
      %440 = vst [vmem:[#allocation2 + $0x160] sm:$0x3] 0.0
      %441 = vst [vmem:[#allocation2 + $0x168] sm:$0xff] 0.0
      %442 = vst [vmem:[#allocation2 + $0x170] sm:$0xff] 0.0
      %443 = vst [vmem:[#allocation2 + $0x178] sm:$0x3] 0.0
      %444 = vst [vmem:[#allocation2 + $0x180] sm:$0xff] 0.0
      %445 = vst [vmem:[#allocation2 + $0x188] sm:$0xff] 0.0
      %446 = vst [vmem:[#allocation2 + $0x190] sm:$0x3] 0.0
      %447 = vst [vmem:[#allocation2 + $0x198] sm:$0xff] 0.0
      %448 = vst [vmem:[#allocation2 + $0x1a0] sm:$0xff] 0.0
      %449 = vst [vmem:[#allocation2 + $0x1a8] sm:$0x3] 0.0
      %s450 = scalar_lea.vmem [#allocation2], 24
      %451 = vst [vmem:[%s450 + $0x1] sm:$0xff] %v364
      %452 = vst [vmem:[%s450 + $0x9] sm:$0xff] %v365
      %453 = vst [vmem:[%s450 + $0x19] sm:$0xff] %v366
      %454 = vst [vmem:[%s450 + $0x21] sm:$0xff] %v367
      %455 = vst [vmem:[%s450 + $0x31] sm:$0xff] %v368
      %456 = vst [vmem:[%s450 + $0x39] sm:$0xff] %v369
      %457 = vst [vmem:[%s450 + $0x49] sm:$0xff] %v370
      %458 = vst [vmem:[%s450 + $0x51] sm:$0xff] %v371
      %459 = vst [vmem:[%s450 + $0x61] sm:$0xff] %v372
      %460 = vst [vmem:[%s450 + $0x69] sm:$0xff] %v373
      %461 = vst [vmem:[%s450 + $0x79] sm:$0xff] %v374
      %462 = vst [vmem:[%s450 + $0x81] sm:$0xff] %v375
      %463 = vst [vmem:[%s450 + $0x91] sm:$0xff] %v376
      %464 = vst [vmem:[%s450 + $0x99] sm:$0xff] %v377
      %465 = vst [vmem:[%s450 + $0xa9] sm:$0xff] %v378
      %466 = vst [vmem:[%s450 + $0xb1] sm:$0xff] %v379
      %467 = vst [vmem:[%s450 + $0xc1] sm:$0xff] %v380
      %468 = vst [vmem:[%s450 + $0xc9] sm:$0xff] %v381
      %469 = vst [vmem:[%s450 + $0xd9] sm:$0xff] %v382
      %470 = vst [vmem:[%s450 + $0xe1] sm:$0xff] %v383
      %471 = vst [vmem:[%s450 + $0xf1] sm:$0xff] %v384
      %472 = vst [vmem:[%s450 + $0xf9] sm:$0xff] %v385
      %473 = vst [vmem:[%s450 + $0x109] sm:$0xff] %v386
      %474 = vst [vmem:[%s450 + $0x111] sm:$0xff] %v387
      %475 = vst [vmem:[%s450 + $0x121] sm:$0xff] %v388
      %476 = vst [vmem:[%s450 + $0x129] sm:$0xff] %v389
      %477 = vst [vmem:[%s450 + $0x139] sm:$0xff] %v390
      %478 = vst [vmem:[%s450 + $0x141] sm:$0xff] %v391
      %479 = vst [vmem:[%s450 + $0x151] sm:$0xff] %v392
      %480 = vst [vmem:[%s450 + $0x159] sm:$0xff] %v393
      %481 = vst [vmem:[%s450 + $0x169] sm:$0xff] %v394
      %482 = vst [vmem:[%s450 + $0x171] sm:$0xff] %v395
      %v483 = vld [vmem:[#allocation2] sm:$0xff]
      %v484 = vld [vmem:[#allocation2 + $0x8] sm:$0xff]
      %v485 = vld [vmem:[#allocation2 + $0x18] sm:$0xff]
      %v486 = vld [vmem:[#allocation2 + $0x20] sm:$0xff]
      %v487 = vld [vmem:[#allocation2 + $0x30] sm:$0xff]
      %v488 = vld [vmem:[#allocation2 + $0x38] sm:$0xff]
      %v489 = vld [vmem:[#allocation2 + $0x48] sm:$0xff]
      %v490 = vld [vmem:[#allocation2 + $0x50] sm:$0xff]
      %v491 = vld [vmem:[#allocation2 + $0x60] sm:$0xff]
      %v492 = vld [vmem:[#allocation2 + $0x68] sm:$0xff]
      %v493 = vld [vmem:[#allocation2 + $0x78] sm:$0xff]
      %v494 = vld [vmem:[#allocation2 + $0x80] sm:$0xff]
      %v495 = vld [vmem:[#allocation2 + $0x90] sm:$0xff]
      %v496 = vld [vmem:[#allocation2 + $0x98] sm:$0xff]
      %v497 = vld [vmem:[#allocation2 + $0xa8] sm:$0xff]
      %v498 = vld [vmem:[#allocation2 + $0xb0] sm:$0xff]
      %v499 = vld [vmem:[#allocation2 + $0xc0] sm:$0xff]
      %v500 = vld [vmem:[#allocation2 + $0xc8] sm:$0xff]
      %v501 = vld [vmem:[#allocation2 + $0xd8] sm:$0xff]
      %v502 = vld [vmem:[#allocation2 + $0xe0] sm:$0xff]
      %v503 = vld [vmem:[#allocation2 + $0xf0] sm:$0xff]
      %v504 = vld [vmem:[#allocation2 + $0xf8] sm:$0xff]
      %v505 = vld [vmem:[#allocation2 + $0x108] sm:$0xff]
      %v506 = vld [vmem:[#allocation2 + $0x110] sm:$0xff]
      %v507 = vld [vmem:[#allocation2 + $0x120] sm:$0xff]
      %v508 = vld [vmem:[#allocation2 + $0x128] sm:$0xff]
      %v509 = vld [vmem:[#allocation2 + $0x138] sm:$0xff]
      %v510 = vld [vmem:[#allocation2 + $0x140] sm:$0xff]
      %v511 = vld [vmem:[#allocation2 + $0x150] sm:$0xff]
      %v512 = vld [vmem:[#allocation2 + $0x158] sm:$0xff]
      %v513 = vld [vmem:[#allocation2 + $0x168] sm:$0xff]
      %v514 = vld [vmem:[#allocation2 + $0x170] sm:$0xff]
      %v515 = vpack.c.bf16 %v484, %v483
      %v516 = vpack.c.bf16 %v486, %v485
      %v517 = vpack.c.bf16 %v488, %v487
      %v518 = vpack.c.bf16 %v490, %v489
      %v519 = vpack.c.bf16 %v492, %v491
      %v520 = vpack.c.bf16 %v494, %v493
      %v521 = vpack.c.bf16 %v496, %v495
      %v522 = vpack.c.bf16 %v498, %v497
      %v523 = vpack.c.bf16 %v500, %v499
      %v524 = vpack.c.bf16 %v502, %v501
      %v525 = vpack.c.bf16 %v504, %v503
      %v526 = vpack.c.bf16 %v506, %v505
      %v527 = vpack.c.bf16 %v508, %v507
      %v528 = vpack.c.bf16 %v510, %v509
      %v529 = vpack.c.bf16 %v512, %v511
      %v530 = vpack.c.bf16 %v514, %v513
      %v531 = vld [vmem:[%s3] sm:$0xf]
      %v532 = vld [vmem:[%s3 + $0x4] sm:$0xf]
      %v533 = vld [vmem:[%s3 + $0x8] sm:$0xf]
      %v534 = vld [vmem:[%s3 + $0xc] sm:$0xf]
      %v535 = vld [vmem:[%s3 + $0x10] sm:$0xf]
      %v536 = vld [vmem:[%s3 + $0x14] sm:$0xf]
      %v537 = vld [vmem:[%s3 + $0x18] sm:$0xf]
      %v538 = vld [vmem:[%s3 + $0x1c] sm:$0xf]
      %v539 = vld [vmem:[%s3 + $0x20] sm:$0xf]
      %v540 = vld [vmem:[%s3 + $0x24] sm:$0xf]
      %v541 = vld [vmem:[%s3 + $0x28] sm:$0xf]
      %v542 = vld [vmem:[%s3 + $0x2c] sm:$0xf]
      %v543 = vld [vmem:[%s3 + $0x30] sm:$0xf]
      %v544 = vld [vmem:[%s3 + $0x34] sm:$0xf]
      %v545 = vld [vmem:[%s3 + $0x38] sm:$0xf]
      %v546 = vld [vmem:[%s3 + $0x3c] sm:$0xf]
      %v547 = vld [vmem:[#allocation2 + $0x1] sm:$0xff]
      %v548 = vld [vmem:[#allocation2 + $0x9] sm:$0xff]
      %v549 = vld [vmem:[#allocation2 + $0x19] sm:$0xff]
      %v550 = vld [vmem:[#allocation2 + $0x21] sm:$0xff]
      %v551 = vld [vmem:[#allocation2 + $0x31] sm:$0xff]
      %v552 = vld [vmem:[#allocation2 + $0x39] sm:$0xff]
      %v553 = vld [vmem:[#allocation2 + $0x49] sm:$0xff]
      %v554 = vld [vmem:[#allocation2 + $0x51] sm:$0xff]
      %v555 = vld [vmem:[#allocation2 + $0x61] sm:$0xff]
      %v556 = vld [vmem:[#allocation2 + $0x69] sm:$0xff]
      %v557 = vld [vmem:[#allocation2 + $0x79] sm:$0xff]
      %v558 = vld [vmem:[#allocation2 + $0x81] sm:$0xff]
      %v559 = vld [vmem:[#allocation2 + $0x91] sm:$0xff]
      %v560 = vld [vmem:[#allocation2 + $0x99] sm:$0xff]
      %v561 = vld [vmem:[#allocation2 + $0xa9] sm:$0xff]
      %v562 = vld [vmem:[#allocation2 + $0xb1] sm:$0xff]
      %v563 = vld [vmem:[#allocation2 + $0xc1] sm:$0xff]
      %v564 = vld [vmem:[#allocation2 + $0xc9] sm:$0xff]
      %v565 = vld [vmem:[#allocation2 + $0xd9] sm:$0xff]
      %v566 = vld [vmem:[#allocation2 + $0xe1] sm:$0xff]
      %v567 = vld [vmem:[#allocation2 + $0xf1] sm:$0xff]
      %v568 = vld [vmem:[#allocation2 + $0xf9] sm:$0xff]
      %v569 = vld [vmem:[#allocation2 + $0x109] sm:$0xff]
      %v570 = vld [vmem:[#allocation2 + $0x111] sm:$0xff]
      %v571 = vld [vmem:[#allocation2 + $0x121] sm:$0xff]
      %v572 = vld [vmem:[#allocation2 + $0x129] sm:$0xff]
      %v573 = vld [vmem:[#allocation2 + $0x139] sm:$0xff]
      %v574 = vld [vmem:[#allocation2 + $0x141] sm:$0xff]
      %v575 = vld [vmem:[#allocation2 + $0x151] sm:$0xff]
      %v576 = vld [vmem:[#allocation2 + $0x159] sm:$0xff]
      %v577 = vld [vmem:[#allocation2 + $0x169] sm:$0xff]
      %v578 = vld [vmem:[#allocation2 + $0x171] sm:$0xff]
      %v579 = vpack.c.bf16 %v548, %v547
      %v580 = vpack.c.bf16 %v550, %v549
      %v581 = vpack.c.bf16 %v552, %v551
      %v582 = vpack.c.bf16 %v554, %v553
      %v583 = vpack.c.bf16 %v556, %v555
      %v584 = vpack.c.bf16 %v558, %v557
      %v585 = vpack.c.bf16 %v560, %v559
      %v586 = vpack.c.bf16 %v562, %v561
      %v587 = vpack.c.bf16 %v564, %v563
      %v588 = vpack.c.bf16 %v566, %v565
      %v589 = vpack.c.bf16 %v568, %v567
      %v590 = vpack.c.bf16 %v570, %v569
      %v591 = vpack.c.bf16 %v572, %v571
      %v592 = vpack.c.bf16 %v574, %v573
      %v593 = vpack.c.bf16 %v576, %v575
      %v594 = vpack.c.bf16 %v578, %v577
      %s595 = scalar_lea.vmem %s3, 64
      %v596 = vld [vmem:[%s595] sm:$0xf]
      %v597 = vld [vmem:[%s595 + $0x4] sm:$0xf]
      %v598 = vld [vmem:[%s595 + $0x8] sm:$0xf]
      %v599 = vld [vmem:[%s595 + $0xc] sm:$0xf]
      %v600 = vld [vmem:[%s595 + $0x10] sm:$0xf]
      %v601 = vld [vmem:[%s595 + $0x14] sm:$0xf]
      %v602 = vld [vmem:[%s595 + $0x18] sm:$0xf]
      %v603 = vld [vmem:[%s595 + $0x1c] sm:$0xf]
      %v604 = vld [vmem:[%s595 + $0x20] sm:$0xf]
      %v605 = vld [vmem:[%s595 + $0x24] sm:$0xf]
      %v606 = vld [vmem:[%s595 + $0x28] sm:$0xf]
      %v607 = vld [vmem:[%s595 + $0x2c] sm:$0xf]
      %v608 = vld [vmem:[%s595 + $0x30] sm:$0xf]
      %v609 = vld [vmem:[%s595 + $0x34] sm:$0xf]
      %v610 = vld [vmem:[%s595 + $0x38] sm:$0xf]
      %v611 = vld [vmem:[%s595 + $0x3c] sm:$0xf]
      %v628 = vunpack.c.l.b16 %v596
      %v629 = vunpack.c.l.b16 %v597
      %v630 = vunpack.c.l.b16 %v598
      %v631 = vunpack.c.l.b16 %v599
      %v632 = vunpack.c.l.b16 %v600
      %v633 = vunpack.c.l.b16 %v601
      %v634 = vunpack.c.l.b16 %v602
      %v635 = vunpack.c.l.b16 %v603
      %v636 = vunpack.c.l.b16 %v604
      %v637 = vunpack.c.l.b16 %v605
      %v638 = vunpack.c.l.b16 %v606
      %v639 = vunpack.c.l.b16 %v607
      %v640 = vunpack.c.l.b16 %v608
      %v641 = vunpack.c.l.b16 %v609
      %v642 = vunpack.c.l.b16 %v610
      %v643 = vunpack.c.l.b16 %v611
      %v644 = vpack.c.b16 %v629, %v628
      %v645 = vpack.c.b16 %v631, %v630
      %v646 = vpack.c.b16 %v633, %v632
      %v647 = vpack.c.b16 %v635, %v634
      %v648 = vpack.c.b16 %v637, %v636
      %v649 = vpack.c.b16 %v639, %v638
      %v650 = vpack.c.b16 %v641, %v640
      %v651 = vpack.c.b16 %v643, %v642
      %660 = vmatprep.subr.bf16.mxu0 0
      %661 = vmatpush1.bf16.msra.mxu0 %v651
      %662 = vmatprep.subr.bf16.mxu0 0
      %663 = vmatpush1.bf16.msra.mxu0 %v650
      %664 = vmatprep.subr.bf16.mxu0 0
      %665 = vmatpush1.bf16.msra.mxu0 %v649
      %666 = vmatprep.subr.bf16.mxu0 0
      %667 = vmatpush1.bf16.msra.mxu0 %v648
      %668 = vmatprep.subr.bf16.mxu0 0
      %669 = vmatpush1.bf16.msra.mxu0 %v647
      %670 = vmatprep.subr.bf16.mxu0 0
      %671 = vmatpush1.bf16.msra.mxu0 %v646
      %672 = vmatprep.subr.bf16.mxu0 0
      %673 = vmatpush1.bf16.msra.mxu0 %v645
      %674 = vmatprep.subr.bf16.mxu0 0
      %675 = vmatpush1.bf16.msra.mxu0 %v644
      %676 = vmatprep.subr.bf16.mxu0 0
      %677 = vmatpush2.bf16.msra.mxu0 0
      %678 = vmatprep.subr.bf16.mxu0 0
      %679 = vmatpush2.bf16.msra.mxu0 0
      %680 = vmatprep.subr.bf16.mxu0 0
      %681 = vmatpush2.bf16.msra.mxu0 0
      %682 = vmatprep.subr.bf16.mxu0 0
      %683 = vmatpush2.bf16.msra.mxu0 0
      %684 = vmatprep.subr.bf16.mxu0 0
      %685 = vmatpush2.bf16.msra.mxu0 0
      %686 = vmatprep.subr.bf16.mxu0 0
      %687 = vmatpush2.bf16.msra.mxu0 0
      %688 = vmatprep.subr.bf16.mxu0 0
      %689 = vmatpush2.bf16.msra.mxu0 0
      %690 = vmatprep.subr.bf16.mxu0 0
      %691 = vmatpush2.bf16.msra.mxu0 0
      %692 = vmatprep.mubr.bf16.mxu0 0
      %693 = vmatmul.mubr.bf16.gmra.mxu0 %v579
      %v694 = vpop.f32.mrf.mxu0
      %v695 = vadd.f32 0.0, %v694
      %v696 = vpop.f32.mrf.mxu0
      %v697 = vpop.f32.mrf.mxu0
      %v698 = vadd.f32 0.0, %v697
      %v699 = vpop.f32.mrf.mxu0
      %700 = vmatprep.mubr.bf16.mxu0 0
      %701 = vmatmul.mubr.bf16.gmra.mxu0 %v580
      %v702 = vpop.f32.mrf.mxu0
      %v703 = vadd.f32 0.0, %v702
      %v704 = vpop.f32.mrf.mxu0
      %v705 = vpop.f32.mrf.mxu0
      %v706 = vadd.f32 0.0, %v705
      %v707 = vpop.f32.mrf.mxu0
      %708 = vmatprep.mubr.bf16.mxu0 0
      %709 = vmatmul.mubr.bf16.gmra.mxu0 %v581
      %v710 = vpop.f32.mrf.mxu0
      %v711 = vadd.f32 0.0, %v710
      %v712 = vpop.f32.mrf.mxu0
      %v713 = vpop.f32.mrf.mxu0
      %v714 = vadd.f32 0.0, %v713
      %v715 = vpop.f32.mrf.mxu0
      %716 = vmatprep.mubr.bf16.mxu0 0
      %717 = vmatmul.mubr.bf16.gmra.mxu0 %v582
      %v718 = vpop.f32.mrf.mxu0
      %v719 = vadd.f32 0.0, %v718
      %v720 = vpop.f32.mrf.mxu0
      %v721 = vpop.f32.mrf.mxu0
      %v722 = vadd.f32 0.0, %v721
      %v723 = vpop.f32.mrf.mxu0
      %724 = vmatprep.mubr.bf16.mxu0 0
      %725 = vmatmul.mubr.bf16.gmra.mxu0 %v583
      %v726 = vpop.f32.mrf.mxu0
      %v727 = vadd.f32 0.0, %v726
      %v728 = vpop.f32.mrf.mxu0
      %v729 = vpop.f32.mrf.mxu0
      %v730 = vadd.f32 0.0, %v729
      %v731 = vpop.f32.mrf.mxu0
      %732 = vmatprep.mubr.bf16.mxu0 0
      %733 = vmatmul.mubr.bf16.gmra.mxu0 %v584
      %v734 = vpop.f32.mrf.mxu0
      %v735 = vadd.f32 0.0, %v734
      %v736 = vpop.f32.mrf.mxu0
      %v737 = vpop.f32.mrf.mxu0
      %v738 = vadd.f32 0.0, %v737
      %v739 = vpop.f32.mrf.mxu0
      %740 = vmatprep.mubr.bf16.mxu0 0
      %741 = vmatmul.mubr.bf16.gmra.mxu0 %v585
      %v742 = vpop.f32.mrf.mxu0
      %v743 = vadd.f32 0.0, %v742
      %v744 = vpop.f32.mrf.mxu0
      %v745 = vpop.f32.mrf.mxu0
      %v746 = vadd.f32 0.0, %v745
      %v747 = vpop.f32.mrf.mxu0
      %748 = vmatprep.mubr.bf16.mxu0 0
      %749 = vmatmul.mubr.bf16.gmra.mxu0 %v586
      %v750 = vpop.f32.mrf.mxu0
      %v751 = vadd.f32 0.0, %v750
      %v752 = vpop.f32.mrf.mxu0
      %v753 = vpop.f32.mrf.mxu0
      %v754 = vadd.f32 0.0, %v753
      %v755 = vpop.f32.mrf.mxu0
      %756 = vmatprep.mubr.bf16.mxu0 0
      %757 = vmatmul.mubr.bf16.gmra.mxu0 %v587
      %v758 = vpop.f32.mrf.mxu0
      %v759 = vadd.f32 0.0, %v758
      %v760 = vpop.f32.mrf.mxu0
      %v761 = vpop.f32.mrf.mxu0
      %v762 = vadd.f32 0.0, %v761
      %v763 = vpop.f32.mrf.mxu0
      %764 = vmatprep.mubr.bf16.mxu0 0
      %765 = vmatmul.mubr.bf16.gmra.mxu0 %v588
      %v766 = vpop.f32.mrf.mxu0
      %v767 = vadd.f32 0.0, %v766
      %v768 = vpop.f32.mrf.mxu0
      %v769 = vpop.f32.mrf.mxu0
      %v770 = vadd.f32 0.0, %v769
      %v771 = vpop.f32.mrf.mxu0
      %772 = vmatprep.mubr.bf16.mxu0 0
      %773 = vmatmul.mubr.bf16.gmra.mxu0 %v589
      %v774 = vpop.f32.mrf.mxu0
      %v775 = vadd.f32 0.0, %v774
      %v776 = vpop.f32.mrf.mxu0
      %v777 = vpop.f32.mrf.mxu0
      %v778 = vadd.f32 0.0, %v777
      %v779 = vpop.f32.mrf.mxu0
      %780 = vmatprep.mubr.bf16.mxu0 0
      %781 = vmatmul.mubr.bf16.gmra.mxu0 %v590
      %v782 = vpop.f32.mrf.mxu0
      %v783 = vadd.f32 0.0, %v782
      %v784 = vpop.f32.mrf.mxu0
      %v785 = vpop.f32.mrf.mxu0
      %v786 = vadd.f32 0.0, %v785
      %v787 = vpop.f32.mrf.mxu0
      %788 = vmatprep.mubr.bf16.mxu0 0
      %789 = vmatmul.mubr.bf16.gmra.mxu0 %v591
      %v790 = vpop.f32.mrf.mxu0
      %v791 = vadd.f32 0.0, %v790
      %v792 = vpop.f32.mrf.mxu0
      %v793 = vpop.f32.mrf.mxu0
      %v794 = vadd.f32 0.0, %v793
      %v795 = vpop.f32.mrf.mxu0
      %796 = vmatprep.mubr.bf16.mxu0 0
      %797 = vmatmul.mubr.bf16.gmra.mxu0 %v592
      %v798 = vpop.f32.mrf.mxu0
      %v799 = vadd.f32 0.0, %v798
      %v800 = vpop.f32.mrf.mxu0
      %v801 = vpop.f32.mrf.mxu0
      %v802 = vadd.f32 0.0, %v801
      %v803 = vpop.f32.mrf.mxu0
      %804 = vmatprep.mubr.bf16.mxu0 0
      %805 = vmatmul.mubr.bf16.gmra.mxu0 %v593
      %v806 = vpop.f32.mrf.mxu0
      %v807 = vadd.f32 0.0, %v806
      %v808 = vpop.f32.mrf.mxu0
      %v809 = vpop.f32.mrf.mxu0
      %v810 = vadd.f32 0.0, %v809
      %v811 = vpop.f32.mrf.mxu0
      %812 = vmatprep.mubr.bf16.mxu0 0
      %813 = vmatmul.mubr.bf16.gmra.mxu0 %v594
      %v814 = vpop.f32.mrf.mxu0
      %v815 = vadd.f32 0.0, %v814
      %v816 = vpop.f32.mrf.mxu0
      %v817 = vpop.f32.mrf.mxu0
      %v818 = vadd.f32 0.0, %v817
      %v819 = vpop.f32.mrf.mxu0
      %820 = vdwg.mxu0
      %v837 = vunpack.c.l.b16 %v531
      %v838 = vunpack.c.l.b16 %v532
      %v839 = vunpack.c.l.b16 %v533
      %v840 = vunpack.c.l.b16 %v534
      %v841 = vunpack.c.l.b16 %v535
      %v842 = vunpack.c.l.b16 %v536
      %v843 = vunpack.c.l.b16 %v537
      %v844 = vunpack.c.l.b16 %v538
      %v845 = vunpack.c.l.b16 %v539
      %v846 = vunpack.c.l.b16 %v540
      %v847 = vunpack.c.l.b16 %v541
      %v848 = vunpack.c.l.b16 %v542
      %v849 = vunpack.c.l.b16 %v543
      %v850 = vunpack.c.l.b16 %v544
      %v851 = vunpack.c.l.b16 %v545
      %v852 = vunpack.c.l.b16 %v546
      %v853 = vpack.c.b16 %v838, %v837
      %v854 = vpack.c.b16 %v840, %v839
      %v855 = vpack.c.b16 %v842, %v841
      %v856 = vpack.c.b16 %v844, %v843
      %v857 = vpack.c.b16 %v846, %v845
      %v858 = vpack.c.b16 %v848, %v847
      %v859 = vpack.c.b16 %v850, %v849
      %v860 = vpack.c.b16 %v852, %v851
      %869 = vmatprep.subr.bf16.mxu0 0
      %870 = vmatpush1.bf16.msra.mxu0 %v860
      %871 = vmatprep.subr.bf16.mxu0 0
      %872 = vmatpush1.bf16.msra.mxu0 %v859
      %873 = vmatprep.subr.bf16.mxu0 0
      %874 = vmatpush1.bf16.msra.mxu0 %v858
      %875 = vmatprep.subr.bf16.mxu0 0
      %876 = vmatpush1.bf16.msra.mxu0 %v857
      %877 = vmatprep.subr.bf16.mxu0 0
      %878 = vmatpush1.bf16.msra.mxu0 %v856
      %879 = vmatprep.subr.bf16.mxu0 0
      %880 = vmatpush1.bf16.msra.mxu0 %v855
      %881 = vmatprep.subr.bf16.mxu0 0
      %882 = vmatpush1.bf16.msra.mxu0 %v854
      %883 = vmatprep.subr.bf16.mxu0 0
      %884 = vmatpush1.bf16.msra.mxu0 %v853
      %885 = vmatprep.subr.bf16.mxu0 0
      %886 = vmatpush2.bf16.msra.mxu0 0
      %887 = vmatprep.subr.bf16.mxu0 0
      %888 = vmatpush2.bf16.msra.mxu0 0
      %889 = vmatprep.subr.bf16.mxu0 0
      %890 = vmatpush2.bf16.msra.mxu0 0
      %891 = vmatprep.subr.bf16.mxu0 0
      %892 = vmatpush2.bf16.msra.mxu0 0
      %893 = vmatprep.subr.bf16.mxu0 0
      %894 = vmatpush2.bf16.msra.mxu0 0
      %895 = vmatprep.subr.bf16.mxu0 0
      %896 = vmatpush2.bf16.msra.mxu0 0
      %897 = vmatprep.subr.bf16.mxu0 0
      %898 = vmatpush2.bf16.msra.mxu0 0
      %899 = vmatprep.subr.bf16.mxu0 0
      %900 = vmatpush2.bf16.msra.mxu0 0
      %901 = vmatprep.mubr.bf16.mxu0 0
      %902 = vmatmul.mubr.bf16.gmra.mxu0 %v515
      %v903 = vpop.f32.mrf.mxu0
      %v904 = vadd.f32 %v695, %v903
      %v905 = vpop.f32.mrf.mxu0
      %v906 = vpop.f32.mrf.mxu0
      %v907 = vadd.f32 %v698, %v906
      %v908 = vpop.f32.mrf.mxu0
      %909 = vmatprep.mubr.bf16.mxu0 0
      %910 = vmatmul.mubr.bf16.gmra.mxu0 %v516
      %v911 = vpop.f32.mrf.mxu0
      %v912 = vadd.f32 %v703, %v911
      %v913 = vpop.f32.mrf.mxu0
      %v914 = vpop.f32.mrf.mxu0
      %v915 = vadd.f32 %v706, %v914
      %v916 = vpop.f32.mrf.mxu0
      %917 = vmatprep.mubr.bf16.mxu0 0
      %918 = vmatmul.mubr.bf16.gmra.mxu0 %v517
      %v919 = vpop.f32.mrf.mxu0
      %v920 = vadd.f32 %v711, %v919
      %v921 = vpop.f32.mrf.mxu0
      %v922 = vpop.f32.mrf.mxu0
      %v923 = vadd.f32 %v714, %v922
      %v924 = vpop.f32.mrf.mxu0
      %925 = vmatprep.mubr.bf16.mxu0 0
      %926 = vmatmul.mubr.bf16.gmra.mxu0 %v518
      %v927 = vpop.f32.mrf.mxu0
      %v928 = vadd.f32 %v719, %v927
      %v929 = vpop.f32.mrf.mxu0
      %v930 = vpop.f32.mrf.mxu0
      %v931 = vadd.f32 %v722, %v930
      %v932 = vpop.f32.mrf.mxu0
      %933 = vmatprep.mubr.bf16.mxu0 0
      %934 = vmatmul.mubr.bf16.gmra.mxu0 %v519
      %v935 = vpop.f32.mrf.mxu0
      %v936 = vadd.f32 %v727, %v935
      %v937 = vpop.f32.mrf.mxu0
      %v938 = vpop.f32.mrf.mxu0
      %v939 = vadd.f32 %v730, %v938
      %v940 = vpop.f32.mrf.mxu0
      %941 = vmatprep.mubr.bf16.mxu0 0
      %942 = vmatmul.mubr.bf16.gmra.mxu0 %v520
      %v943 = vpop.f32.mrf.mxu0
      %v944 = vadd.f32 %v735, %v943
      %v945 = vpop.f32.mrf.mxu0
      %v946 = vpop.f32.mrf.mxu0
      %v947 = vadd.f32 %v738, %v946
      %v948 = vpop.f32.mrf.mxu0
      %949 = vmatprep.mubr.bf16.mxu0 0
      %950 = vmatmul.mubr.bf16.gmra.mxu0 %v521
      %v951 = vpop.f32.mrf.mxu0
      %v952 = vadd.f32 %v743, %v951
      %v953 = vpop.f32.mrf.mxu0
      %v954 = vpop.f32.mrf.mxu0
      %v955 = vadd.f32 %v746, %v954
      %v956 = vpop.f32.mrf.mxu0
      %957 = vmatprep.mubr.bf16.mxu0 0
      %958 = vmatmul.mubr.bf16.gmra.mxu0 %v522
      %v959 = vpop.f32.mrf.mxu0
      %v960 = vadd.f32 %v751, %v959
      %v961 = vpop.f32.mrf.mxu0
      %v962 = vpop.f32.mrf.mxu0
      %v963 = vadd.f32 %v754, %v962
      %v964 = vpop.f32.mrf.mxu0
      %965 = vmatprep.mubr.bf16.mxu0 0
      %966 = vmatmul.mubr.bf16.gmra.mxu0 %v523
      %v967 = vpop.f32.mrf.mxu0
      %v968 = vadd.f32 %v759, %v967
      %v969 = vpop.f32.mrf.mxu0
      %v970 = vpop.f32.mrf.mxu0
      %v971 = vadd.f32 %v762, %v970
      %v972 = vpop.f32.mrf.mxu0
      %973 = vmatprep.mubr.bf16.mxu0 0
      %974 = vmatmul.mubr.bf16.gmra.mxu0 %v524
      %v975 = vpop.f32.mrf.mxu0
      %v976 = vadd.f32 %v767, %v975
      %v977 = vpop.f32.mrf.mxu0
      %v978 = vpop.f32.mrf.mxu0
      %v979 = vadd.f32 %v770, %v978
      %v980 = vpop.f32.mrf.mxu0
      %981 = vmatprep.mubr.bf16.mxu0 0
      %982 = vmatmul.mubr.bf16.gmra.mxu0 %v525
      %v983 = vpop.f32.mrf.mxu0
      %v984 = vadd.f32 %v775, %v983
      %v985 = vpop.f32.mrf.mxu0
      %v986 = vpop.f32.mrf.mxu0
      %v987 = vadd.f32 %v778, %v986
      %v988 = vpop.f32.mrf.mxu0
      %989 = vmatprep.mubr.bf16.mxu0 0
      %990 = vmatmul.mubr.bf16.gmra.mxu0 %v526
      %v991 = vpop.f32.mrf.mxu0
      %v992 = vadd.f32 %v783, %v991
      %v993 = vpop.f32.mrf.mxu0
      %v994 = vpop.f32.mrf.mxu0
      %v995 = vadd.f32 %v786, %v994
      %v996 = vpop.f32.mrf.mxu0
      %997 = vmatprep.mubr.bf16.mxu0 0
      %998 = vmatmul.mubr.bf16.gmra.mxu0 %v527
      %v999 = vpop.f32.mrf.mxu0
      %v1000 = vadd.f32 %v791, %v999
      %v1001 = vpop.f32.mrf.mxu0
      %v1002 = vpop.f32.mrf.mxu0
      %v1003 = vadd.f32 %v794, %v1002
      %v1004 = vpop.f32.mrf.mxu0
      %1005 = vmatprep.mubr.bf16.mxu0 0
      %1006 = vmatmul.mubr.bf16.gmra.mxu0 %v528
      %v1007 = vpop.f32.mrf.mxu0
      %v1008 = vadd.f32 %v799, %v1007
      %v1009 = vpop.f32.mrf.mxu0
      %v1010 = vpop.f32.mrf.mxu0
      %v1011 = vadd.f32 %v802, %v1010
      %v1012 = vpop.f32.mrf.mxu0
      %1013 = vmatprep.mubr.bf16.mxu0 0
      %1014 = vmatmul.mubr.bf16.gmra.mxu0 %v529
      %v1015 = vpop.f32.mrf.mxu0
      %v1016 = vadd.f32 %v807, %v1015
      %v1017 = vpop.f32.mrf.mxu0
      %v1018 = vpop.f32.mrf.mxu0
      %v1019 = vadd.f32 %v810, %v1018
      %v1020 = vpop.f32.mrf.mxu0
      %1021 = vmatprep.mubr.bf16.mxu0 0
      %1022 = vmatmul.mubr.bf16.gmra.mxu0 %v530
      %v1023 = vpop.f32.mrf.mxu0
      %v1024 = vadd.f32 %v815, %v1023
      %v1025 = vpop.f32.mrf.mxu0
      %v1026 = vpop.f32.mrf.mxu0
      %v1027 = vadd.f32 %v818, %v1026
      %v1028 = vpop.f32.mrf.mxu0
      %1029 = vdwg.mxu0
      %v1030 = vld [vmem:[#allocation2 + $0x2] sm:$0xff]
      %v1031 = vld [vmem:[#allocation2 + $0xa] sm:$0xff]
      %v1032 = vld [vmem:[#allocation2 + $0x1a] sm:$0xff]
      %v1033 = vld [vmem:[#allocation2 + $0x22] sm:$0xff]
      %v1034 = vld [vmem:[#allocation2 + $0x32] sm:$0xff]
      %v1035 = vld [vmem:[#allocation2 + $0x3a] sm:$0xff]
      %v1036 = vld [vmem:[#allocation2 + $0x4a] sm:$0xff]
      %v1037 = vld [vmem:[#allocation2 + $0x52] sm:$0xff]
      %v1038 = vld [vmem:[#allocation2 + $0x62] sm:$0xff]
      %v1039 = vld [vmem:[#allocation2 + $0x6a] sm:$0xff]
      %v1040 = vld [vmem:[#allocation2 + $0x7a] sm:$0xff]
      %v1041 = vld [vmem:[#allocation2 + $0x82] sm:$0xff]
      %v1042 = vld [vmem:[#allocation2 + $0x92] sm:$0xff]
      %v1043 = vld [vmem:[#allocation2 + $0x9a] sm:$0xff]
      %v1044 = vld [vmem:[#allocation2 + $0xaa] sm:$0xff]
      %v1045 = vld [vmem:[#allocation2 + $0xb2] sm:$0xff]
      %v1046 = vld [vmem:[#allocation2 + $0xc2] sm:$0xff]
      %v1047 = vld [vmem:[#allocation2 + $0xca] sm:$0xff]
      %v1048 = vld [vmem:[#allocation2 + $0xda] sm:$0xff]
      %v1049 = vld [vmem:[#allocation2 + $0xe2] sm:$0xff]
      %v1050 = vld [vmem:[#allocation2 + $0xf2] sm:$0xff]
      %v1051 = vld [vmem:[#allocation2 + $0xfa] sm:$0xff]
      %v1052 = vld [vmem:[#allocation2 + $0x10a] sm:$0xff]
      %v1053 = vld [vmem:[#allocation2 + $0x112] sm:$0xff]
      %v1054 = vld [vmem:[#allocation2 + $0x122] sm:$0xff]
      %v1055 = vld [vmem:[#allocation2 + $0x12a] sm:$0xff]
      %v1056 = vld [vmem:[#allocation2 + $0x13a] sm:$0xff]
      %v1057 = vld [vmem:[#allocation2 + $0x142] sm:$0xff]
      %v1058 = vld [vmem:[#allocation2 + $0x152] sm:$0xff]
      %v1059 = vld [vmem:[#allocation2 + $0x15a] sm:$0xff]
      %v1060 = vld [vmem:[#allocation2 + $0x16a] sm:$0xff]
      %v1061 = vld [vmem:[#allocation2 + $0x172] sm:$0xff]
      %v1062 = vpack.c.bf16 %v1031, %v1030
      %v1063 = vpack.c.bf16 %v1033, %v1032
      %v1064 = vpack.c.bf16 %v1035, %v1034
      %v1065 = vpack.c.bf16 %v1037, %v1036
      %v1066 = vpack.c.bf16 %v1039, %v1038
      %v1067 = vpack.c.bf16 %v1041, %v1040
      %v1068 = vpack.c.bf16 %v1043, %v1042
      %v1069 = vpack.c.bf16 %v1045, %v1044
      %v1070 = vpack.c.bf16 %v1047, %v1046
      %v1071 = vpack.c.bf16 %v1049, %v1048
      %v1072 = vpack.c.bf16 %v1051, %v1050
      %v1073 = vpack.c.bf16 %v1053, %v1052
      %v1074 = vpack.c.bf16 %v1055, %v1054
      %v1075 = vpack.c.bf16 %v1057, %v1056
      %v1076 = vpack.c.bf16 %v1059, %v1058
      %v1077 = vpack.c.bf16 %v1061, %v1060
      %s1078 = scalar_lea.vmem %s3, 128
      %v1079 = vld [vmem:[%s1078] sm:$0xf]
      %v1080 = vld [vmem:[%s1078 + $0x4] sm:$0xf]
      %v1081 = vld [vmem:[%s1078 + $0x8] sm:$0xf]
      %v1082 = vld [vmem:[%s1078 + $0xc] sm:$0xf]
      %v1083 = vld [vmem:[%s1078 + $0x10] sm:$0xf]
      %v1084 = vld [vmem:[%s1078 + $0x14] sm:$0xf]
      %v1085 = vld [vmem:[%s1078 + $0x18] sm:$0xf]
      %v1086 = vld [vmem:[%s1078 + $0x1c] sm:$0xf]
      %v1087 = vld [vmem:[%s1078 + $0x20] sm:$0xf]
      %v1088 = vld [vmem:[%s1078 + $0x24] sm:$0xf]
      %v1089 = vld [vmem:[%s1078 + $0x28] sm:$0xf]
      %v1090 = vld [vmem:[%s1078 + $0x2c] sm:$0xf]
      %v1091 = vld [vmem:[%s1078 + $0x30] sm:$0xf]
      %v1092 = vld [vmem:[%s1078 + $0x34] sm:$0xf]
      %v1093 = vld [vmem:[%s1078 + $0x38] sm:$0xf]
      %v1094 = vld [vmem:[%s1078 + $0x3c] sm:$0xf]
      %v1111 = vunpack.c.l.b16 %v1079
      %v1112 = vunpack.c.l.b16 %v1080
      %v1113 = vunpack.c.l.b16 %v1081
      %v1114 = vunpack.c.l.b16 %v1082
      %v1115 = vunpack.c.l.b16 %v1083
      %v1116 = vunpack.c.l.b16 %v1084
      %v1117 = vunpack.c.l.b16 %v1085
      %v1118 = vunpack.c.l.b16 %v1086
      %v1119 = vunpack.c.l.b16 %v1087
      %v1120 = vunpack.c.l.b16 %v1088
      %v1121 = vunpack.c.l.b16 %v1089
      %v1122 = vunpack.c.l.b16 %v1090
      %v1123 = vunpack.c.l.b16 %v1091
      %v1124 = vunpack.c.l.b16 %v1092
      %v1125 = vunpack.c.l.b16 %v1093
      %v1126 = vunpack.c.l.b16 %v1094
      %v1127 = vpack.c.b16 %v1112, %v1111
      %v1128 = vpack.c.b16 %v1114, %v1113
      %v1129 = vpack.c.b16 %v1116, %v1115
      %v1130 = vpack.c.b16 %v1118, %v1117
      %v1131 = vpack.c.b16 %v1120, %v1119
      %v1132 = vpack.c.b16 %v1122, %v1121
      %v1133 = vpack.c.b16 %v1124, %v1123
      %v1134 = vpack.c.b16 %v1126, %v1125
      %1143 = vmatprep.subr.bf16.mxu0 0
      %1144 = vmatpush1.bf16.msra.mxu0 %v1134
      %1145 = vmatprep.subr.bf16.mxu0 0
      %1146 = vmatpush1.bf16.msra.mxu0 %v1133
      %1147 = vmatprep.subr.bf16.mxu0 0
      %1148 = vmatpush1.bf16.msra.mxu0 %v1132
      %1149 = vmatprep.subr.bf16.mxu0 0
      %1150 = vmatpush1.bf16.msra.mxu0 %v1131
      %1151 = vmatprep.subr.bf16.mxu0 0
      %1152 = vmatpush1.bf16.msra.mxu0 %v1130
      %1153 = vmatprep.subr.bf16.mxu0 0
      %1154 = vmatpush1.bf16.msra.mxu0 %v1129
      %1155 = vmatprep.subr.bf16.mxu0 0
      %1156 = vmatpush1.bf16.msra.mxu0 %v1128
      %1157 = vmatprep.subr.bf16.mxu0 0
      %1158 = vmatpush1.bf16.msra.mxu0 %v1127
      %1159 = vmatprep.subr.bf16.mxu0 0
      %1160 = vmatpush2.bf16.msra.mxu0 0
      %1161 = vmatprep.subr.bf16.mxu0 0
      %1162 = vmatpush2.bf16.msra.mxu0 0
      %1163 = vmatprep.subr.bf16.mxu0 0
      %1164 = vmatpush2.bf16.msra.mxu0 0
      %1165 = vmatprep.subr.bf16.mxu0 0
      %1166 = vmatpush2.bf16.msra.mxu0 0
      %1167 = vmatprep.subr.bf16.mxu0 0
      %1168 = vmatpush2.bf16.msra.mxu0 0
      %1169 = vmatprep.subr.bf16.mxu0 0
      %1170 = vmatpush2.bf16.msra.mxu0 0
      %1171 = vmatprep.subr.bf16.mxu0 0
      %1172 = vmatpush2.bf16.msra.mxu0 0
      %1173 = vmatprep.subr.bf16.mxu0 0
      %1174 = vmatpush2.bf16.msra.mxu0 0
      %1175 = vmatprep.mubr.bf16.mxu0 0
      %1176 = vmatmul.mubr.bf16.gmra.mxu0 %v1062
      %v1177 = vpop.f32.mrf.mxu0
      %v1178 = vadd.f32 0.0, %v1177
      %v1179 = vpop.f32.mrf.mxu0
      %v1180 = vpop.f32.mrf.mxu0
      %v1181 = vadd.f32 0.0, %v1180
      %v1182 = vpop.f32.mrf.mxu0
      %1183 = vmatprep.mubr.bf16.mxu0 0
      %1184 = vmatmul.mubr.bf16.gmra.mxu0 %v1063
      %v1185 = vpop.f32.mrf.mxu0
      %v1186 = vadd.f32 0.0, %v1185
      %v1187 = vpop.f32.mrf.mxu0
      %v1188 = vpop.f32.mrf.mxu0
      %v1189 = vadd.f32 0.0, %v1188
      %v1190 = vpop.f32.mrf.mxu0
      %1191 = vmatprep.mubr.bf16.mxu0 0
      %1192 = vmatmul.mubr.bf16.gmra.mxu0 %v1064
      %v1193 = vpop.f32.mrf.mxu0
      %v1194 = vadd.f32 0.0, %v1193
      %v1195 = vpop.f32.mrf.mxu0
      %v1196 = vpop.f32.mrf.mxu0
      %v1197 = vadd.f32 0.0, %v1196
      %v1198 = vpop.f32.mrf.mxu0
      %1199 = vmatprep.mubr.bf16.mxu0 0
      %1200 = vmatmul.mubr.bf16.gmra.mxu0 %v1065
      %v1201 = vpop.f32.mrf.mxu0
      %v1202 = vadd.f32 0.0, %v1201
      %v1203 = vpop.f32.mrf.mxu0
      %v1204 = vpop.f32.mrf.mxu0
      %v1205 = vadd.f32 0.0, %v1204
      %v1206 = vpop.f32.mrf.mxu0
      %1207 = vmatprep.mubr.bf16.mxu0 0
      %1208 = vmatmul.mubr.bf16.gmra.mxu0 %v1066
      %v1209 = vpop.f32.mrf.mxu0
      %v1210 = vadd.f32 0.0, %v1209
      %v1211 = vpop.f32.mrf.mxu0
      %v1212 = vpop.f32.mrf.mxu0
      %v1213 = vadd.f32 0.0, %v1212
      %v1214 = vpop.f32.mrf.mxu0
      %1215 = vmatprep.mubr.bf16.mxu0 0
      %1216 = vmatmul.mubr.bf16.gmra.mxu0 %v1067
      %v1217 = vpop.f32.mrf.mxu0
      %v1218 = vadd.f32 0.0, %v1217
      %v1219 = vpop.f32.mrf.mxu0
      %v1220 = vpop.f32.mrf.mxu0
      %v1221 = vadd.f32 0.0, %v1220
      %v1222 = vpop.f32.mrf.mxu0
      %1223 = vmatprep.mubr.bf16.mxu0 0
      %1224 = vmatmul.mubr.bf16.gmra.mxu0 %v1068
      %v1225 = vpop.f32.mrf.mxu0
      %v1226 = vadd.f32 0.0, %v1225
      %v1227 = vpop.f32.mrf.mxu0
      %v1228 = vpop.f32.mrf.mxu0
      %v1229 = vadd.f32 0.0, %v1228
      %v1230 = vpop.f32.mrf.mxu0
      %1231 = vmatprep.mubr.bf16.mxu0 0
      %1232 = vmatmul.mubr.bf16.gmra.mxu0 %v1069
      %v1233 = vpop.f32.mrf.mxu0
      %v1234 = vadd.f32 0.0, %v1233
      %v1235 = vpop.f32.mrf.mxu0
      %v1236 = vpop.f32.mrf.mxu0
      %v1237 = vadd.f32 0.0, %v1236
      %v1238 = vpop.f32.mrf.mxu0
      %1239 = vmatprep.mubr.bf16.mxu0 0
      %1240 = vmatmul.mubr.bf16.gmra.mxu0 %v1070
      %v1241 = vpop.f32.mrf.mxu0
      %v1242 = vadd.f32 0.0, %v1241
      %v1243 = vpop.f32.mrf.mxu0
      %v1244 = vpop.f32.mrf.mxu0
      %v1245 = vadd.f32 0.0, %v1244
      %v1246 = vpop.f32.mrf.mxu0
      %1247 = vmatprep.mubr.bf16.mxu0 0
      %1248 = vmatmul.mubr.bf16.gmra.mxu0 %v1071
      %v1249 = vpop.f32.mrf.mxu0
      %v1250 = vadd.f32 0.0, %v1249
      %v1251 = vpop.f32.mrf.mxu0
      %v1252 = vpop.f32.mrf.mxu0
      %v1253 = vadd.f32 0.0, %v1252
      %v1254 = vpop.f32.mrf.mxu0
      %1255 = vmatprep.mubr.bf16.mxu0 0
      %1256 = vmatmul.mubr.bf16.gmra.mxu0 %v1072
      %v1257 = vpop.f32.mrf.mxu0
      %v1258 = vadd.f32 0.0, %v1257
      %v1259 = vpop.f32.mrf.mxu0
      %v1260 = vpop.f32.mrf.mxu0
      %v1261 = vadd.f32 0.0, %v1260
      %v1262 = vpop.f32.mrf.mxu0
      %1263 = vmatprep.mubr.bf16.mxu0 0
      %1264 = vmatmul.mubr.bf16.gmra.mxu0 %v1073
      %v1265 = vpop.f32.mrf.mxu0
      %v1266 = vadd.f32 0.0, %v1265
      %v1267 = vpop.f32.mrf.mxu0
      %v1268 = vpop.f32.mrf.mxu0
      %v1269 = vadd.f32 0.0, %v1268
      %v1270 = vpop.f32.mrf.mxu0
      %1271 = vmatprep.mubr.bf16.mxu0 0
      %1272 = vmatmul.mubr.bf16.gmra.mxu0 %v1074
      %v1273 = vpop.f32.mrf.mxu0
      %v1274 = vadd.f32 0.0, %v1273
      %v1275 = vpop.f32.mrf.mxu0
      %v1276 = vpop.f32.mrf.mxu0
      %v1277 = vadd.f32 0.0, %v1276
      %v1278 = vpop.f32.mrf.mxu0
      %1279 = vmatprep.mubr.bf16.mxu0 0
      %1280 = vmatmul.mubr.bf16.gmra.mxu0 %v1075
      %v1281 = vpop.f32.mrf.mxu0
      %v1282 = vadd.f32 0.0, %v1281
      %v1283 = vpop.f32.mrf.mxu0
      %v1284 = vpop.f32.mrf.mxu0
      %v1285 = vadd.f32 0.0, %v1284
      %v1286 = vpop.f32.mrf.mxu0
      %1287 = vmatprep.mubr.bf16.mxu0 0
      %1288 = vmatmul.mubr.bf16.gmra.mxu0 %v1076
      %v1289 = vpop.f32.mrf.mxu0
      %v1290 = vadd.f32 0.0, %v1289
      %v1291 = vpop.f32.mrf.mxu0
      %v1292 = vpop.f32.mrf.mxu0
      %v1293 = vadd.f32 0.0, %v1292
      %v1294 = vpop.f32.mrf.mxu0
      %1295 = vmatprep.mubr.bf16.mxu0 0
      %1296 = vmatmul.mubr.bf16.gmra.mxu0 %v1077
      %v1297 = vpop.f32.mrf.mxu0
      %v1298 = vadd.f32 0.0, %v1297
      %v1299 = vpop.f32.mrf.mxu0
      %v1300 = vpop.f32.mrf.mxu0
      %v1301 = vadd.f32 0.0, %v1300
      %v1302 = vpop.f32.mrf.mxu0
      %1303 = vdwg.mxu0
      %v1304 = vadd.f32 %v904, %v1178
      %v1305 = vadd.f32 %v907, %v1181
      %v1306 = vadd.f32 %v912, %v1186
      %v1307 = vadd.f32 %v915, %v1189
      %v1308 = vadd.f32 %v920, %v1194
      %v1309 = vadd.f32 %v923, %v1197
      %v1310 = vadd.f32 %v928, %v1202
      %v1311 = vadd.f32 %v931, %v1205
      %v1312 = vadd.f32 %v936, %v1210
      %v1313 = vadd.f32 %v939, %v1213
      %v1314 = vadd.f32 %v944, %v1218
      %v1315 = vadd.f32 %v947, %v1221
      %v1316 = vadd.f32 %v952, %v1226
      %v1317 = vadd.f32 %v955, %v1229
      %v1318 = vadd.f32 %v960, %v1234
      %v1319 = vadd.f32 %v963, %v1237
      %v1320 = vadd.f32 %v968, %v1242
      %v1321 = vadd.f32 %v971, %v1245
      %v1322 = vadd.f32 %v976, %v1250
      %v1323 = vadd.f32 %v979, %v1253
      %v1324 = vadd.f32 %v984, %v1258
      %v1325 = vadd.f32 %v987, %v1261
      %v1326 = vadd.f32 %v992, %v1266
      %v1327 = vadd.f32 %v995, %v1269
      %v1328 = vadd.f32 %v1000, %v1274
      %v1329 = vadd.f32 %v1003, %v1277
      %v1330 = vadd.f32 %v1008, %v1282
      %v1331 = vadd.f32 %v1011, %v1285
      %v1332 = vadd.f32 %v1016, %v1290
      %v1333 = vadd.f32 %v1019, %v1293
      %v1334 = vadd.f32 %v1024, %v1298
      %v1335 = vadd.f32 %v1027, %v1301
      %v1336 = vld [vmem:[%s450] sm:$0xff]
      %v1337 = vld [vmem:[%s450 + $0x8] sm:$0xff]
      %v1338 = vld [vmem:[%s450 + $0x18] sm:$0xff]
      %v1339 = vld [vmem:[%s450 + $0x20] sm:$0xff]
      %v1340 = vld [vmem:[%s450 + $0x30] sm:$0xff]
      %v1341 = vld [vmem:[%s450 + $0x38] sm:$0xff]
      %v1342 = vld [vmem:[%s450 + $0x48] sm:$0xff]
      %v1343 = vld [vmem:[%s450 + $0x50] sm:$0xff]
      %v1344 = vld [vmem:[%s450 + $0x60] sm:$0xff]
      %v1345 = vld [vmem:[%s450 + $0x68] sm:$0xff]
      %v1346 = vld [vmem:[%s450 + $0x78] sm:$0xff]
      %v1347 = vld [vmem:[%s450 + $0x80] sm:$0xff]
      %v1348 = vld [vmem:[%s450 + $0x90] sm:$0xff]
      %v1349 = vld [vmem:[%s450 + $0x98] sm:$0xff]
      %v1350 = vld [vmem:[%s450 + $0xa8] sm:$0xff]
      %v1351 = vld [vmem:[%s450 + $0xb0] sm:$0xff]
      %v1352 = vld [vmem:[%s450 + $0xc0] sm:$0xff]
      %v1353 = vld [vmem:[%s450 + $0xc8] sm:$0xff]
      %v1354 = vld [vmem:[%s450 + $0xd8] sm:$0xff]
      %v1355 = vld [vmem:[%s450 + $0xe0] sm:$0xff]
      %v1356 = vld [vmem:[%s450 + $0xf0] sm:$0xff]
      %v1357 = vld [vmem:[%s450 + $0xf8] sm:$0xff]
      %v1358 = vld [vmem:[%s450 + $0x108] sm:$0xff]
      %v1359 = vld [vmem:[%s450 + $0x110] sm:$0xff]
      %v1360 = vld [vmem:[%s450 + $0x120] sm:$0xff]
      %v1361 = vld [vmem:[%s450 + $0x128] sm:$0xff]
      %v1362 = vld [vmem:[%s450 + $0x138] sm:$0xff]
      %v1363 = vld [vmem:[%s450 + $0x140] sm:$0xff]
      %v1364 = vld [vmem:[%s450 + $0x150] sm:$0xff]
      %v1365 = vld [vmem:[%s450 + $0x158] sm:$0xff]
      %v1366 = vld [vmem:[%s450 + $0x168] sm:$0xff]
      %v1367 = vld [vmem:[%s450 + $0x170] sm:$0xff]
      %v1368 = vpack.c.bf16 %v1337, %v1336
      %v1369 = vpack.c.bf16 %v1339, %v1338
      %v1370 = vpack.c.bf16 %v1341, %v1340
      %v1371 = vpack.c.bf16 %v1343, %v1342
      %v1372 = vpack.c.bf16 %v1345, %v1344
      %v1373 = vpack.c.bf16 %v1347, %v1346
      %v1374 = vpack.c.bf16 %v1349, %v1348
      %v1375 = vpack.c.bf16 %v1351, %v1350
      %v1376 = vpack.c.bf16 %v1353, %v1352
      %v1377 = vpack.c.bf16 %v1355, %v1354
      %v1378 = vpack.c.bf16 %v1357, %v1356
      %v1379 = vpack.c.bf16 %v1359, %v1358
      %v1380 = vpack.c.bf16 %v1361, %v1360
      %v1381 = vpack.c.bf16 %v1363, %v1362
      %v1382 = vpack.c.bf16 %v1365, %v1364
      %v1383 = vpack.c.bf16 %v1367, %v1366
      %s1384 = scalar_lea.vmem %s3, 192
      %v1385 = vld [vmem:[%s1384] sm:$0xf]
      %v1386 = vld [vmem:[%s1384 + $0x4] sm:$0xf]
      %v1387 = vld [vmem:[%s1384 + $0x8] sm:$0xf]
      %v1388 = vld [vmem:[%s1384 + $0xc] sm:$0xf]
      %v1389 = vld [vmem:[%s1384 + $0x10] sm:$0xf]
      %v1390 = vld [vmem:[%s1384 + $0x14] sm:$0xf]
      %v1391 = vld [vmem:[%s1384 + $0x18] sm:$0xf]
      %v1392 = vld [vmem:[%s1384 + $0x1c] sm:$0xf]
      %v1393 = vld [vmem:[%s1384 + $0x20] sm:$0xf]
      %v1394 = vld [vmem:[%s1384 + $0x24] sm:$0xf]
      %v1395 = vld [vmem:[%s1384 + $0x28] sm:$0xf]
      %v1396 = vld [vmem:[%s1384 + $0x2c] sm:$0xf]
      %v1397 = vld [vmem:[%s1384 + $0x30] sm:$0xf]
      %v1398 = vld [vmem:[%s1384 + $0x34] sm:$0xf]
      %v1399 = vld [vmem:[%s1384 + $0x38] sm:$0xf]
      %v1400 = vld [vmem:[%s1384 + $0x3c] sm:$0xf]
      %v1417 = vunpack.c.l.b16 %v1385
      %v1418 = vunpack.c.l.b16 %v1386
      %v1419 = vunpack.c.l.b16 %v1387
      %v1420 = vunpack.c.l.b16 %v1388
      %v1421 = vunpack.c.l.b16 %v1389
      %v1422 = vunpack.c.l.b16 %v1390
      %v1423 = vunpack.c.l.b16 %v1391
      %v1424 = vunpack.c.l.b16 %v1392
      %v1425 = vunpack.c.l.b16 %v1393
      %v1426 = vunpack.c.l.b16 %v1394
      %v1427 = vunpack.c.l.b16 %v1395
      %v1428 = vunpack.c.l.b16 %v1396
      %v1429 = vunpack.c.l.b16 %v1397
      %v1430 = vunpack.c.l.b16 %v1398
      %v1431 = vunpack.c.l.b16 %v1399
      %v1432 = vunpack.c.l.b16 %v1400
      %v1433 = vpack.c.b16 %v1418, %v1417
      %v1434 = vpack.c.b16 %v1420, %v1419
      %v1435 = vpack.c.b16 %v1422, %v1421
      %v1436 = vpack.c.b16 %v1424, %v1423
      %v1437 = vpack.c.b16 %v1426, %v1425
      %v1438 = vpack.c.b16 %v1428, %v1427
      %v1439 = vpack.c.b16 %v1430, %v1429
      %v1440 = vpack.c.b16 %v1432, %v1431
      %1449 = vmatprep.subr.bf16.mxu0 0
      %1450 = vmatpush1.bf16.msra.mxu0 %v1440
      %1451 = vmatprep.subr.bf16.mxu0 0
      %1452 = vmatpush1.bf16.msra.mxu0 %v1439
      %1453 = vmatprep.subr.bf16.mxu0 0
      %1454 = vmatpush1.bf16.msra.mxu0 %v1438
      %1455 = vmatprep.subr.bf16.mxu0 0
      %1456 = vmatpush1.bf16.msra.mxu0 %v1437
      %1457 = vmatprep.subr.bf16.mxu0 0
      %1458 = vmatpush1.bf16.msra.mxu0 %v1436
      %1459 = vmatprep.subr.bf16.mxu0 0
      %1460 = vmatpush1.bf16.msra.mxu0 %v1435
      %1461 = vmatprep.subr.bf16.mxu0 0
      %1462 = vmatpush1.bf16.msra.mxu0 %v1434
      %1463 = vmatprep.subr.bf16.mxu0 0
      %1464 = vmatpush1.bf16.msra.mxu0 %v1433
      %1465 = vmatprep.subr.bf16.mxu0 0
      %1466 = vmatpush2.bf16.msra.mxu0 0
      %1467 = vmatprep.subr.bf16.mxu0 0
      %1468 = vmatpush2.bf16.msra.mxu0 0
      %1469 = vmatprep.subr.bf16.mxu0 0
      %1470 = vmatpush2.bf16.msra.mxu0 0
      %1471 = vmatprep.subr.bf16.mxu0 0
      %1472 = vmatpush2.bf16.msra.mxu0 0
      %1473 = vmatprep.subr.bf16.mxu0 0
      %1474 = vmatpush2.bf16.msra.mxu0 0
      %1475 = vmatprep.subr.bf16.mxu0 0
      %1476 = vmatpush2.bf16.msra.mxu0 0
      %1477 = vmatprep.subr.bf16.mxu0 0
      %1478 = vmatpush2.bf16.msra.mxu0 0
      %1479 = vmatprep.subr.bf16.mxu0 0
      %1480 = vmatpush2.bf16.msra.mxu0 0
      %1481 = vmatprep.mubr.bf16.mxu0 0
      %1482 = vmatmul.mubr.bf16.gmra.mxu0 %v1368
      %v1483 = vpop.f32.mrf.mxu0
      %v1484 = vadd.f32 0.0, %v1483
      %v1485 = vpop.f32.mrf.mxu0
      %v1486 = vpop.f32.mrf.mxu0
      %v1487 = vadd.f32 0.0, %v1486
      %v1488 = vpop.f32.mrf.mxu0
      %1489 = vmatprep.mubr.bf16.mxu0 0
      %1490 = vmatmul.mubr.bf16.gmra.mxu0 %v1369
      %v1491 = vpop.f32.mrf.mxu0
      %v1492 = vadd.f32 0.0, %v1491
      %v1493 = vpop.f32.mrf.mxu0
      %v1494 = vpop.f32.mrf.mxu0
      %v1495 = vadd.f32 0.0, %v1494
      %v1496 = vpop.f32.mrf.mxu0
      %1497 = vmatprep.mubr.bf16.mxu0 0
      %1498 = vmatmul.mubr.bf16.gmra.mxu0 %v1370
      %v1499 = vpop.f32.mrf.mxu0
      %v1500 = vadd.f32 0.0, %v1499
      %v1501 = vpop.f32.mrf.mxu0
      %v1502 = vpop.f32.mrf.mxu0
      %v1503 = vadd.f32 0.0, %v1502
      %v1504 = vpop.f32.mrf.mxu0
      %1505 = vmatprep.mubr.bf16.mxu0 0
      %1506 = vmatmul.mubr.bf16.gmra.mxu0 %v1371
      %v1507 = vpop.f32.mrf.mxu0
      %v1508 = vadd.f32 0.0, %v1507
      %v1509 = vpop.f32.mrf.mxu0
      %v1510 = vpop.f32.mrf.mxu0
      %v1511 = vadd.f32 0.0, %v1510
      %v1512 = vpop.f32.mrf.mxu0
      %1513 = vmatprep.mubr.bf16.mxu0 0
      %1514 = vmatmul.mubr.bf16.gmra.mxu0 %v1372
      %v1515 = vpop.f32.mrf.mxu0
      %v1516 = vadd.f32 0.0, %v1515
      %v1517 = vpop.f32.mrf.mxu0
      %v1518 = vpop.f32.mrf.mxu0
      %v1519 = vadd.f32 0.0, %v1518
      %v1520 = vpop.f32.mrf.mxu0
      %1521 = vmatprep.mubr.bf16.mxu0 0
      %1522 = vmatmul.mubr.bf16.gmra.mxu0 %v1373
      %v1523 = vpop.f32.mrf.mxu0
      %v1524 = vadd.f32 0.0, %v1523
      %v1525 = vpop.f32.mrf.mxu0
      %v1526 = vpop.f32.mrf.mxu0
      %v1527 = vadd.f32 0.0, %v1526
      %v1528 = vpop.f32.mrf.mxu0
      %1529 = vmatprep.mubr.bf16.mxu0 0
      %1530 = vmatmul.mubr.bf16.gmra.mxu0 %v1374
      %v1531 = vpop.f32.mrf.mxu0
      %v1532 = vadd.f32 0.0, %v1531
      %v1533 = vpop.f32.mrf.mxu0
      %v1534 = vpop.f32.mrf.mxu0
      %v1535 = vadd.f32 0.0, %v1534
      %v1536 = vpop.f32.mrf.mxu0
      %1537 = vmatprep.mubr.bf16.mxu0 0
      %1538 = vmatmul.mubr.bf16.gmra.mxu0 %v1375
      %v1539 = vpop.f32.mrf.mxu0
      %v1540 = vadd.f32 0.0, %v1539
      %v1541 = vpop.f32.mrf.mxu0
      %v1542 = vpop.f32.mrf.mxu0
      %v1543 = vadd.f32 0.0, %v1542
      %v1544 = vpop.f32.mrf.mxu0
      %1545 = vmatprep.mubr.bf16.mxu0 0
      %1546 = vmatmul.mubr.bf16.gmra.mxu0 %v1376
      %v1547 = vpop.f32.mrf.mxu0
      %v1548 = vadd.f32 0.0, %v1547
      %v1549 = vpop.f32.mrf.mxu0
      %v1550 = vpop.f32.mrf.mxu0
      %v1551 = vadd.f32 0.0, %v1550
      %v1552 = vpop.f32.mrf.mxu0
      %1553 = vmatprep.mubr.bf16.mxu0 0
      %1554 = vmatmul.mubr.bf16.gmra.mxu0 %v1377
      %v1555 = vpop.f32.mrf.mxu0
      %v1556 = vadd.f32 0.0, %v1555
      %v1557 = vpop.f32.mrf.mxu0
      %v1558 = vpop.f32.mrf.mxu0
      %v1559 = vadd.f32 0.0, %v1558
      %v1560 = vpop.f32.mrf.mxu0
      %1561 = vmatprep.mubr.bf16.mxu0 0
      %1562 = vmatmul.mubr.bf16.gmra.mxu0 %v1378
      %v1563 = vpop.f32.mrf.mxu0
      %v1564 = vadd.f32 0.0, %v1563
      %v1565 = vpop.f32.mrf.mxu0
      %v1566 = vpop.f32.mrf.mxu0
      %v1567 = vadd.f32 0.0, %v1566
      %v1568 = vpop.f32.mrf.mxu0
      %1569 = vmatprep.mubr.bf16.mxu0 0
      %1570 = vmatmul.mubr.bf16.gmra.mxu0 %v1379
      %v1571 = vpop.f32.mrf.mxu0
      %v1572 = vadd.f32 0.0, %v1571
      %v1573 = vpop.f32.mrf.mxu0
      %v1574 = vpop.f32.mrf.mxu0
      %v1575 = vadd.f32 0.0, %v1574
      %v1576 = vpop.f32.mrf.mxu0
      %1577 = vmatprep.mubr.bf16.mxu0 0
      %1578 = vmatmul.mubr.bf16.gmra.mxu0 %v1380
      %v1579 = vpop.f32.mrf.mxu0
      %v1580 = vadd.f32 0.0, %v1579
      %v1581 = vpop.f32.mrf.mxu0
      %v1582 = vpop.f32.mrf.mxu0
      %v1583 = vadd.f32 0.0, %v1582
      %v1584 = vpop.f32.mrf.mxu0
      %1585 = vmatprep.mubr.bf16.mxu0 0
      %1586 = vmatmul.mubr.bf16.gmra.mxu0 %v1381
      %v1587 = vpop.f32.mrf.mxu0
      %v1588 = vadd.f32 0.0, %v1587
      %v1589 = vpop.f32.mrf.mxu0
      %v1590 = vpop.f32.mrf.mxu0
      %v1591 = vadd.f32 0.0, %v1590
      %v1592 = vpop.f32.mrf.mxu0
      %1593 = vmatprep.mubr.bf16.mxu0 0
      %1594 = vmatmul.mubr.bf16.gmra.mxu0 %v1382
      %v1595 = vpop.f32.mrf.mxu0
      %v1596 = vadd.f32 0.0, %v1595
      %v1597 = vpop.f32.mrf.mxu0
      %v1598 = vpop.f32.mrf.mxu0
      %v1599 = vadd.f32 0.0, %v1598
      %v1600 = vpop.f32.mrf.mxu0
      %1601 = vmatprep.mubr.bf16.mxu0 0
      %1602 = vmatmul.mubr.bf16.gmra.mxu0 %v1383
      %v1603 = vpop.f32.mrf.mxu0
      %v1604 = vadd.f32 0.0, %v1603
      %v1605 = vpop.f32.mrf.mxu0
      %v1606 = vpop.f32.mrf.mxu0
      %v1607 = vadd.f32 0.0, %v1606
      %v1608 = vpop.f32.mrf.mxu0
      %1609 = vdwg.mxu0
      %v1610 = vadd.f32 %v1304, %v1484
      %v1611 = vadd.f32 %v1305, %v1487
      %v1612 = vadd.f32 %v1306, %v1492
      %v1613 = vadd.f32 %v1307, %v1495
      %v1614 = vadd.f32 %v1308, %v1500
      %v1615 = vadd.f32 %v1309, %v1503
      %v1616 = vadd.f32 %v1310, %v1508
      %v1617 = vadd.f32 %v1311, %v1511
      %v1618 = vadd.f32 %v1312, %v1516
      %v1619 = vadd.f32 %v1313, %v1519
      %v1620 = vadd.f32 %v1314, %v1524
      %v1621 = vadd.f32 %v1315, %v1527
      %v1622 = vadd.f32 %v1316, %v1532
      %v1623 = vadd.f32 %v1317, %v1535
      %v1624 = vadd.f32 %v1318, %v1540
      %v1625 = vadd.f32 %v1319, %v1543
      %v1626 = vadd.f32 %v1320, %v1548
      %v1627 = vadd.f32 %v1321, %v1551
      %v1628 = vadd.f32 %v1322, %v1556
      %v1629 = vadd.f32 %v1323, %v1559
      %v1630 = vadd.f32 %v1324, %v1564
      %v1631 = vadd.f32 %v1325, %v1567
      %v1632 = vadd.f32 %v1326, %v1572
      %v1633 = vadd.f32 %v1327, %v1575
      %v1634 = vadd.f32 %v1328, %v1580
      %v1635 = vadd.f32 %v1329, %v1583
      %v1636 = vadd.f32 %v1330, %v1588
      %v1637 = vadd.f32 %v1331, %v1591
      %v1638 = vadd.f32 %v1332, %v1596
      %v1639 = vadd.f32 %v1333, %v1599
      %v1640 = vadd.f32 %v1334, %v1604
      %v1641 = vadd.f32 %v1335, %v1607
      %v1642 = vld [vmem:[%s450 + $0x1] sm:$0xff]
      %v1643 = vld [vmem:[%s450 + $0x9] sm:$0xff]
      %v1644 = vld [vmem:[%s450 + $0x19] sm:$0xff]
      %v1645 = vld [vmem:[%s450 + $0x21] sm:$0xff]
      %v1646 = vld [vmem:[%s450 + $0x31] sm:$0xff]
      %v1647 = vld [vmem:[%s450 + $0x39] sm:$0xff]
      %v1648 = vld [vmem:[%s450 + $0x49] sm:$0xff]
      %v1649 = vld [vmem:[%s450 + $0x51] sm:$0xff]
      %v1650 = vld [vmem:[%s450 + $0x61] sm:$0xff]
      %v1651 = vld [vmem:[%s450 + $0x69] sm:$0xff]
      %v1652 = vld [vmem:[%s450 + $0x79] sm:$0xff]
      %v1653 = vld [vmem:[%s450 + $0x81] sm:$0xff]
      %v1654 = vld [vmem:[%s450 + $0x91] sm:$0xff]
      %v1655 = vld [vmem:[%s450 + $0x99] sm:$0xff]
      %v1656 = vld [vmem:[%s450 + $0xa9] sm:$0xff]
      %v1657 = vld [vmem:[%s450 + $0xb1] sm:$0xff]
      %v1658 = vld [vmem:[%s450 + $0xc1] sm:$0xff]
      %v1659 = vld [vmem:[%s450 + $0xc9] sm:$0xff]
      %v1660 = vld [vmem:[%s450 + $0xd9] sm:$0xff]
      %v1661 = vld [vmem:[%s450 + $0xe1] sm:$0xff]
      %v1662 = vld [vmem:[%s450 + $0xf1] sm:$0xff]
      %v1663 = vld [vmem:[%s450 + $0xf9] sm:$0xff]
      %v1664 = vld [vmem:[%s450 + $0x109] sm:$0xff]
      %v1665 = vld [vmem:[%s450 + $0x111] sm:$0xff]
      %v1666 = vld [vmem:[%s450 + $0x121] sm:$0xff]
      %v1667 = vld [vmem:[%s450 + $0x129] sm:$0xff]
      %v1668 = vld [vmem:[%s450 + $0x139] sm:$0xff]
      %v1669 = vld [vmem:[%s450 + $0x141] sm:$0xff]
      %v1670 = vld [vmem:[%s450 + $0x151] sm:$0xff]
      %v1671 = vld [vmem:[%s450 + $0x159] sm:$0xff]
      %v1672 = vld [vmem:[%s450 + $0x169] sm:$0xff]
      %v1673 = vld [vmem:[%s450 + $0x171] sm:$0xff]
      %v1674 = vpack.c.bf16 %v1643, %v1642
      %v1675 = vpack.c.bf16 %v1645, %v1644
      %v1676 = vpack.c.bf16 %v1647, %v1646
      %v1677 = vpack.c.bf16 %v1649, %v1648
      %v1678 = vpack.c.bf16 %v1651, %v1650
      %v1679 = vpack.c.bf16 %v1653, %v1652
      %v1680 = vpack.c.bf16 %v1655, %v1654
      %v1681 = vpack.c.bf16 %v1657, %v1656
      %v1682 = vpack.c.bf16 %v1659, %v1658
      %v1683 = vpack.c.bf16 %v1661, %v1660
      %v1684 = vpack.c.bf16 %v1663, %v1662
      %v1685 = vpack.c.bf16 %v1665, %v1664
      %v1686 = vpack.c.bf16 %v1667, %v1666
      %v1687 = vpack.c.bf16 %v1669, %v1668
      %v1688 = vpack.c.bf16 %v1671, %v1670
      %v1689 = vpack.c.bf16 %v1673, %v1672
      %s1690 = scalar_lea.vmem %s3, 256
      %v1691 = vld [vmem:[%s1690] sm:$0xf]
      %v1692 = vld [vmem:[%s1690 + $0x4] sm:$0xf]
      %v1693 = vld [vmem:[%s1690 + $0x8] sm:$0xf]
      %v1694 = vld [vmem:[%s1690 + $0xc] sm:$0xf]
      %v1695 = vld [vmem:[%s1690 + $0x10] sm:$0xf]
      %v1696 = vld [vmem:[%s1690 + $0x14] sm:$0xf]
      %v1697 = vld [vmem:[%s1690 + $0x18] sm:$0xf]
      %v1698 = vld [vmem:[%s1690 + $0x1c] sm:$0xf]
      %v1699 = vld [vmem:[%s1690 + $0x20] sm:$0xf]
      %v1700 = vld [vmem:[%s1690 + $0x24] sm:$0xf]
      %v1701 = vld [vmem:[%s1690 + $0x28] sm:$0xf]
      %v1702 = vld [vmem:[%s1690 + $0x2c] sm:$0xf]
      %v1703 = vld [vmem:[%s1690 + $0x30] sm:$0xf]
      %v1704 = vld [vmem:[%s1690 + $0x34] sm:$0xf]
      %v1705 = vld [vmem:[%s1690 + $0x38] sm:$0xf]
      %v1706 = vld [vmem:[%s1690 + $0x3c] sm:$0xf]
      %v1723 = vunpack.c.l.b16 %v1691
      %v1724 = vunpack.c.l.b16 %v1692
      %v1725 = vunpack.c.l.b16 %v1693
      %v1726 = vunpack.c.l.b16 %v1694
      %v1727 = vunpack.c.l.b16 %v1695
      %v1728 = vunpack.c.l.b16 %v1696
      %v1729 = vunpack.c.l.b16 %v1697
      %v1730 = vunpack.c.l.b16 %v1698
      %v1731 = vunpack.c.l.b16 %v1699
      %v1732 = vunpack.c.l.b16 %v1700
      %v1733 = vunpack.c.l.b16 %v1701
      %v1734 = vunpack.c.l.b16 %v1702
      %v1735 = vunpack.c.l.b16 %v1703
      %v1736 = vunpack.c.l.b16 %v1704
      %v1737 = vunpack.c.l.b16 %v1705
      %v1738 = vunpack.c.l.b16 %v1706
      %v1739 = vpack.c.b16 %v1724, %v1723
      %v1740 = vpack.c.b16 %v1726, %v1725
      %v1741 = vpack.c.b16 %v1728, %v1727
      %v1742 = vpack.c.b16 %v1730, %v1729
      %v1743 = vpack.c.b16 %v1732, %v1731
      %v1744 = vpack.c.b16 %v1734, %v1733
      %v1745 = vpack.c.b16 %v1736, %v1735
      %v1746 = vpack.c.b16 %v1738, %v1737
      %1755 = vmatprep.subr.bf16.mxu0 0
      %1756 = vmatpush1.bf16.msra.mxu0 %v1746
      %1757 = vmatprep.subr.bf16.mxu0 0
      %1758 = vmatpush1.bf16.msra.mxu0 %v1745
      %1759 = vmatprep.subr.bf16.mxu0 0
      %1760 = vmatpush1.bf16.msra.mxu0 %v1744
      %1761 = vmatprep.subr.bf16.mxu0 0
      %1762 = vmatpush1.bf16.msra.mxu0 %v1743
      %1763 = vmatprep.subr.bf16.mxu0 0
      %1764 = vmatpush1.bf16.msra.mxu0 %v1742
      %1765 = vmatprep.subr.bf16.mxu0 0
      %1766 = vmatpush1.bf16.msra.mxu0 %v1741
      %1767 = vmatprep.subr.bf16.mxu0 0
      %1768 = vmatpush1.bf16.msra.mxu0 %v1740
      %1769 = vmatprep.subr.bf16.mxu0 0
      %1770 = vmatpush1.bf16.msra.mxu0 %v1739
      %1771 = vmatprep.subr.bf16.mxu0 0
      %1772 = vmatpush2.bf16.msra.mxu0 0
      %1773 = vmatprep.subr.bf16.mxu0 0
      %1774 = vmatpush2.bf16.msra.mxu0 0
      %1775 = vmatprep.subr.bf16.mxu0 0
      %1776 = vmatpush2.bf16.msra.mxu0 0
      %1777 = vmatprep.subr.bf16.mxu0 0
      %1778 = vmatpush2.bf16.msra.mxu0 0
      %1779 = vmatprep.subr.bf16.mxu0 0
      %1780 = vmatpush2.bf16.msra.mxu0 0
      %1781 = vmatprep.subr.bf16.mxu0 0
      %1782 = vmatpush2.bf16.msra.mxu0 0
      %1783 = vmatprep.subr.bf16.mxu0 0
      %1784 = vmatpush2.bf16.msra.mxu0 0
      %1785 = vmatprep.subr.bf16.mxu0 0
      %1786 = vmatpush2.bf16.msra.mxu0 0
      %1787 = vmatprep.mubr.bf16.mxu0 0
      %1788 = vmatmul.mubr.bf16.gmra.mxu0 %v1674
      %v1789 = vpop.f32.mrf.mxu0
      %v1790 = vadd.f32 0.0, %v1789
      %v1791 = vpop.f32.mrf.mxu0
      %v1792 = vpop.f32.mrf.mxu0
      %v1793 = vadd.f32 0.0, %v1792
      %v1794 = vpop.f32.mrf.mxu0
      %1795 = vmatprep.mubr.bf16.mxu0 0
      %1796 = vmatmul.mubr.bf16.gmra.mxu0 %v1675
      %v1797 = vpop.f32.mrf.mxu0
      %v1798 = vadd.f32 0.0, %v1797
      %v1799 = vpop.f32.mrf.mxu0
      %v1800 = vpop.f32.mrf.mxu0
      %v1801 = vadd.f32 0.0, %v1800
      %v1802 = vpop.f32.mrf.mxu0
      %1803 = vmatprep.mubr.bf16.mxu0 0
      %1804 = vmatmul.mubr.bf16.gmra.mxu0 %v1676
      %v1805 = vpop.f32.mrf.mxu0
      %v1806 = vadd.f32 0.0, %v1805
      %v1807 = vpop.f32.mrf.mxu0
      %v1808 = vpop.f32.mrf.mxu0
      %v1809 = vadd.f32 0.0, %v1808
      %v1810 = vpop.f32.mrf.mxu0
      %1811 = vmatprep.mubr.bf16.mxu0 0
      %1812 = vmatmul.mubr.bf16.gmra.mxu0 %v1677
      %v1813 = vpop.f32.mrf.mxu0
      %v1814 = vadd.f32 0.0, %v1813
      %v1815 = vpop.f32.mrf.mxu0
      %v1816 = vpop.f32.mrf.mxu0
      %v1817 = vadd.f32 0.0, %v1816
      %v1818 = vpop.f32.mrf.mxu0
      %1819 = vmatprep.mubr.bf16.mxu0 0
      %1820 = vmatmul.mubr.bf16.gmra.mxu0 %v1678
      %v1821 = vpop.f32.mrf.mxu0
      %v1822 = vadd.f32 0.0, %v1821
      %v1823 = vpop.f32.mrf.mxu0
      %v1824 = vpop.f32.mrf.mxu0
      %v1825 = vadd.f32 0.0, %v1824
      %v1826 = vpop.f32.mrf.mxu0
      %1827 = vmatprep.mubr.bf16.mxu0 0
      %1828 = vmatmul.mubr.bf16.gmra.mxu0 %v1679
      %v1829 = vpop.f32.mrf.mxu0
      %v1830 = vadd.f32 0.0, %v1829
      %v1831 = vpop.f32.mrf.mxu0
      %v1832 = vpop.f32.mrf.mxu0
      %v1833 = vadd.f32 0.0, %v1832
      %v1834 = vpop.f32.mrf.mxu0
      %1835 = vmatprep.mubr.bf16.mxu0 0
      %1836 = vmatmul.mubr.bf16.gmra.mxu0 %v1680
      %v1837 = vpop.f32.mrf.mxu0
      %v1838 = vadd.f32 0.0, %v1837
      %v1839 = vpop.f32.mrf.mxu0
      %v1840 = vpop.f32.mrf.mxu0
      %v1841 = vadd.f32 0.0, %v1840
      %v1842 = vpop.f32.mrf.mxu0
      %1843 = vmatprep.mubr.bf16.mxu0 0
      %1844 = vmatmul.mubr.bf16.gmra.mxu0 %v1681
      %v1845 = vpop.f32.mrf.mxu0
      %v1846 = vadd.f32 0.0, %v1845
      %v1847 = vpop.f32.mrf.mxu0
      %v1848 = vpop.f32.mrf.mxu0
      %v1849 = vadd.f32 0.0, %v1848
      %v1850 = vpop.f32.mrf.mxu0
      %1851 = vmatprep.mubr.bf16.mxu0 0
      %1852 = vmatmul.mubr.bf16.gmra.mxu0 %v1682
      %v1853 = vpop.f32.mrf.mxu0
      %v1854 = vadd.f32 0.0, %v1853
      %v1855 = vpop.f32.mrf.mxu0
      %v1856 = vpop.f32.mrf.mxu0
      %v1857 = vadd.f32 0.0, %v1856
      %v1858 = vpop.f32.mrf.mxu0
      %1859 = vmatprep.mubr.bf16.mxu0 0
      %1860 = vmatmul.mubr.bf16.gmra.mxu0 %v1683
      %v1861 = vpop.f32.mrf.mxu0
      %v1862 = vadd.f32 0.0, %v1861
      %v1863 = vpop.f32.mrf.mxu0
      %v1864 = vpop.f32.mrf.mxu0
      %v1865 = vadd.f32 0.0, %v1864
      %v1866 = vpop.f32.mrf.mxu0
      %1867 = vmatprep.mubr.bf16.mxu0 0
      %1868 = vmatmul.mubr.bf16.gmra.mxu0 %v1684
      %v1869 = vpop.f32.mrf.mxu0
      %v1870 = vadd.f32 0.0, %v1869
      %v1871 = vpop.f32.mrf.mxu0
      %v1872 = vpop.f32.mrf.mxu0
      %v1873 = vadd.f32 0.0, %v1872
      %v1874 = vpop.f32.mrf.mxu0
      %1875 = vmatprep.mubr.bf16.mxu0 0
      %1876 = vmatmul.mubr.bf16.gmra.mxu0 %v1685
      %v1877 = vpop.f32.mrf.mxu0
      %v1878 = vadd.f32 0.0, %v1877
      %v1879 = vpop.f32.mrf.mxu0
      %v1880 = vpop.f32.mrf.mxu0
      %v1881 = vadd.f32 0.0, %v1880
      %v1882 = vpop.f32.mrf.mxu0
      %1883 = vmatprep.mubr.bf16.mxu0 0
      %1884 = vmatmul.mubr.bf16.gmra.mxu0 %v1686
      %v1885 = vpop.f32.mrf.mxu0
      %v1886 = vadd.f32 0.0, %v1885
      %v1887 = vpop.f32.mrf.mxu0
      %v1888 = vpop.f32.mrf.mxu0
      %v1889 = vadd.f32 0.0, %v1888
      %v1890 = vpop.f32.mrf.mxu0
      %1891 = vmatprep.mubr.bf16.mxu0 0
      %1892 = vmatmul.mubr.bf16.gmra.mxu0 %v1687
      %v1893 = vpop.f32.mrf.mxu0
      %v1894 = vadd.f32 0.0, %v1893
      %v1895 = vpop.f32.mrf.mxu0
      %v1896 = vpop.f32.mrf.mxu0
      %v1897 = vadd.f32 0.0, %v1896
      %v1898 = vpop.f32.mrf.mxu0
      %1899 = vmatprep.mubr.bf16.mxu0 0
      %1900 = vmatmul.mubr.bf16.gmra.mxu0 %v1688
      %v1901 = vpop.f32.mrf.mxu0
      %v1902 = vadd.f32 0.0, %v1901
      %v1903 = vpop.f32.mrf.mxu0
      %v1904 = vpop.f32.mrf.mxu0
      %v1905 = vadd.f32 0.0, %v1904
      %v1906 = vpop.f32.mrf.mxu0
      %1907 = vmatprep.mubr.bf16.mxu0 0
      %1908 = vmatmul.mubr.bf16.gmra.mxu0 %v1689
      %v1909 = vpop.f32.mrf.mxu0
      %v1910 = vadd.f32 0.0, %v1909
      %v1911 = vpop.f32.mrf.mxu0
      %v1912 = vpop.f32.mrf.mxu0
      %v1913 = vadd.f32 0.0, %v1912
      %v1914 = vpop.f32.mrf.mxu0
      %1915 = vdwg.mxu0
      %v1916 = vadd.f32 %v1610, %v1790
      %v1917 = vadd.f32 %v1611, %v1793
      %v1918 = vadd.f32 %v1612, %v1798
      %v1919 = vadd.f32 %v1613, %v1801
      %v1920 = vadd.f32 %v1614, %v1806
      %v1921 = vadd.f32 %v1615, %v1809
      %v1922 = vadd.f32 %v1616, %v1814
      %v1923 = vadd.f32 %v1617, %v1817
      %v1924 = vadd.f32 %v1618, %v1822
      %v1925 = vadd.f32 %v1619, %v1825
      %v1926 = vadd.f32 %v1620, %v1830
      %v1927 = vadd.f32 %v1621, %v1833
      %v1928 = vadd.f32 %v1622, %v1838
      %v1929 = vadd.f32 %v1623, %v1841
      %v1930 = vadd.f32 %v1624, %v1846
      %v1931 = vadd.f32 %v1625, %v1849
      %v1932 = vadd.f32 %v1626, %v1854
      %v1933 = vadd.f32 %v1627, %v1857
      %v1934 = vadd.f32 %v1628, %v1862
      %v1935 = vadd.f32 %v1629, %v1865
      %v1936 = vadd.f32 %v1630, %v1870
      %v1937 = vadd.f32 %v1631, %v1873
      %v1938 = vadd.f32 %v1632, %v1878
      %v1939 = vadd.f32 %v1633, %v1881
      %v1940 = vadd.f32 %v1634, %v1886
      %v1941 = vadd.f32 %v1635, %v1889
      %v1942 = vadd.f32 %v1636, %v1894
      %v1943 = vadd.f32 %v1637, %v1897
      %v1944 = vadd.f32 %v1638, %v1902
      %v1945 = vadd.f32 %v1639, %v1905
      %v1946 = vadd.f32 %v1640, %v1910
      %v1947 = vadd.f32 %v1641, %v1913
      %v1948 = vld [vmem:[%s450 + $0x2] sm:$0xff]
      %v1949 = vld [vmem:[%s450 + $0xa] sm:$0xff]
      %v1950 = vld [vmem:[%s450 + $0x1a] sm:$0xff]
      %v1951 = vld [vmem:[%s450 + $0x22] sm:$0xff]
      %v1952 = vld [vmem:[%s450 + $0x32] sm:$0xff]
      %v1953 = vld [vmem:[%s450 + $0x3a] sm:$0xff]
      %v1954 = vld [vmem:[%s450 + $0x4a] sm:$0xff]
      %v1955 = vld [vmem:[%s450 + $0x52] sm:$0xff]
      %v1956 = vld [vmem:[%s450 + $0x62] sm:$0xff]
      %v1957 = vld [vmem:[%s450 + $0x6a] sm:$0xff]
      %v1958 = vld [vmem:[%s450 + $0x7a] sm:$0xff]
      %v1959 = vld [vmem:[%s450 + $0x82] sm:$0xff]
      %v1960 = vld [vmem:[%s450 + $0x92] sm:$0xff]
      %v1961 = vld [vmem:[%s450 + $0x9a] sm:$0xff]
      %v1962 = vld [vmem:[%s450 + $0xaa] sm:$0xff]
      %v1963 = vld [vmem:[%s450 + $0xb2] sm:$0xff]
      %v1964 = vld [vmem:[%s450 + $0xc2] sm:$0xff]
      %v1965 = vld [vmem:[%s450 + $0xca] sm:$0xff]
      %v1966 = vld [vmem:[%s450 + $0xda] sm:$0xff]
      %v1967 = vld [vmem:[%s450 + $0xe2] sm:$0xff]
      %v1968 = vld [vmem:[%s450 + $0xf2] sm:$0xff]
      %v1969 = vld [vmem:[%s450 + $0xfa] sm:$0xff]
      %v1970 = vld [vmem:[%s450 + $0x10a] sm:$0xff]
      %v1971 = vld [vmem:[%s450 + $0x112] sm:$0xff]
      %v1972 = vld [vmem:[%s450 + $0x122] sm:$0xff]
      %v1973 = vld [vmem:[%s450 + $0x12a] sm:$0xff]
      %v1974 = vld [vmem:[%s450 + $0x13a] sm:$0xff]
      %v1975 = vld [vmem:[%s450 + $0x142] sm:$0xff]
      %v1976 = vld [vmem:[%s450 + $0x152] sm:$0xff]
      %v1977 = vld [vmem:[%s450 + $0x15a] sm:$0xff]
      %v1978 = vld [vmem:[%s450 + $0x16a] sm:$0xff]
      %v1979 = vld [vmem:[%s450 + $0x172] sm:$0xff]
      %v1980 = vpack.c.bf16 %v1949, %v1948
      %v1981 = vpack.c.bf16 %v1951, %v1950
      %v1982 = vpack.c.bf16 %v1953, %v1952
      %v1983 = vpack.c.bf16 %v1955, %v1954
      %v1984 = vpack.c.bf16 %v1957, %v1956
      %v1985 = vpack.c.bf16 %v1959, %v1958
      %v1986 = vpack.c.bf16 %v1961, %v1960
      %v1987 = vpack.c.bf16 %v1963, %v1962
      %v1988 = vpack.c.bf16 %v1965, %v1964
      %v1989 = vpack.c.bf16 %v1967, %v1966
      %v1990 = vpack.c.bf16 %v1969, %v1968
      %v1991 = vpack.c.bf16 %v1971, %v1970
      %v1992 = vpack.c.bf16 %v1973, %v1972
      %v1993 = vpack.c.bf16 %v1975, %v1974
      %v1994 = vpack.c.bf16 %v1977, %v1976
      %v1995 = vpack.c.bf16 %v1979, %v1978
      %s1996 = scalar_lea.vmem %s3, 320
      %v1997 = vld [vmem:[%s1996] sm:$0xf]
      %v1998 = vld [vmem:[%s1996 + $0x4] sm:$0xf]
      %v1999 = vld [vmem:[%s1996 + $0x8] sm:$0xf]
      %v2000 = vld [vmem:[%s1996 + $0xc] sm:$0xf]
      %v2001 = vld [vmem:[%s1996 + $0x10] sm:$0xf]
      %v2002 = vld [vmem:[%s1996 + $0x14] sm:$0xf]
      %v2003 = vld [vmem:[%s1996 + $0x18] sm:$0xf]
      %v2004 = vld [vmem:[%s1996 + $0x1c] sm:$0xf]
      %v2005 = vld [vmem:[%s1996 + $0x20] sm:$0xf]
      %v2006 = vld [vmem:[%s1996 + $0x24] sm:$0xf]
      %v2007 = vld [vmem:[%s1996 + $0x28] sm:$0xf]
      %v2008 = vld [vmem:[%s1996 + $0x2c] sm:$0xf]
      %v2009 = vld [vmem:[%s1996 + $0x30] sm:$0xf]
      %v2010 = vld [vmem:[%s1996 + $0x34] sm:$0xf]
      %v2011 = vld [vmem:[%s1996 + $0x38] sm:$0xf]
      %v2012 = vld [vmem:[%s1996 + $0x3c] sm:$0xf]
      %v2029 = vunpack.c.l.b16 %v1997
      %v2030 = vunpack.c.l.b16 %v1998
      %v2031 = vunpack.c.l.b16 %v1999
      %v2032 = vunpack.c.l.b16 %v2000
      %v2033 = vunpack.c.l.b16 %v2001
      %v2034 = vunpack.c.l.b16 %v2002
      %v2035 = vunpack.c.l.b16 %v2003
      %v2036 = vunpack.c.l.b16 %v2004
      %v2037 = vunpack.c.l.b16 %v2005
      %v2038 = vunpack.c.l.b16 %v2006
      %v2039 = vunpack.c.l.b16 %v2007
      %v2040 = vunpack.c.l.b16 %v2008
      %v2041 = vunpack.c.l.b16 %v2009
      %v2042 = vunpack.c.l.b16 %v2010
      %v2043 = vunpack.c.l.b16 %v2011
      %v2044 = vunpack.c.l.b16 %v2012
      %v2045 = vpack.c.b16 %v2030, %v2029
      %v2046 = vpack.c.b16 %v2032, %v2031
      %v2047 = vpack.c.b16 %v2034, %v2033
      %v2048 = vpack.c.b16 %v2036, %v2035
      %v2049 = vpack.c.b16 %v2038, %v2037
      %v2050 = vpack.c.b16 %v2040, %v2039
      %v2051 = vpack.c.b16 %v2042, %v2041
      %v2052 = vpack.c.b16 %v2044, %v2043
      %2061 = vmatprep.subr.bf16.mxu0 0
      %2062 = vmatpush1.bf16.msra.mxu0 %v2052
      %2063 = vmatprep.subr.bf16.mxu0 0
      %2064 = vmatpush1.bf16.msra.mxu0 %v2051
      %2065 = vmatprep.subr.bf16.mxu0 0
      %2066 = vmatpush1.bf16.msra.mxu0 %v2050
      %2067 = vmatprep.subr.bf16.mxu0 0
      %2068 = vmatpush1.bf16.msra.mxu0 %v2049
      %2069 = vmatprep.subr.bf16.mxu0 0
      %2070 = vmatpush1.bf16.msra.mxu0 %v2048
      %2071 = vmatprep.subr.bf16.mxu0 0
      %2072 = vmatpush1.bf16.msra.mxu0 %v2047
      %2073 = vmatprep.subr.bf16.mxu0 0
      %2074 = vmatpush1.bf16.msra.mxu0 %v2046
      %2075 = vmatprep.subr.bf16.mxu0 0
      %2076 = vmatpush1.bf16.msra.mxu0 %v2045
      %2077 = vmatprep.subr.bf16.mxu0 0
      %2078 = vmatpush2.bf16.msra.mxu0 0
      %2079 = vmatprep.subr.bf16.mxu0 0
      %2080 = vmatpush2.bf16.msra.mxu0 0
      %2081 = vmatprep.subr.bf16.mxu0 0
      %2082 = vmatpush2.bf16.msra.mxu0 0
      %2083 = vmatprep.subr.bf16.mxu0 0
      %2084 = vmatpush2.bf16.msra.mxu0 0
      %2085 = vmatprep.subr.bf16.mxu0 0
      %2086 = vmatpush2.bf16.msra.mxu0 0
      %2087 = vmatprep.subr.bf16.mxu0 0
      %2088 = vmatpush2.bf16.msra.mxu0 0
      %2089 = vmatprep.subr.bf16.mxu0 0
      %2090 = vmatpush2.bf16.msra.mxu0 0
      %2091 = vmatprep.subr.bf16.mxu0 0
      %2092 = vmatpush2.bf16.msra.mxu0 0
      %2093 = vmatprep.mubr.bf16.mxu0 0
      %2094 = vmatmul.mubr.bf16.gmra.mxu0 %v1980
      %v2095 = vpop.f32.mrf.mxu0
      %v2096 = vadd.f32 0.0, %v2095
      %v2097 = vpop.f32.mrf.mxu0
      %v2098 = vpop.f32.mrf.mxu0
      %v2099 = vadd.f32 0.0, %v2098
      %v2100 = vpop.f32.mrf.mxu0
      %2101 = vmatprep.mubr.bf16.mxu0 0
      %2102 = vmatmul.mubr.bf16.gmra.mxu0 %v1981
      %v2103 = vpop.f32.mrf.mxu0
      %v2104 = vadd.f32 0.0, %v2103
      %v2105 = vpop.f32.mrf.mxu0
      %v2106 = vpop.f32.mrf.mxu0
      %v2107 = vadd.f32 0.0, %v2106
      %v2108 = vpop.f32.mrf.mxu0
      %2109 = vmatprep.mubr.bf16.mxu0 0
      %2110 = vmatmul.mubr.bf16.gmra.mxu0 %v1982
      %v2111 = vpop.f32.mrf.mxu0
      %v2112 = vadd.f32 0.0, %v2111
      %v2113 = vpop.f32.mrf.mxu0
      %v2114 = vpop.f32.mrf.mxu0
      %v2115 = vadd.f32 0.0, %v2114
      %v2116 = vpop.f32.mrf.mxu0
      %2117 = vmatprep.mubr.bf16.mxu0 0
      %2118 = vmatmul.mubr.bf16.gmra.mxu0 %v1983
      %v2119 = vpop.f32.mrf.mxu0
      %v2120 = vadd.f32 0.0, %v2119
      %v2121 = vpop.f32.mrf.mxu0
      %v2122 = vpop.f32.mrf.mxu0
      %v2123 = vadd.f32 0.0, %v2122
      %v2124 = vpop.f32.mrf.mxu0
      %2125 = vmatprep.mubr.bf16.mxu0 0
      %2126 = vmatmul.mubr.bf16.gmra.mxu0 %v1984
      %v2127 = vpop.f32.mrf.mxu0
      %v2128 = vadd.f32 0.0, %v2127
      %v2129 = vpop.f32.mrf.mxu0
      %v2130 = vpop.f32.mrf.mxu0
      %v2131 = vadd.f32 0.0, %v2130
      %v2132 = vpop.f32.mrf.mxu0
      %2133 = vmatprep.mubr.bf16.mxu0 0
      %2134 = vmatmul.mubr.bf16.gmra.mxu0 %v1985
      %v2135 = vpop.f32.mrf.mxu0
      %v2136 = vadd.f32 0.0, %v2135
      %v2137 = vpop.f32.mrf.mxu0
      %v2138 = vpop.f32.mrf.mxu0
      %v2139 = vadd.f32 0.0, %v2138
      %v2140 = vpop.f32.mrf.mxu0
      %2141 = vmatprep.mubr.bf16.mxu0 0
      %2142 = vmatmul.mubr.bf16.gmra.mxu0 %v1986
      %v2143 = vpop.f32.mrf.mxu0
      %v2144 = vadd.f32 0.0, %v2143
      %v2145 = vpop.f32.mrf.mxu0
      %v2146 = vpop.f32.mrf.mxu0
      %v2147 = vadd.f32 0.0, %v2146
      %v2148 = vpop.f32.mrf.mxu0
      %2149 = vmatprep.mubr.bf16.mxu0 0
      %2150 = vmatmul.mubr.bf16.gmra.mxu0 %v1987
      %v2151 = vpop.f32.mrf.mxu0
      %v2152 = vadd.f32 0.0, %v2151
      %v2153 = vpop.f32.mrf.mxu0
      %v2154 = vpop.f32.mrf.mxu0
      %v2155 = vadd.f32 0.0, %v2154
      %v2156 = vpop.f32.mrf.mxu0
      %2157 = vmatprep.mubr.bf16.mxu0 0
      %2158 = vmatmul.mubr.bf16.gmra.mxu0 %v1988
      %v2159 = vpop.f32.mrf.mxu0
      %v2160 = vadd.f32 0.0, %v2159
      %v2161 = vpop.f32.mrf.mxu0
      %v2162 = vpop.f32.mrf.mxu0
      %v2163 = vadd.f32 0.0, %v2162
      %v2164 = vpop.f32.mrf.mxu0
      %2165 = vmatprep.mubr.bf16.mxu0 0
      %2166 = vmatmul.mubr.bf16.gmra.mxu0 %v1989
      %v2167 = vpop.f32.mrf.mxu0
      %v2168 = vadd.f32 0.0, %v2167
      %v2169 = vpop.f32.mrf.mxu0
      %v2170 = vpop.f32.mrf.mxu0
      %v2171 = vadd.f32 0.0, %v2170
      %v2172 = vpop.f32.mrf.mxu0
      %2173 = vmatprep.mubr.bf16.mxu0 0
      %2174 = vmatmul.mubr.bf16.gmra.mxu0 %v1990
      %v2175 = vpop.f32.mrf.mxu0
      %v2176 = vadd.f32 0.0, %v2175
      %v2177 = vpop.f32.mrf.mxu0
      %v2178 = vpop.f32.mrf.mxu0
      %v2179 = vadd.f32 0.0, %v2178
      %v2180 = vpop.f32.mrf.mxu0
      %2181 = vmatprep.mubr.bf16.mxu0 0
      %2182 = vmatmul.mubr.bf16.gmra.mxu0 %v1991
      %v2183 = vpop.f32.mrf.mxu0
      %v2184 = vadd.f32 0.0, %v2183
      %v2185 = vpop.f32.mrf.mxu0
      %v2186 = vpop.f32.mrf.mxu0
      %v2187 = vadd.f32 0.0, %v2186
      %v2188 = vpop.f32.mrf.mxu0
      %2189 = vmatprep.mubr.bf16.mxu0 0
      %2190 = vmatmul.mubr.bf16.gmra.mxu0 %v1992
      %v2191 = vpop.f32.mrf.mxu0
      %v2192 = vadd.f32 0.0, %v2191
      %v2193 = vpop.f32.mrf.mxu0
      %v2194 = vpop.f32.mrf.mxu0
      %v2195 = vadd.f32 0.0, %v2194
      %v2196 = vpop.f32.mrf.mxu0
      %2197 = vmatprep.mubr.bf16.mxu0 0
      %2198 = vmatmul.mubr.bf16.gmra.mxu0 %v1993
      %v2199 = vpop.f32.mrf.mxu0
      %v2200 = vadd.f32 0.0, %v2199
      %v2201 = vpop.f32.mrf.mxu0
      %v2202 = vpop.f32.mrf.mxu0
      %v2203 = vadd.f32 0.0, %v2202
      %v2204 = vpop.f32.mrf.mxu0
      %2205 = vmatprep.mubr.bf16.mxu0 0
      %2206 = vmatmul.mubr.bf16.gmra.mxu0 %v1994
      %v2207 = vpop.f32.mrf.mxu0
      %v2208 = vadd.f32 0.0, %v2207
      %v2209 = vpop.f32.mrf.mxu0
      %v2210 = vpop.f32.mrf.mxu0
      %v2211 = vadd.f32 0.0, %v2210
      %v2212 = vpop.f32.mrf.mxu0
      %2213 = vmatprep.mubr.bf16.mxu0 0
      %2214 = vmatmul.mubr.bf16.gmra.mxu0 %v1995
      %v2215 = vpop.f32.mrf.mxu0
      %v2216 = vadd.f32 0.0, %v2215
      %v2217 = vpop.f32.mrf.mxu0
      %v2218 = vpop.f32.mrf.mxu0
      %v2219 = vadd.f32 0.0, %v2218
      %v2220 = vpop.f32.mrf.mxu0
      %2221 = vdwg.mxu0
      %v2222 = vadd.f32 %v1916, %v2096
      %v2223 = vadd.f32 %v1917, %v2099
      %v2224 = vadd.f32 %v1918, %v2104
      %v2225 = vadd.f32 %v1919, %v2107
      %v2226 = vadd.f32 %v1920, %v2112
      %v2227 = vadd.f32 %v1921, %v2115
      %v2228 = vadd.f32 %v1922, %v2120
      %v2229 = vadd.f32 %v1923, %v2123
      %v2230 = vadd.f32 %v1924, %v2128
      %v2231 = vadd.f32 %v1925, %v2131
      %v2232 = vadd.f32 %v1926, %v2136
      %v2233 = vadd.f32 %v1927, %v2139
      %v2234 = vadd.f32 %v1928, %v2144
      %v2235 = vadd.f32 %v1929, %v2147
      %v2236 = vadd.f32 %v1930, %v2152
      %v2237 = vadd.f32 %v1931, %v2155
      %v2238 = vadd.f32 %v1932, %v2160
      %v2239 = vadd.f32 %v1933, %v2163
      %v2240 = vadd.f32 %v1934, %v2168
      %v2241 = vadd.f32 %v1935, %v2171
      %v2242 = vadd.f32 %v1936, %v2176
      %v2243 = vadd.f32 %v1937, %v2179
      %v2244 = vadd.f32 %v1938, %v2184
      %v2245 = vadd.f32 %v1939, %v2187
      %v2246 = vadd.f32 %v1940, %v2192
      %v2247 = vadd.f32 %v1941, %v2195
      %v2248 = vadd.f32 %v1942, %v2200
      %v2249 = vadd.f32 %v1943, %v2203
      %v2250 = vadd.f32 %v1944, %v2208
      %v2251 = vadd.f32 %v1945, %v2211
      %v2252 = vadd.f32 %v1946, %v2216
      %v2253 = vadd.f32 %v1947, %v2219
      %s2254 = scalar_lea.vmem [#allocation2], 48
      %v2255 = vld [vmem:[%s2254] sm:$0xff]
      %v2256 = vld [vmem:[%s2254 + $0x8] sm:$0xff]
      %v2257 = vld [vmem:[%s2254 + $0x18] sm:$0xff]
      %v2258 = vld [vmem:[%s2254 + $0x20] sm:$0xff]
      %v2259 = vld [vmem:[%s2254 + $0x30] sm:$0xff]
      %v2260 = vld [vmem:[%s2254 + $0x38] sm:$0xff]
      %v2261 = vld [vmem:[%s2254 + $0x48] sm:$0xff]
      %v2262 = vld [vmem:[%s2254 + $0x50] sm:$0xff]
      %v2263 = vld [vmem:[%s2254 + $0x60] sm:$0xff]
      %v2264 = vld [vmem:[%s2254 + $0x68] sm:$0xff]
      %v2265 = vld [vmem:[%s2254 + $0x78] sm:$0xff]
      %v2266 = vld [vmem:[%s2254 + $0x80] sm:$0xff]
      %v2267 = vld [vmem:[%s2254 + $0x90] sm:$0xff]
      %v2268 = vld [vmem:[%s2254 + $0x98] sm:$0xff]
      %v2269 = vld [vmem:[%s2254 + $0xa8] sm:$0xff]
      %v2270 = vld [vmem:[%s2254 + $0xb0] sm:$0xff]
      %v2271 = vld [vmem:[%s2254 + $0xc0] sm:$0xff]
      %v2272 = vld [vmem:[%s2254 + $0xc8] sm:$0xff]
      %v2273 = vld [vmem:[%s2254 + $0xd8] sm:$0xff]
      %v2274 = vld [vmem:[%s2254 + $0xe0] sm:$0xff]
      %v2275 = vld [vmem:[%s2254 + $0xf0] sm:$0xff]
      %v2276 = vld [vmem:[%s2254 + $0xf8] sm:$0xff]
      %v2277 = vld [vmem:[%s2254 + $0x108] sm:$0xff]
      %v2278 = vld [vmem:[%s2254 + $0x110] sm:$0xff]
      %v2279 = vld [vmem:[%s2254 + $0x120] sm:$0xff]
      %v2280 = vld [vmem:[%s2254 + $0x128] sm:$0xff]
      %v2281 = vld [vmem:[%s2254 + $0x138] sm:$0xff]
      %v2282 = vld [vmem:[%s2254 + $0x140] sm:$0xff]
      %v2283 = vld [vmem:[%s2254 + $0x150] sm:$0xff]
      %v2284 = vld [vmem:[%s2254 + $0x158] sm:$0xff]
      %v2285 = vld [vmem:[%s2254 + $0x168] sm:$0xff]
      %v2286 = vld [vmem:[%s2254 + $0x170] sm:$0xff]
      %v2287 = vpack.c.bf16 %v2256, %v2255
      %v2288 = vpack.c.bf16 %v2258, %v2257
      %v2289 = vpack.c.bf16 %v2260, %v2259
      %v2290 = vpack.c.bf16 %v2262, %v2261
      %v2291 = vpack.c.bf16 %v2264, %v2263
      %v2292 = vpack.c.bf16 %v2266, %v2265
      %v2293 = vpack.c.bf16 %v2268, %v2267
      %v2294 = vpack.c.bf16 %v2270, %v2269
      %v2295 = vpack.c.bf16 %v2272, %v2271
      %v2296 = vpack.c.bf16 %v2274, %v2273
      %v2297 = vpack.c.bf16 %v2276, %v2275
      %v2298 = vpack.c.bf16 %v2278, %v2277
      %v2299 = vpack.c.bf16 %v2280, %v2279
      %v2300 = vpack.c.bf16 %v2282, %v2281
      %v2301 = vpack.c.bf16 %v2284, %v2283
      %v2302 = vpack.c.bf16 %v2286, %v2285
      %s2303 = scalar_lea.vmem %s3, 384
      %v2304 = vld [vmem:[%s2303] sm:$0xf]
      %v2305 = vld [vmem:[%s2303 + $0x4] sm:$0xf]
      %v2306 = vld [vmem:[%s2303 + $0x8] sm:$0xf]
      %v2307 = vld [vmem:[%s2303 + $0xc] sm:$0xf]
      %v2308 = vld [vmem:[%s2303 + $0x10] sm:$0xf]
      %v2309 = vld [vmem:[%s2303 + $0x14] sm:$0xf]
      %v2310 = vld [vmem:[%s2303 + $0x18] sm:$0xf]
      %v2311 = vld [vmem:[%s2303 + $0x1c] sm:$0xf]
      %v2312 = vld [vmem:[%s2303 + $0x20] sm:$0xf]
      %v2313 = vld [vmem:[%s2303 + $0x24] sm:$0xf]
      %v2314 = vld [vmem:[%s2303 + $0x28] sm:$0xf]
      %v2315 = vld [vmem:[%s2303 + $0x2c] sm:$0xf]
      %v2316 = vld [vmem:[%s2303 + $0x30] sm:$0xf]
      %v2317 = vld [vmem:[%s2303 + $0x34] sm:$0xf]
      %v2318 = vld [vmem:[%s2303 + $0x38] sm:$0xf]
      %v2319 = vld [vmem:[%s2303 + $0x3c] sm:$0xf]
      %v2336 = vunpack.c.l.b16 %v2304
      %v2337 = vunpack.c.l.b16 %v2305
      %v2338 = vunpack.c.l.b16 %v2306
      %v2339 = vunpack.c.l.b16 %v2307
      %v2340 = vunpack.c.l.b16 %v2308
      %v2341 = vunpack.c.l.b16 %v2309
      %v2342 = vunpack.c.l.b16 %v2310
      %v2343 = vunpack.c.l.b16 %v2311
      %v2344 = vunpack.c.l.b16 %v2312
      %v2345 = vunpack.c.l.b16 %v2313
      %v2346 = vunpack.c.l.b16 %v2314
      %v2347 = vunpack.c.l.b16 %v2315
      %v2348 = vunpack.c.l.b16 %v2316
      %v2349 = vunpack.c.l.b16 %v2317
      %v2350 = vunpack.c.l.b16 %v2318
      %v2351 = vunpack.c.l.b16 %v2319
      %v2352 = vpack.c.b16 %v2337, %v2336
      %v2353 = vpack.c.b16 %v2339, %v2338
      %v2354 = vpack.c.b16 %v2341, %v2340
      %v2355 = vpack.c.b16 %v2343, %v2342
      %v2356 = vpack.c.b16 %v2345, %v2344
      %v2357 = vpack.c.b16 %v2347, %v2346
      %v2358 = vpack.c.b16 %v2349, %v2348
      %v2359 = vpack.c.b16 %v2351, %v2350
      %2368 = vmatprep.subr.bf16.mxu0 0
      %2369 = vmatpush1.bf16.msra.mxu0 %v2359
      %2370 = vmatprep.subr.bf16.mxu0 0
      %2371 = vmatpush1.bf16.msra.mxu0 %v2358
      %2372 = vmatprep.subr.bf16.mxu0 0
      %2373 = vmatpush1.bf16.msra.mxu0 %v2357
      %2374 = vmatprep.subr.bf16.mxu0 0
      %2375 = vmatpush1.bf16.msra.mxu0 %v2356
      %2376 = vmatprep.subr.bf16.mxu0 0
      %2377 = vmatpush1.bf16.msra.mxu0 %v2355
      %2378 = vmatprep.subr.bf16.mxu0 0
      %2379 = vmatpush1.bf16.msra.mxu0 %v2354
      %2380 = vmatprep.subr.bf16.mxu0 0
      %2381 = vmatpush1.bf16.msra.mxu0 %v2353
      %2382 = vmatprep.subr.bf16.mxu0 0
      %2383 = vmatpush1.bf16.msra.mxu0 %v2352
      %2384 = vmatprep.subr.bf16.mxu0 0
      %2385 = vmatpush2.bf16.msra.mxu0 0
      %2386 = vmatprep.subr.bf16.mxu0 0
      %2387 = vmatpush2.bf16.msra.mxu0 0
      %2388 = vmatprep.subr.bf16.mxu0 0
      %2389 = vmatpush2.bf16.msra.mxu0 0
      %2390 = vmatprep.subr.bf16.mxu0 0
      %2391 = vmatpush2.bf16.msra.mxu0 0
      %2392 = vmatprep.subr.bf16.mxu0 0
      %2393 = vmatpush2.bf16.msra.mxu0 0
      %2394 = vmatprep.subr.bf16.mxu0 0
      %2395 = vmatpush2.bf16.msra.mxu0 0
      %2396 = vmatprep.subr.bf16.mxu0 0
      %2397 = vmatpush2.bf16.msra.mxu0 0
      %2398 = vmatprep.subr.bf16.mxu0 0
      %2399 = vmatpush2.bf16.msra.mxu0 0
      %2400 = vmatprep.mubr.bf16.mxu0 0
      %2401 = vmatmul.mubr.bf16.gmra.mxu0 %v2287
      %v2402 = vpop.f32.mrf.mxu0
      %v2403 = vadd.f32 0.0, %v2402
      %v2404 = vpop.f32.mrf.mxu0
      %v2405 = vpop.f32.mrf.mxu0
      %v2406 = vadd.f32 0.0, %v2405
      %v2407 = vpop.f32.mrf.mxu0
      %2408 = vmatprep.mubr.bf16.mxu0 0
      %2409 = vmatmul.mubr.bf16.gmra.mxu0 %v2288
      %v2410 = vpop.f32.mrf.mxu0
      %v2411 = vadd.f32 0.0, %v2410
      %v2412 = vpop.f32.mrf.mxu0
      %v2413 = vpop.f32.mrf.mxu0
      %v2414 = vadd.f32 0.0, %v2413
      %v2415 = vpop.f32.mrf.mxu0
      %2416 = vmatprep.mubr.bf16.mxu0 0
      %2417 = vmatmul.mubr.bf16.gmra.mxu0 %v2289
      %v2418 = vpop.f32.mrf.mxu0
      %v2419 = vadd.f32 0.0, %v2418
      %v2420 = vpop.f32.mrf.mxu0
      %v2421 = vpop.f32.mrf.mxu0
      %v2422 = vadd.f32 0.0, %v2421
      %v2423 = vpop.f32.mrf.mxu0
      %2424 = vmatprep.mubr.bf16.mxu0 0
      %2425 = vmatmul.mubr.bf16.gmra.mxu0 %v2290
      %v2426 = vpop.f32.mrf.mxu0
      %v2427 = vadd.f32 0.0, %v2426
      %v2428 = vpop.f32.mrf.mxu0
      %v2429 = vpop.f32.mrf.mxu0
      %v2430 = vadd.f32 0.0, %v2429
      %v2431 = vpop.f32.mrf.mxu0
      %2432 = vmatprep.mubr.bf16.mxu0 0
      %2433 = vmatmul.mubr.bf16.gmra.mxu0 %v2291
      %v2434 = vpop.f32.mrf.mxu0
      %v2435 = vadd.f32 0.0, %v2434
      %v2436 = vpop.f32.mrf.mxu0
      %v2437 = vpop.f32.mrf.mxu0
      %v2438 = vadd.f32 0.0, %v2437
      %v2439 = vpop.f32.mrf.mxu0
      %2440 = vmatprep.mubr.bf16.mxu0 0
      %2441 = vmatmul.mubr.bf16.gmra.mxu0 %v2292
      %v2442 = vpop.f32.mrf.mxu0
      %v2443 = vadd.f32 0.0, %v2442
      %v2444 = vpop.f32.mrf.mxu0
      %v2445 = vpop.f32.mrf.mxu0
      %v2446 = vadd.f32 0.0, %v2445
      %v2447 = vpop.f32.mrf.mxu0
      %2448 = vmatprep.mubr.bf16.mxu0 0
      %2449 = vmatmul.mubr.bf16.gmra.mxu0 %v2293
      %v2450 = vpop.f32.mrf.mxu0
      %v2451 = vadd.f32 0.0, %v2450
      %v2452 = vpop.f32.mrf.mxu0
      %v2453 = vpop.f32.mrf.mxu0
      %v2454 = vadd.f32 0.0, %v2453
      %v2455 = vpop.f32.mrf.mxu0
      %2456 = vmatprep.mubr.bf16.mxu0 0
      %2457 = vmatmul.mubr.bf16.gmra.mxu0 %v2294
      %v2458 = vpop.f32.mrf.mxu0
      %v2459 = vadd.f32 0.0, %v2458
      %v2460 = vpop.f32.mrf.mxu0
      %v2461 = vpop.f32.mrf.mxu0
      %v2462 = vadd.f32 0.0, %v2461
      %v2463 = vpop.f32.mrf.mxu0
      %2464 = vmatprep.mubr.bf16.mxu0 0
      %2465 = vmatmul.mubr.bf16.gmra.mxu0 %v2295
      %v2466 = vpop.f32.mrf.mxu0
      %v2467 = vadd.f32 0.0, %v2466
      %v2468 = vpop.f32.mrf.mxu0
      %v2469 = vpop.f32.mrf.mxu0
      %v2470 = vadd.f32 0.0, %v2469
      %v2471 = vpop.f32.mrf.mxu0
      %2472 = vmatprep.mubr.bf16.mxu0 0
      %2473 = vmatmul.mubr.bf16.gmra.mxu0 %v2296
      %v2474 = vpop.f32.mrf.mxu0
      %v2475 = vadd.f32 0.0, %v2474
      %v2476 = vpop.f32.mrf.mxu0
      %v2477 = vpop.f32.mrf.mxu0
      %v2478 = vadd.f32 0.0, %v2477
      %v2479 = vpop.f32.mrf.mxu0
      %2480 = vmatprep.mubr.bf16.mxu0 0
      %2481 = vmatmul.mubr.bf16.gmra.mxu0 %v2297
      %v2482 = vpop.f32.mrf.mxu0
      %v2483 = vadd.f32 0.0, %v2482
      %v2484 = vpop.f32.mrf.mxu0
      %v2485 = vpop.f32.mrf.mxu0
      %v2486 = vadd.f32 0.0, %v2485
      %v2487 = vpop.f32.mrf.mxu0
      %2488 = vmatprep.mubr.bf16.mxu0 0
      %2489 = vmatmul.mubr.bf16.gmra.mxu0 %v2298
      %v2490 = vpop.f32.mrf.mxu0
      %v2491 = vadd.f32 0.0, %v2490
      %v2492 = vpop.f32.mrf.mxu0
      %v2493 = vpop.f32.mrf.mxu0
      %v2494 = vadd.f32 0.0, %v2493
      %v2495 = vpop.f32.mrf.mxu0
      %2496 = vmatprep.mubr.bf16.mxu0 0
      %2497 = vmatmul.mubr.bf16.gmra.mxu0 %v2299
      %v2498 = vpop.f32.mrf.mxu0
      %v2499 = vadd.f32 0.0, %v2498
      %v2500 = vpop.f32.mrf.mxu0
      %v2501 = vpop.f32.mrf.mxu0
      %v2502 = vadd.f32 0.0, %v2501
      %v2503 = vpop.f32.mrf.mxu0
      %2504 = vmatprep.mubr.bf16.mxu0 0
      %2505 = vmatmul.mubr.bf16.gmra.mxu0 %v2300
      %v2506 = vpop.f32.mrf.mxu0
      %v2507 = vadd.f32 0.0, %v2506
      %v2508 = vpop.f32.mrf.mxu0
      %v2509 = vpop.f32.mrf.mxu0
      %v2510 = vadd.f32 0.0, %v2509
      %v2511 = vpop.f32.mrf.mxu0
      %2512 = vmatprep.mubr.bf16.mxu0 0
      %2513 = vmatmul.mubr.bf16.gmra.mxu0 %v2301
      %v2514 = vpop.f32.mrf.mxu0
      %v2515 = vadd.f32 0.0, %v2514
      %v2516 = vpop.f32.mrf.mxu0
      %v2517 = vpop.f32.mrf.mxu0
      %v2518 = vadd.f32 0.0, %v2517
      %v2519 = vpop.f32.mrf.mxu0
      %2520 = vmatprep.mubr.bf16.mxu0 0
      %2521 = vmatmul.mubr.bf16.gmra.mxu0 %v2302
      %v2522 = vpop.f32.mrf.mxu0
      %v2523 = vadd.f32 0.0, %v2522
      %v2524 = vpop.f32.mrf.mxu0
      %v2525 = vpop.f32.mrf.mxu0
      %v2526 = vadd.f32 0.0, %v2525
      %v2527 = vpop.f32.mrf.mxu0
      %2528 = vdwg.mxu0
      %v2529 = vadd.f32 %v2222, %v2403
      %v2530 = vadd.f32 %v2223, %v2406
      %v2531 = vadd.f32 %v2224, %v2411
      %v2532 = vadd.f32 %v2225, %v2414
      %v2533 = vadd.f32 %v2226, %v2419
      %v2534 = vadd.f32 %v2227, %v2422
      %v2535 = vadd.f32 %v2228, %v2427
      %v2536 = vadd.f32 %v2229, %v2430
      %v2537 = vadd.f32 %v2230, %v2435
      %v2538 = vadd.f32 %v2231, %v2438
      %v2539 = vadd.f32 %v2232, %v2443
      %v2540 = vadd.f32 %v2233, %v2446
      %v2541 = vadd.f32 %v2234, %v2451
      %v2542 = vadd.f32 %v2235, %v2454
      %v2543 = vadd.f32 %v2236, %v2459
      %v2544 = vadd.f32 %v2237, %v2462
      %v2545 = vadd.f32 %v2238, %v2467
      %v2546 = vadd.f32 %v2239, %v2470
      %v2547 = vadd.f32 %v2240, %v2475
      %v2548 = vadd.f32 %v2241, %v2478
      %v2549 = vadd.f32 %v2242, %v2483
      %v2550 = vadd.f32 %v2243, %v2486
      %v2551 = vadd.f32 %v2244, %v2491
      %v2552 = vadd.f32 %v2245, %v2494
      %v2553 = vadd.f32 %v2246, %v2499
      %v2554 = vadd.f32 %v2247, %v2502
      %v2555 = vadd.f32 %v2248, %v2507
      %v2556 = vadd.f32 %v2249, %v2510
      %v2557 = vadd.f32 %v2250, %v2515
      %v2558 = vadd.f32 %v2251, %v2518
      %v2559 = vadd.f32 %v2252, %v2523
      %v2560 = vadd.f32 %v2253, %v2526
      %v2561 = vld [vmem:[%s2254 + $0x1] sm:$0xff]
      %v2562 = vld [vmem:[%s2254 + $0x9] sm:$0xff]
      %v2563 = vld [vmem:[%s2254 + $0x19] sm:$0xff]
      %v2564 = vld [vmem:[%s2254 + $0x21] sm:$0xff]
      %v2565 = vld [vmem:[%s2254 + $0x31] sm:$0xff]
      %v2566 = vld [vmem:[%s2254 + $0x39] sm:$0xff]
      %v2567 = vld [vmem:[%s2254 + $0x49] sm:$0xff]
      %v2568 = vld [vmem:[%s2254 + $0x51] sm:$0xff]
      %v2569 = vld [vmem:[%s2254 + $0x61] sm:$0xff]
      %v2570 = vld [vmem:[%s2254 + $0x69] sm:$0xff]
      %v2571 = vld [vmem:[%s2254 + $0x79] sm:$0xff]
      %v2572 = vld [vmem:[%s2254 + $0x81] sm:$0xff]
      %v2573 = vld [vmem:[%s2254 + $0x91] sm:$0xff]
      %v2574 = vld [vmem:[%s2254 + $0x99] sm:$0xff]
      %v2575 = vld [vmem:[%s2254 + $0xa9] sm:$0xff]
      %v2576 = vld [vmem:[%s2254 + $0xb1] sm:$0xff]
      %v2577 = vld [vmem:[%s2254 + $0xc1] sm:$0xff]
      %v2578 = vld [vmem:[%s2254 + $0xc9] sm:$0xff]
      %v2579 = vld [vmem:[%s2254 + $0xd9] sm:$0xff]
      %v2580 = vld [vmem:[%s2254 + $0xe1] sm:$0xff]
      %v2581 = vld [vmem:[%s2254 + $0xf1] sm:$0xff]
      %v2582 = vld [vmem:[%s2254 + $0xf9] sm:$0xff]
      %v2583 = vld [vmem:[%s2254 + $0x109] sm:$0xff]
      %v2584 = vld [vmem:[%s2254 + $0x111] sm:$0xff]
      %v2585 = vld [vmem:[%s2254 + $0x121] sm:$0xff]
      %v2586 = vld [vmem:[%s2254 + $0x129] sm:$0xff]
      %v2587 = vld [vmem:[%s2254 + $0x139] sm:$0xff]
      %v2588 = vld [vmem:[%s2254 + $0x141] sm:$0xff]
      %v2589 = vld [vmem:[%s2254 + $0x151] sm:$0xff]
      %v2590 = vld [vmem:[%s2254 + $0x159] sm:$0xff]
      %v2591 = vld [vmem:[%s2254 + $0x169] sm:$0xff]
      %v2592 = vld [vmem:[%s2254 + $0x171] sm:$0xff]
      %v2593 = vpack.c.bf16 %v2562, %v2561
      %v2594 = vpack.c.bf16 %v2564, %v2563
      %v2595 = vpack.c.bf16 %v2566, %v2565
      %v2596 = vpack.c.bf16 %v2568, %v2567
      %v2597 = vpack.c.bf16 %v2570, %v2569
      %v2598 = vpack.c.bf16 %v2572, %v2571
      %v2599 = vpack.c.bf16 %v2574, %v2573
      %v2600 = vpack.c.bf16 %v2576, %v2575
      %v2601 = vpack.c.bf16 %v2578, %v2577
      %v2602 = vpack.c.bf16 %v2580, %v2579
      %v2603 = vpack.c.bf16 %v2582, %v2581
      %v2604 = vpack.c.bf16 %v2584, %v2583
      %v2605 = vpack.c.bf16 %v2586, %v2585
      %v2606 = vpack.c.bf16 %v2588, %v2587
      %v2607 = vpack.c.bf16 %v2590, %v2589
      %v2608 = vpack.c.bf16 %v2592, %v2591
      %s2609 = scalar_lea.vmem %s3, 448
      %v2610 = vld [vmem:[%s2609] sm:$0xf]
      %v2611 = vld [vmem:[%s2609 + $0x4] sm:$0xf]
      %v2612 = vld [vmem:[%s2609 + $0x8] sm:$0xf]
      %v2613 = vld [vmem:[%s2609 + $0xc] sm:$0xf]
      %v2614 = vld [vmem:[%s2609 + $0x10] sm:$0xf]
      %v2615 = vld [vmem:[%s2609 + $0x14] sm:$0xf]
      %v2616 = vld [vmem:[%s2609 + $0x18] sm:$0xf]
      %v2617 = vld [vmem:[%s2609 + $0x1c] sm:$0xf]
      %v2618 = vld [vmem:[%s2609 + $0x20] sm:$0xf]
      %v2619 = vld [vmem:[%s2609 + $0x24] sm:$0xf]
      %v2620 = vld [vmem:[%s2609 + $0x28] sm:$0xf]
      %v2621 = vld [vmem:[%s2609 + $0x2c] sm:$0xf]
      %v2622 = vld [vmem:[%s2609 + $0x30] sm:$0xf]
      %v2623 = vld [vmem:[%s2609 + $0x34] sm:$0xf]
      %v2624 = vld [vmem:[%s2609 + $0x38] sm:$0xf]
      %v2625 = vld [vmem:[%s2609 + $0x3c] sm:$0xf]
      %v2642 = vunpack.c.l.b16 %v2610
      %v2643 = vunpack.c.l.b16 %v2611
      %v2644 = vunpack.c.l.b16 %v2612
      %v2645 = vunpack.c.l.b16 %v2613
      %v2646 = vunpack.c.l.b16 %v2614
      %v2647 = vunpack.c.l.b16 %v2615
      %v2648 = vunpack.c.l.b16 %v2616
      %v2649 = vunpack.c.l.b16 %v2617
      %v2650 = vunpack.c.l.b16 %v2618
      %v2651 = vunpack.c.l.b16 %v2619
      %v2652 = vunpack.c.l.b16 %v2620
      %v2653 = vunpack.c.l.b16 %v2621
      %v2654 = vunpack.c.l.b16 %v2622
      %v2655 = vunpack.c.l.b16 %v2623
      %v2656 = vunpack.c.l.b16 %v2624
      %v2657 = vunpack.c.l.b16 %v2625
      %v2658 = vpack.c.b16 %v2643, %v2642
      %v2659 = vpack.c.b16 %v2645, %v2644
      %v2660 = vpack.c.b16 %v2647, %v2646
      %v2661 = vpack.c.b16 %v2649, %v2648
      %v2662 = vpack.c.b16 %v2651, %v2650
      %v2663 = vpack.c.b16 %v2653, %v2652
      %v2664 = vpack.c.b16 %v2655, %v2654
      %v2665 = vpack.c.b16 %v2657, %v2656
      %2674 = vmatprep.subr.bf16.mxu0 0
      %2675 = vmatpush1.bf16.msra.mxu0 %v2665
      %2676 = vmatprep.subr.bf16.mxu0 0
      %2677 = vmatpush1.bf16.msra.mxu0 %v2664
      %2678 = vmatprep.subr.bf16.mxu0 0
      %2679 = vmatpush1.bf16.msra.mxu0 %v2663
      %2680 = vmatprep.subr.bf16.mxu0 0
      %2681 = vmatpush1.bf16.msra.mxu0 %v2662
      %2682 = vmatprep.subr.bf16.mxu0 0
      %2683 = vmatpush1.bf16.msra.mxu0 %v2661
      %2684 = vmatprep.subr.bf16.mxu0 0
      %2685 = vmatpush1.bf16.msra.mxu0 %v2660
      %2686 = vmatprep.subr.bf16.mxu0 0
      %2687 = vmatpush1.bf16.msra.mxu0 %v2659
      %2688 = vmatprep.subr.bf16.mxu0 0
      %2689 = vmatpush1.bf16.msra.mxu0 %v2658
      %2690 = vmatprep.subr.bf16.mxu0 0
      %2691 = vmatpush2.bf16.msra.mxu0 0
      %2692 = vmatprep.subr.bf16.mxu0 0
      %2693 = vmatpush2.bf16.msra.mxu0 0
      %2694 = vmatprep.subr.bf16.mxu0 0
      %2695 = vmatpush2.bf16.msra.mxu0 0
      %2696 = vmatprep.subr.bf16.mxu0 0
      %2697 = vmatpush2.bf16.msra.mxu0 0
      %2698 = vmatprep.subr.bf16.mxu0 0
      %2699 = vmatpush2.bf16.msra.mxu0 0
      %2700 = vmatprep.subr.bf16.mxu0 0
      %2701 = vmatpush2.bf16.msra.mxu0 0
      %2702 = vmatprep.subr.bf16.mxu0 0
      %2703 = vmatpush2.bf16.msra.mxu0 0
      %2704 = vmatprep.subr.bf16.mxu0 0
      %2705 = vmatpush2.bf16.msra.mxu0 0
      %2706 = vmatprep.mubr.bf16.mxu0 0
      %2707 = vmatmul.mubr.bf16.gmra.mxu0 %v2593
      %v2708 = vpop.f32.mrf.mxu0
      %v2709 = vadd.f32 0.0, %v2708
      %v2710 = vpop.f32.mrf.mxu0
      %v2711 = vpop.f32.mrf.mxu0
      %v2712 = vadd.f32 0.0, %v2711
      %v2713 = vpop.f32.mrf.mxu0
      %2714 = vmatprep.mubr.bf16.mxu0 0
      %2715 = vmatmul.mubr.bf16.gmra.mxu0 %v2594
      %v2716 = vpop.f32.mrf.mxu0
      %v2717 = vadd.f32 0.0, %v2716
      %v2718 = vpop.f32.mrf.mxu0
      %v2719 = vpop.f32.mrf.mxu0
      %v2720 = vadd.f32 0.0, %v2719
      %v2721 = vpop.f32.mrf.mxu0
      %2722 = vmatprep.mubr.bf16.mxu0 0
      %2723 = vmatmul.mubr.bf16.gmra.mxu0 %v2595
      %v2724 = vpop.f32.mrf.mxu0
      %v2725 = vadd.f32 0.0, %v2724
      %v2726 = vpop.f32.mrf.mxu0
      %v2727 = vpop.f32.mrf.mxu0
      %v2728 = vadd.f32 0.0, %v2727
      %v2729 = vpop.f32.mrf.mxu0
      %2730 = vmatprep.mubr.bf16.mxu0 0
      %2731 = vmatmul.mubr.bf16.gmra.mxu0 %v2596
      %v2732 = vpop.f32.mrf.mxu0
      %v2733 = vadd.f32 0.0, %v2732
      %v2734 = vpop.f32.mrf.mxu0
      %v2735 = vpop.f32.mrf.mxu0
      %v2736 = vadd.f32 0.0, %v2735
      %v2737 = vpop.f32.mrf.mxu0
      %2738 = vmatprep.mubr.bf16.mxu0 0
      %2739 = vmatmul.mubr.bf16.gmra.mxu0 %v2597
      %v2740 = vpop.f32.mrf.mxu0
      %v2741 = vadd.f32 0.0, %v2740
      %v2742 = vpop.f32.mrf.mxu0
      %v2743 = vpop.f32.mrf.mxu0
      %v2744 = vadd.f32 0.0, %v2743
      %v2745 = vpop.f32.mrf.mxu0
      %2746 = vmatprep.mubr.bf16.mxu0 0
      %2747 = vmatmul.mubr.bf16.gmra.mxu0 %v2598
      %v2748 = vpop.f32.mrf.mxu0
      %v2749 = vadd.f32 0.0, %v2748
      %v2750 = vpop.f32.mrf.mxu0
      %v2751 = vpop.f32.mrf.mxu0
      %v2752 = vadd.f32 0.0, %v2751
      %v2753 = vpop.f32.mrf.mxu0
      %2754 = vmatprep.mubr.bf16.mxu0 0
      %2755 = vmatmul.mubr.bf16.gmra.mxu0 %v2599
      %v2756 = vpop.f32.mrf.mxu0
      %v2757 = vadd.f32 0.0, %v2756
      %v2758 = vpop.f32.mrf.mxu0
      %v2759 = vpop.f32.mrf.mxu0
      %v2760 = vadd.f32 0.0, %v2759
      %v2761 = vpop.f32.mrf.mxu0
      %2762 = vmatprep.mubr.bf16.mxu0 0
      %2763 = vmatmul.mubr.bf16.gmra.mxu0 %v2600
      %v2764 = vpop.f32.mrf.mxu0
      %v2765 = vadd.f32 0.0, %v2764
      %v2766 = vpop.f32.mrf.mxu0
      %v2767 = vpop.f32.mrf.mxu0
      %v2768 = vadd.f32 0.0, %v2767
      %v2769 = vpop.f32.mrf.mxu0
      %2770 = vmatprep.mubr.bf16.mxu0 0
      %2771 = vmatmul.mubr.bf16.gmra.mxu0 %v2601
      %v2772 = vpop.f32.mrf.mxu0
      %v2773 = vadd.f32 0.0, %v2772
      %v2774 = vpop.f32.mrf.mxu0
      %v2775 = vpop.f32.mrf.mxu0
      %v2776 = vadd.f32 0.0, %v2775
      %v2777 = vpop.f32.mrf.mxu0
      %2778 = vmatprep.mubr.bf16.mxu0 0
      %2779 = vmatmul.mubr.bf16.gmra.mxu0 %v2602
      %v2780 = vpop.f32.mrf.mxu0
      %v2781 = vadd.f32 0.0, %v2780
      %v2782 = vpop.f32.mrf.mxu0
      %v2783 = vpop.f32.mrf.mxu0
      %v2784 = vadd.f32 0.0, %v2783
      %v2785 = vpop.f32.mrf.mxu0
      %2786 = vmatprep.mubr.bf16.mxu0 0
      %2787 = vmatmul.mubr.bf16.gmra.mxu0 %v2603
      %v2788 = vpop.f32.mrf.mxu0
      %v2789 = vadd.f32 0.0, %v2788
      %v2790 = vpop.f32.mrf.mxu0
      %v2791 = vpop.f32.mrf.mxu0
      %v2792 = vadd.f32 0.0, %v2791
      %v2793 = vpop.f32.mrf.mxu0
      %2794 = vmatprep.mubr.bf16.mxu0 0
      %2795 = vmatmul.mubr.bf16.gmra.mxu0 %v2604
      %v2796 = vpop.f32.mrf.mxu0
      %v2797 = vadd.f32 0.0, %v2796
      %v2798 = vpop.f32.mrf.mxu0
      %v2799 = vpop.f32.mrf.mxu0
      %v2800 = vadd.f32 0.0, %v2799
      %v2801 = vpop.f32.mrf.mxu0
      %2802 = vmatprep.mubr.bf16.mxu0 0
      %2803 = vmatmul.mubr.bf16.gmra.mxu0 %v2605
      %v2804 = vpop.f32.mrf.mxu0
      %v2805 = vadd.f32 0.0, %v2804
      %v2806 = vpop.f32.mrf.mxu0
      %v2807 = vpop.f32.mrf.mxu0
      %v2808 = vadd.f32 0.0, %v2807
      %v2809 = vpop.f32.mrf.mxu0
      %2810 = vmatprep.mubr.bf16.mxu0 0
      %2811 = vmatmul.mubr.bf16.gmra.mxu0 %v2606
      %v2812 = vpop.f32.mrf.mxu0
      %v2813 = vadd.f32 0.0, %v2812
      %v2814 = vpop.f32.mrf.mxu0
      %v2815 = vpop.f32.mrf.mxu0
      %v2816 = vadd.f32 0.0, %v2815
      %v2817 = vpop.f32.mrf.mxu0
      %2818 = vmatprep.mubr.bf16.mxu0 0
      %2819 = vmatmul.mubr.bf16.gmra.mxu0 %v2607
      %v2820 = vpop.f32.mrf.mxu0
      %v2821 = vadd.f32 0.0, %v2820
      %v2822 = vpop.f32.mrf.mxu0
      %v2823 = vpop.f32.mrf.mxu0
      %v2824 = vadd.f32 0.0, %v2823
      %v2825 = vpop.f32.mrf.mxu0
      %2826 = vmatprep.mubr.bf16.mxu0 0
      %2827 = vmatmul.mubr.bf16.gmra.mxu0 %v2608
      %v2828 = vpop.f32.mrf.mxu0
      %v2829 = vadd.f32 0.0, %v2828
      %v2830 = vpop.f32.mrf.mxu0
      %v2831 = vpop.f32.mrf.mxu0
      %v2832 = vadd.f32 0.0, %v2831
      %v2833 = vpop.f32.mrf.mxu0
      %2834 = vdwg.mxu0
      %v2835 = vadd.f32 %v2529, %v2709
      %v2836 = vadd.f32 %v2530, %v2712
      %v2837 = vadd.f32 %v2531, %v2717
      %v2838 = vadd.f32 %v2532, %v2720
      %v2839 = vadd.f32 %v2533, %v2725
      %v2840 = vadd.f32 %v2534, %v2728
      %v2841 = vadd.f32 %v2535, %v2733
      %v2842 = vadd.f32 %v2536, %v2736
      %v2843 = vadd.f32 %v2537, %v2741
      %v2844 = vadd.f32 %v2538, %v2744
      %v2845 = vadd.f32 %v2539, %v2749
      %v2846 = vadd.f32 %v2540, %v2752
      %v2847 = vadd.f32 %v2541, %v2757
      %v2848 = vadd.f32 %v2542, %v2760
      %v2849 = vadd.f32 %v2543, %v2765
      %v2850 = vadd.f32 %v2544, %v2768
      %v2851 = vadd.f32 %v2545, %v2773
      %v2852 = vadd.f32 %v2546, %v2776
      %v2853 = vadd.f32 %v2547, %v2781
      %v2854 = vadd.f32 %v2548, %v2784
      %v2855 = vadd.f32 %v2549, %v2789
      %v2856 = vadd.f32 %v2550, %v2792
      %v2857 = vadd.f32 %v2551, %v2797
      %v2858 = vadd.f32 %v2552, %v2800
      %v2859 = vadd.f32 %v2553, %v2805
      %v2860 = vadd.f32 %v2554, %v2808
      %v2861 = vadd.f32 %v2555, %v2813
      %v2862 = vadd.f32 %v2556, %v2816
      %v2863 = vadd.f32 %v2557, %v2821
      %v2864 = vadd.f32 %v2558, %v2824
      %v2865 = vadd.f32 %v2559, %v2829
      %v2866 = vadd.f32 %v2560, %v2832
      %v2867 = vld [vmem:[%s2254 + $0x2] sm:$0xff]
      %v2868 = vld [vmem:[%s2254 + $0xa] sm:$0xff]
      %v2869 = vld [vmem:[%s2254 + $0x1a] sm:$0xff]
      %v2870 = vld [vmem:[%s2254 + $0x22] sm:$0xff]
      %v2871 = vld [vmem:[%s2254 + $0x32] sm:$0xff]
      %v2872 = vld [vmem:[%s2254 + $0x3a] sm:$0xff]
      %v2873 = vld [vmem:[%s2254 + $0x4a] sm:$0xff]
      %v2874 = vld [vmem:[%s2254 + $0x52] sm:$0xff]
      %v2875 = vld [vmem:[%s2254 + $0x62] sm:$0xff]
      %v2876 = vld [vmem:[%s2254 + $0x6a] sm:$0xff]
      %v2877 = vld [vmem:[%s2254 + $0x7a] sm:$0xff]
      %v2878 = vld [vmem:[%s2254 + $0x82] sm:$0xff]
      %v2879 = vld [vmem:[%s2254 + $0x92] sm:$0xff]
      %v2880 = vld [vmem:[%s2254 + $0x9a] sm:$0xff]
      %v2881 = vld [vmem:[%s2254 + $0xaa] sm:$0xff]
      %v2882 = vld [vmem:[%s2254 + $0xb2] sm:$0xff]
      %v2883 = vld [vmem:[%s2254 + $0xc2] sm:$0xff]
      %v2884 = vld [vmem:[%s2254 + $0xca] sm:$0xff]
      %v2885 = vld [vmem:[%s2254 + $0xda] sm:$0xff]
      %v2886 = vld [vmem:[%s2254 + $0xe2] sm:$0xff]
      %v2887 = vld [vmem:[%s2254 + $0xf2] sm:$0xff]
      %v2888 = vld [vmem:[%s2254 + $0xfa] sm:$0xff]
      %v2889 = vld [vmem:[%s2254 + $0x10a] sm:$0xff]
      %v2890 = vld [vmem:[%s2254 + $0x112] sm:$0xff]
      %v2891 = vld [vmem:[%s2254 + $0x122] sm:$0xff]
      %v2892 = vld [vmem:[%s2254 + $0x12a] sm:$0xff]
      %v2893 = vld [vmem:[%s2254 + $0x13a] sm:$0xff]
      %v2894 = vld [vmem:[%s2254 + $0x142] sm:$0xff]
      %v2895 = vld [vmem:[%s2254 + $0x152] sm:$0xff]
      %v2896 = vld [vmem:[%s2254 + $0x15a] sm:$0xff]
      %v2897 = vld [vmem:[%s2254 + $0x16a] sm:$0xff]
      %v2898 = vld [vmem:[%s2254 + $0x172] sm:$0xff]
      %v2899 = vpack.c.bf16 %v2868, %v2867
      %v2900 = vpack.c.bf16 %v2870, %v2869
      %v2901 = vpack.c.bf16 %v2872, %v2871
      %v2902 = vpack.c.bf16 %v2874, %v2873
      %v2903 = vpack.c.bf16 %v2876, %v2875
      %v2904 = vpack.c.bf16 %v2878, %v2877
      %v2905 = vpack.c.bf16 %v2880, %v2879
      %v2906 = vpack.c.bf16 %v2882, %v2881
      %v2907 = vpack.c.bf16 %v2884, %v2883
      %v2908 = vpack.c.bf16 %v2886, %v2885
      %v2909 = vpack.c.bf16 %v2888, %v2887
      %v2910 = vpack.c.bf16 %v2890, %v2889
      %v2911 = vpack.c.bf16 %v2892, %v2891
      %v2912 = vpack.c.bf16 %v2894, %v2893
      %v2913 = vpack.c.bf16 %v2896, %v2895
      %v2914 = vpack.c.bf16 %v2898, %v2897
      %s2915 = scalar_lea.vmem %s3, 512
      %v2916 = vld [vmem:[%s2915] sm:$0xf]
      %v2917 = vld [vmem:[%s2915 + $0x4] sm:$0xf]
      %v2918 = vld [vmem:[%s2915 + $0x8] sm:$0xf]
      %v2919 = vld [vmem:[%s2915 + $0xc] sm:$0xf]
      %v2920 = vld [vmem:[%s2915 + $0x10] sm:$0xf]
      %v2921 = vld [vmem:[%s2915 + $0x14] sm:$0xf]
      %v2922 = vld [vmem:[%s2915 + $0x18] sm:$0xf]
      %v2923 = vld [vmem:[%s2915 + $0x1c] sm:$0xf]
      %v2924 = vld [vmem:[%s2915 + $0x20] sm:$0xf]
      %v2925 = vld [vmem:[%s2915 + $0x24] sm:$0xf]
      %v2926 = vld [vmem:[%s2915 + $0x28] sm:$0xf]
      %v2927 = vld [vmem:[%s2915 + $0x2c] sm:$0xf]
      %v2928 = vld [vmem:[%s2915 + $0x30] sm:$0xf]
      %v2929 = vld [vmem:[%s2915 + $0x34] sm:$0xf]
      %v2930 = vld [vmem:[%s2915 + $0x38] sm:$0xf]
      %v2931 = vld [vmem:[%s2915 + $0x3c] sm:$0xf]
      %v2948 = vunpack.c.l.b16 %v2916
      %v2949 = vunpack.c.l.b16 %v2917
      %v2950 = vunpack.c.l.b16 %v2918
      %v2951 = vunpack.c.l.b16 %v2919
      %v2952 = vunpack.c.l.b16 %v2920
      %v2953 = vunpack.c.l.b16 %v2921
      %v2954 = vunpack.c.l.b16 %v2922
      %v2955 = vunpack.c.l.b16 %v2923
      %v2956 = vunpack.c.l.b16 %v2924
      %v2957 = vunpack.c.l.b16 %v2925
      %v2958 = vunpack.c.l.b16 %v2926
      %v2959 = vunpack.c.l.b16 %v2927
      %v2960 = vunpack.c.l.b16 %v2928
      %v2961 = vunpack.c.l.b16 %v2929
      %v2962 = vunpack.c.l.b16 %v2930
      %v2963 = vunpack.c.l.b16 %v2931
      %v2964 = vpack.c.b16 %v2949, %v2948
      %v2965 = vpack.c.b16 %v2951, %v2950
      %v2966 = vpack.c.b16 %v2953, %v2952
      %v2967 = vpack.c.b16 %v2955, %v2954
      %v2968 = vpack.c.b16 %v2957, %v2956
      %v2969 = vpack.c.b16 %v2959, %v2958
      %v2970 = vpack.c.b16 %v2961, %v2960
      %v2971 = vpack.c.b16 %v2963, %v2962
      %2980 = vmatprep.subr.bf16.mxu0 0
      %2981 = vmatpush1.bf16.msra.mxu0 %v2971
      %2982 = vmatprep.subr.bf16.mxu0 0
      %2983 = vmatpush1.bf16.msra.mxu0 %v2970
      %2984 = vmatprep.subr.bf16.mxu0 0
      %2985 = vmatpush1.bf16.msra.mxu0 %v2969
      %2986 = vmatprep.subr.bf16.mxu0 0
      %2987 = vmatpush1.bf16.msra.mxu0 %v2968
      %2988 = vmatprep.subr.bf16.mxu0 0
      %2989 = vmatpush1.bf16.msra.mxu0 %v2967
      %2990 = vmatprep.subr.bf16.mxu0 0
      %2991 = vmatpush1.bf16.msra.mxu0 %v2966
      %2992 = vmatprep.subr.bf16.mxu0 0
      %2993 = vmatpush1.bf16.msra.mxu0 %v2965
      %2994 = vmatprep.subr.bf16.mxu0 0
      %2995 = vmatpush1.bf16.msra.mxu0 %v2964
      %2996 = vmatprep.subr.bf16.mxu0 0
      %2997 = vmatpush2.bf16.msra.mxu0 0
      %2998 = vmatprep.subr.bf16.mxu0 0
      %2999 = vmatpush2.bf16.msra.mxu0 0
      %3000 = vmatprep.subr.bf16.mxu0 0
      %3001 = vmatpush2.bf16.msra.mxu0 0
      %3002 = vmatprep.subr.bf16.mxu0 0
      %3003 = vmatpush2.bf16.msra.mxu0 0
      %3004 = vmatprep.subr.bf16.mxu0 0
      %3005 = vmatpush2.bf16.msra.mxu0 0
      %3006 = vmatprep.subr.bf16.mxu0 0
      %3007 = vmatpush2.bf16.msra.mxu0 0
      %3008 = vmatprep.subr.bf16.mxu0 0
      %3009 = vmatpush2.bf16.msra.mxu0 0
      %3010 = vmatprep.subr.bf16.mxu0 0
      %3011 = vmatpush2.bf16.msra.mxu0 0
      %3012 = vmatprep.mubr.bf16.mxu0 0
      %3013 = vmatmul.mubr.bf16.gmra.mxu0 %v2899
      %v3014 = vpop.f32.mrf.mxu0
      %v3015 = vadd.f32 0.0, %v3014
      %v3016 = vpop.f32.mrf.mxu0
      %v3017 = vpop.f32.mrf.mxu0
      %v3018 = vadd.f32 0.0, %v3017
      %v3019 = vpop.f32.mrf.mxu0
      %3020 = vmatprep.mubr.bf16.mxu0 0
      %3021 = vmatmul.mubr.bf16.gmra.mxu0 %v2900
      %v3022 = vpop.f32.mrf.mxu0
      %v3023 = vadd.f32 0.0, %v3022
      %v3024 = vpop.f32.mrf.mxu0
      %v3025 = vpop.f32.mrf.mxu0
      %v3026 = vadd.f32 0.0, %v3025
      %v3027 = vpop.f32.mrf.mxu0
      %3028 = vmatprep.mubr.bf16.mxu0 0
      %3029 = vmatmul.mubr.bf16.gmra.mxu0 %v2901
      %v3030 = vpop.f32.mrf.mxu0
      %v3031 = vadd.f32 0.0, %v3030
      %v3032 = vpop.f32.mrf.mxu0
      %v3033 = vpop.f32.mrf.mxu0
      %v3034 = vadd.f32 0.0, %v3033
      %v3035 = vpop.f32.mrf.mxu0
      %3036 = vmatprep.mubr.bf16.mxu0 0
      %3037 = vmatmul.mubr.bf16.gmra.mxu0 %v2902
      %v3038 = vpop.f32.mrf.mxu0
      %v3039 = vadd.f32 0.0, %v3038
      %v3040 = vpop.f32.mrf.mxu0
      %v3041 = vpop.f32.mrf.mxu0
      %v3042 = vadd.f32 0.0, %v3041
      %v3043 = vpop.f32.mrf.mxu0
      %3044 = vmatprep.mubr.bf16.mxu0 0
      %3045 = vmatmul.mubr.bf16.gmra.mxu0 %v2903
      %v3046 = vpop.f32.mrf.mxu0
      %v3047 = vadd.f32 0.0, %v3046
      %v3048 = vpop.f32.mrf.mxu0
      %v3049 = vpop.f32.mrf.mxu0
      %v3050 = vadd.f32 0.0, %v3049
      %v3051 = vpop.f32.mrf.mxu0
      %3052 = vmatprep.mubr.bf16.mxu0 0
      %3053 = vmatmul.mubr.bf16.gmra.mxu0 %v2904
      %v3054 = vpop.f32.mrf.mxu0
      %v3055 = vadd.f32 0.0, %v3054
      %v3056 = vpop.f32.mrf.mxu0
      %v3057 = vpop.f32.mrf.mxu0
      %v3058 = vadd.f32 0.0, %v3057
      %v3059 = vpop.f32.mrf.mxu0
      %3060 = vmatprep.mubr.bf16.mxu0 0
      %3061 = vmatmul.mubr.bf16.gmra.mxu0 %v2905
      %v3062 = vpop.f32.mrf.mxu0
      %v3063 = vadd.f32 0.0, %v3062
      %v3064 = vpop.f32.mrf.mxu0
      %v3065 = vpop.f32.mrf.mxu0
      %v3066 = vadd.f32 0.0, %v3065
      %v3067 = vpop.f32.mrf.mxu0
      %3068 = vmatprep.mubr.bf16.mxu0 0
      %3069 = vmatmul.mubr.bf16.gmra.mxu0 %v2906
      %v3070 = vpop.f32.mrf.mxu0
      %v3071 = vadd.f32 0.0, %v3070
      %v3072 = vpop.f32.mrf.mxu0
      %v3073 = vpop.f32.mrf.mxu0
      %v3074 = vadd.f32 0.0, %v3073
      %v3075 = vpop.f32.mrf.mxu0
      %3076 = vmatprep.mubr.bf16.mxu0 0
      %3077 = vmatmul.mubr.bf16.gmra.mxu0 %v2907
      %v3078 = vpop.f32.mrf.mxu0
      %v3079 = vadd.f32 0.0, %v3078
      %v3080 = vpop.f32.mrf.mxu0
      %v3081 = vpop.f32.mrf.mxu0
      %v3082 = vadd.f32 0.0, %v3081
      %v3083 = vpop.f32.mrf.mxu0
      %3084 = vmatprep.mubr.bf16.mxu0 0
      %3085 = vmatmul.mubr.bf16.gmra.mxu0 %v2908
      %v3086 = vpop.f32.mrf.mxu0
      %v3087 = vadd.f32 0.0, %v3086
      %v3088 = vpop.f32.mrf.mxu0
      %v3089 = vpop.f32.mrf.mxu0
      %v3090 = vadd.f32 0.0, %v3089
      %v3091 = vpop.f32.mrf.mxu0
      %3092 = vmatprep.mubr.bf16.mxu0 0
      %3093 = vmatmul.mubr.bf16.gmra.mxu0 %v2909
      %v3094 = vpop.f32.mrf.mxu0
      %v3095 = vadd.f32 0.0, %v3094
      %v3096 = vpop.f32.mrf.mxu0
      %v3097 = vpop.f32.mrf.mxu0
      %v3098 = vadd.f32 0.0, %v3097
      %v3099 = vpop.f32.mrf.mxu0
      %3100 = vmatprep.mubr.bf16.mxu0 0
      %3101 = vmatmul.mubr.bf16.gmra.mxu0 %v2910
      %v3102 = vpop.f32.mrf.mxu0
      %v3103 = vadd.f32 0.0, %v3102
      %v3104 = vpop.f32.mrf.mxu0
      %v3105 = vpop.f32.mrf.mxu0
      %v3106 = vadd.f32 0.0, %v3105
      %v3107 = vpop.f32.mrf.mxu0
      %3108 = vmatprep.mubr.bf16.mxu0 0
      %3109 = vmatmul.mubr.bf16.gmra.mxu0 %v2911
      %v3110 = vpop.f32.mrf.mxu0
      %v3111 = vadd.f32 0.0, %v3110
      %v3112 = vpop.f32.mrf.mxu0
      %v3113 = vpop.f32.mrf.mxu0
      %v3114 = vadd.f32 0.0, %v3113
      %v3115 = vpop.f32.mrf.mxu0
      %3116 = vmatprep.mubr.bf16.mxu0 0
      %3117 = vmatmul.mubr.bf16.gmra.mxu0 %v2912
      %v3118 = vpop.f32.mrf.mxu0
      %v3119 = vadd.f32 0.0, %v3118
      %v3120 = vpop.f32.mrf.mxu0
      %v3121 = vpop.f32.mrf.mxu0
      %v3122 = vadd.f32 0.0, %v3121
      %v3123 = vpop.f32.mrf.mxu0
      %3124 = vmatprep.mubr.bf16.mxu0 0
      %3125 = vmatmul.mubr.bf16.gmra.mxu0 %v2913
      %v3126 = vpop.f32.mrf.mxu0
      %v3127 = vadd.f32 0.0, %v3126
      %v3128 = vpop.f32.mrf.mxu0
      %v3129 = vpop.f32.mrf.mxu0
      %v3130 = vadd.f32 0.0, %v3129
      %v3131 = vpop.f32.mrf.mxu0
      %3132 = vmatprep.mubr.bf16.mxu0 0
      %3133 = vmatmul.mubr.bf16.gmra.mxu0 %v2914
      %v3134 = vpop.f32.mrf.mxu0
      %v3135 = vadd.f32 0.0, %v3134
      %v3136 = vpop.f32.mrf.mxu0
      %v3137 = vpop.f32.mrf.mxu0
      %v3138 = vadd.f32 0.0, %v3137
      %v3139 = vpop.f32.mrf.mxu0
      %3140 = vdwg.mxu0
      %v3141 = vadd.f32 %v2835, %v3015
      %v3142 = vadd.f32 %v2836, %v3018
      %v3143 = vadd.f32 %v2837, %v3023
      %v3144 = vadd.f32 %v2838, %v3026
      %v3145 = vadd.f32 %v2839, %v3031
      %v3146 = vadd.f32 %v2840, %v3034
      %v3147 = vadd.f32 %v2841, %v3039
      %v3148 = vadd.f32 %v2842, %v3042
      %v3149 = vadd.f32 %v2843, %v3047
      %v3150 = vadd.f32 %v2844, %v3050
      %v3151 = vadd.f32 %v2845, %v3055
      %v3152 = vadd.f32 %v2846, %v3058
      %v3153 = vadd.f32 %v2847, %v3063
      %v3154 = vadd.f32 %v2848, %v3066
      %v3155 = vadd.f32 %v2849, %v3071
      %v3156 = vadd.f32 %v2850, %v3074
      %v3157 = vadd.f32 %v2851, %v3079
      %v3158 = vadd.f32 %v2852, %v3082
      %v3159 = vadd.f32 %v2853, %v3087
      %v3160 = vadd.f32 %v2854, %v3090
      %v3161 = vadd.f32 %v2855, %v3095
      %v3162 = vadd.f32 %v2856, %v3098
      %v3163 = vadd.f32 %v2857, %v3103
      %v3164 = vadd.f32 %v2858, %v3106
      %v3165 = vadd.f32 %v2859, %v3111
      %v3166 = vadd.f32 %v2860, %v3114
      %v3167 = vadd.f32 %v2861, %v3119
      %v3168 = vadd.f32 %v2862, %v3122
      %v3169 = vadd.f32 %v2863, %v3127
      %v3170 = vadd.f32 %v2864, %v3130
      %v3171 = vadd.f32 %v2865, %v3135
      %v3172 = vadd.f32 %v2866, %v3138
      %3173 = vst [vmem:[%s246] sm:$0xff] %v3141
      %3174 = vst [vmem:[%s246 + $0x8] sm:$0xff] %v3142
      %3175 = vst [vmem:[%s246 + $0x10] sm:$0xff] %v3143
      %3176 = vst [vmem:[%s246 + $0x18] sm:$0xff] %v3144
      %3177 = vst [vmem:[%s246 + $0x20] sm:$0xff] %v3145
      %3178 = vst [vmem:[%s246 + $0x28] sm:$0xff] %v3146
      %3179 = vst [vmem:[%s246 + $0x30] sm:$0xff] %v3147
      %3180 = vst [vmem:[%s246 + $0x38] sm:$0xff] %v3148
      %3181 = vst [vmem:[%s246 + $0x40] sm:$0xff] %v3149
      %3182 = vst [vmem:[%s246 + $0x48] sm:$0xff] %v3150
      %3183 = vst [vmem:[%s246 + $0x50] sm:$0xff] %v3151
      %3184 = vst [vmem:[%s246 + $0x58] sm:$0xff] %v3152
      %3185 = vst [vmem:[%s246 + $0x60] sm:$0xff] %v3153
      %3186 = vst [vmem:[%s246 + $0x68] sm:$0xff] %v3154
      %3187 = vst [vmem:[%s246 + $0x70] sm:$0xff] %v3155
      %3188 = vst [vmem:[%s246 + $0x78] sm:$0xff] %v3156
      %3189 = vst [vmem:[%s246 + $0x80] sm:$0xff] %v3157
      %3190 = vst [vmem:[%s246 + $0x88] sm:$0xff] %v3158
      %3191 = vst [vmem:[%s246 + $0x90] sm:$0xff] %v3159
      %3192 = vst [vmem:[%s246 + $0x98] sm:$0xff] %v3160
      %3193 = vst [vmem:[%s246 + $0xa0] sm:$0xff] %v3161
      %3194 = vst [vmem:[%s246 + $0xa8] sm:$0xff] %v3162
      %3195 = vst [vmem:[%s246 + $0xb0] sm:$0xff] %v3163
      %3196 = vst [vmem:[%s246 + $0xb8] sm:$0xff] %v3164
      %3197 = vst [vmem:[%s246 + $0xc0] sm:$0xff] %v3165
      %3198 = vst [vmem:[%s246 + $0xc8] sm:$0xff] %v3166
      %3199 = vst [vmem:[%s246 + $0xd0] sm:$0xff] %v3167
      %3200 = vst [vmem:[%s246 + $0xd8] sm:$0xff] %v3168
      %3201 = vst [vmem:[%s246 + $0xe0] sm:$0xff] %v3169
      %3202 = vst [vmem:[%s246 + $0xe8] sm:$0xff] %v3170
      %3203 = vst [vmem:[%s246 + $0xf0] sm:$0xff] %v3171
      %3204 = vst [vmem:[%s246 + $0xf8] sm:$0xff] %v3172
      %v3205 = vld [vmem:[%s5] sm:$0x1]
      %v3206 = vadd.f32 %v3141, %v3142
      %v3207 = vadd.f32 %v3206, %v3143
      %v3208 = vadd.f32 %v3207, %v3144
      %v3209 = vadd.f32 %v3208, %v3145
      %v3210 = vadd.f32 %v3209, %v3146
      %v3211 = vadd.f32 %v3210, %v3147
      %v3212 = vadd.f32 %v3211, %v3148
      %v3213 = vadd.f32 %v3212, %v3149
      %v3214 = vadd.f32 %v3213, %v3150
      %v3215 = vadd.f32 %v3214, %v3151
      %v3216 = vadd.f32 %v3215, %v3152
      %v3217 = vadd.f32 %v3216, %v3153
      %v3218 = vadd.f32 %v3217, %v3154
      %v3219 = vadd.f32 %v3218, %v3155
      %v3220 = vadd.f32 %v3219, %v3156
      %v3221 = vadd.f32 %v3220, %v3157
      %v3222 = vadd.f32 %v3221, %v3158
      %v3223 = vadd.f32 %v3222, %v3159
      %v3224 = vadd.f32 %v3223, %v3160
      %v3225 = vadd.f32 %v3224, %v3161
      %v3226 = vadd.f32 %v3225, %v3162
      %v3227 = vadd.f32 %v3226, %v3163
      %v3228 = vadd.f32 %v3227, %v3164
      %v3229 = vadd.f32 %v3228, %v3165
      %v3230 = vadd.f32 %v3229, %v3166
      %v3231 = vadd.f32 %v3230, %v3167
      %v3232 = vadd.f32 %v3231, %v3168
      %v3233 = vadd.f32 %v3232, %v3169
      %v3234 = vadd.f32 %v3233, %v3170
      %v3235 = vadd.f32 %v3234, %v3171
      %v3236 = vadd.f32 %v3235, %v3172
      %v3237 = vrot.slane %v3236, 4
      %v3238 = vadd.f32 %v3236, %v3237
      %v3239 = vrot.slane %v3238, 2
      %v3240 = vadd.f32 %v3238, %v3239
      %v3241 = vrot.slane %v3240, 1
      %v3242 = vadd.f32 %v3240, %v3241
      %v3243 = vadd.f32 %v3205, %v3242
      %3244 = vst [vmem:[%s5] sm:$0x1] %v3243
      %v3245 = vld [vmem:[%s6] sm:$0x1]
      %v3246 = vmul.f32 %v3141, %v3141
      %v3247 = vmul.f32 %v3142, %v3142
      %v3248 = vmul.f32 %v3143, %v3143
      %v3249 = vmul.f32 %v3144, %v3144
      %v3250 = vmul.f32 %v3145, %v3145
      %v3251 = vmul.f32 %v3146, %v3146
      %v3252 = vmul.f32 %v3147, %v3147
      %v3253 = vmul.f32 %v3148, %v3148
      %v3254 = vmul.f32 %v3149, %v3149
      %v3255 = vmul.f32 %v3150, %v3150
      %v3256 = vmul.f32 %v3151, %v3151
      %v3257 = vmul.f32 %v3152, %v3152
      %v3258 = vmul.f32 %v3153, %v3153
      %v3259 = vmul.f32 %v3154, %v3154
      %v3260 = vmul.f32 %v3155, %v3155
      %v3261 = vmul.f32 %v3156, %v3156
      %v3262 = vmul.f32 %v3157, %v3157
      %v3263 = vmul.f32 %v3158, %v3158
      %v3264 = vmul.f32 %v3159, %v3159
      %v3265 = vmul.f32 %v3160, %v3160
      %v3266 = vmul.f32 %v3161, %v3161
      %v3267 = vmul.f32 %v3162, %v3162
      %v3268 = vmul.f32 %v3163, %v3163
      %v3269 = vmul.f32 %v3164, %v3164
      %v3270 = vmul.f32 %v3165, %v3165
      %v3271 = vmul.f32 %v3166, %v3166
      %v3272 = vmul.f32 %v3167, %v3167
      %v3273 = vmul.f32 %v3168, %v3168
      %v3274 = vmul.f32 %v3169, %v3169
      %v3275 = vmul.f32 %v3170, %v3170
      %v3276 = vmul.f32 %v3171, %v3171
      %v3277 = vmul.f32 %v3172, %v3172
      %v3278 = vadd.f32 %v3246, %v3247
      %v3279 = vadd.f32 %v3278, %v3248
      %v3280 = vadd.f32 %v3279, %v3249
      %v3281 = vadd.f32 %v3280, %v3250
      %v3282 = vadd.f32 %v3281, %v3251
      %v3283 = vadd.f32 %v3282, %v3252
      %v3284 = vadd.f32 %v3283, %v3253
      %v3285 = vadd.f32 %v3284, %v3254
      %v3286 = vadd.f32 %v3285, %v3255
      %v3287 = vadd.f32 %v3286, %v3256
      %v3288 = vadd.f32 %v3287, %v3257
      %v3289 = vadd.f32 %v3288, %v3258
      %v3290 = vadd.f32 %v3289, %v3259
      %v3291 = vadd.f32 %v3290, %v3260
      %v3292 = vadd.f32 %v3291, %v3261
      %v3293 = vadd.f32 %v3292, %v3262
      %v3294 = vadd.f32 %v3293, %v3263
      %v3295 = vadd.f32 %v3294, %v3264
      %v3296 = vadd.f32 %v3295, %v3265
      %v3297 = vadd.f32 %v3296, %v3266
      %v3298 = vadd.f32 %v3297, %v3267
      %v3299 = vadd.f32 %v3298, %v3268
      %v3300 = vadd.f32 %v3299, %v3269
      %v3301 = vadd.f32 %v3300, %v3270
      %v3302 = vadd.f32 %v3301, %v3271
      %v3303 = vadd.f32 %v3302, %v3272
      %v3304 = vadd.f32 %v3303, %v3273
      %v3305 = vadd.f32 %v3304, %v3274
      %v3306 = vadd.f32 %v3305, %v3275
      %v3307 = vadd.f32 %v3306, %v3276
      %v3308 = vadd.f32 %v3307, %v3277
      %v3309 = vrot.slane %v3308, 4
      %v3310 = vadd.f32 %v3308, %v3309
      %v3311 = vrot.slane %v3310, 2
      %v3312 = vadd.f32 %v3310, %v3311
      %v3313 = vrot.slane %v3312, 1
      %v3314 = vadd.f32 %v3312, %v3313
      %v3315 = vadd.f32 %v3245, %v3314
      %3316 = vst [vmem:[%s6] sm:$0x1] %v3315
      %p3317 = scmp.lt.s32.totalorder %s18, 1
      %s3318 = scalar_select %p3317, %s18, 1
      %s3319 = smul.addr %s3318, 32
      %s3320 = smul.addr %s3319, 8
      %s3321 = scalar_lea.vmem %s4, %s3320
      // Predicated region
      $region41: #{basic_block_forward.4} parent=35 // pred_check
        %p3322 = pneg %p125
      $region42: #{basic_block_forward.4} parent=35 // pred_check_branch
        %3324 = sbr.rel (%p3322) target = $region44
      $region43: #{basic_block_forward.4} parent=35 // pred_region
        _
      $region44: #{basic_block_forward.4} parent=35 // pred_fallthru
        _
      // Predicated region
      $region45: #{basic_block_forward.4} parent=35 // pred_check
        %p3325 = pneg %p146
      $region46: #{basic_block_forward.4} parent=35 // pred_check_branch
        %3327 = sbr.rel (%p3325) target = $region48
      $region47: #{basic_block_forward.4} parent=35 // pred_region
        _
      $region48: #{basic_block_forward.4} parent=35 // pred_fallthru
        _
      // Predicated region
      $region49: #{basic_block_forward.4} parent=35 // pred_check
        %p3328 = pneg %p167
      $region50: #{basic_block_forward.4} parent=35 // pred_check_branch
        %3330 = sbr.rel (%p3328) target = $region52
      $region51: #{basic_block_forward.4} parent=35 // pred_region
        _
      $region52: #{basic_block_forward.4} parent=35 // pred_fallthru
        _
      // Predicated region
      $region53: #{basic_block_forward.4} parent=35 // pred_check
        %p3331 = pneg %p146
      $region54: #{basic_block_forward.4} parent=35 // pred_check_branch
        %3333 = sbr.rel (%p3331) target = $region56
      $region55: #{basic_block_forward.4} parent=35 // pred_region
        _
      $region56: #{basic_block_forward.4} parent=35 // pred_fallthru
        _
      // Predicated region
      $region57: #{basic_block_forward.4} parent=35 // pred_check
        %p3334 = pneg %p167
      $region58: #{basic_block_forward.4} parent=35 // pred_check_branch
        %3336 = sbr.rel (%p3334) target = $region60
      $region59: #{basic_block_forward.4} parent=35 // pred_region
        _
      $region60: #{basic_block_forward.4} parent=35 // pred_fallthru
        _
    $region36: #{basic_block_forward.4} parent=5 // pred_fallthru
      _
    %p3337 = scmp.le.s32.totalorder 2, %s13
    // Predicated region
    $region61: #{basic_block_forward.4} parent=5 // pred_check
      %p3338 = pneg %p3337
    $region62: #{basic_block_forward.4} parent=5 // pred_check_branch
      %3340 = sbr.rel (%p3338) target = $region64
    $region63: #{basic_block_forward.4} parent=5 // pred_region
      %s3341 = ssub.s32 %s13, 2
      // Predicated region
      $region65: #{basic_block_forward.4} parent=63 // pred_check
        %p3342 = pneg %p131
      $region66: #{basic_block_forward.4} parent=63 // pred_check_branch
        %3344 = sbr.rel (%p3342) target = $region68
      $region67: #{basic_block_forward.4} parent=63 // pred_region
        %p3345 = scmp.lt.s32.totalorder %s19, 1
        %s3346 = scalar_select %p3345, %s19, 1
        %s3347 = smul.addr %s3346, 32
        %s3348 = smul.addr %s3347, 8
        %s3349 = scalar_lea.vmem %s4, %s3348
      $region68: #{basic_block_forward.4} parent=63 // pred_fallthru
        _
    $region64: #{basic_block_forward.4} parent=5 // pred_fallthru
      _
  $region6: #{basic_block_forward.4} parent=0 // loop_footer
    %s17 = sadd.s32 1, %s13
  $region7: #{basic_block_forward.4} parent=0 // loop_footer_branch
    %12 = sbr.rel target = $region3
  $region8: #{basic_block_forward.4} parent=0 // loop_exit
    _

</llo_original>
